<compile_context>
chip_gen: v5e
topology: v5e:2x2
jax: 0.10.0
libtpu: 0.0.40
codegen_flags: <defaults>
</compile_context>

<pallas_src>
import jax
import jax.numpy as jnp
from jax import lax
from jax.experimental import pallas as pl
from jax.experimental.pallas import tpu as pltpu

ENC_MID = 64     # encoder mid channels (fixed by the module: Conv2d(n_channels, 64, 3))
NC_PAD = 16      # output channels padded to a bf16/f32-tile friendly row count
PAD_START = 128  # lane offset of the image interior inside the padded scratch


def _full_spec(shape):
    return pl.BlockSpec(shape, lambda b, _n=len(shape): (0,) * _n)


# ---------------------------------------------------------------------------
# fused kernel factory: encoder -> `steps` NCA updates -> head + sigmoid
# ---------------------------------------------------------------------------
def _make_fused_kernel(*, H, W, HW, hc, cx, steps):
    P = PAD_START
    f32 = jnp.float32
    bf16 = jnp.bfloat16
    # tap k = 3*dy + dx, flat-index offset of the shifted read
    offs = [((dy - 1) * W + (dx - 1), dx) for dy in range(3) for dx in range(3)]

    def kernel(x_ref, masks_ref, colmask_ref,
               e1w_ref, e1b_ref, e2w_ref, e2b_ref,
               wp1_ref, bp1_ref, wp2_ref, bp2_ref,
               wu1_ref, bu1_ref, wu2_ref, bu2_ref,
               wout_ref, bout_ref,
               o_ref, pad_ref, taps_ref):
        # per-pixel column masks handling the row-wrap of the flattened shift
        notl = colmask_ref[0:1, :]   # zero where x == 0      (for dx == 0 taps)
        notr = colmask_ref[1:2, :]   # zero where x == W - 1  (for dx == 2 taps)

        def load_tap(k, cin):
            off, dx = offs[k]
            t = pad_ref[0:cin, P + off:P + off + HW]
            if dx == 0:
                t = t * notl
            elif dx == 2:
                t = t * notr
            return t

        def stage_taps_bf16(act, cin):
            # write the activation into the zero-bordered scratch, then stage all
            # nine shifted taps (bf16) so the conv is a single K = 9*cin matmul.
            pad_ref[0:cin, P:P + HW] = act
            for k in range(9):
                taps_ref[k * cin:(k + 1) * cin, :] = load_tap(k, cin).astype(bf16)

        # zero the padded scratch (keeps the "SAME"-padding borders at zero)
        pad_ref[...] = jnp.zeros_like(pad_ref)

        # ---- encoder conv1 (Cin = n_channels): VPU broadcast-FMA path (K=1 dots
        #      would waste the MXU); weights stay f32 here.
        x0 = x_ref[0].astype(f32)                         # (cx, HW)
        pad_ref[0:cx, P:P + HW] = x0
        acc = jnp.zeros((ENC_MID, HW), f32)
        for k in range(9):
            t = load_tap(k, cx)                           # (cx, HW)
            for c in range(cx):
                wcol = e1w_ref[:, k * cx + c:k * cx + c + 1]   # (64, 1)
                acc = acc + wcol * t[c:c + 1, :]
        h1 = jnp.maximum(acc + e1b_ref[...], 0.0)         # (64, HW) f32

        # ---- encoder conv2: single (hc, 9*64) @ (9*64, HW) bf16 MXU matmul
        stage_taps_bf16(h1.astype(bf16).astype(f32) * 0.0 + h1, ENC_MID) \
            if False else stage_taps_bf16(h1, ENC_MID)
        h = jnp.dot(e2w_ref[...], taps_ref[0:9 * ENC_MID, :],
                    preferred_element_type=f32) + e2b_ref[...]
        h = jnp.maximum(h, 0.0)                           # (hc, HW) f32

        # ---- NCA steps: state stays on-chip across steps (no HBM round trips)
        for s in range(steps):
            stage_taps_bf16(h, hc)
            c1 = jnp.dot(wp1_ref[...], taps_ref[0:9 * hc, :],
                         preferred_element_type=f32) + bp1_ref[...]
            c2 = jnp.dot(wp2_ref[...], h.astype(bf16),
                         preferred_element_type=f32) + bp2_ref[...]
            # perception vector relu(cat([h, c1, c2])) staged for ONE K=3*hc matmul
            taps_ref[0:hc, :] = jnp.maximum(h, 0.0).astype(bf16)
            taps_ref[hc:2 * hc, :] = jnp.maximum(c1, 0.0).astype(bf16)
            taps_ref[2 * hc:3 * hc, :] = jnp.maximum(c2, 0.0).astype(bf16)
            z = jnp.maximum(
                jnp.dot(wu1_ref[...], taps_ref[0:3 * hc, :],
                        preferred_element_type=f32) + bu1_ref[...], 0.0)
            u = jnp.dot(wu2_ref[...], z.astype(bf16),
                        preferred_element_type=f32) + bu2_ref[...]
            m = masks_ref[0, s]                           # (1, HW), broadcast over hc
            h = h + m * u

        # ---- head (to_output 1x1 conv) + sigmoid, fused, lane-dense store
        logits = jnp.dot(wout_ref[...], h.astype(bf16),
                         preferred_element_type=f32) + bout_ref[...]
        o_ref[0] = jax.nn.sigmoid(logits)

    return kernel


# ---------------------------------------------------------------------------
# host wrapper
# ---------------------------------------------------------------------------
def _to_kernel_params(p):
    bf16 = jnp.bfloat16

    def convT(w9, dtype):              # (9, cin, cout) -> (cout, 9*cin)
        k, cin, cout = w9.shape
        return jnp.transpose(w9, (2, 0, 1)).reshape(cout, 9 * cin).astype(dtype)

    def col(b):
        return b.reshape(-1, 1).astype(jnp.float32)

    hc, nc = p['wout'].shape
    kp = {
        'enc1_w': convT(p['enc1_w'], jnp.float32),   # f32: used on the VPU path
        'enc1_b': col(p['enc1_b']),
        'enc2_w': convT(p['enc2_w'], bf16),
        'enc2_b': col(p['enc2_b']),
        'wp1': convT(p['wp1'], bf16),
        'bp1': col(p['bp1']),
        'wp2': p['wp2'].T.astype(bf16),
        'bp2': col(p['bp2']),
        'wu1': p['wu1'].T.astype(bf16),              # (128, 3*hc), [h | c1 | c2] order
        'bu1': col(p['bu1']),
        'wu2': p['wu2'].T.astype(bf16),
        'bu2': col(p['bu2']),
        'wout': jnp.zeros((NC_PAD, hc), jnp.float32).at[:nc].set(p['wout'].T).astype(bf16),
        'bout': jnp.zeros((NC_PAD, 1), jnp.float32).at[:nc, 0].set(p['bout']),
    }
    return kp


def basic_nca_forward(params, x_nchw, masks, *, steps=1, hidden_channels=16):
    B, Cx, H, W = x_nchw.shape
    hc = hidden_channels
    HW = H * W
    assert HW % 128 == 0, "demo implementation needs H*W to be a multiple of 128"
    assert W + 1 <= PAD_START and hc % 16 == 0 and hc <= ENC_MID and Cx <= ENC_MID

    nc = params['wout'].shape[1]
    kp = _to_kernel_params(params)

    x_flat = x_nchw.reshape(B, Cx, HW).astype(jnp.float32)
    m = jnp.transpose(masks.astype(jnp.float32), (1, 0, 2)).reshape(B, steps, 1, HW)
    cols = jnp.arange(HW, dtype=jnp.int32) % W
    colmask = jnp.stack([(cols != 0), (cols != W - 1)]).astype(jnp.float32)  # (2, HW)

    kernel = _make_fused_kernel(H=H, W=W, HW=HW, hc=hc, cx=Cx, steps=steps)

    pad_rows = max(ENC_MID, hc, Cx)
    tap_rows = max(9 * ENC_MID, 9 * hc, 3 * hc)

    out = pl.pallas_call(
        kernel,
        out_shape=jax.ShapeDtypeStruct((B, NC_PAD, HW), jnp.float32),
        grid_spec=pltpu.PrefetchScalarGridSpec(
            num_scalar_prefetch=0,
            grid=(B,),
            in_specs=[
                pl.BlockSpec((1, Cx, HW), lambda b: (b, 0, 0)),
                pl.BlockSpec((1, steps, 1, HW), lambda b: (b, 0, 0, 0)),
                _full_spec((2, HW)),
                _full_spec(kp['enc1_w'].shape), _full_spec(kp['enc1_b'].shape),
                _full_spec(kp['enc2_w'].shape), _full_spec(kp['enc2_b'].shape),
                _full_spec(kp['wp1'].shape), _full_spec(kp['bp1'].shape),
                _full_spec(kp['wp2'].shape), _full_spec(kp['bp2'].shape),
                _full_spec(kp['wu1'].shape), _full_spec(kp['bu1'].shape),
                _full_spec(kp['wu2'].shape), _full_spec(kp['bu2'].shape),
                _full_spec(kp['wout'].shape), _full_spec(kp['bout'].shape),
            ],
            out_specs=pl.BlockSpec((1, NC_PAD, HW), lambda b: (b, 0, 0)),
            scratch_shapes=[
                pltpu.VMEM((pad_rows, HW + 2 * PAD_START), jnp.float32),  # padded act
                pltpu.VMEM((tap_rows, HW), jnp.bfloat16),                 # staged taps
            ],
        ),
        compiler_params=pltpu.CompilerParams(dimension_semantics=("parallel",)),
    )(x_flat, m, colmask,
      kp['enc1_w'], kp['enc1_b'], kp['enc2_w'], kp['enc2_b'],
      kp['wp1'], kp['bp1'], kp['wp2'], kp['bp2'],
      kp['wu1'], kp['bu1'], kp['wu2'], kp['bu2'],
      kp['wout'], kp['bout'])

    return out[:, :nc, :].reshape(B, nc, H, W)


# ---------------------------------------------------------------------------
# synthetic parameters (canonical layout); eval-mode BN folded into the encoder
# ---------------------------------------------------------------------------
def init_params(key, hidden_channels=16, n_channels=1):
    hc = hidden_channels
    keys = iter(jax.random.split(key, 32))

    def nrm(shape, fan_in):
        return jax.random.normal(next(keys), shape, jnp.float32) / jnp.sqrt(fan_in)

    def folded_conv_bn(cin, cout):
        w = nrm((9, cin, cout), 9 * cin)
        b = 0.05 * jax.random.normal(next(keys), (cout,), jnp.float32)
        gamma = 1.0 + 0.1 * jax.random.normal(next(keys), (cout,), jnp.float32)
        beta = 0.05 * jax.random.normal(next(keys), (cout,), jnp.float32)
        mean = 0.05 * jax.random.normal(next(keys), (cout,), jnp.float32)
        var = 1.0 + 0.1 * jnp.abs(jax.random.normal(next(keys), (cout,), jnp.float32))
        scale = gamma / jnp.sqrt(var + 1e-5)
        return w * scale[None, None, :], (b - mean) * scale + beta

    p = {}
    p['enc1_w'], p['enc1_b'] = folded_conv_bn(n_channels, ENC_MID)
    p['enc2_w'], p['enc2_b'] = folded_conv_bn(ENC_MID, hc)
    p['wp1'] = nrm((9, hc, hc), 9 * hc)
    p['bp1'] = 0.05 * jax.random.normal(next(keys), (hc,), jnp.float32)
    p['wp2'] = nrm((hc, hc), hc)
    p['bp2'] = 0.05 * jax.random.normal(next(keys), (hc,), jnp.float32)
    p['wu1'] = nrm((3 * hc, 128), 3 * hc)
    p['bu1'] = 0.05 * jax.random.normal(next(keys), (128,), jnp.float32)
    p['wu2'] = nrm((128, hc), 128)
    p['bu2'] = 0.05 * jax.random.normal(next(keys), (hc,), jnp.float32)
    p['wout'] = nrm((hc, n_channels), hc)
    p['bout'] = 0.05 * jax.random.normal(next(keys), (n_channels,), jnp.float32)
    return p


# ---------------------------------------------------------------------------
# pure-JAX reference (matching bf16-input / f32-accumulation matmul math)
# ---------------------------------------------------------------------------
def ref_forward(params, x_nchw, masks, *, steps=1, hidden_channels=16):
    f32, bf16 = jnp.float32, jnp.bfloat16
    x = jnp.transpose(x_nchw, (0, 2, 3, 1)).astype(f32)   # NHWC

    def conv3(xx, w9, b, cast):
        cin, cout = w9.shape[1], w9.shape[2]
        W3 = w9.reshape(3, 3, cin, cout)
        y = lax.conv_general_dilated(
            xx.astype(cast), W3.astype(cast), (1, 1), 'SAME',
            dimension_numbers=('NHWC', 'HWIO', 'NHWC'),
            preferred_element_type=f32,
            precision=lax.Precision.HIGHEST)
        return y + b.reshape(1, 1, 1, cout)

    def dense(a, w):
        return jnp.einsum('bhwc,cd->bhwd', a.astype(bf16), w.astype(bf16),
                          preferred_element_type=f32)

    h = jax.nn.relu(conv3(x, params['enc1_w'], params['enc1_b'], f32))   # kernel's enc1 is f32 VPU
    h = jax.nn.relu(conv3(h, params['enc2_w'], params['enc2_b'], bf16))
    B, H, W, hc = h.shape
    for s in range(steps):
        c1 = conv3(h, params['wp1'], params['bp1'], bf16)
        c2 = dense(h, params['wp2']) + params['bp2'].reshape(1, 1, 1, -1)
        p = jax.nn.relu(jnp.concatenate([h, c1, c2], axis=-1))
        z = jax.nn.relu(dense(p, params['wu1']) + params['bu1'].reshape(1, 1, 1, -1))
        u = dense(z, params['wu2']) + params['bu2'].reshape(1, 1, 1, -1)
        m = masks[s].reshape(B, H, W, 1)
        h = h + m * u
    out = jax.nn.sigmoid(dense(h, params['wout']) + params['bout'].reshape(1, 1, 1, -1))
    return jnp.transpose(out, (0, 3, 1, 2))


# ---------------------------------------------------------------------------
if __name__ == "__main__":
    hidden_channels, n_channels, fire_rate, steps = 16, 1, 0.5, 2
    B, H, W = 2, 16, 16

    key = jax.random.PRNGKey(0)
    kparam, kx, km = jax.random.split(key, 3)
    params = init_params(kparam, hidden_channels, n_channels)
    x = jax.random.normal(kx, (B, n_channels, H, W), jnp.float32)

    # one Bernoulli(fire_rate) sample per pixel per step (shared across hidden
    # channels, as in the PyTorch module); channel broadcast happens in-kernel.
    masks = (jax.random.uniform(km, (steps, B, H * W)) < fire_rate).astype(jnp.float32)

    out = basic_nca_forward(params, x, masks, steps=steps,
                            hidden_channels=hidden_channels)
    out = jax.block_until_ready(out)

    ref = ref_forward(params, x, masks, steps=steps, hidden_channels=hidden_channels)
    ref = jax.block_until_ready(ref)

    assert out.shape == (B, n_channels, H, W), out.shape
    err = float(jnp.max(jnp.abs(out - ref)))
    assert err < 1e-2, f"max abs err vs reference: {err}"
    print("KERNEL_OK")
</pallas_src>

<mosaic_0001>
module attributes {stable_mosaic.version = 11 : i64} {
  func.func @kernel(%arg0: i32, %arg1: memref<1x1x256xf32, #tpu.memory_space<vmem>>, %arg2: memref<1x2x1x256xf32, #tpu.memory_space<vmem>>, %arg3: memref<2x256xf32, #tpu.memory_space<vmem>>, %arg4: memref<64x9xf32, #tpu.memory_space<vmem>>, %arg5: memref<64x1xf32, #tpu.memory_space<vmem>>, %arg6: memref<16x576xbf16, #tpu.memory_space<vmem>>, %arg7: memref<16x1xf32, #tpu.memory_space<vmem>>, %arg8: memref<16x144xbf16, #tpu.memory_space<vmem>>, %arg9: memref<16x1xf32, #tpu.memory_space<vmem>>, %arg10: memref<16x16xbf16, #tpu.memory_space<vmem>>, %arg11: memref<16x1xf32, #tpu.memory_space<vmem>>, %arg12: memref<128x48xbf16, #tpu.memory_space<vmem>>, %arg13: memref<128x1xf32, #tpu.memory_space<vmem>>, %arg14: memref<16x128xbf16, #tpu.memory_space<vmem>>, %arg15: memref<16x1xf32, #tpu.memory_space<vmem>>, %arg16: memref<16x16xbf16, #tpu.memory_space<vmem>>, %arg17: memref<16x1xf32, #tpu.memory_space<vmem>>, %arg18: memref<1x16x256xf32, #tpu.memory_space<vmem>>, %arg19: memref<64x512xf32, #tpu.memory_space<vmem>>, %arg20: memref<576x256xbf16, #tpu.memory_space<vmem>>) attributes {dimension_semantics = [#tpu.dimension_semantics<parallel>], iteration_bounds = array<i64: 2>, scalar_prefetch = 0 : i64, scratch_operands = 2 : i64, tpu.core_type = #tpu.core_type<tc>, window_params = [{transform_indices = @transform_0, window_bounds = array<i64: 1, 1, 256>}, {transform_indices = @transform_1, window_bounds = array<i64: 1, 2, 1, 256>}, {pipeline_mode = #tpu.pipeline_mode<synchronous>, transform_indices = @transform_2, window_bounds = array<i64: 2, 256>}, {pipeline_mode = #tpu.pipeline_mode<synchronous>, transform_indices = @transform_3, window_bounds = array<i64: 64, 9>}, {pipeline_mode = #tpu.pipeline_mode<synchronous>, transform_indices = @transform_4, window_bounds = array<i64: 64, 1>}, {pipeline_mode = #tpu.pipeline_mode<synchronous>, transform_indices = @transform_5, window_bounds = array<i64: 16, 576>}, {pipeline_mode = #tpu.pipeline_mode<synchronous>, transform_indices = @transform_6, window_bounds = array<i64: 16, 1>}, {pipeline_mode = #tpu.pipeline_mode<synchronous>, transform_indices = @transform_7, window_bounds = array<i64: 16, 144>}, {pipeline_mode = #tpu.pipeline_mode<synchronous>, transform_indices = @transform_8, window_bounds = array<i64: 16, 1>}, {pipeline_mode = #tpu.pipeline_mode<synchronous>, transform_indices = @transform_9, window_bounds = array<i64: 16, 16>}, {pipeline_mode = #tpu.pipeline_mode<synchronous>, transform_indices = @transform_10, window_bounds = array<i64: 16, 1>}, {pipeline_mode = #tpu.pipeline_mode<synchronous>, transform_indices = @transform_11, window_bounds = array<i64: 128, 48>}, {pipeline_mode = #tpu.pipeline_mode<synchronous>, transform_indices = @transform_12, window_bounds = array<i64: 128, 1>}, {pipeline_mode = #tpu.pipeline_mode<synchronous>, transform_indices = @transform_13, window_bounds = array<i64: 16, 128>}, {pipeline_mode = #tpu.pipeline_mode<synchronous>, transform_indices = @transform_14, window_bounds = array<i64: 16, 1>}, {pipeline_mode = #tpu.pipeline_mode<synchronous>, transform_indices = @transform_15, window_bounds = array<i64: 16, 16>}, {pipeline_mode = #tpu.pipeline_mode<synchronous>, transform_indices = @transform_16, window_bounds = array<i64: 16, 1>}, {transform_indices = @transform_17, window_bounds = array<i64: 1, 16, 256>}]} {
    %c0 = arith.constant 0 : index
    %c0_0 = arith.constant 0 : index
    %0 = vector.load %arg3[%c0, %c0_0] : memref<2x256xf32, #tpu.memory_space<vmem>>, vector<1x256xf32>
    %c1 = arith.constant 1 : index
    %c0_1 = arith.constant 0 : index
    %1 = vector.load %arg3[%c1, %c0_1] : memref<2x256xf32, #tpu.memory_space<vmem>>, vector<1x256xf32>
    %cst = arith.constant 0.000000e+00 : f32
    %2 = vector.broadcast %cst : f32 to vector<64x512xf32>
    %c0_2 = arith.constant 0 : index
    %c0_3 = arith.constant 0 : index
    %3 = vector.load %arg19[%c0_2, %c0_3] : memref<64x512xf32, #tpu.memory_space<vmem>>, vector<64x512xf32>
    tpu.vector_store %arg19[%c0_2, %c0_3], %2 {strides = array<i32>} : memref<64x512xf32, #tpu.memory_space<vmem>>, vector<64x512xf32>,
    %c0_4 = arith.constant 0 : index
    %c0_5 = arith.constant 0 : index
    %c0_6 = arith.constant 0 : index
    %4 = vector.load %arg1[%c0_4, %c0_5, %c0_6] : memref<1x1x256xf32, #tpu.memory_space<vmem>>, vector<1x1x256xf32>
    %5 = vector.shape_cast %4 : vector<1x1x256xf32> to vector<1x256xf32>
    %c0_7 = arith.constant 0 : index
    %c128 = arith.constant 128 : index
    %6 = vector.load %arg19[%c0_7, %c128] : memref<64x512xf32, #tpu.memory_space<vmem>>, vector<1x256xf32>
    tpu.vector_store %arg19[%c0_7, %c128], %5 {strides = array<i32>} : memref<64x512xf32, #tpu.memory_space<vmem>>, vector<1x256xf32>,
    %cst_8 = arith.constant 0.000000e+00 : f32
    %7 = vector.broadcast %cst_8 : f32 to vector<64x256xf32>
    %c0_9 = arith.constant 0 : index
    %c111 = arith.constant 111 : index
    %8 = vector.load %arg19[%c0_9, %c111] : memref<64x512xf32, #tpu.memory_space<vmem>>, vector<1x256xf32>
    %9 = arith.mulf %8, %0 : vector<1x256xf32>
    %c0_10 = arith.constant 0 : index
    %c0_11 = arith.constant 0 : index
    %10 = vector.load %arg4[%c0_10, %c0_11] : memref<64x9xf32, #tpu.memory_space<vmem>>, vector<64x1xf32>
    %11 = vector.broadcast %10 : vector<64x1xf32> to vector<64x256xf32>
    %12 = vector.broadcast %9 : vector<1x256xf32> to vector<64x256xf32>
    %13 = arith.mulf %11, %12 : vector<64x256xf32>
    %14 = arith.addf %7, %13 : vector<64x256xf32>
    %c0_12 = arith.constant 0 : index
    %c112 = arith.constant 112 : index
    %15 = vector.load %arg19[%c0_12, %c112] : memref<64x512xf32, #tpu.memory_space<vmem>>, vector<1x256xf32>
    %c0_13 = arith.constant 0 : index
    %c1_14 = arith.constant 1 : index
    %16 = vector.load %arg4[%c0_13, %c1_14] : memref<64x9xf32, #tpu.memory_space<vmem>>, vector<64x1xf32>
    %17 = vector.broadcast %16 : vector<64x1xf32> to vector<64x256xf32>
    %18 = vector.broadcast %15 : vector<1x256xf32> to vector<64x256xf32>
    %19 = arith.mulf %17, %18 : vector<64x256xf32>
    %20 = arith.addf %14, %19 : vector<64x256xf32>
    %c0_15 = arith.constant 0 : index
    %c113 = arith.constant 113 : index
    %21 = vector.load %arg19[%c0_15, %c113] : memref<64x512xf32, #tpu.memory_space<vmem>>, vector<1x256xf32>
    %22 = arith.mulf %21, %1 : vector<1x256xf32>
    %c0_16 = arith.constant 0 : index
    %c2 = arith.constant 2 : index
    %23 = vector.load %arg4[%c0_16, %c2] : memref<64x9xf32, #tpu.memory_space<vmem>>, vector<64x1xf32>
    %24 = vector.broadcast %23 : vector<64x1xf32> to vector<64x256xf32>
    %25 = vector.broadcast %22 : vector<1x256xf32> to vector<64x256xf32>
    %26 = arith.mulf %24, %25 : vector<64x256xf32>
    %27 = arith.addf %20, %26 : vector<64x256xf32>
    %c0_17 = arith.constant 0 : index
    %c127 = arith.constant 127 : index
    %28 = vector.load %arg19[%c0_17, %c127] : memref<64x512xf32, #tpu.memory_space<vmem>>, vector<1x256xf32>
    %29 = arith.mulf %28, %0 : vector<1x256xf32>
    %c0_18 = arith.constant 0 : index
    %c3 = arith.constant 3 : index
    %30 = vector.load %arg4[%c0_18, %c3] : memref<64x9xf32, #tpu.memory_space<vmem>>, vector<64x1xf32>
    %31 = vector.broadcast %30 : vector<64x1xf32> to vector<64x256xf32>
    %32 = vector.broadcast %29 : vector<1x256xf32> to vector<64x256xf32>
    %33 = arith.mulf %31, %32 : vector<64x256xf32>
    %34 = arith.addf %27, %33 : vector<64x256xf32>
    %c0_19 = arith.constant 0 : index
    %c128_20 = arith.constant 128 : index
    %35 = vector.load %arg19[%c0_19, %c128_20] : memref<64x512xf32, #tpu.memory_space<vmem>>, vector<1x256xf32>
    %c0_21 = arith.constant 0 : index
    %c4 = arith.constant 4 : index
    %36 = vector.load %arg4[%c0_21, %c4] : memref<64x9xf32, #tpu.memory_space<vmem>>, vector<64x1xf32>
    %37 = vector.broadcast %36 : vector<64x1xf32> to vector<64x256xf32>
    %38 = vector.broadcast %35 : vector<1x256xf32> to vector<64x256xf32>
    %39 = arith.mulf %37, %38 : vector<64x256xf32>
    %40 = arith.addf %34, %39 : vector<64x256xf32>
    %c0_22 = arith.constant 0 : index
    %c129 = arith.constant 129 : index
    %41 = vector.load %arg19[%c0_22, %c129] : memref<64x512xf32, #tpu.memory_space<vmem>>, vector<1x256xf32>
    %42 = arith.mulf %41, %1 : vector<1x256xf32>
    %c0_23 = arith.constant 0 : index
    %c5 = arith.constant 5 : index
    %43 = vector.load %arg4[%c0_23, %c5] : memref<64x9xf32, #tpu.memory_space<vmem>>, vector<64x1xf32>
    %44 = vector.broadcast %43 : vector<64x1xf32> to vector<64x256xf32>
    %45 = vector.broadcast %42 : vector<1x256xf32> to vector<64x256xf32>
    %46 = arith.mulf %44, %45 : vector<64x256xf32>
    %47 = arith.addf %40, %46 : vector<64x256xf32>
    %c0_24 = arith.constant 0 : index
    %c143 = arith.constant 143 : index
    %48 = vector.load %arg19[%c0_24, %c143] : memref<64x512xf32, #tpu.memory_space<vmem>>, vector<1x256xf32>
    %49 = arith.mulf %48, %0 : vector<1x256xf32>
    %c0_25 = arith.constant 0 : index
    %c6 = arith.constant 6 : index
    %50 = vector.load %arg4[%c0_25, %c6] : memref<64x9xf32, #tpu.memory_space<vmem>>, vector<64x1xf32>
    %51 = vector.broadcast %50 : vector<64x1xf32> to vector<64x256xf32>
    %52 = vector.broadcast %49 : vector<1x256xf32> to vector<64x256xf32>
    %53 = arith.mulf %51, %52 : vector<64x256xf32>
    %54 = arith.addf %47, %53 : vector<64x256xf32>
    %c0_26 = arith.constant 0 : index
    %c144 = arith.constant 144 : index
    %55 = vector.load %arg19[%c0_26, %c144] : memref<64x512xf32, #tpu.memory_space<vmem>>, vector<1x256xf32>
    %c0_27 = arith.constant 0 : index
    %c7 = arith.constant 7 : index
    %56 = vector.load %arg4[%c0_27, %c7] : memref<64x9xf32, #tpu.memory_space<vmem>>, vector<64x1xf32>
    %57 = vector.broadcast %56 : vector<64x1xf32> to vector<64x256xf32>
    %58 = vector.broadcast %55 : vector<1x256xf32> to vector<64x256xf32>
    %59 = arith.mulf %57, %58 : vector<64x256xf32>
    %60 = arith.addf %54, %59 : vector<64x256xf32>
    %c0_28 = arith.constant 0 : index
    %c145 = arith.constant 145 : index
    %61 = vector.load %arg19[%c0_28, %c145] : memref<64x512xf32, #tpu.memory_space<vmem>>, vector<1x256xf32>
    %62 = arith.mulf %61, %1 : vector<1x256xf32>
    %c0_29 = arith.constant 0 : index
    %c8 = arith.constant 8 : index
    %63 = vector.load %arg4[%c0_29, %c8] : memref<64x9xf32, #tpu.memory_space<vmem>>, vector<64x1xf32>
    %64 = vector.broadcast %63 : vector<64x1xf32> to vector<64x256xf32>
    %65 = vector.broadcast %62 : vector<1x256xf32> to vector<64x256xf32>
    %66 = arith.mulf %64, %65 : vector<64x256xf32>
    %67 = arith.addf %60, %66 : vector<64x256xf32>
    %c0_30 = arith.constant 0 : index
    %c0_31 = arith.constant 0 : index
    %68 = vector.load %arg5[%c0_30, %c0_31] : memref<64x1xf32, #tpu.memory_space<vmem>>, vector<64x1xf32>
    %69 = vector.broadcast %68 : vector<64x1xf32> to vector<64x256xf32>
    %70 = arith.addf %67, %69 : vector<64x256xf32>
    %cst_32 = arith.constant 0.000000e+00 : f32
    %71 = vector.broadcast %cst_32 : f32 to vector<64x256xf32>
    %72 = arith.maximumf %70, %71 : vector<64x256xf32>
    %c0_33 = arith.constant 0 : index
    %c128_34 = arith.constant 128 : index
    %73 = vector.load %arg19[%c0_33, %c128_34] : memref<64x512xf32, #tpu.memory_space<vmem>>, vector<64x256xf32>
    tpu.vector_store %arg19[%c0_33, %c128_34], %72 {strides = array<i32>} : memref<64x512xf32, #tpu.memory_space<vmem>>, vector<64x256xf32>,
    %c0_35 = arith.constant 0 : index
    %c111_36 = arith.constant 111 : index
    %74 = vector.load %arg19[%c0_35, %c111_36] : memref<64x512xf32, #tpu.memory_space<vmem>>, vector<64x256xf32>
    %75 = vector.broadcast %0 : vector<1x256xf32> to vector<64x256xf32>
    %76 = arith.mulf %74, %75 : vector<64x256xf32>
    %77 = arith.truncf %76 : vector<64x256xf32> to vector<64x256xbf16>
    %c0_37 = arith.constant 0 : index
    %c0_38 = arith.constant 0 : index
    %78 = vector.load %arg20[%c0_37, %c0_38] : memref<576x256xbf16, #tpu.memory_space<vmem>>, vector<64x256xbf16>
    tpu.vector_store %arg20[%c0_37, %c0_38], %77 {strides = array<i32>} : memref<576x256xbf16, #tpu.memory_space<vmem>>, vector<64x256xbf16>,
    %c0_39 = arith.constant 0 : index
    %c112_40 = arith.constant 112 : index
    %79 = vector.load %arg19[%c0_39, %c112_40] : memref<64x512xf32, #tpu.memory_space<vmem>>, vector<64x256xf32>
    %80 = arith.truncf %79 : vector<64x256xf32> to vector<64x256xbf16>
    %c64 = arith.constant 64 : index
    %c0_41 = arith.constant 0 : index
    %81 = vector.load %arg20[%c64, %c0_41] : memref<576x256xbf16, #tpu.memory_space<vmem>>, vector<64x256xbf16>
    tpu.vector_store %arg20[%c64, %c0_41], %80 {strides = array<i32>} : memref<576x256xbf16, #tpu.memory_space<vmem>>, vector<64x256xbf16>,
    %c0_42 = arith.constant 0 : index
    %c113_43 = arith.constant 113 : index
    %82 = vector.load %arg19[%c0_42, %c113_43] : memref<64x512xf32, #tpu.memory_space<vmem>>, vector<64x256xf32>
    %83 = vector.broadcast %1 : vector<1x256xf32> to vector<64x256xf32>
    %84 = arith.mulf %82, %83 : vector<64x256xf32>
    %85 = arith.truncf %84 : vector<64x256xf32> to vector<64x256xbf16>
    %c128_44 = arith.constant 128 : index
    %c0_45 = arith.constant 0 : index
    %86 = vector.load %arg20[%c128_44, %c0_45] : memref<576x256xbf16, #tpu.memory_space<vmem>>, vector<64x256xbf16>
    tpu.vector_store %arg20[%c128_44, %c0_45], %85 {strides = array<i32>} : memref<576x256xbf16, #tpu.memory_space<vmem>>, vector<64x256xbf16>,
    %c0_46 = arith.constant 0 : index
    %c127_47 = arith.constant 127 : index
    %87 = vector.load %arg19[%c0_46, %c127_47] : memref<64x512xf32, #tpu.memory_space<vmem>>, vector<64x256xf32>
    %88 = vector.broadcast %0 : vector<1x256xf32> to vector<64x256xf32>
    %89 = arith.mulf %87, %88 : vector<64x256xf32>
    %90 = arith.truncf %89 : vector<64x256xf32> to vector<64x256xbf16>
    %c192 = arith.constant 192 : index
    %c0_48 = arith.constant 0 : index
    %91 = vector.load %arg20[%c192, %c0_48] : memref<576x256xbf16, #tpu.memory_space<vmem>>, vector<64x256xbf16>
    tpu.vector_store %arg20[%c192, %c0_48], %90 {strides = array<i32>} : memref<576x256xbf16, #tpu.memory_space<vmem>>, vector<64x256xbf16>,
    %c0_49 = arith.constant 0 : index
    %c128_50 = arith.constant 128 : index
    %92 = vector.load %arg19[%c0_49, %c128_50] : memref<64x512xf32, #tpu.memory_space<vmem>>, vector<64x256xf32>
    %93 = arith.truncf %92 : vector<64x256xf32> to vector<64x256xbf16>
    %c256 = arith.constant 256 : index
    %c0_51 = arith.constant 0 : index
    %94 = vector.load %arg20[%c256, %c0_51] : memref<576x256xbf16, #tpu.memory_space<vmem>>, vector<64x256xbf16>
    tpu.vector_store %arg20[%c256, %c0_51], %93 {strides = array<i32>} : memref<576x256xbf16, #tpu.memory_space<vmem>>, vector<64x256xbf16>,
    %c0_52 = arith.constant 0 : index
    %c129_53 = arith.constant 129 : index
    %95 = vector.load %arg19[%c0_52, %c129_53] : memref<64x512xf32, #tpu.memory_space<vmem>>, vector<64x256xf32>
    %96 = vector.broadcast %1 : vector<1x256xf32> to vector<64x256xf32>
    %97 = arith.mulf %95, %96 : vector<64x256xf32>
    %98 = arith.truncf %97 : vector<64x256xf32> to vector<64x256xbf16>
    %c320 = arith.constant 320 : index
    %c0_54 = arith.constant 0 : index
    %99 = vector.load %arg20[%c320, %c0_54] : memref<576x256xbf16, #tpu.memory_space<vmem>>, vector<64x256xbf16>
    tpu.vector_store %arg20[%c320, %c0_54], %98 {strides = array<i32>} : memref<576x256xbf16, #tpu.memory_space<vmem>>, vector<64x256xbf16>,
    %c0_55 = arith.constant 0 : index
    %c143_56 = arith.constant 143 : index
    %100 = vector.load %arg19[%c0_55, %c143_56] : memref<64x512xf32, #tpu.memory_space<vmem>>, vector<64x256xf32>
    %101 = vector.broadcast %0 : vector<1x256xf32> to vector<64x256xf32>
    %102 = arith.mulf %100, %101 : vector<64x256xf32>
    %103 = arith.truncf %102 : vector<64x256xf32> to vector<64x256xbf16>
    %c384 = arith.constant 384 : index
    %c0_57 = arith.constant 0 : index
    %104 = vector.load %arg20[%c384, %c0_57] : memref<576x256xbf16, #tpu.memory_space<vmem>>, vector<64x256xbf16>
    tpu.vector_store %arg20[%c384, %c0_57], %103 {strides = array<i32>} : memref<576x256xbf16, #tpu.memory_space<vmem>>, vector<64x256xbf16>,
    %c0_58 = arith.constant 0 : index
    %c144_59 = arith.constant 144 : index
    %105 = vector.load %arg19[%c0_58, %c144_59] : memref<64x512xf32, #tpu.memory_space<vmem>>, vector<64x256xf32>
    %106 = arith.truncf %105 : vector<64x256xf32> to vector<64x256xbf16>
    %c448 = arith.constant 448 : index
    %c0_60 = arith.constant 0 : index
    %107 = vector.load %arg20[%c448, %c0_60] : memref<576x256xbf16, #tpu.memory_space<vmem>>, vector<64x256xbf16>
    tpu.vector_store %arg20[%c448, %c0_60], %106 {strides = array<i32>} : memref<576x256xbf16, #tpu.memory_space<vmem>>, vector<64x256xbf16>,
    %c0_61 = arith.constant 0 : index
    %c145_62 = arith.constant 145 : index
    %108 = vector.load %arg19[%c0_61, %c145_62] : memref<64x512xf32, #tpu.memory_space<vmem>>, vector<64x256xf32>
    %109 = vector.broadcast %1 : vector<1x256xf32> to vector<64x256xf32>
    %110 = arith.mulf %108, %109 : vector<64x256xf32>
    %111 = arith.truncf %110 : vector<64x256xf32> to vector<64x256xbf16>
    %c512 = arith.constant 512 : index
    %c0_63 = arith.constant 0 : index
    %112 = vector.load %arg20[%c512, %c0_63] : memref<576x256xbf16, #tpu.memory_space<vmem>>, vector<64x256xbf16>
    tpu.vector_store %arg20[%c512, %c0_63], %111 {strides = array<i32>} : memref<576x256xbf16, #tpu.memory_space<vmem>>, vector<64x256xbf16>,
    %c0_64 = arith.constant 0 : index
    %c0_65 = arith.constant 0 : index
    %113 = vector.load %arg6[%c0_64, %c0_65] : memref<16x576xbf16, #tpu.memory_space<vmem>>, vector<16x576xbf16>
    %c0_66 = arith.constant 0 : index
    %c0_67 = arith.constant 0 : index
    %114 = vector.load %arg20[%c0_66, %c0_67] : memref<576x256xbf16, #tpu.memory_space<vmem>>, vector<576x256xbf16>
    %cst_68 = arith.constant dense<0.000000e+00> : vector<16x256xf32>
    %115 = tpu.matmul %113, %114, %cst_68 {dimension_numbers = #tpu.dot_dimension_numbers<[1], [0], [0], [1], [0, 0, 1, 1], [], []>} : vector<16x576xbf16>, vector<576x256xbf16>, vector<16x256xf32> -> vector<16x256xf32>
    %c0_69 = arith.constant 0 : index
    %c0_70 = arith.constant 0 : index
    %116 = vector.load %arg7[%c0_69, %c0_70] : memref<16x1xf32, #tpu.memory_space<vmem>>, vector<16x1xf32>
    %117 = vector.broadcast %116 : vector<16x1xf32> to vector<16x256xf32>
    %118 = arith.addf %115, %117 : vector<16x256xf32>
    %cst_71 = arith.constant 0.000000e+00 : f32
    %119 = vector.broadcast %cst_71 : f32 to vector<16x256xf32>
    %120 = arith.maximumf %118, %119 : vector<16x256xf32>
    %c0_72 = arith.constant 0 : index
    %c128_73 = arith.constant 128 : index
    %121 = vector.load %arg19[%c0_72, %c128_73] : memref<64x512xf32, #tpu.memory_space<vmem>>, vector<16x256xf32>
    tpu.vector_store %arg19[%c0_72, %c128_73], %120 {strides = array<i32>} : memref<64x512xf32, #tpu.memory_space<vmem>>, vector<16x256xf32>,
    %c0_74 = arith.constant 0 : index
    %c111_75 = arith.constant 111 : index
    %122 = vector.load %arg19[%c0_74, %c111_75] : memref<64x512xf32, #tpu.memory_space<vmem>>, vector<16x256xf32>
    %123 = vector.broadcast %0 : vector<1x256xf32> to vector<16x256xf32>
    %124 = arith.mulf %122, %123 : vector<16x256xf32>
    %125 = arith.truncf %124 : vector<16x256xf32> to vector<16x256xbf16>
    %c0_76 = arith.constant 0 : index
    %c0_77 = arith.constant 0 : index
    %126 = vector.load %arg20[%c0_76, %c0_77] : memref<576x256xbf16, #tpu.memory_space<vmem>>, vector<16x256xbf16>
    tpu.vector_store %arg20[%c0_76, %c0_77], %125 {strides = array<i32>} : memref<576x256xbf16, #tpu.memory_space<vmem>>, vector<16x256xbf16>,
    %c0_78 = arith.constant 0 : index
    %c112_79 = arith.constant 112 : index
    %127 = vector.load %arg19[%c0_78, %c112_79] : memref<64x512xf32, #tpu.memory_space<vmem>>, vector<16x256xf32>
    %128 = arith.truncf %127 : vector<16x256xf32> to vector<16x256xbf16>
    %c16 = arith.constant 16 : index
    %c0_80 = arith.constant 0 : index
    %129 = vector.load %arg20[%c16, %c0_80] : memref<576x256xbf16, #tpu.memory_space<vmem>>, vector<16x256xbf16>
    tpu.vector_store %arg20[%c16, %c0_80], %128 {strides = array<i32>} : memref<576x256xbf16, #tpu.memory_space<vmem>>, vector<16x256xbf16>,
    %c0_81 = arith.constant 0 : index
    %c113_82 = arith.constant 113 : index
    %130 = vector.load %arg19[%c0_81, %c113_82] : memref<64x512xf32, #tpu.memory_space<vmem>>, vector<16x256xf32>
    %131 = vector.broadcast %1 : vector<1x256xf32> to vector<16x256xf32>
    %132 = arith.mulf %130, %131 : vector<16x256xf32>
    %133 = arith.truncf %132 : vector<16x256xf32> to vector<16x256xbf16>
    %c32 = arith.constant 32 : index
    %c0_83 = arith.constant 0 : index
    %134 = vector.load %arg20[%c32, %c0_83] : memref<576x256xbf16, #tpu.memory_space<vmem>>, vector<16x256xbf16>
    tpu.vector_store %arg20[%c32, %c0_83], %133 {strides = array<i32>} : memref<576x256xbf16, #tpu.memory_space<vmem>>, vector<16x256xbf16>,
    %c0_84 = arith.constant 0 : index
    %c127_85 = arith.constant 127 : index
    %135 = vector.load %arg19[%c0_84, %c127_85] : memref<64x512xf32, #tpu.memory_space<vmem>>, vector<16x256xf32>
    %136 = vector.broadcast %0 : vector<1x256xf32> to vector<16x256xf32>
    %137 = arith.mulf %135, %136 : vector<16x256xf32>
    %138 = arith.truncf %137 : vector<16x256xf32> to vector<16x256xbf16>
    %c48 = arith.constant 48 : index
    %c0_86 = arith.constant 0 : index
    %139 = vector.load %arg20[%c48, %c0_86] : memref<576x256xbf16, #tpu.memory_space<vmem>>, vector<16x256xbf16>
    tpu.vector_store %arg20[%c48, %c0_86], %138 {strides = array<i32>} : memref<576x256xbf16, #tpu.memory_space<vmem>>, vector<16x256xbf16>,
    %c0_87 = arith.constant 0 : index
    %c128_88 = arith.constant 128 : index
    %140 = vector.load %arg19[%c0_87, %c128_88] : memref<64x512xf32, #tpu.memory_space<vmem>>, vector<16x256xf32>
    %141 = arith.truncf %140 : vector<16x256xf32> to vector<16x256xbf16>
    %c64_89 = arith.constant 64 : index
    %c0_90 = arith.constant 0 : index
    %142 = vector.load %arg20[%c64_89, %c0_90] : memref<576x256xbf16, #tpu.memory_space<vmem>>, vector<16x256xbf16>
    tpu.vector_store %arg20[%c64_89, %c0_90], %141 {strides = array<i32>} : memref<576x256xbf16, #tpu.memory_space<vmem>>, vector<16x256xbf16>,
    %c0_91 = arith.constant 0 : index
    %c129_92 = arith.constant 129 : index
    %143 = vector.load %arg19[%c0_91, %c129_92] : memref<64x512xf32, #tpu.memory_space<vmem>>, vector<16x256xf32>
    %144 = vector.broadcast %1 : vector<1x256xf32> to vector<16x256xf32>
    %145 = arith.mulf %143, %144 : vector<16x256xf32>
    %146 = arith.truncf %145 : vector<16x256xf32> to vector<16x256xbf16>
    %c80 = arith.constant 80 : index
    %c0_93 = arith.constant 0 : index
    %147 = vector.load %arg20[%c80, %c0_93] : memref<576x256xbf16, #tpu.memory_space<vmem>>, vector<16x256xbf16>
    tpu.vector_store %arg20[%c80, %c0_93], %146 {strides = array<i32>} : memref<576x256xbf16, #tpu.memory_space<vmem>>, vector<16x256xbf16>,
    %c0_94 = arith.constant 0 : index
    %c143_95 = arith.constant 143 : index
    %148 = vector.load %arg19[%c0_94, %c143_95] : memref<64x512xf32, #tpu.memory_space<vmem>>, vector<16x256xf32>
    %149 = vector.broadcast %0 : vector<1x256xf32> to vector<16x256xf32>
    %150 = arith.mulf %148, %149 : vector<16x256xf32>
    %151 = arith.truncf %150 : vector<16x256xf32> to vector<16x256xbf16>
    %c96 = arith.constant 96 : index
    %c0_96 = arith.constant 0 : index
    %152 = vector.load %arg20[%c96, %c0_96] : memref<576x256xbf16, #tpu.memory_space<vmem>>, vector<16x256xbf16>
    tpu.vector_store %arg20[%c96, %c0_96], %151 {strides = array<i32>} : memref<576x256xbf16, #tpu.memory_space<vmem>>, vector<16x256xbf16>,
    %c0_97 = arith.constant 0 : index
    %c144_98 = arith.constant 144 : index
    %153 = vector.load %arg19[%c0_97, %c144_98] : memref<64x512xf32, #tpu.memory_space<vmem>>, vector<16x256xf32>
    %154 = arith.truncf %153 : vector<16x256xf32> to vector<16x256xbf16>
    %c112_99 = arith.constant 112 : index
    %c0_100 = arith.constant 0 : index
    %155 = vector.load %arg20[%c112_99, %c0_100] : memref<576x256xbf16, #tpu.memory_space<vmem>>, vector<16x256xbf16>
    tpu.vector_store %arg20[%c112_99, %c0_100], %154 {strides = array<i32>} : memref<576x256xbf16, #tpu.memory_space<vmem>>, vector<16x256xbf16>,
    %c0_101 = arith.constant 0 : index
    %c145_102 = arith.constant 145 : index
    %156 = vector.load %arg19[%c0_101, %c145_102] : memref<64x512xf32, #tpu.memory_space<vmem>>, vector<16x256xf32>
    %157 = vector.broadcast %1 : vector<1x256xf32> to vector<16x256xf32>
    %158 = arith.mulf %156, %157 : vector<16x256xf32>
    %159 = arith.truncf %158 : vector<16x256xf32> to vector<16x256xbf16>
    %c128_103 = arith.constant 128 : index
    %c0_104 = arith.constant 0 : index
    %160 = vector.load %arg20[%c128_103, %c0_104] : memref<576x256xbf16, #tpu.memory_space<vmem>>, vector<16x256xbf16>
    tpu.vector_store %arg20[%c128_103, %c0_104], %159 {strides = array<i32>} : memref<576x256xbf16, #tpu.memory_space<vmem>>, vector<16x256xbf16>,
    %c0_105 = arith.constant 0 : index
    %c0_106 = arith.constant 0 : index
    %161 = vector.load %arg8[%c0_105, %c0_106] : memref<16x144xbf16, #tpu.memory_space<vmem>>, vector<16x144xbf16>
    %c0_107 = arith.constant 0 : index
    %c0_108 = arith.constant 0 : index
    %162 = vector.load %arg20[%c0_107, %c0_108] : memref<576x256xbf16, #tpu.memory_space<vmem>>, vector<144x256xbf16>
    %cst_109 = arith.constant dense<0.000000e+00> : vector<16x256xf32>
    %163 = tpu.matmul %161, %162, %cst_109 {dimension_numbers = #tpu.dot_dimension_numbers<[1], [0], [0], [1], [0, 0, 1, 1], [], []>} : vector<16x144xbf16>, vector<144x256xbf16>, vector<16x256xf32> -> vector<16x256xf32>
    %c0_110 = arith.constant 0 : index
    %c0_111 = arith.constant 0 : index
    %164 = vector.load %arg9[%c0_110, %c0_111] : memref<16x1xf32, #tpu.memory_space<vmem>>, vector<16x1xf32>
    %165 = vector.broadcast %164 : vector<16x1xf32> to vector<16x256xf32>
    %166 = arith.addf %163, %165 : vector<16x256xf32>
    %c0_112 = arith.constant 0 : index
    %c0_113 = arith.constant 0 : index
    %167 = vector.load %arg10[%c0_112, %c0_113] : memref<16x16xbf16, #tpu.memory_space<vmem>>, vector<16x16xbf16>
    %168 = arith.truncf %120 : vector<16x256xf32> to vector<16x256xbf16>
    %cst_114 = arith.constant dense<0.000000e+00> : vector<16x256xf32>
    %169 = tpu.matmul %167, %168, %cst_114 {dimension_numbers = #tpu.dot_dimension_numbers<[1], [0], [0], [1], [0, 0, 1, 1], [], []>} : vector<16x16xbf16>, vector<16x256xbf16>, vector<16x256xf32> -> vector<16x256xf32>
    %c0_115 = arith.constant 0 : index
    %c0_116 = arith.constant 0 : index
    %170 = vector.load %arg11[%c0_115, %c0_116] : memref<16x1xf32, #tpu.memory_space<vmem>>, vector<16x1xf32>
    %171 = vector.broadcast %170 : vector<16x1xf32> to vector<16x256xf32>
    %172 = arith.addf %169, %171 : vector<16x256xf32>
    %cst_117 = arith.constant 0.000000e+00 : f32
    %173 = vector.broadcast %cst_117 : f32 to vector<16x256xf32>
    %174 = arith.maximumf %120, %173 : vector<16x256xf32>
    %175 = arith.truncf %174 : vector<16x256xf32> to vector<16x256xbf16>
    %c0_118 = arith.constant 0 : index
    %c0_119 = arith.constant 0 : index
    %176 = vector.load %arg20[%c0_118, %c0_119] : memref<576x256xbf16, #tpu.memory_space<vmem>>, vector<16x256xbf16>
    tpu.vector_store %arg20[%c0_118, %c0_119], %175 {strides = array<i32>} : memref<576x256xbf16, #tpu.memory_space<vmem>>, vector<16x256xbf16>,
    %cst_120 = arith.constant 0.000000e+00 : f32
    %177 = vector.broadcast %cst_120 : f32 to vector<16x256xf32>
    %178 = arith.maximumf %166, %177 : vector<16x256xf32>
    %179 = arith.truncf %178 : vector<16x256xf32> to vector<16x256xbf16>
    %c16_121 = arith.constant 16 : index
    %c0_122 = arith.constant 0 : index
    %180 = vector.load %arg20[%c16_121, %c0_122] : memref<576x256xbf16, #tpu.memory_space<vmem>>, vector<16x256xbf16>
    tpu.vector_store %arg20[%c16_121, %c0_122], %179 {strides = array<i32>} : memref<576x256xbf16, #tpu.memory_space<vmem>>, vector<16x256xbf16>,
    %cst_123 = arith.constant 0.000000e+00 : f32
    %181 = vector.broadcast %cst_123 : f32 to vector<16x256xf32>
    %182 = arith.maximumf %172, %181 : vector<16x256xf32>
    %183 = arith.truncf %182 : vector<16x256xf32> to vector<16x256xbf16>
    %c32_124 = arith.constant 32 : index
    %c0_125 = arith.constant 0 : index
    %184 = vector.load %arg20[%c32_124, %c0_125] : memref<576x256xbf16, #tpu.memory_space<vmem>>, vector<16x256xbf16>
    tpu.vector_store %arg20[%c32_124, %c0_125], %183 {strides = array<i32>} : memref<576x256xbf16, #tpu.memory_space<vmem>>, vector<16x256xbf16>,
    %c0_126 = arith.constant 0 : index
    %c0_127 = arith.constant 0 : index
    %185 = vector.load %arg12[%c0_126, %c0_127] : memref<128x48xbf16, #tpu.memory_space<vmem>>, vector<128x48xbf16>
    %c0_128 = arith.constant 0 : index
    %c0_129 = arith.constant 0 : index
    %186 = vector.load %arg20[%c0_128, %c0_129] : memref<576x256xbf16, #tpu.memory_space<vmem>>, vector<48x256xbf16>
    %cst_130 = arith.constant dense<0.000000e+00> : vector<128x256xf32>
    %187 = tpu.matmul %185, %186, %cst_130 {dimension_numbers = #tpu.dot_dimension_numbers<[1], [0], [0], [1], [0, 0, 1, 1], [], []>} : vector<128x48xbf16>, vector<48x256xbf16>, vector<128x256xf32> -> vector<128x256xf32>
    %c0_131 = arith.constant 0 : index
    %c0_132 = arith.constant 0 : index
    %188 = vector.load %arg13[%c0_131, %c0_132] : memref<128x1xf32, #tpu.memory_space<vmem>>, vector<128x1xf32>
    %189 = vector.broadcast %188 : vector<128x1xf32> to vector<128x256xf32>
    %190 = arith.addf %187, %189 : vector<128x256xf32>
    %cst_133 = arith.constant 0.000000e+00 : f32
    %191 = vector.broadcast %cst_133 : f32 to vector<128x256xf32>
    %192 = arith.maximumf %190, %191 : vector<128x256xf32>
    %c0_134 = arith.constant 0 : index
    %c0_135 = arith.constant 0 : index
    %193 = vector.load %arg14[%c0_134, %c0_135] : memref<16x128xbf16, #tpu.memory_space<vmem>>, vector<16x128xbf16>
    %194 = arith.truncf %192 : vector<128x256xf32> to vector<128x256xbf16>
    %cst_136 = arith.constant dense<0.000000e+00> : vector<16x256xf32>
    %195 = tpu.matmul %193, %194, %cst_136 {dimension_numbers = #tpu.dot_dimension_numbers<[1], [0], [0], [1], [0, 0, 1, 1], [], []>} : vector<16x128xbf16>, vector<128x256xbf16>, vector<16x256xf32> -> vector<16x256xf32>
    %c0_137 = arith.constant 0 : index
    %c0_138 = arith.constant 0 : index
    %196 = vector.load %arg15[%c0_137, %c0_138] : memref<16x1xf32, #tpu.memory_space<vmem>>, vector<16x1xf32>
    %197 = vector.broadcast %196 : vector<16x1xf32> to vector<16x256xf32>
    %198 = arith.addf %195, %197 : vector<16x256xf32>
    %c0_139 = arith.constant 0 : index
    %c0_140 = arith.constant 0 : index
    %c0_141 = arith.constant 0 : index
    %c0_142 = arith.constant 0 : index
    %199 = vector.load %arg2[%c0_139, %c0_140, %c0_141, %c0_142] : memref<1x2x1x256xf32, #tpu.memory_space<vmem>>, vector<1x1x1x256xf32>
    %200 = vector.shape_cast %199 : vector<1x1x1x256xf32> to vector<1x256xf32>
    %201 = vector.broadcast %200 : vector<1x256xf32> to vector<16x256xf32>
    %202 = arith.mulf %201, %198 : vector<16x256xf32>
    %203 = arith.addf %120, %202 : vector<16x256xf32>
    %c0_143 = arith.constant 0 : index
    %c128_144 = arith.constant 128 : index
    %204 = vector.load %arg19[%c0_143, %c128_144] : memref<64x512xf32, #tpu.memory_space<vmem>>, vector<16x256xf32>
    tpu.vector_store %arg19[%c0_143, %c128_144], %203 {strides = array<i32>} : memref<64x512xf32, #tpu.memory_space<vmem>>, vector<16x256xf32>,
    %c0_145 = arith.constant 0 : index
    %c111_146 = arith.constant 111 : index
    %205 = vector.load %arg19[%c0_145, %c111_146] : memref<64x512xf32, #tpu.memory_space<vmem>>, vector<16x256xf32>
    %206 = vector.broadcast %0 : vector<1x256xf32> to vector<16x256xf32>
    %207 = arith.mulf %205, %206 : vector<16x256xf32>
    %208 = arith.truncf %207 : vector<16x256xf32> to vector<16x256xbf16>
    %c0_147 = arith.constant 0 : index
    %c0_148 = arith.constant 0 : index
    %209 = vector.load %arg20[%c0_147, %c0_148] : memref<576x256xbf16, #tpu.memory_space<vmem>>, vector<16x256xbf16>
    tpu.vector_store %arg20[%c0_147, %c0_148], %208 {strides = array<i32>} : memref<576x256xbf16, #tpu.memory_space<vmem>>, vector<16x256xbf16>,
    %c0_149 = arith.constant 0 : index
    %c112_150 = arith.constant 112 : index
    %210 = vector.load %arg19[%c0_149, %c112_150] : memref<64x512xf32, #tpu.memory_space<vmem>>, vector<16x256xf32>
    %211 = arith.truncf %210 : vector<16x256xf32> to vector<16x256xbf16>
    %c16_151 = arith.constant 16 : index
    %c0_152 = arith.constant 0 : index
    %212 = vector.load %arg20[%c16_151, %c0_152] : memref<576x256xbf16, #tpu.memory_space<vmem>>, vector<16x256xbf16>
    tpu.vector_store %arg20[%c16_151, %c0_152], %211 {strides = array<i32>} : memref<576x256xbf16, #tpu.memory_space<vmem>>, vector<16x256xbf16>,
    %c0_153 = arith.constant 0 : index
    %c113_154 = arith.constant 113 : index
    %213 = vector.load %arg19[%c0_153, %c113_154] : memref<64x512xf32, #tpu.memory_space<vmem>>, vector<16x256xf32>
    %214 = vector.broadcast %1 : vector<1x256xf32> to vector<16x256xf32>
    %215 = arith.mulf %213, %214 : vector<16x256xf32>
    %216 = arith.truncf %215 : vector<16x256xf32> to vector<16x256xbf16>
    %c32_155 = arith.constant 32 : index
    %c0_156 = arith.constant 0 : index
    %217 = vector.load %arg20[%c32_155, %c0_156] : memref<576x256xbf16, #tpu.memory_space<vmem>>, vector<16x256xbf16>
    tpu.vector_store %arg20[%c32_155, %c0_156], %216 {strides = array<i32>} : memref<576x256xbf16, #tpu.memory_space<vmem>>, vector<16x256xbf16>,
    %c0_157 = arith.constant 0 : index
    %c127_158 = arith.constant 127 : index
    %218 = vector.load %arg19[%c0_157, %c127_158] : memref<64x512xf32, #tpu.memory_space<vmem>>, vector<16x256xf32>
    %219 = vector.broadcast %0 : vector<1x256xf32> to vector<16x256xf32>
    %220 = arith.mulf %218, %219 : vector<16x256xf32>
    %221 = arith.truncf %220 : vector<16x256xf32> to vector<16x256xbf16>
    %c48_159 = arith.constant 48 : index
    %c0_160 = arith.constant 0 : index
    %222 = vector.load %arg20[%c48_159, %c0_160] : memref<576x256xbf16, #tpu.memory_space<vmem>>, vector<16x256xbf16>
    tpu.vector_store %arg20[%c48_159, %c0_160], %221 {strides = array<i32>} : memref<576x256xbf16, #tpu.memory_space<vmem>>, vector<16x256xbf16>,
    %c0_161 = arith.constant 0 : index
    %c128_162 = arith.constant 128 : index
    %223 = vector.load %arg19[%c0_161, %c128_162] : memref<64x512xf32, #tpu.memory_space<vmem>>, vector<16x256xf32>
    %224 = arith.truncf %223 : vector<16x256xf32> to vector<16x256xbf16>
    %c64_163 = arith.constant 64 : index
    %c0_164 = arith.constant 0 : index
    %225 = vector.load %arg20[%c64_163, %c0_164] : memref<576x256xbf16, #tpu.memory_space<vmem>>, vector<16x256xbf16>
    tpu.vector_store %arg20[%c64_163, %c0_164], %224 {strides = array<i32>} : memref<576x256xbf16, #tpu.memory_space<vmem>>, vector<16x256xbf16>,
    %c0_165 = arith.constant 0 : index
    %c129_166 = arith.constant 129 : index
    %226 = vector.load %arg19[%c0_165, %c129_166] : memref<64x512xf32, #tpu.memory_space<vmem>>, vector<16x256xf32>
    %227 = vector.broadcast %1 : vector<1x256xf32> to vector<16x256xf32>
    %228 = arith.mulf %226, %227 : vector<16x256xf32>
    %229 = arith.truncf %228 : vector<16x256xf32> to vector<16x256xbf16>
    %c80_167 = arith.constant 80 : index
    %c0_168 = arith.constant 0 : index
    %230 = vector.load %arg20[%c80_167, %c0_168] : memref<576x256xbf16, #tpu.memory_space<vmem>>, vector<16x256xbf16>
    tpu.vector_store %arg20[%c80_167, %c0_168], %229 {strides = array<i32>} : memref<576x256xbf16, #tpu.memory_space<vmem>>, vector<16x256xbf16>,
    %c0_169 = arith.constant 0 : index
    %c143_170 = arith.constant 143 : index
    %231 = vector.load %arg19[%c0_169, %c143_170] : memref<64x512xf32, #tpu.memory_space<vmem>>, vector<16x256xf32>
    %232 = vector.broadcast %0 : vector<1x256xf32> to vector<16x256xf32>
    %233 = arith.mulf %231, %232 : vector<16x256xf32>
    %234 = arith.truncf %233 : vector<16x256xf32> to vector<16x256xbf16>
    %c96_171 = arith.constant 96 : index
    %c0_172 = arith.constant 0 : index
    %235 = vector.load %arg20[%c96_171, %c0_172] : memref<576x256xbf16, #tpu.memory_space<vmem>>, vector<16x256xbf16>
    tpu.vector_store %arg20[%c96_171, %c0_172], %234 {strides = array<i32>} : memref<576x256xbf16, #tpu.memory_space<vmem>>, vector<16x256xbf16>,
    %c0_173 = arith.constant 0 : index
    %c144_174 = arith.constant 144 : index
    %236 = vector.load %arg19[%c0_173, %c144_174] : memref<64x512xf32, #tpu.memory_space<vmem>>, vector<16x256xf32>
    %237 = arith.truncf %236 : vector<16x256xf32> to vector<16x256xbf16>
    %c112_175 = arith.constant 112 : index
    %c0_176 = arith.constant 0 : index
    %238 = vector.load %arg20[%c112_175, %c0_176] : memref<576x256xbf16, #tpu.memory_space<vmem>>, vector<16x256xbf16>
    tpu.vector_store %arg20[%c112_175, %c0_176], %237 {strides = array<i32>} : memref<576x256xbf16, #tpu.memory_space<vmem>>, vector<16x256xbf16>,
    %c0_177 = arith.constant 0 : index
    %c145_178 = arith.constant 145 : index
    %239 = vector.load %arg19[%c0_177, %c145_178] : memref<64x512xf32, #tpu.memory_space<vmem>>, vector<16x256xf32>
    %240 = vector.broadcast %1 : vector<1x256xf32> to vector<16x256xf32>
    %241 = arith.mulf %239, %240 : vector<16x256xf32>
    %242 = arith.truncf %241 : vector<16x256xf32> to vector<16x256xbf16>
    %c128_179 = arith.constant 128 : index
    %c0_180 = arith.constant 0 : index
    %243 = vector.load %arg20[%c128_179, %c0_180] : memref<576x256xbf16, #tpu.memory_space<vmem>>, vector<16x256xbf16>
    tpu.vector_store %arg20[%c128_179, %c0_180], %242 {strides = array<i32>} : memref<576x256xbf16, #tpu.memory_space<vmem>>, vector<16x256xbf16>,
    %c0_181 = arith.constant 0 : index
    %c0_182 = arith.constant 0 : index
    %244 = vector.load %arg8[%c0_181, %c0_182] : memref<16x144xbf16, #tpu.memory_space<vmem>>, vector<16x144xbf16>
    %c0_183 = arith.constant 0 : index
    %c0_184 = arith.constant 0 : index
    %245 = vector.load %arg20[%c0_183, %c0_184] : memref<576x256xbf16, #tpu.memory_space<vmem>>, vector<144x256xbf16>
    %cst_185 = arith.constant dense<0.000000e+00> : vector<16x256xf32>
    %246 = tpu.matmul %244, %245, %cst_185 {dimension_numbers = #tpu.dot_dimension_numbers<[1], [0], [0], [1], [0, 0, 1, 1], [], []>} : vector<16x144xbf16>, vector<144x256xbf16>, vector<16x256xf32> -> vector<16x256xf32>
    %c0_186 = arith.constant 0 : index
    %c0_187 = arith.constant 0 : index
    %247 = vector.load %arg9[%c0_186, %c0_187] : memref<16x1xf32, #tpu.memory_space<vmem>>, vector<16x1xf32>
    %248 = vector.broadcast %247 : vector<16x1xf32> to vector<16x256xf32>
    %249 = arith.addf %246, %248 : vector<16x256xf32>
    %c0_188 = arith.constant 0 : index
    %c0_189 = arith.constant 0 : index
    %250 = vector.load %arg10[%c0_188, %c0_189] : memref<16x16xbf16, #tpu.memory_space<vmem>>, vector<16x16xbf16>
    %251 = arith.truncf %203 : vector<16x256xf32> to vector<16x256xbf16>
    %cst_190 = arith.constant dense<0.000000e+00> : vector<16x256xf32>
    %252 = tpu.matmul %250, %251, %cst_190 {dimension_numbers = #tpu.dot_dimension_numbers<[1], [0], [0], [1], [0, 0, 1, 1], [], []>} : vector<16x16xbf16>, vector<16x256xbf16>, vector<16x256xf32> -> vector<16x256xf32>
    %c0_191 = arith.constant 0 : index
    %c0_192 = arith.constant 0 : index
    %253 = vector.load %arg11[%c0_191, %c0_192] : memref<16x1xf32, #tpu.memory_space<vmem>>, vector<16x1xf32>
    %254 = vector.broadcast %253 : vector<16x1xf32> to vector<16x256xf32>
    %255 = arith.addf %252, %254 : vector<16x256xf32>
    %cst_193 = arith.constant 0.000000e+00 : f32
    %256 = vector.broadcast %cst_193 : f32 to vector<16x256xf32>
    %257 = arith.maximumf %203, %256 : vector<16x256xf32>
    %258 = arith.truncf %257 : vector<16x256xf32> to vector<16x256xbf16>
    %c0_194 = arith.constant 0 : index
    %c0_195 = arith.constant 0 : index
    %259 = vector.load %arg20[%c0_194, %c0_195] : memref<576x256xbf16, #tpu.memory_space<vmem>>, vector<16x256xbf16>
    tpu.vector_store %arg20[%c0_194, %c0_195], %258 {strides = array<i32>} : memref<576x256xbf16, #tpu.memory_space<vmem>>, vector<16x256xbf16>,
    %cst_196 = arith.constant 0.000000e+00 : f32
    %260 = vector.broadcast %cst_196 : f32 to vector<16x256xf32>
    %261 = arith.maximumf %249, %260 : vector<16x256xf32>
    %262 = arith.truncf %261 : vector<16x256xf32> to vector<16x256xbf16>
    %c16_197 = arith.constant 16 : index
    %c0_198 = arith.constant 0 : index
    %263 = vector.load %arg20[%c16_197, %c0_198] : memref<576x256xbf16, #tpu.memory_space<vmem>>, vector<16x256xbf16>
    tpu.vector_store %arg20[%c16_197, %c0_198], %262 {strides = array<i32>} : memref<576x256xbf16, #tpu.memory_space<vmem>>, vector<16x256xbf16>,
    %cst_199 = arith.constant 0.000000e+00 : f32
    %264 = vector.broadcast %cst_199 : f32 to vector<16x256xf32>
    %265 = arith.maximumf %255, %264 : vector<16x256xf32>
    %266 = arith.truncf %265 : vector<16x256xf32> to vector<16x256xbf16>
    %c32_200 = arith.constant 32 : index
    %c0_201 = arith.constant 0 : index
    %267 = vector.load %arg20[%c32_200, %c0_201] : memref<576x256xbf16, #tpu.memory_space<vmem>>, vector<16x256xbf16>
    tpu.vector_store %arg20[%c32_200, %c0_201], %266 {strides = array<i32>} : memref<576x256xbf16, #tpu.memory_space<vmem>>, vector<16x256xbf16>,
    %c0_202 = arith.constant 0 : index
    %c0_203 = arith.constant 0 : index
    %268 = vector.load %arg12[%c0_202, %c0_203] : memref<128x48xbf16, #tpu.memory_space<vmem>>, vector<128x48xbf16>
    %c0_204 = arith.constant 0 : index
    %c0_205 = arith.constant 0 : index
    %269 = vector.load %arg20[%c0_204, %c0_205] : memref<576x256xbf16, #tpu.memory_space<vmem>>, vector<48x256xbf16>
    %cst_206 = arith.constant dense<0.000000e+00> : vector<128x256xf32>
    %270 = tpu.matmul %268, %269, %cst_206 {dimension_numbers = #tpu.dot_dimension_numbers<[1], [0], [0], [1], [0, 0, 1, 1], [], []>} : vector<128x48xbf16>, vector<48x256xbf16>, vector<128x256xf32> -> vector<128x256xf32>
    %c0_207 = arith.constant 0 : index
    %c0_208 = arith.constant 0 : index
    %271 = vector.load %arg13[%c0_207, %c0_208] : memref<128x1xf32, #tpu.memory_space<vmem>>, vector<128x1xf32>
    %272 = vector.broadcast %271 : vector<128x1xf32> to vector<128x256xf32>
    %273 = arith.addf %270, %272 : vector<128x256xf32>
    %cst_209 = arith.constant 0.000000e+00 : f32
    %274 = vector.broadcast %cst_209 : f32 to vector<128x256xf32>
    %275 = arith.maximumf %273, %274 : vector<128x256xf32>
    %c0_210 = arith.constant 0 : index
    %c0_211 = arith.constant 0 : index
    %276 = vector.load %arg14[%c0_210, %c0_211] : memref<16x128xbf16, #tpu.memory_space<vmem>>, vector<16x128xbf16>
    %277 = arith.truncf %275 : vector<128x256xf32> to vector<128x256xbf16>
    %cst_212 = arith.constant dense<0.000000e+00> : vector<16x256xf32>
    %278 = tpu.matmul %276, %277, %cst_212 {dimension_numbers = #tpu.dot_dimension_numbers<[1], [0], [0], [1], [0, 0, 1, 1], [], []>} : vector<16x128xbf16>, vector<128x256xbf16>, vector<16x256xf32> -> vector<16x256xf32>
    %c0_213 = arith.constant 0 : index
    %c0_214 = arith.constant 0 : index
    %279 = vector.load %arg15[%c0_213, %c0_214] : memref<16x1xf32, #tpu.memory_space<vmem>>, vector<16x1xf32>
    %280 = vector.broadcast %279 : vector<16x1xf32> to vector<16x256xf32>
    %281 = arith.addf %278, %280 : vector<16x256xf32>
    %c0_215 = arith.constant 0 : index
    %c1_216 = arith.constant 1 : index
    %c0_217 = arith.constant 0 : index
    %c0_218 = arith.constant 0 : index
    %282 = vector.load %arg2[%c0_215, %c1_216, %c0_217, %c0_218] : memref<1x2x1x256xf32, #tpu.memory_space<vmem>>, vector<1x1x1x256xf32>
    %283 = vector.shape_cast %282 : vector<1x1x1x256xf32> to vector<1x256xf32>
    %284 = vector.broadcast %283 : vector<1x256xf32> to vector<16x256xf32>
    %285 = arith.mulf %284, %281 : vector<16x256xf32>
    %286 = arith.addf %203, %285 : vector<16x256xf32>
    %c0_219 = arith.constant 0 : index
    %c0_220 = arith.constant 0 : index
    %287 = vector.load %arg16[%c0_219, %c0_220] : memref<16x16xbf16, #tpu.memory_space<vmem>>, vector<16x16xbf16>
    %288 = arith.truncf %286 : vector<16x256xf32> to vector<16x256xbf16>
    %cst_221 = arith.constant dense<0.000000e+00> : vector<16x256xf32>
    %289 = tpu.matmul %287, %288, %cst_221 {dimension_numbers = #tpu.dot_dimension_numbers<[1], [0], [0], [1], [0, 0, 1, 1], [], []>} : vector<16x16xbf16>, vector<16x256xbf16>, vector<16x256xf32> -> vector<16x256xf32>
    %c0_222 = arith.constant 0 : index
    %c0_223 = arith.constant 0 : index
    %290 = vector.load %arg17[%c0_222, %c0_223] : memref<16x1xf32, #tpu.memory_space<vmem>>, vector<16x1xf32>
    %291 = vector.broadcast %290 : vector<16x1xf32> to vector<16x256xf32>
    %292 = arith.addf %289, %291 : vector<16x256xf32>
    %293 = arith.negf %292 : vector<16x256xf32>
    %294 = math.exp %293 : vector<16x256xf32>
    %cst_224 = arith.constant 1.000000e+00 : f32
    %295 = vector.broadcast %cst_224 : f32 to vector<16x256xf32>
    %296 = arith.addf %295, %294 : vector<16x256xf32>
    %297 = arith.divf %295, %296 : vector<16x256xf32>
    %c0_225 = arith.constant 0 : index
    %c0_226 = arith.constant 0 : index
    %c0_227 = arith.constant 0 : index
    %298 = vector.load %arg18[%c0_225, %c0_226, %c0_227] : memref<1x16x256xf32, #tpu.memory_space<vmem>>, vector<1x16x256xf32>
    %299 = vector.shape_cast %298 : vector<1x16x256xf32> to vector<16x256xf32>
    %300 = vector.shape_cast %297 : vector<16x256xf32> to vector<1x16x256xf32>
    tpu.vector_store %arg18[%c0_225, %c0_226, %c0_227], %300 {strides = array<i32>} : memref<1x16x256xf32, #tpu.memory_space<vmem>>, vector<1x16x256xf32>,
    return
  }
  func.func @transform_0(%arg0: i32) -> (i32, i32, i32) {
    %c0_i32 = arith.constant 0 : i32
    %c0_i32_0 = arith.constant 0 : i32
    %c0_i32_1 = arith.constant 0 : i32
    return %arg0, %c0_i32, %c0_i32_0 : i32, i32, i32
  }
  func.func @transform_1(%arg0: i32) -> (i32, i32, i32, i32) {
    %c0_i32 = arith.constant 0 : i32
    %c0_i32_0 = arith.constant 0 : i32
    %c0_i32_1 = arith.constant 0 : i32
    %c0_i32_2 = arith.constant 0 : i32
    return %arg0, %c0_i32, %c0_i32_0, %c0_i32_1 : i32, i32, i32, i32
  }
  func.func @transform_2(%arg0: i32) -> (i32, i32) {
    %c0_i32 = arith.constant 0 : i32
    %c0_i32_0 = arith.constant 0 : i32
    %c0_i32_1 = arith.constant 0 : i32
    return %c0_i32, %c0_i32_0 : i32, i32
  }
  func.func @transform_3(%arg0: i32) -> (i32, i32) {
    %c0_i32 = arith.constant 0 : i32
    %c0_i32_0 = arith.constant 0 : i32
    %c0_i32_1 = arith.constant 0 : i32
    return %c0_i32, %c0_i32_0 : i32, i32
  }
  func.func @transform_4(%arg0: i32) -> (i32, i32) {
    %c0_i32 = arith.constant 0 : i32
    %c0_i32_0 = arith.constant 0 : i32
    %c0_i32_1 = arith.constant 0 : i32
    return %c0_i32, %c0_i32_0 : i32, i32
  }
  func.func @transform_5(%arg0: i32) -> (i32, i32) {
    %c0_i32 = arith.constant 0 : i32
    %c0_i32_0 = arith.constant 0 : i32
    %c0_i32_1 = arith.constant 0 : i32
    return %c0_i32, %c0_i32_0 : i32, i32
  }
  func.func @transform_6(%arg0: i32) -> (i32, i32) {
    %c0_i32 = arith.constant 0 : i32
    %c0_i32_0 = arith.constant 0 : i32
    %c0_i32_1 = arith.constant 0 : i32
    return %c0_i32, %c0_i32_0 : i32, i32
  }
  func.func @transform_7(%arg0: i32) -> (i32, i32) {
    %c0_i32 = arith.constant 0 : i32
    %c0_i32_0 = arith.constant 0 : i32
    %c0_i32_1 = arith.constant 0 : i32
    return %c0_i32, %c0_i32_0 : i32, i32
  }
  func.func @transform_8(%arg0: i32) -> (i32, i32) {
    %c0_i32 = arith.constant 0 : i32
    %c0_i32_0 = arith.constant 0 : i32
    %c0_i32_1 = arith.constant 0 : i32
    return %c0_i32, %c0_i32_0 : i32, i32
  }
  func.func @transform_9(%arg0: i32) -> (i32, i32) {
    %c0_i32 = arith.constant 0 : i32
    %c0_i32_0 = arith.constant 0 : i32
    %c0_i32_1 = arith.constant 0 : i32
    return %c0_i32, %c0_i32_0 : i32, i32
  }
  func.func @transform_10(%arg0: i32) -> (i32, i32) {
    %c0_i32 = arith.constant 0 : i32
    %c0_i32_0 = arith.constant 0 : i32
    %c0_i32_1 = arith.constant 0 : i32
    return %c0_i32, %c0_i32_0 : i32, i32
  }
  func.func @transform_11(%arg0: i32) -> (i32, i32) {
    %c0_i32 = arith.constant 0 : i32
    %c0_i32_0 = arith.constant 0 : i32
    %c0_i32_1 = arith.constant 0 : i32
    return %c0_i32, %c0_i32_0 : i32, i32
  }
  func.func @transform_12(%arg0: i32) -> (i32, i32) {
    %c0_i32 = arith.constant 0 : i32
    %c0_i32_0 = arith.constant 0 : i32
    %c0_i32_1 = arith.constant 0 : i32
    return %c0_i32, %c0_i32_0 : i32, i32
  }
  func.func @transform_13(%arg0: i32) -> (i32, i32) {
    %c0_i32 = arith.constant 0 : i32
    %c0_i32_0 = arith.constant 0 : i32
    %c0_i32_1 = arith.constant 0 : i32
    return %c0_i32, %c0_i32_0 : i32, i32
  }
  func.func @transform_14(%arg0: i32) -> (i32, i32) {
    %c0_i32 = arith.constant 0 : i32
    %c0_i32_0 = arith.constant 0 : i32
    %c0_i32_1 = arith.constant 0 : i32
    return %c0_i32, %c0_i32_0 : i32, i32
  }
  func.func @transform_15(%arg0: i32) -> (i32, i32) {
    %c0_i32 = arith.constant 0 : i32
    %c0_i32_0 = arith.constant 0 : i32
    %c0_i32_1 = arith.constant 0 : i32
    return %c0_i32, %c0_i32_0 : i32, i32
  }
  func.func @transform_16(%arg0: i32) -> (i32, i32) {
    %c0_i32 = arith.constant 0 : i32
    %c0_i32_0 = arith.constant 0 : i32
    %c0_i32_1 = arith.constant 0 : i32
    return %c0_i32, %c0_i32_0 : i32, i32
  }
  func.func @transform_17(%arg0: i32) -> (i32, i32, i32) {
    %c0_i32 = arith.constant 0 : i32
    %c0_i32_0 = arith.constant 0 : i32
    %c0_i32_1 = arith.constant 0 : i32
    return %arg0, %c0_i32, %c0_i32_0 : i32, i32, i32
  }
}

</mosaic_0001>

<llo_original>
// kernel: tpu_custom_call.1
$region0: #{tpu_custom_call.1}
  #allocation0 [shape = 'u32[]', space=smem, size = 0x4, offset = 0x4, fixed_abs, tag = 'smem constant byte address 0x4 - core index']
  #allocation1 [shape = 'u32[72,128]{1,0:T(1,128)}', space=vmem, size = 0x9000, scoped, tag = 'internal scratch']
  #allocation2 [shape = 'f32[64,512]{1,0:T(8,128)}', space=vmem, size = 0x20000, scoped, tag = 'scratch operand']
  #allocation3 [shape = 'bf16[576,256]{1,0:T(8,128)(2,1)}', space=vmem, size = 0x48000, scoped, tag = 'scratch operand']
  %s0 = inlined_call_operand.vmem [shape: f32[2,1,256], index: 0, kind: input, shape index: {}]
  %s1 = inlined_call_operand.vmem [shape: f32[2,2,1,256], index: 1, kind: input, shape index: {}]
  %s2 = inlined_call_operand.vmem [shape: f32[2,256], index: 2, kind: input, shape index: {}]
  %s3 = inlined_call_operand.vmem [shape: f32[64,9], index: 3, kind: input, shape index: {}]
  %s4 = inlined_call_operand.vmem [shape: f32[64,1], index: 4, kind: input, shape index: {}]
  %s5 = inlined_call_operand.vmem [shape: bf16[16,576], index: 5, kind: input, shape index: {}]
  %s6 = inlined_call_operand.vmem [shape: f32[16,1], index: 6, kind: input, shape index: {}]
  %s7 = inlined_call_operand.vmem [shape: bf16[16,144], index: 7, kind: input, shape index: {}]
  %s8 = inlined_call_operand.vmem [shape: f32[16,1], index: 8, kind: input, shape index: {}]
  %s9 = inlined_call_operand.vmem [shape: bf16[16,16], index: 9, kind: input, shape index: {}]
  %s10 = inlined_call_operand.vmem [shape: f32[16,1], index: 10, kind: input, shape index: {}]
  %s11 = inlined_call_operand.vmem [shape: bf16[128,48], index: 11, kind: input, shape index: {}]
  %s12 = inlined_call_operand.vmem [shape: f32[128,1], index: 12, kind: input, shape index: {}]
  %s13 = inlined_call_operand.vmem [shape: bf16[16,128], index: 13, kind: input, shape index: {}]
  %s14 = inlined_call_operand.vmem [shape: f32[16,1], index: 14, kind: input, shape index: {}]
  %s15 = inlined_call_operand.vmem [shape: bf16[16,16], index: 15, kind: input, shape index: {}]
  %s16 = inlined_call_operand.vmem [shape: f32[16,1], index: 16, kind: input, shape index: {}]
  %s17 = inlined_call_operand.hbm [shape: f32[2,16,256], index: 17, kind: output, shape index: {}]
  %s18 = sld [smem:[#allocation0]]
  $region101: #{tpu_custom_call.1} parent=0
    _
  %s20 = ssub.s32 1, %s18
  %s21 = scalar_select 0, %s20, %s18
  $region1: #{tpu_custom_call.1} parent=0
    #allocation4 [shape = 'u8[32768]{0}', space=vmem, size = 0x8000, scoped, tag = 'output window, operand 0']
    #allocation5 [shape = 's32[2]{0}', space=sflag, size = 0x8, scoped, tag = 'scoped memory for tpu_custom_call.1']
    %22 = vsyncpa [#allocation5], 0
    %s23 = scalar_lea.sflag [#allocation5], 1
    %24 = vsyncpa %s23, 0
    loop: start=0, step=1, limit=4
    $region2: #{tpu_custom_call.1} parent=1 // loop_pre_header
      _
    $region3: #{tpu_custom_call.1} parent=1 // loop_header
      %s26 = sphi 0, %s30
      %p27 = scmp.ge.s32.totalorder %s26, 4
      %s36 = sphi 0, %s38
      %s39 = sphi 0, %s36
      %s40 = sphi 0, %s39
      %s56 = sphi 0, %s40
      %s62 = sphi 0, %s64
      %s65 = sphi 0, %s62
      %s66 = sphi 0, %s65
      %s82 = sphi 0, %s66
      %s86 = sphi 0, %s86
      %s88 = sphi 0, %s86
      %s89 = sphi 0, %s88
      %s103 = sphi 0, %s89
      %s107 = sphi 0, %s107
      %s109 = sphi 0, %s107
      %s110 = sphi 0, %s109
      %s124 = sphi 0, %s110
      %s128 = sphi 0, %s128
      %s130 = sphi 0, %s128
      %s131 = sphi 0, %s130
      %s145 = sphi 0, %s131
      %s149 = sphi 0, %s149
      %s151 = sphi 0, %s149
      %s152 = sphi 0, %s151
      %s166 = sphi 0, %s152
      %s170 = sphi 0, %s170
      %s172 = sphi 0, %s170
      %s173 = sphi 0, %s172
      %s187 = sphi 0, %s173
      %s191 = sphi 0, %s191
      %s193 = sphi 0, %s191
      %s194 = sphi 0, %s193
      %s208 = sphi 0, %s194
      %s212 = sphi 0, %s212
      %s214 = sphi 0, %s212
      %s215 = sphi 0, %s214
      %s229 = sphi 0, %s215
      %s233 = sphi 0, %s233
      %s235 = sphi 0, %s233
      %s236 = sphi 0, %s235
      %s250 = sphi 0, %s236
      %s254 = sphi 0, %s254
      %s256 = sphi 0, %s254
      %s257 = sphi 0, %s256
      %s271 = sphi 0, %s257
      %s275 = sphi 0, %s275
      %s277 = sphi 0, %s275
      %s278 = sphi 0, %s277
      %s292 = sphi 0, %s278
      %s296 = sphi 0, %s296
      %s298 = sphi 0, %s296
      %s299 = sphi 0, %s298
      %s313 = sphi 0, %s299
      %s317 = sphi 0, %s317
      %s319 = sphi 0, %s317
      %s320 = sphi 0, %s319
      %s334 = sphi 0, %s320
      %s338 = sphi 0, %s338
      %s340 = sphi 0, %s338
      %s341 = sphi 0, %s340
      %s355 = sphi 0, %s341
      %s359 = sphi 0, %s359
      %s361 = sphi 0, %s359
      %s362 = sphi 0, %s361
      %s376 = sphi 0, %s362
      %s380 = sphi 0, %s380
      %s382 = sphi 0, %s380
      %s383 = sphi 0, %s382
      %s397 = sphi 0, %s383
      %s403 = sphi 0, %s405
      %s406 = sphi 0, %s403
      %s407 = sphi 0, %s406
      %s423 = sphi 0, %s407
    $region4: #{tpu_custom_call.1} parent=1 // loop_header_branch
      %29 = sbr.rel (%p27) target = $region8
    $region5: #{tpu_custom_call.1} parent=1 // loop_body
      %s31 = ssub.s32 %s26, 1
      %s32 = ssub.s32 %s26, 2
      %s33 = sadd.s32 %s26, 1
      %s34 = ssub.s32 %s26, %s33
      %p35 = scmp.eq.s32.totalorder %s34, 0
      %s37 = sadd.s32 %s36, 1
      %s38 = scalar_select %p35, %s36, %s37
      %p41 = pneg %p35
      %p42 = scmp.eq.s32.totalorder %s26, 1
      %p43 = por %p41, %p42
      %p44 = scmp.ne.s32.totalorder %s36, %s39
      %p45 = scmp.eq.s32.totalorder %s26, 0
      %p46 = por %p44, %p45
      %p47 = scmp.ne.s32.totalorder %s36, %s39
      %p48 = scmp.eq.s32.totalorder %s31, 1
      %p49 = por %p47, %p48
      %p50 = scmp.ne.s32.totalorder %s39, %s40
      %p51 = scmp.eq.s32.totalorder %s31, 0
      %p52 = por %p50, %p51
      %p53 = scmp.ne.s32.totalorder %s39, %s40
      %p54 = scmp.eq.s32.totalorder %s32, 1
      %p55 = por %p53, %p54
      %p57 = scmp.ne.s32.totalorder %s40, %s56
      %p58 = scmp.eq.s32.totalorder %s32, 0
      %p59 = por %p57, %p58
      %s60 = ssub.s32 %s26, %s33
      %p61 = scmp.eq.s32.totalorder %s60, 0
      %s63 = sadd.s32 %s62, 1
      %s64 = scalar_select %p61, %s62, %s63
      %p67 = pneg %p61
      %p68 = scmp.eq.s32.totalorder %s26, 1
      %p69 = por %p67, %p68
      %p70 = scmp.ne.s32.totalorder %s62, %s65
      %p71 = scmp.eq.s32.totalorder %s26, 0
      %p72 = por %p70, %p71
      %p73 = scmp.ne.s32.totalorder %s62, %s65
      %p74 = scmp.eq.s32.totalorder %s31, 1
      %p75 = por %p73, %p74
      %p76 = scmp.ne.s32.totalorder %s65, %s66
      %p77 = scmp.eq.s32.totalorder %s31, 0
      %p78 = por %p76, %p77
      %p79 = scmp.ne.s32.totalorder %s65, %s66
      %p80 = scmp.eq.s32.totalorder %s32, 1
      %p81 = por %p79, %p80
      %p83 = scmp.ne.s32.totalorder %s66, %s82
      %p84 = scmp.eq.s32.totalorder %s32, 0
      %p85 = por %p83, %p84
      %s87 = sadd.s32 %s86, 1
      %p90 = scmp.eq.s32.totalorder %s26, 1
      %p91 = scmp.ne.s32.totalorder %s86, %s88
      %p92 = scmp.eq.s32.totalorder %s26, 0
      %p93 = por %p91, %p92
      %p94 = scmp.ne.s32.totalorder %s86, %s88
      %p95 = scmp.eq.s32.totalorder %s31, 1
      %p96 = por %p94, %p95
      %p97 = scmp.ne.s32.totalorder %s88, %s89
      %p98 = scmp.eq.s32.totalorder %s31, 0
      %p99 = por %p97, %p98
      %p100 = scmp.ne.s32.totalorder %s88, %s89
      %p101 = scmp.eq.s32.totalorder %s32, 1
      %p102 = por %p100, %p101
      %p104 = scmp.ne.s32.totalorder %s89, %s103
      %p105 = scmp.eq.s32.totalorder %s32, 0
      %p106 = por %p104, %p105
      %s108 = sadd.s32 %s107, 1
      %p111 = scmp.eq.s32.totalorder %s26, 1
      %p112 = scmp.ne.s32.totalorder %s107, %s109
      %p113 = scmp.eq.s32.totalorder %s26, 0
      %p114 = por %p112, %p113
      %p115 = scmp.ne.s32.totalorder %s107, %s109
      %p116 = scmp.eq.s32.totalorder %s31, 1
      %p117 = por %p115, %p116
      %p118 = scmp.ne.s32.totalorder %s109, %s110
      %p119 = scmp.eq.s32.totalorder %s31, 0
      %p120 = por %p118, %p119
      %p121 = scmp.ne.s32.totalorder %s109, %s110
      %p122 = scmp.eq.s32.totalorder %s32, 1
      %p123 = por %p121, %p122
      %p125 = scmp.ne.s32.totalorder %s110, %s124
      %p126 = scmp.eq.s32.totalorder %s32, 0
      %p127 = por %p125, %p126
      %s129 = sadd.s32 %s128, 1
      %p132 = scmp.eq.s32.totalorder %s26, 1
      %p133 = scmp.ne.s32.totalorder %s128, %s130
      %p134 = scmp.eq.s32.totalorder %s26, 0
      %p135 = por %p133, %p134
      %p136 = scmp.ne.s32.totalorder %s128, %s130
      %p137 = scmp.eq.s32.totalorder %s31, 1
      %p138 = por %p136, %p137
      %p139 = scmp.ne.s32.totalorder %s130, %s131
      %p140 = scmp.eq.s32.totalorder %s31, 0
      %p141 = por %p139, %p140
      %p142 = scmp.ne.s32.totalorder %s130, %s131
      %p143 = scmp.eq.s32.totalorder %s32, 1
      %p144 = por %p142, %p143
      %p146 = scmp.ne.s32.totalorder %s131, %s145
      %p147 = scmp.eq.s32.totalorder %s32, 0
      %p148 = por %p146, %p147
      %s150 = sadd.s32 %s149, 1
      %p153 = scmp.eq.s32.totalorder %s26, 1
      %p154 = scmp.ne.s32.totalorder %s149, %s151
      %p155 = scmp.eq.s32.totalorder %s26, 0
      %p156 = por %p154, %p155
      %p157 = scmp.ne.s32.totalorder %s149, %s151
      %p158 = scmp.eq.s32.totalorder %s31, 1
      %p159 = por %p157, %p158
      %p160 = scmp.ne.s32.totalorder %s151, %s152
      %p161 = scmp.eq.s32.totalorder %s31, 0
      %p162 = por %p160, %p161
      %p163 = scmp.ne.s32.totalorder %s151, %s152
      %p164 = scmp.eq.s32.totalorder %s32, 1
      %p165 = por %p163, %p164
      %p167 = scmp.ne.s32.totalorder %s152, %s166
      %p168 = scmp.eq.s32.totalorder %s32, 0
      %p169 = por %p167, %p168
      %s171 = sadd.s32 %s170, 1
      %p174 = scmp.eq.s32.totalorder %s26, 1
      %p175 = scmp.ne.s32.totalorder %s170, %s172
      %p176 = scmp.eq.s32.totalorder %s26, 0
      %p177 = por %p175, %p176
      %p178 = scmp.ne.s32.totalorder %s170, %s172
      %p179 = scmp.eq.s32.totalorder %s31, 1
      %p180 = por %p178, %p179
      %p181 = scmp.ne.s32.totalorder %s172, %s173
      %p182 = scmp.eq.s32.totalorder %s31, 0
      %p183 = por %p181, %p182
      %p184 = scmp.ne.s32.totalorder %s172, %s173
      %p185 = scmp.eq.s32.totalorder %s32, 1
      %p186 = por %p184, %p185
      %p188 = scmp.ne.s32.totalorder %s173, %s187
      %p189 = scmp.eq.s32.totalorder %s32, 0
      %p190 = por %p188, %p189
      %s192 = sadd.s32 %s191, 1
      %p195 = scmp.eq.s32.totalorder %s26, 1
      %p196 = scmp.ne.s32.totalorder %s191, %s193
      %p197 = scmp.eq.s32.totalorder %s26, 0
      %p198 = por %p196, %p197
      %p199 = scmp.ne.s32.totalorder %s191, %s193
      %p200 = scmp.eq.s32.totalorder %s31, 1
      %p201 = por %p199, %p200
      %p202 = scmp.ne.s32.totalorder %s193, %s194
      %p203 = scmp.eq.s32.totalorder %s31, 0
      %p204 = por %p202, %p203
      %p205 = scmp.ne.s32.totalorder %s193, %s194
      %p206 = scmp.eq.s32.totalorder %s32, 1
      %p207 = por %p205, %p206
      %p209 = scmp.ne.s32.totalorder %s194, %s208
      %p210 = scmp.eq.s32.totalorder %s32, 0
      %p211 = por %p209, %p210
      %s213 = sadd.s32 %s212, 1
      %p216 = scmp.eq.s32.totalorder %s26, 1
      %p217 = scmp.ne.s32.totalorder %s212, %s214
      %p218 = scmp.eq.s32.totalorder %s26, 0
      %p219 = por %p217, %p218
      %p220 = scmp.ne.s32.totalorder %s212, %s214
      %p221 = scmp.eq.s32.totalorder %s31, 1
      %p222 = por %p220, %p221
      %p223 = scmp.ne.s32.totalorder %s214, %s215
      %p224 = scmp.eq.s32.totalorder %s31, 0
      %p225 = por %p223, %p224
      %p226 = scmp.ne.s32.totalorder %s214, %s215
      %p227 = scmp.eq.s32.totalorder %s32, 1
      %p228 = por %p226, %p227
      %p230 = scmp.ne.s32.totalorder %s215, %s229
      %p231 = scmp.eq.s32.totalorder %s32, 0
      %p232 = por %p230, %p231
      %s234 = sadd.s32 %s233, 1
      %p237 = scmp.eq.s32.totalorder %s26, 1
      %p238 = scmp.ne.s32.totalorder %s233, %s235
      %p239 = scmp.eq.s32.totalorder %s26, 0
      %p240 = por %p238, %p239
      %p241 = scmp.ne.s32.totalorder %s233, %s235
      %p242 = scmp.eq.s32.totalorder %s31, 1
      %p243 = por %p241, %p242
      %p244 = scmp.ne.s32.totalorder %s235, %s236
      %p245 = scmp.eq.s32.totalorder %s31, 0
      %p246 = por %p244, %p245
      %p247 = scmp.ne.s32.totalorder %s235, %s236
      %p248 = scmp.eq.s32.totalorder %s32, 1
      %p249 = por %p247, %p248
      %p251 = scmp.ne.s32.totalorder %s236, %s250
      %p252 = scmp.eq.s32.totalorder %s32, 0
      %p253 = por %p251, %p252
      %s255 = sadd.s32 %s254, 1
      %p258 = scmp.eq.s32.totalorder %s26, 1
      %p259 = scmp.ne.s32.totalorder %s254, %s256
      %p260 = scmp.eq.s32.totalorder %s26, 0
      %p261 = por %p259, %p260
      %p262 = scmp.ne.s32.totalorder %s254, %s256
      %p263 = scmp.eq.s32.totalorder %s31, 1
      %p264 = por %p262, %p263
      %p265 = scmp.ne.s32.totalorder %s256, %s257
      %p266 = scmp.eq.s32.totalorder %s31, 0
      %p267 = por %p265, %p266
      %p268 = scmp.ne.s32.totalorder %s256, %s257
      %p269 = scmp.eq.s32.totalorder %s32, 1
      %p270 = por %p268, %p269
      %p272 = scmp.ne.s32.totalorder %s257, %s271
      %p273 = scmp.eq.s32.totalorder %s32, 0
      %p274 = por %p272, %p273
      %s276 = sadd.s32 %s275, 1
      %p279 = scmp.eq.s32.totalorder %s26, 1
      %p280 = scmp.ne.s32.totalorder %s275, %s277
      %p281 = scmp.eq.s32.totalorder %s26, 0
      %p282 = por %p280, %p281
      %p283 = scmp.ne.s32.totalorder %s275, %s277
      %p284 = scmp.eq.s32.totalorder %s31, 1
      %p285 = por %p283, %p284
      %p286 = scmp.ne.s32.totalorder %s277, %s278
      %p287 = scmp.eq.s32.totalorder %s31, 0
      %p288 = por %p286, %p287
      %p289 = scmp.ne.s32.totalorder %s277, %s278
      %p290 = scmp.eq.s32.totalorder %s32, 1
      %p291 = por %p289, %p290
      %p293 = scmp.ne.s32.totalorder %s278, %s292
      %p294 = scmp.eq.s32.totalorder %s32, 0
      %p295 = por %p293, %p294
      %s297 = sadd.s32 %s296, 1
      %p300 = scmp.eq.s32.totalorder %s26, 1
      %p301 = scmp.ne.s32.totalorder %s296, %s298
      %p302 = scmp.eq.s32.totalorder %s26, 0
      %p303 = por %p301, %p302
      %p304 = scmp.ne.s32.totalorder %s296, %s298
      %p305 = scmp.eq.s32.totalorder %s31, 1
      %p306 = por %p304, %p305
      %p307 = scmp.ne.s32.totalorder %s298, %s299
      %p308 = scmp.eq.s32.totalorder %s31, 0
      %p309 = por %p307, %p308
      %p310 = scmp.ne.s32.totalorder %s298, %s299
      %p311 = scmp.eq.s32.totalorder %s32, 1
      %p312 = por %p310, %p311
      %p314 = scmp.ne.s32.totalorder %s299, %s313
      %p315 = scmp.eq.s32.totalorder %s32, 0
      %p316 = por %p314, %p315
      %s318 = sadd.s32 %s317, 1
      %p321 = scmp.eq.s32.totalorder %s26, 1
      %p322 = scmp.ne.s32.totalorder %s317, %s319
      %p323 = scmp.eq.s32.totalorder %s26, 0
      %p324 = por %p322, %p323
      %p325 = scmp.ne.s32.totalorder %s317, %s319
      %p326 = scmp.eq.s32.totalorder %s31, 1
      %p327 = por %p325, %p326
      %p328 = scmp.ne.s32.totalorder %s319, %s320
      %p329 = scmp.eq.s32.totalorder %s31, 0
      %p330 = por %p328, %p329
      %p331 = scmp.ne.s32.totalorder %s319, %s320
      %p332 = scmp.eq.s32.totalorder %s32, 1
      %p333 = por %p331, %p332
      %p335 = scmp.ne.s32.totalorder %s320, %s334
      %p336 = scmp.eq.s32.totalorder %s32, 0
      %p337 = por %p335, %p336
      %s339 = sadd.s32 %s338, 1
      %p342 = scmp.eq.s32.totalorder %s26, 1
      %p343 = scmp.ne.s32.totalorder %s338, %s340
      %p344 = scmp.eq.s32.totalorder %s26, 0
      %p345 = por %p343, %p344
      %p346 = scmp.ne.s32.totalorder %s338, %s340
      %p347 = scmp.eq.s32.totalorder %s31, 1
      %p348 = por %p346, %p347
      %p349 = scmp.ne.s32.totalorder %s340, %s341
      %p350 = scmp.eq.s32.totalorder %s31, 0
      %p351 = por %p349, %p350
      %p352 = scmp.ne.s32.totalorder %s340, %s341
      %p353 = scmp.eq.s32.totalorder %s32, 1
      %p354 = por %p352, %p353
      %p356 = scmp.ne.s32.totalorder %s341, %s355
      %p357 = scmp.eq.s32.totalorder %s32, 0
      %p358 = por %p356, %p357
      %s360 = sadd.s32 %s359, 1
      %p363 = scmp.eq.s32.totalorder %s26, 1
      %p364 = scmp.ne.s32.totalorder %s359, %s361
      %p365 = scmp.eq.s32.totalorder %s26, 0
      %p366 = por %p364, %p365
      %p367 = scmp.ne.s32.totalorder %s359, %s361
      %p368 = scmp.eq.s32.totalorder %s31, 1
      %p369 = por %p367, %p368
      %p370 = scmp.ne.s32.totalorder %s361, %s362
      %p371 = scmp.eq.s32.totalorder %s31, 0
      %p372 = por %p370, %p371
      %p373 = scmp.ne.s32.totalorder %s361, %s362
      %p374 = scmp.eq.s32.totalorder %s32, 1
      %p375 = por %p373, %p374
      %p377 = scmp.ne.s32.totalorder %s362, %s376
      %p378 = scmp.eq.s32.totalorder %s32, 0
      %p379 = por %p377, %p378
      %s381 = sadd.s32 %s380, 1
      %p384 = scmp.eq.s32.totalorder %s26, 1
      %p385 = scmp.ne.s32.totalorder %s380, %s382
      %p386 = scmp.eq.s32.totalorder %s26, 0
      %p387 = por %p385, %p386
      %p388 = scmp.ne.s32.totalorder %s380, %s382
      %p389 = scmp.eq.s32.totalorder %s31, 1
      %p390 = por %p388, %p389
      %p391 = scmp.ne.s32.totalorder %s382, %s383
      %p392 = scmp.eq.s32.totalorder %s31, 0
      %p393 = por %p391, %p392
      %p394 = scmp.ne.s32.totalorder %s382, %s383
      %p395 = scmp.eq.s32.totalorder %s32, 1
      %p396 = por %p394, %p395
      %p398 = scmp.ne.s32.totalorder %s383, %s397
      %p399 = scmp.eq.s32.totalorder %s32, 0
      %p400 = por %p398, %p399
      %s401 = ssub.s32 %s26, %s33
      %p402 = scmp.eq.s32.totalorder %s401, 0
      %s404 = sadd.s32 %s403, 1
      %s405 = scalar_select %p402, %s403, %s404
      %p408 = pneg %p402
      %p409 = scmp.eq.s32.totalorder %s26, 1
      %p410 = por %p408, %p409
      %p411 = scmp.ne.s32.totalorder %s403, %s406
      %p412 = scmp.eq.s32.totalorder %s26, 0
      %p413 = por %p411, %p412
      %p414 = scmp.ne.s32.totalorder %s403, %s406
      %p415 = scmp.eq.s32.totalorder %s31, 1
      %p416 = por %p414, %p415
      %p417 = scmp.ne.s32.totalorder %s406, %s407
      %p418 = scmp.eq.s32.totalorder %s31, 0
      %p419 = por %p417, %p418
      %p420 = scmp.ne.s32.totalorder %s406, %s407
      %p421 = scmp.eq.s32.totalorder %s32, 1
      %p422 = por %p420, %p421
      %p424 = scmp.ne.s32.totalorder %s407, %s423
      %p425 = scmp.eq.s32.totalorder %s32, 0
      %p426 = por %p424, %p425
      %p427 = scmp.le.s32.totalorder 1, %s26
      %p428 = scmp.lt.s32.totalorder %s26, 3
      %p429 = pnand %p427, %p428
      %p430 = pneg %p429
      // Predicated region
      $region9: #{tpu_custom_call.1} parent=5 // pred_check
        _
      $region10: #{tpu_custom_call.1} parent=5 // pred_check_branch
        %432 = sbr.rel (%p429) target = $region12
      $region11: #{tpu_custom_call.1} parent=5 // pred_region
        %s433 = ssub.s32 %s26, 1
        // Predicated region
        $region13: #{tpu_custom_call.1} parent=11 // pred_check
          %p434 = pneg %p99
        $region14: #{tpu_custom_call.1} parent=11 // pred_check_branch
          %436 = sbr.rel (%p434) target = $region16
        $region15: #{tpu_custom_call.1} parent=11 // pred_region
          _
        $region16: #{tpu_custom_call.1} parent=11 // pred_fallthru
          _
        // Predicated region
        $region17: #{tpu_custom_call.1} parent=11 // pred_check
          %p437 = pneg %p120
        $region18: #{tpu_custom_call.1} parent=11 // pred_check_branch
          %439 = sbr.rel (%p437) target = $region20
        $region19: #{tpu_custom_call.1} parent=11 // pred_region
          _
        $region20: #{tpu_custom_call.1} parent=11 // pred_fallthru
          _
        // Predicated region
        $region21: #{tpu_custom_call.1} parent=11 // pred_check
          %p440 = pneg %p141
        $region22: #{tpu_custom_call.1} parent=11 // pred_check_branch
          %442 = sbr.rel (%p440) target = $region24
        $region23: #{tpu_custom_call.1} parent=11 // pred_region
          _
        $region24: #{tpu_custom_call.1} parent=11 // pred_fallthru
          _
        // Predicated region
        $region25: #{tpu_custom_call.1} parent=11 // pred_check
          %p443 = pneg %p162
        $region26: #{tpu_custom_call.1} parent=11 // pred_check_branch
          %445 = sbr.rel (%p443) target = $region28
        $region27: #{tpu_custom_call.1} parent=11 // pred_region
          _
        $region28: #{tpu_custom_call.1} parent=11 // pred_fallthru
          _
        // Predicated region
        $region29: #{tpu_custom_call.1} parent=11 // pred_check
          %p446 = pneg %p183
        $region30: #{tpu_custom_call.1} parent=11 // pred_check_branch
          %448 = sbr.rel (%p446) target = $region32
        $region31: #{tpu_custom_call.1} parent=11 // pred_region
          _
        $region32: #{tpu_custom_call.1} parent=11 // pred_fallthru
          _
        // Predicated region
        $region33: #{tpu_custom_call.1} parent=11 // pred_check
          %p449 = pneg %p204
        $region34: #{tpu_custom_call.1} parent=11 // pred_check_branch
          %451 = sbr.rel (%p449) target = $region36
        $region35: #{tpu_custom_call.1} parent=11 // pred_region
          _
        $region36: #{tpu_custom_call.1} parent=11 // pred_fallthru
          _
        // Predicated region
        $region37: #{tpu_custom_call.1} parent=11 // pred_check
          %p452 = pneg %p225
        $region38: #{tpu_custom_call.1} parent=11 // pred_check_branch
          %454 = sbr.rel (%p452) target = $region40
        $region39: #{tpu_custom_call.1} parent=11 // pred_region
          _
        $region40: #{tpu_custom_call.1} parent=11 // pred_fallthru
          _
        // Predicated region
        $region41: #{tpu_custom_call.1} parent=11 // pred_check
          %p455 = pneg %p246
        $region42: #{tpu_custom_call.1} parent=11 // pred_check_branch
          %457 = sbr.rel (%p455) target = $region44
        $region43: #{tpu_custom_call.1} parent=11 // pred_region
          _
        $region44: #{tpu_custom_call.1} parent=11 // pred_fallthru
          _
        // Predicated region
        $region45: #{tpu_custom_call.1} parent=11 // pred_check
          %p458 = pneg %p267
        $region46: #{tpu_custom_call.1} parent=11 // pred_check_branch
          %460 = sbr.rel (%p458) target = $region48
        $region47: #{tpu_custom_call.1} parent=11 // pred_region
          _
        $region48: #{tpu_custom_call.1} parent=11 // pred_fallthru
          _
        // Predicated region
        $region49: #{tpu_custom_call.1} parent=11 // pred_check
          %p461 = pneg %p288
        $region50: #{tpu_custom_call.1} parent=11 // pred_check_branch
          %463 = sbr.rel (%p461) target = $region52
        $region51: #{tpu_custom_call.1} parent=11 // pred_region
          _
        $region52: #{tpu_custom_call.1} parent=11 // pred_fallthru
          _
        // Predicated region
        $region53: #{tpu_custom_call.1} parent=11 // pred_check
          %p464 = pneg %p309
        $region54: #{tpu_custom_call.1} parent=11 // pred_check_branch
          %466 = sbr.rel (%p464) target = $region56
        $region55: #{tpu_custom_call.1} parent=11 // pred_region
          _
        $region56: #{tpu_custom_call.1} parent=11 // pred_fallthru
          _
        // Predicated region
        $region57: #{tpu_custom_call.1} parent=11 // pred_check
          %p467 = pneg %p330
        $region58: #{tpu_custom_call.1} parent=11 // pred_check_branch
          %469 = sbr.rel (%p467) target = $region60
        $region59: #{tpu_custom_call.1} parent=11 // pred_region
          _
        $region60: #{tpu_custom_call.1} parent=11 // pred_fallthru
          _
        // Predicated region
        $region61: #{tpu_custom_call.1} parent=11 // pred_check
          %p470 = pneg %p351
        $region62: #{tpu_custom_call.1} parent=11 // pred_check_branch
          %472 = sbr.rel (%p470) target = $region64
        $region63: #{tpu_custom_call.1} parent=11 // pred_region
          _
        $region64: #{tpu_custom_call.1} parent=11 // pred_fallthru
          _
        // Predicated region
        $region65: #{tpu_custom_call.1} parent=11 // pred_check
          %p473 = pneg %p372
        $region66: #{tpu_custom_call.1} parent=11 // pred_check_branch
          %475 = sbr.rel (%p473) target = $region68
        $region67: #{tpu_custom_call.1} parent=11 // pred_region
          _
        $region68: #{tpu_custom_call.1} parent=11 // pred_fallthru
          _
        // Predicated region
        $region69: #{tpu_custom_call.1} parent=11 // pred_check
          %p476 = pneg %p393
        $region70: #{tpu_custom_call.1} parent=11 // pred_check_branch
          %478 = sbr.rel (%p476) target = $region72
        $region71: #{tpu_custom_call.1} parent=11 // pred_region
          _
        $region72: #{tpu_custom_call.1} parent=11 // pred_fallthru
          _
      $region12: #{tpu_custom_call.1} parent=5 // pred_fallthru
        _
      %p479 = scmp.lt.s32.totalorder %s26, 2
      // Predicated region
      $region73: #{tpu_custom_call.1} parent=5 // pred_check
        %p480 = pneg %p479
      $region74: #{tpu_custom_call.1} parent=5 // pred_check_branch
        %482 = sbr.rel (%p480) target = $region76
      $region75: #{tpu_custom_call.1} parent=5 // pred_region
        // Predicated region
        $region77: #{tpu_custom_call.1} parent=75 // pred_check
          %p483 = pneg %p46
        $region78: #{tpu_custom_call.1} parent=75 // pred_check_branch
          %485 = sbr.rel (%p483) target = $region80
        $region79: #{tpu_custom_call.1} parent=75 // pred_region
          %p486 = scmp.lt.s32.totalorder %s26, 1
          %s487 = scalar_select %p486, %s26, 1
          %s488 = smul.addr %s487, 2
          %s489 = scalar_lea.vmem %s0, %s488
        $region80: #{tpu_custom_call.1} parent=75 // pred_fallthru
          _
        // Predicated region
        $region81: #{tpu_custom_call.1} parent=75 // pred_check
          %p490 = pneg %p72
        $region82: #{tpu_custom_call.1} parent=75 // pred_check_branch
          %492 = sbr.rel (%p490) target = $region84
        $region83: #{tpu_custom_call.1} parent=75 // pred_region
          %p493 = scmp.lt.s32.totalorder %s26, 1
          %s494 = scalar_select %p493, %s26, 1
          %s495 = smul.addr %s494, 4
          %s496 = scalar_lea.vmem %s1, %s495
        $region84: #{tpu_custom_call.1} parent=75 // pred_fallthru
          _
      $region76: #{tpu_custom_call.1} parent=5 // pred_fallthru
        _
      %p497 = scmp.le.s32.totalorder 1, %s26
      %p498 = scmp.lt.s32.totalorder %s26, 3
      %p499 = pnand %p497, %p498
      %p500 = pneg %p499
      // Predicated region
      $region85: #{tpu_custom_call.1} parent=5 // pred_check
        _
      $region86: #{tpu_custom_call.1} parent=5 // pred_check_branch
        %502 = sbr.rel (%p499) target = $region88
      $region87: #{tpu_custom_call.1} parent=5 // pred_region
        %s503 = ssub.s32 %s26, 1
        %p504 = scmp.lt.s32.totalorder %s31, 1
        %s505 = scalar_select %p504, %s31, 1
        %s506 = smul.addr %s505, 2
        %s507 = scalar_lea.vmem %s0, %s506
        %p508 = pneg %p52
        %p509 = pneg %p49
        %p510 = scmp.lt.s32.totalorder %s31, 1
        %s511 = scalar_select %p510, %s31, 1
        %s512 = smul.addr %s511, 4
        %s513 = scalar_lea.vmem %s1, %s512
        %p514 = pneg %p78
        %p515 = pneg %p75
        %p516 = pneg %p99
        %p517 = pneg %p96
        %p518 = pneg %p120
        %p519 = pneg %p117
        %p520 = pneg %p141
        %p521 = pneg %p138
        %p522 = pneg %p162
        %p523 = pneg %p159
        %p524 = pneg %p183
        %p525 = pneg %p180
        %p526 = pneg %p204
        %p527 = pneg %p201
        %p528 = pneg %p225
        %p529 = pneg %p222
        %p530 = pneg %p246
        %p531 = pneg %p243
        %p532 = pneg %p267
        %p533 = pneg %p264
        %p534 = pneg %p288
        %p535 = pneg %p285
        %p536 = pneg %p309
        %p537 = pneg %p306
        %p538 = pneg %p330
        %p539 = pneg %p327
        %p540 = pneg %p351
        %p541 = pneg %p348
        %p542 = pneg %p372
        %p543 = pneg %p369
        %p544 = pneg %p393
        %p545 = pneg %p390
        %p546 = pneg %p419
        %p547 = pneg %p416
        %s548 = sand.u32 %s406, 1
        %s549 = scalar_lea.sflag [#allocation5], %s548
        %s550 = sand.u32 %s406, 1
        %s551 = smul.addr %s550, 32
        %s552 = scalar_lea.vmem [#allocation4], %s551
        %p553 = scmp.lt.s32.totalorder %s31, 1
        %s554 = scalar_select %p553, %s31, 1
        %s555 = smul.addr %s554, 2
        %s556 = scalar_lea.vmem %s0, %s555
        %p557 = scmp.lt.s32.totalorder %s31, 1
        %s558 = scalar_select %p557, %s31, 1
        %s559 = smul.addr %s558, 4
        %s560 = scalar_lea.vmem %s1, %s559
        %v562 = vld [vmem:[%s2] ss:$2 sm:$0x3]
        %s563 = scalar_lea.vmem %s2, 1
        %v564 = vld [vmem:[%s563] ss:$2 sm:$0x3]
        %565 = vst [vmem:[#allocation2] sm:$0xff] 0.0
        %566 = vst [vmem:[#allocation2 + $0x8] sm:$0xff] 0.0
        %567 = vst [vmem:[#allocation2 + $0x10] sm:$0xff] 0.0
        %568 = vst [vmem:[#allocation2 + $0x18] sm:$0xff] 0.0
        %569 = vst [vmem:[#allocation2 + $0x20] sm:$0xff] 0.0
        %570 = vst [vmem:[#allocation2 + $0x28] sm:$0xff] 0.0
        %571 = vst [vmem:[#allocation2 + $0x30] sm:$0xff] 0.0
        %572 = vst [vmem:[#allocation2 + $0x38] sm:$0xff] 0.0
        %573 = vst [vmem:[#allocation2 + $0x40] sm:$0xff] 0.0
        %574 = vst [vmem:[#allocation2 + $0x48] sm:$0xff] 0.0
        %575 = vst [vmem:[#allocation2 + $0x50] sm:$0xff] 0.0
        %576 = vst [vmem:[#allocation2 + $0x58] sm:$0xff] 0.0
        %577 = vst [vmem:[#allocation2 + $0x60] sm:$0xff] 0.0
        %578 = vst [vmem:[#allocation2 + $0x68] sm:$0xff] 0.0
        %579 = vst [vmem:[#allocation2 + $0x70] sm:$0xff] 0.0
        %580 = vst [vmem:[#allocation2 + $0x78] sm:$0xff] 0.0
        %581 = vst [vmem:[#allocation2 + $0x80] sm:$0xff] 0.0
        %582 = vst [vmem:[#allocation2 + $0x88] sm:$0xff] 0.0
        %583 = vst [vmem:[#allocation2 + $0x90] sm:$0xff] 0.0
        %584 = vst [vmem:[#allocation2 + $0x98] sm:$0xff] 0.0
        %585 = vst [vmem:[#allocation2 + $0xa0] sm:$0xff] 0.0
        %586 = vst [vmem:[#allocation2 + $0xa8] sm:$0xff] 0.0
        %587 = vst [vmem:[#allocation2 + $0xb0] sm:$0xff] 0.0
        %588 = vst [vmem:[#allocation2 + $0xb8] sm:$0xff] 0.0
        %589 = vst [vmem:[#allocation2 + $0xc0] sm:$0xff] 0.0
        %590 = vst [vmem:[#allocation2 + $0xc8] sm:$0xff] 0.0
        %591 = vst [vmem:[#allocation2 + $0xd0] sm:$0xff] 0.0
        %592 = vst [vmem:[#allocation2 + $0xd8] sm:$0xff] 0.0
        %593 = vst [vmem:[#allocation2 + $0xe0] sm:$0xff] 0.0
        %594 = vst [vmem:[#allocation2 + $0xe8] sm:$0xff] 0.0
        %595 = vst [vmem:[#allocation2 + $0xf0] sm:$0xff] 0.0
        %596 = vst [vmem:[#allocation2 + $0xf8] sm:$0xff] 0.0
        %v597 = vld [vmem:[%s556] sm:$0x3]
        %v598 = vlaneseq
        %vm599 = vcmp.ge.s32.totalorder %v598, 0
        %vm600 = vcmp.lt.s32.totalorder %v598, 256
        %vm601 = vmand %vm599, %vm600
        %s602 = scalar_lea.vmem [#allocation2], 8
        %603 = vst.msk [vmem:[%s602] ss:$8 sm:$0x3] %vm601, %v597
        %604 = vst.msk [vmem:[%s602] ss:$8 sm:$0x0] %vm601, %v597
        %v605 = vld [vmem:[#allocation2] ss:$8 sm:$0x7]
        %607 = vrot.lane.b32.xlu0 %v562, 111
        %v608 = vpop.permute.xlu0 %607
        %v609 = vrot.slane %v608, 7
        %vm610 = vcmask 908288
        %v611 = vsel %vm610, %v609, %v608
        %v613 = vmul.f32 %v605, %v611
        %v614 = vld [vmem:[%s3] sm:$0xff]
        %v615 = vld [vmem:[%s3 + $0x8] sm:$0xff]
        %v616 = vld [vmem:[%s3 + $0x10] sm:$0xff]
        %v617 = vld [vmem:[%s3 + $0x18] sm:$0xff]
        %v618 = vld [vmem:[%s3 + $0x20] sm:$0xff]
        %v619 = vld [vmem:[%s3 + $0x28] sm:$0xff]
        %v620 = vld [vmem:[%s3 + $0x30] sm:$0xff]
        %v621 = vld [vmem:[%s3 + $0x38] sm:$0xff]
        %623 = vset.pattern.permute.xlu0 0
        %624 = vperm.xlu0 %623, %v614
        %v625 = vpop.permute.xlu0 %624
        %628 = vset.pattern.permute.xlu0 0
        %629 = vperm.xlu0 %628, %v615
        %v630 = vpop.permute.xlu0 %629
        %633 = vset.pattern.permute.xlu0 0
        %634 = vperm.xlu0 %633, %v616
        %v635 = vpop.permute.xlu0 %634
        %638 = vset.pattern.permute.xlu0 0
        %639 = vperm.xlu0 %638, %v617
        %v640 = vpop.permute.xlu0 %639
        %643 = vset.pattern.permute.xlu0 0
        %644 = vperm.xlu0 %643, %v618
        %v645 = vpop.permute.xlu0 %644
        %648 = vset.pattern.permute.xlu0 0
        %649 = vperm.xlu0 %648, %v619
        %v650 = vpop.permute.xlu0 %649
        %653 = vset.pattern.permute.xlu0 0
        %654 = vperm.xlu0 %653, %v620
        %v655 = vpop.permute.xlu0 %654
        %658 = vset.pattern.permute.xlu0 0
        %659 = vperm.xlu0 %658, %v621
        %v660 = vpop.permute.xlu0 %659
        %v663 = vperm.slane %v613, 0
        %v664 = vperm.slane %v613, 1
        %v665 = vperm.slane %v613, 2
        %v669 = vmul.f32 %v625, %v663
        %v670 = vmul.f32 %v625, %v664
        %v671 = vmul.f32 %v625, %v665
        %v672 = vmul.f32 %v630, %v663
        %v673 = vmul.f32 %v630, %v664
        %v674 = vmul.f32 %v630, %v665
        %v675 = vmul.f32 %v635, %v663
        %v676 = vmul.f32 %v635, %v664
        %v677 = vmul.f32 %v635, %v665
        %v678 = vmul.f32 %v640, %v663
        %v679 = vmul.f32 %v640, %v664
        %v680 = vmul.f32 %v640, %v665
        %v681 = vmul.f32 %v645, %v663
        %v682 = vmul.f32 %v645, %v664
        %v683 = vmul.f32 %v645, %v665
        %v684 = vmul.f32 %v650, %v663
        %v685 = vmul.f32 %v650, %v664
        %v686 = vmul.f32 %v650, %v665
        %v687 = vmul.f32 %v655, %v663
        %v688 = vmul.f32 %v655, %v664
        %v689 = vmul.f32 %v655, %v665
        %v690 = vmul.f32 %v660, %v663
        %v691 = vmul.f32 %v660, %v664
        %v692 = vmul.f32 %v660, %v665
        %v693 = vadd.f32 %v669, 0.0
        %v694 = vadd.f32 %v670, 0.0
        %v695 = vadd.f32 %v671, 0.0
        %v696 = vadd.f32 %v672, 0.0
        %v697 = vadd.f32 %v673, 0.0
        %v698 = vadd.f32 %v674, 0.0
        %v699 = vadd.f32 %v675, 0.0
        %v700 = vadd.f32 %v676, 0.0
        %v701 = vadd.f32 %v677, 0.0
        %v702 = vadd.f32 %v678, 0.0
        %v703 = vadd.f32 %v679, 0.0
        %v704 = vadd.f32 %v680, 0.0
        %v705 = vadd.f32 %v681, 0.0
        %v706 = vadd.f32 %v682, 0.0
        %v707 = vadd.f32 %v683, 0.0
        %v708 = vadd.f32 %v684, 0.0
        %v709 = vadd.f32 %v685, 0.0
        %v710 = vadd.f32 %v686, 0.0
        %v711 = vadd.f32 %v687, 0.0
        %v712 = vadd.f32 %v688, 0.0
        %v713 = vadd.f32 %v689, 0.0
        %v714 = vadd.f32 %v690, 0.0
        %v715 = vadd.f32 %v691, 0.0
        %v716 = vadd.f32 %v692, 0.0
        %717 = vset.pattern.permute.xlu0 1
        %718 = vperm.xlu0 %717, %v614
        %v719 = vpop.permute.xlu0 %718
        %721 = vset.pattern.permute.xlu0 1
        %722 = vperm.xlu0 %721, %v615
        %v723 = vpop.permute.xlu0 %722
        %725 = vset.pattern.permute.xlu0 1
        %726 = vperm.xlu0 %725, %v616
        %v727 = vpop.permute.xlu0 %726
        %729 = vset.pattern.permute.xlu0 1
        %730 = vperm.xlu0 %729, %v617
        %v731 = vpop.permute.xlu0 %730
        %733 = vset.pattern.permute.xlu0 1
        %734 = vperm.xlu0 %733, %v618
        %v735 = vpop.permute.xlu0 %734
        %737 = vset.pattern.permute.xlu0 1
        %738 = vperm.xlu0 %737, %v619
        %v739 = vpop.permute.xlu0 %738
        %741 = vset.pattern.permute.xlu0 1
        %742 = vperm.xlu0 %741, %v620
        %v743 = vpop.permute.xlu0 %742
        %745 = vset.pattern.permute.xlu0 1
        %746 = vperm.xlu0 %745, %v621
        %v747 = vpop.permute.xlu0 %746
        %v750 = vperm.slane %v605, 0
        %v751 = vperm.slane %v605, 1
        %v752 = vperm.slane %v605, 2
        %v756 = vmul.f32 %v719, %v750
        %v757 = vmul.f32 %v719, %v751
        %v758 = vmul.f32 %v719, %v752
        %v759 = vmul.f32 %v723, %v750
        %v760 = vmul.f32 %v723, %v751
        %v761 = vmul.f32 %v723, %v752
        %v762 = vmul.f32 %v727, %v750
        %v763 = vmul.f32 %v727, %v751
        %v764 = vmul.f32 %v727, %v752
        %v765 = vmul.f32 %v731, %v750
        %v766 = vmul.f32 %v731, %v751
        %v767 = vmul.f32 %v731, %v752
        %v768 = vmul.f32 %v735, %v750
        %v769 = vmul.f32 %v735, %v751
        %v770 = vmul.f32 %v735, %v752
        %v771 = vmul.f32 %v739, %v750
        %v772 = vmul.f32 %v739, %v751
        %v773 = vmul.f32 %v739, %v752
        %v774 = vmul.f32 %v743, %v750
        %v775 = vmul.f32 %v743, %v751
        %v776 = vmul.f32 %v743, %v752
        %v777 = vmul.f32 %v747, %v750
        %v778 = vmul.f32 %v747, %v751
        %v779 = vmul.f32 %v747, %v752
        %804 = vrot.lane.b32.xlu0 %v756, 127
        %v805 = vpop.permute.xlu0 %804
        %806 = vrot.lane.b32.xlu0 %v757, 127
        %v807 = vpop.permute.xlu0 %806
        %808 = vrot.lane.b32.xlu0 %v758, 127
        %v809 = vpop.permute.xlu0 %808
        %810 = vrot.lane.b32.xlu0 %v759, 127
        %v811 = vpop.permute.xlu0 %810
        %812 = vrot.lane.b32.xlu0 %v760, 127
        %v813 = vpop.permute.xlu0 %812
        %814 = vrot.lane.b32.xlu0 %v761, 127
        %v815 = vpop.permute.xlu0 %814
        %816 = vrot.lane.b32.xlu0 %v762, 127
        %v817 = vpop.permute.xlu0 %816
        %818 = vrot.lane.b32.xlu0 %v763, 127
        %v819 = vpop.permute.xlu0 %818
        %820 = vrot.lane.b32.xlu0 %v764, 127
        %v821 = vpop.permute.xlu0 %820
        %822 = vrot.lane.b32.xlu0 %v765, 127
        %v823 = vpop.permute.xlu0 %822
        %824 = vrot.lane.b32.xlu0 %v766, 127
        %v825 = vpop.permute.xlu0 %824
        %826 = vrot.lane.b32.xlu0 %v767, 127
        %v827 = vpop.permute.xlu0 %826
        %828 = vrot.lane.b32.xlu0 %v768, 127
        %v829 = vpop.permute.xlu0 %828
        %830 = vrot.lane.b32.xlu0 %v769, 127
        %v831 = vpop.permute.xlu0 %830
        %832 = vrot.lane.b32.xlu0 %v770, 127
        %v833 = vpop.permute.xlu0 %832
        %834 = vrot.lane.b32.xlu0 %v771, 127
        %v835 = vpop.permute.xlu0 %834
        %836 = vrot.lane.b32.xlu0 %v772, 127
        %v837 = vpop.permute.xlu0 %836
        %838 = vrot.lane.b32.xlu0 %v773, 127
        %v839 = vpop.permute.xlu0 %838
        %840 = vrot.lane.b32.xlu0 %v774, 127
        %v841 = vpop.permute.xlu0 %840
        %842 = vrot.lane.b32.xlu0 %v775, 127
        %v843 = vpop.permute.xlu0 %842
        %844 = vrot.lane.b32.xlu0 %v776, 127
        %v845 = vpop.permute.xlu0 %844
        %846 = vrot.lane.b32.xlu0 %v777, 127
        %v847 = vpop.permute.xlu0 %846
        %848 = vrot.lane.b32.xlu0 %v778, 127
        %v849 = vpop.permute.xlu0 %848
        %850 = vrot.lane.b32.xlu0 %v779, 127
        %v851 = vpop.permute.xlu0 %850
        %vm852 = vcmask 1039360
        %v853 = vsel %vm852, %v805, %v807
        %v854 = vsel %vm852, %v807, %v809
        %v855 = vsel %vm852, %v811, %v813
        %v856 = vsel %vm852, %v813, %v815
        %v857 = vsel %vm852, %v817, %v819
        %v858 = vsel %vm852, %v819, %v821
        %v859 = vsel %vm852, %v823, %v825
        %v860 = vsel %vm852, %v825, %v827
        %v861 = vsel %vm852, %v829, %v831
        %v862 = vsel %vm852, %v831, %v833
        %v863 = vsel %vm852, %v835, %v837
        %v864 = vsel %vm852, %v837, %v839
        %v865 = vsel %vm852, %v841, %v843
        %v866 = vsel %vm852, %v843, %v845
        %v867 = vsel %vm852, %v847, %v849
        %v868 = vsel %vm852, %v849, %v851
        %v893 = vadd.f32 %v693, %v853
        %v894 = vadd.f32 %v694, %v854
        %v895 = vadd.f32 %v695, %v809
        %v896 = vadd.f32 %v696, %v855
        %v897 = vadd.f32 %v697, %v856
        %v898 = vadd.f32 %v698, %v815
        %v899 = vadd.f32 %v699, %v857
        %v900 = vadd.f32 %v700, %v858
        %v901 = vadd.f32 %v701, %v821
        %v902 = vadd.f32 %v702, %v859
        %v903 = vadd.f32 %v703, %v860
        %v904 = vadd.f32 %v704, %v827
        %v905 = vadd.f32 %v705, %v861
        %v906 = vadd.f32 %v706, %v862
        %v907 = vadd.f32 %v707, %v833
        %v908 = vadd.f32 %v708, %v863
        %v909 = vadd.f32 %v709, %v864
        %v910 = vadd.f32 %v710, %v839
        %v911 = vadd.f32 %v711, %v865
        %v912 = vadd.f32 %v712, %v866
        %v913 = vadd.f32 %v713, %v845
        %v914 = vadd.f32 %v714, %v867
        %v915 = vadd.f32 %v715, %v868
        %v916 = vadd.f32 %v716, %v851
        %918 = vrot.lane.b32.xlu0 %v564, 113
        %v919 = vpop.permute.xlu0 %918
        %v920 = vrot.slane %v919, 7
        %vm921 = vcmask 924672
        %v922 = vsel %vm921, %v920, %v919
        %v924 = vmul.f32 %v605, %v922
        %925 = vset.pattern.permute.xlu0 2
        %926 = vperm.xlu0 %925, %v614
        %v927 = vpop.permute.xlu0 %926
        %929 = vset.pattern.permute.xlu0 2
        %930 = vperm.xlu0 %929, %v615
        %v931 = vpop.permute.xlu0 %930
        %933 = vset.pattern.permute.xlu0 2
        %934 = vperm.xlu0 %933, %v616
        %v935 = vpop.permute.xlu0 %934
        %937 = vset.pattern.permute.xlu0 2
        %938 = vperm.xlu0 %937, %v617
        %v939 = vpop.permute.xlu0 %938
        %941 = vset.pattern.permute.xlu0 2
        %942 = vperm.xlu0 %941, %v618
        %v943 = vpop.permute.xlu0 %942
        %945 = vset.pattern.permute.xlu0 2
        %946 = vperm.xlu0 %945, %v619
        %v947 = vpop.permute.xlu0 %946
        %949 = vset.pattern.permute.xlu0 2
        %950 = vperm.xlu0 %949, %v620
        %v951 = vpop.permute.xlu0 %950
        %953 = vset.pattern.permute.xlu0 2
        %954 = vperm.xlu0 %953, %v621
        %v955 = vpop.permute.xlu0 %954
        %v958 = vperm.slane %v924, 0
        %v959 = vperm.slane %v924, 1
        %v960 = vperm.slane %v924, 2
        %v964 = vmul.f32 %v927, %v958
        %v965 = vmul.f32 %v927, %v959
        %v966 = vmul.f32 %v927, %v960
        %v967 = vmul.f32 %v931, %v958
        %v968 = vmul.f32 %v931, %v959
        %v969 = vmul.f32 %v931, %v960
        %v970 = vmul.f32 %v935, %v958
        %v971 = vmul.f32 %v935, %v959
        %v972 = vmul.f32 %v935, %v960
        %v973 = vmul.f32 %v939, %v958
        %v974 = vmul.f32 %v939, %v959
        %v975 = vmul.f32 %v939, %v960
        %v976 = vmul.f32 %v943, %v958
        %v977 = vmul.f32 %v943, %v959
        %v978 = vmul.f32 %v943, %v960
        %v979 = vmul.f32 %v947, %v958
        %v980 = vmul.f32 %v947, %v959
        %v981 = vmul.f32 %v947, %v960
        %v982 = vmul.f32 %v951, %v958
        %v983 = vmul.f32 %v951, %v959
        %v984 = vmul.f32 %v951, %v960
        %v985 = vmul.f32 %v955, %v958
        %v986 = vmul.f32 %v955, %v959
        %v987 = vmul.f32 %v955, %v960
        %1012 = vrot.lane.b32.xlu0 %v964, 126
        %v1013 = vpop.permute.xlu0 %1012
        %1014 = vrot.lane.b32.xlu0 %v965, 126
        %v1015 = vpop.permute.xlu0 %1014
        %1016 = vrot.lane.b32.xlu0 %v966, 126
        %v1017 = vpop.permute.xlu0 %1016
        %1018 = vrot.lane.b32.xlu0 %v967, 126
        %v1019 = vpop.permute.xlu0 %1018
        %1020 = vrot.lane.b32.xlu0 %v968, 126
        %v1021 = vpop.permute.xlu0 %1020
        %1022 = vrot.lane.b32.xlu0 %v969, 126
        %v1023 = vpop.permute.xlu0 %1022
        %1024 = vrot.lane.b32.xlu0 %v970, 126
        %v1025 = vpop.permute.xlu0 %1024
        %1026 = vrot.lane.b32.xlu0 %v971, 126
        %v1027 = vpop.permute.xlu0 %1026
        %1028 = vrot.lane.b32.xlu0 %v972, 126
        %v1029 = vpop.permute.xlu0 %1028
        %1030 = vrot.lane.b32.xlu0 %v973, 126
        %v1031 = vpop.permute.xlu0 %1030
        %1032 = vrot.lane.b32.xlu0 %v974, 126
        %v1033 = vpop.permute.xlu0 %1032
        %1034 = vrot.lane.b32.xlu0 %v975, 126
        %v1035 = vpop.permute.xlu0 %1034
        %1036 = vrot.lane.b32.xlu0 %v976, 126
        %v1037 = vpop.permute.xlu0 %1036
        %1038 = vrot.lane.b32.xlu0 %v977, 126
        %v1039 = vpop.permute.xlu0 %1038
        %1040 = vrot.lane.b32.xlu0 %v978, 126
        %v1041 = vpop.permute.xlu0 %1040
        %1042 = vrot.lane.b32.xlu0 %v979, 126
        %v1043 = vpop.permute.xlu0 %1042
        %1044 = vrot.lane.b32.xlu0 %v980, 126
        %v1045 = vpop.permute.xlu0 %1044
        %1046 = vrot.lane.b32.xlu0 %v981, 126
        %v1047 = vpop.permute.xlu0 %1046
        %1048 = vrot.lane.b32.xlu0 %v982, 126
        %v1049 = vpop.permute.xlu0 %1048
        %1050 = vrot.lane.b32.xlu0 %v983, 126
        %v1051 = vpop.permute.xlu0 %1050
        %1052 = vrot.lane.b32.xlu0 %v984, 126
        %v1053 = vpop.permute.xlu0 %1052
        %1054 = vrot.lane.b32.xlu0 %v985, 126
        %v1055 = vpop.permute.xlu0 %1054
        %1056 = vrot.lane.b32.xlu0 %v986, 126
        %v1057 = vpop.permute.xlu0 %1056
        %1058 = vrot.lane.b32.xlu0 %v987, 126
        %v1059 = vpop.permute.xlu0 %1058
        %vm1060 = vcmask 1031168
        %v1061 = vsel %vm1060, %v1013, %v1015
        %v1062 = vsel %vm1060, %v1015, %v1017
        %v1063 = vsel %vm1060, %v1019, %v1021
        %v1064 = vsel %vm1060, %v1021, %v1023
        %v1065 = vsel %vm1060, %v1025, %v1027
        %v1066 = vsel %vm1060, %v1027, %v1029
        %v1067 = vsel %vm1060, %v1031, %v1033
        %v1068 = vsel %vm1060, %v1033, %v1035
        %v1069 = vsel %vm1060, %v1037, %v1039
        %v1070 = vsel %vm1060, %v1039, %v1041
        %v1071 = vsel %vm1060, %v1043, %v1045
        %v1072 = vsel %vm1060, %v1045, %v1047
        %v1073 = vsel %vm1060, %v1049, %v1051
        %v1074 = vsel %vm1060, %v1051, %v1053
        %v1075 = vsel %vm1060, %v1055, %v1057
        %v1076 = vsel %vm1060, %v1057, %v1059
        %v1101 = vadd.f32 %v893, %v1061
        %v1102 = vadd.f32 %v894, %v1062
        %v1103 = vadd.f32 %v895, %v1017
        %v1104 = vadd.f32 %v896, %v1063
        %v1105 = vadd.f32 %v897, %v1064
        %v1106 = vadd.f32 %v898, %v1023
        %v1107 = vadd.f32 %v899, %v1065
        %v1108 = vadd.f32 %v900, %v1066
        %v1109 = vadd.f32 %v901, %v1029
        %v1110 = vadd.f32 %v902, %v1067
        %v1111 = vadd.f32 %v903, %v1068
        %v1112 = vadd.f32 %v904, %v1035
        %v1113 = vadd.f32 %v905, %v1069
        %v1114 = vadd.f32 %v906, %v1070
        %v1115 = vadd.f32 %v907, %v1041
        %v1116 = vadd.f32 %v908, %v1071
        %v1117 = vadd.f32 %v909, %v1072
        %v1118 = vadd.f32 %v910, %v1047
        %v1119 = vadd.f32 %v911, %v1073
        %v1120 = vadd.f32 %v912, %v1074
        %v1121 = vadd.f32 %v913, %v1053
        %v1122 = vadd.f32 %v914, %v1075
        %v1123 = vadd.f32 %v915, %v1076
        %v1124 = vadd.f32 %v916, %v1059
        %1125 = vrot.lane.b32.xlu0 %v562, 127
        %v1126 = vpop.permute.xlu0 %1125
        %v1127 = vrot.slane %v1126, 7
        %v1128 = vsel %vm852, %v1127, %v1126
        %v1130 = vmul.f32 %v605, %v1128
        %1131 = vset.pattern.permute.xlu0 3
        %1132 = vperm.xlu0 %1131, %v614
        %v1133 = vpop.permute.xlu0 %1132
        %1135 = vset.pattern.permute.xlu0 3
        %1136 = vperm.xlu0 %1135, %v615
        %v1137 = vpop.permute.xlu0 %1136
        %1139 = vset.pattern.permute.xlu0 3
        %1140 = vperm.xlu0 %1139, %v616
        %v1141 = vpop.permute.xlu0 %1140
        %1143 = vset.pattern.permute.xlu0 3
        %1144 = vperm.xlu0 %1143, %v617
        %v1145 = vpop.permute.xlu0 %1144
        %1147 = vset.pattern.permute.xlu0 3
        %1148 = vperm.xlu0 %1147, %v618
        %v1149 = vpop.permute.xlu0 %1148
        %1151 = vset.pattern.permute.xlu0 3
        %1152 = vperm.xlu0 %1151, %v619
        %v1153 = vpop.permute.xlu0 %1152
        %1155 = vset.pattern.permute.xlu0 3
        %1156 = vperm.xlu0 %1155, %v620
        %v1157 = vpop.permute.xlu0 %1156
        %1159 = vset.pattern.permute.xlu0 3
        %1160 = vperm.xlu0 %1159, %v621
        %v1161 = vpop.permute.xlu0 %1160
        %v1164 = vperm.slane %v1130, 0
        %v1165 = vperm.slane %v1130, 1
        %v1166 = vperm.slane %v1130, 2
        %v1170 = vmul.f32 %v1133, %v1164
        %v1171 = vmul.f32 %v1133, %v1165
        %v1172 = vmul.f32 %v1133, %v1166
        %v1173 = vmul.f32 %v1137, %v1164
        %v1174 = vmul.f32 %v1137, %v1165
        %v1175 = vmul.f32 %v1137, %v1166
        %v1176 = vmul.f32 %v1141, %v1164
        %v1177 = vmul.f32 %v1141, %v1165
        %v1178 = vmul.f32 %v1141, %v1166
        %v1179 = vmul.f32 %v1145, %v1164
        %v1180 = vmul.f32 %v1145, %v1165
        %v1181 = vmul.f32 %v1145, %v1166
        %v1182 = vmul.f32 %v1149, %v1164
        %v1183 = vmul.f32 %v1149, %v1165
        %v1184 = vmul.f32 %v1149, %v1166
        %v1185 = vmul.f32 %v1153, %v1164
        %v1186 = vmul.f32 %v1153, %v1165
        %v1187 = vmul.f32 %v1153, %v1166
        %v1188 = vmul.f32 %v1157, %v1164
        %v1189 = vmul.f32 %v1157, %v1165
        %v1190 = vmul.f32 %v1157, %v1166
        %v1191 = vmul.f32 %v1161, %v1164
        %v1192 = vmul.f32 %v1161, %v1165
        %v1193 = vmul.f32 %v1161, %v1166
        %1218 = vrot.lane.b32.xlu0 %v1170, 112
        %v1219 = vpop.permute.xlu0 %1218
        %1220 = vrot.lane.b32.xlu0 %v1171, 112
        %v1221 = vpop.permute.xlu0 %1220
        %1222 = vrot.lane.b32.xlu0 %v1172, 112
        %v1223 = vpop.permute.xlu0 %1222
        %1224 = vrot.lane.b32.xlu0 %v1173, 112
        %v1225 = vpop.permute.xlu0 %1224
        %1226 = vrot.lane.b32.xlu0 %v1174, 112
        %v1227 = vpop.permute.xlu0 %1226
        %1228 = vrot.lane.b32.xlu0 %v1175, 112
        %v1229 = vpop.permute.xlu0 %1228
        %1230 = vrot.lane.b32.xlu0 %v1176, 112
        %v1231 = vpop.permute.xlu0 %1230
        %1232 = vrot.lane.b32.xlu0 %v1177, 112
        %v1233 = vpop.permute.xlu0 %1232
        %1234 = vrot.lane.b32.xlu0 %v1178, 112
        %v1235 = vpop.permute.xlu0 %1234
        %1236 = vrot.lane.b32.xlu0 %v1179, 112
        %v1237 = vpop.permute.xlu0 %1236
        %1238 = vrot.lane.b32.xlu0 %v1180, 112
        %v1239 = vpop.permute.xlu0 %1238
        %1240 = vrot.lane.b32.xlu0 %v1181, 112
        %v1241 = vpop.permute.xlu0 %1240
        %1242 = vrot.lane.b32.xlu0 %v1182, 112
        %v1243 = vpop.permute.xlu0 %1242
        %1244 = vrot.lane.b32.xlu0 %v1183, 112
        %v1245 = vpop.permute.xlu0 %1244
        %1246 = vrot.lane.b32.xlu0 %v1184, 112
        %v1247 = vpop.permute.xlu0 %1246
        %1248 = vrot.lane.b32.xlu0 %v1185, 112
        %v1249 = vpop.permute.xlu0 %1248
        %1250 = vrot.lane.b32.xlu0 %v1186, 112
        %v1251 = vpop.permute.xlu0 %1250
        %1252 = vrot.lane.b32.xlu0 %v1187, 112
        %v1253 = vpop.permute.xlu0 %1252
        %1254 = vrot.lane.b32.xlu0 %v1188, 112
        %v1255 = vpop.permute.xlu0 %1254
        %1256 = vrot.lane.b32.xlu0 %v1189, 112
        %v1257 = vpop.permute.xlu0 %1256
        %1258 = vrot.lane.b32.xlu0 %v1190, 112
        %v1259 = vpop.permute.xlu0 %1258
        %1260 = vrot.lane.b32.xlu0 %v1191, 112
        %v1261 = vpop.permute.xlu0 %1260
        %1262 = vrot.lane.b32.xlu0 %v1192, 112
        %v1263 = vpop.permute.xlu0 %1262
        %1264 = vrot.lane.b32.xlu0 %v1193, 112
        %v1265 = vpop.permute.xlu0 %1264
        %vm1266 = vcmask 916480
        %v1267 = vsel %vm1266, %v1219, %v1221
        %v1268 = vsel %vm1266, %v1221, %v1223
        %v1269 = vsel %vm1266, %v1225, %v1227
        %v1270 = vsel %vm1266, %v1227, %v1229
        %v1271 = vsel %vm1266, %v1231, %v1233
        %v1272 = vsel %vm1266, %v1233, %v1235
        %v1273 = vsel %vm1266, %v1237, %v1239
        %v1274 = vsel %vm1266, %v1239, %v1241
        %v1275 = vsel %vm1266, %v1243, %v1245
        %v1276 = vsel %vm1266, %v1245, %v1247
        %v1277 = vsel %vm1266, %v1249, %v1251
        %v1278 = vsel %vm1266, %v1251, %v1253
        %v1279 = vsel %vm1266, %v1255, %v1257
        %v1280 = vsel %vm1266, %v1257, %v1259
        %v1281 = vsel %vm1266, %v1261, %v1263
        %v1282 = vsel %vm1266, %v1263, %v1265
        %v1307 = vadd.f32 %v1101, %v1267
        %v1308 = vadd.f32 %v1102, %v1268
        %v1309 = vadd.f32 %v1103, %v1223
        %v1310 = vadd.f32 %v1104, %v1269
        %v1311 = vadd.f32 %v1105, %v1270
        %v1312 = vadd.f32 %v1106, %v1229
        %v1313 = vadd.f32 %v1107, %v1271
        %v1314 = vadd.f32 %v1108, %v1272
        %v1315 = vadd.f32 %v1109, %v1235
        %v1316 = vadd.f32 %v1110, %v1273
        %v1317 = vadd.f32 %v1111, %v1274
        %v1318 = vadd.f32 %v1112, %v1241
        %v1319 = vadd.f32 %v1113, %v1275
        %v1320 = vadd.f32 %v1114, %v1276
        %v1321 = vadd.f32 %v1115, %v1247
        %v1322 = vadd.f32 %v1116, %v1277
        %v1323 = vadd.f32 %v1117, %v1278
        %v1324 = vadd.f32 %v1118, %v1253
        %v1325 = vadd.f32 %v1119, %v1279
        %v1326 = vadd.f32 %v1120, %v1280
        %v1327 = vadd.f32 %v1121, %v1259
        %v1328 = vadd.f32 %v1122, %v1281
        %v1329 = vadd.f32 %v1123, %v1282
        %v1330 = vadd.f32 %v1124, %v1265
        %v1331 = vld [vmem:[%s602] ss:$8 sm:$0x3]
        %1332 = vset.pattern.permute.xlu0 4
        %1333 = vperm.xlu0 %1332, %v614
        %v1334 = vpop.permute.xlu0 %1333
        %1336 = vset.pattern.permute.xlu0 4
        %1337 = vperm.xlu0 %1336, %v615
        %v1338 = vpop.permute.xlu0 %1337
        %1340 = vset.pattern.permute.xlu0 4
        %1341 = vperm.xlu0 %1340, %v616
        %v1342 = vpop.permute.xlu0 %1341
        %1344 = vset.pattern.permute.xlu0 4
        %1345 = vperm.xlu0 %1344, %v617
        %v1346 = vpop.permute.xlu0 %1345
        %1348 = vset.pattern.permute.xlu0 4
        %1349 = vperm.xlu0 %1348, %v618
        %v1350 = vpop.permute.xlu0 %1349
        %1352 = vset.pattern.permute.xlu0 4
        %1353 = vperm.xlu0 %1352, %v619
        %v1354 = vpop.permute.xlu0 %1353
        %1356 = vset.pattern.permute.xlu0 4
        %1357 = vperm.xlu0 %1356, %v620
        %v1358 = vpop.permute.xlu0 %1357
        %1360 = vset.pattern.permute.xlu0 4
        %1361 = vperm.xlu0 %1360, %v621
        %v1362 = vpop.permute.xlu0 %1361
        %v1365 = vperm.slane %v1331, 0
        %v1366 = vperm.slane %v1331, 1
        %v1369 = vmul.f32 %v1334, %v1365
        %v1370 = vmul.f32 %v1334, %v1366
        %v1371 = vmul.f32 %v1338, %v1365
        %v1372 = vmul.f32 %v1338, %v1366
        %v1373 = vmul.f32 %v1342, %v1365
        %v1374 = vmul.f32 %v1342, %v1366
        %v1375 = vmul.f32 %v1346, %v1365
        %v1376 = vmul.f32 %v1346, %v1366
        %v1377 = vmul.f32 %v1350, %v1365
        %v1378 = vmul.f32 %v1350, %v1366
        %v1379 = vmul.f32 %v1354, %v1365
        %v1380 = vmul.f32 %v1354, %v1366
        %v1381 = vmul.f32 %v1358, %v1365
        %v1382 = vmul.f32 %v1358, %v1366
        %v1383 = vmul.f32 %v1362, %v1365
        %v1384 = vmul.f32 %v1362, %v1366
        %1401 = vrot.lane.b32.xlu0 %v1369, 111
        %v1402 = vpop.permute.xlu0 %1401
        %1403 = vrot.lane.b32.xlu0 %v1370, 111
        %v1404 = vpop.permute.xlu0 %1403
        %1405 = vrot.lane.b32.xlu0 %v1371, 111
        %v1406 = vpop.permute.xlu0 %1405
        %1407 = vrot.lane.b32.xlu0 %v1372, 111
        %v1408 = vpop.permute.xlu0 %1407
        %1409 = vrot.lane.b32.xlu0 %v1373, 111
        %v1410 = vpop.permute.xlu0 %1409
        %1411 = vrot.lane.b32.xlu0 %v1374, 111
        %v1412 = vpop.permute.xlu0 %1411
        %1413 = vrot.lane.b32.xlu0 %v1375, 111
        %v1414 = vpop.permute.xlu0 %1413
        %1415 = vrot.lane.b32.xlu0 %v1376, 111
        %v1416 = vpop.permute.xlu0 %1415
        %1417 = vrot.lane.b32.xlu0 %v1377, 111
        %v1418 = vpop.permute.xlu0 %1417
        %1419 = vrot.lane.b32.xlu0 %v1378, 111
        %v1420 = vpop.permute.xlu0 %1419
        %1421 = vrot.lane.b32.xlu0 %v1379, 111
        %v1422 = vpop.permute.xlu0 %1421
        %1423 = vrot.lane.b32.xlu0 %v1380, 111
        %v1424 = vpop.permute.xlu0 %1423
        %1425 = vrot.lane.b32.xlu0 %v1381, 111
        %v1426 = vpop.permute.xlu0 %1425
        %1427 = vrot.lane.b32.xlu0 %v1382, 111
        %v1428 = vpop.permute.xlu0 %1427
        %1429 = vrot.lane.b32.xlu0 %v1383, 111
        %v1430 = vpop.permute.xlu0 %1429
        %1431 = vrot.lane.b32.xlu0 %v1384, 111
        %v1432 = vpop.permute.xlu0 %1431
        %v1433 = vsel %vm610, %v1402, %v1404
        %v1434 = vsel %vm610, %v1406, %v1408
        %v1435 = vsel %vm610, %v1410, %v1412
        %v1436 = vsel %vm610, %v1414, %v1416
        %v1437 = vsel %vm610, %v1418, %v1420
        %v1438 = vsel %vm610, %v1422, %v1424
        %v1439 = vsel %vm610, %v1426, %v1428
        %v1440 = vsel %vm610, %v1430, %v1432
        %v1465 = vadd.f32 %v1307, %v1402
        %v1466 = vadd.f32 %v1308, %v1433
        %v1467 = vadd.f32 %v1309, %v1404
        %v1468 = vadd.f32 %v1310, %v1406
        %v1469 = vadd.f32 %v1311, %v1434
        %v1470 = vadd.f32 %v1312, %v1408
        %v1471 = vadd.f32 %v1313, %v1410
        %v1472 = vadd.f32 %v1314, %v1435
        %v1473 = vadd.f32 %v1315, %v1412
        %v1474 = vadd.f32 %v1316, %v1414
        %v1475 = vadd.f32 %v1317, %v1436
        %v1476 = vadd.f32 %v1318, %v1416
        %v1477 = vadd.f32 %v1319, %v1418
        %v1478 = vadd.f32 %v1320, %v1437
        %v1479 = vadd.f32 %v1321, %v1420
        %v1480 = vadd.f32 %v1322, %v1422
        %v1481 = vadd.f32 %v1323, %v1438
        %v1482 = vadd.f32 %v1324, %v1424
        %v1483 = vadd.f32 %v1325, %v1426
        %v1484 = vadd.f32 %v1326, %v1439
        %v1485 = vadd.f32 %v1327, %v1428
        %v1486 = vadd.f32 %v1328, %v1430
        %v1487 = vadd.f32 %v1329, %v1440
        %v1488 = vadd.f32 %v1330, %v1432
        %v1489 = vld [vmem:[%s602] ss:$8 sm:$0x7]
        %1490 = vrot.lane.b32.xlu0 %v564, 1
        %v1491 = vpop.permute.xlu0 %1490
        %v1492 = vrot.slane %v1491, 7
        %vm1493 = vcmask 7168
        %v1494 = vsel %vm1493, %v1492, %v1491
        %v1496 = vmul.f32 %v1489, %v1494
        %1497 = vset.pattern.permute.xlu0 5
        %1498 = vperm.xlu0 %1497, %v614
        %v1499 = vpop.permute.xlu0 %1498
        %1501 = vset.pattern.permute.xlu0 5
        %1502 = vperm.xlu0 %1501, %v615
        %v1503 = vpop.permute.xlu0 %1502
        %1505 = vset.pattern.permute.xlu0 5
        %1506 = vperm.xlu0 %1505, %v616
        %v1507 = vpop.permute.xlu0 %1506
        %1509 = vset.pattern.permute.xlu0 5
        %1510 = vperm.xlu0 %1509, %v617
        %v1511 = vpop.permute.xlu0 %1510
        %1513 = vset.pattern.permute.xlu0 5
        %1514 = vperm.xlu0 %1513, %v618
        %v1515 = vpop.permute.xlu0 %1514
        %1517 = vset.pattern.permute.xlu0 5
        %1518 = vperm.xlu0 %1517, %v619
        %v1519 = vpop.permute.xlu0 %1518
        %1521 = vset.pattern.permute.xlu0 5
        %1522 = vperm.xlu0 %1521, %v620
        %v1523 = vpop.permute.xlu0 %1522
        %1525 = vset.pattern.permute.xlu0 5
        %1526 = vperm.xlu0 %1525, %v621
        %v1527 = vpop.permute.xlu0 %1526
        %v1530 = vperm.slane %v1496, 0
        %v1531 = vperm.slane %v1496, 1
        %v1532 = vperm.slane %v1496, 2
        %v1536 = vmul.f32 %v1499, %v1530
        %v1537 = vmul.f32 %v1499, %v1531
        %v1538 = vmul.f32 %v1499, %v1532
        %v1539 = vmul.f32 %v1503, %v1530
        %v1540 = vmul.f32 %v1503, %v1531
        %v1541 = vmul.f32 %v1503, %v1532
        %v1542 = vmul.f32 %v1507, %v1530
        %v1543 = vmul.f32 %v1507, %v1531
        %v1544 = vmul.f32 %v1507, %v1532
        %v1545 = vmul.f32 %v1511, %v1530
        %v1546 = vmul.f32 %v1511, %v1531
        %v1547 = vmul.f32 %v1511, %v1532
        %v1548 = vmul.f32 %v1515, %v1530
        %v1549 = vmul.f32 %v1515, %v1531
        %v1550 = vmul.f32 %v1515, %v1532
        %v1551 = vmul.f32 %v1519, %v1530
        %v1552 = vmul.f32 %v1519, %v1531
        %v1553 = vmul.f32 %v1519, %v1532
        %v1554 = vmul.f32 %v1523, %v1530
        %v1555 = vmul.f32 %v1523, %v1531
        %v1556 = vmul.f32 %v1523, %v1532
        %v1557 = vmul.f32 %v1527, %v1530
        %v1558 = vmul.f32 %v1527, %v1531
        %v1559 = vmul.f32 %v1527, %v1532
        %1584 = vrot.lane.b32.xlu0 %v1536, 110
        %v1585 = vpop.permute.xlu0 %1584
        %1586 = vrot.lane.b32.xlu0 %v1537, 110
        %v1587 = vpop.permute.xlu0 %1586
        %1588 = vrot.lane.b32.xlu0 %v1538, 110
        %v1589 = vpop.permute.xlu0 %1588
        %1590 = vrot.lane.b32.xlu0 %v1539, 110
        %v1591 = vpop.permute.xlu0 %1590
        %1592 = vrot.lane.b32.xlu0 %v1540, 110
        %v1593 = vpop.permute.xlu0 %1592
        %1594 = vrot.lane.b32.xlu0 %v1541, 110
        %v1595 = vpop.permute.xlu0 %1594
        %1596 = vrot.lane.b32.xlu0 %v1542, 110
        %v1597 = vpop.permute.xlu0 %1596
        %1598 = vrot.lane.b32.xlu0 %v1543, 110
        %v1599 = vpop.permute.xlu0 %1598
        %1600 = vrot.lane.b32.xlu0 %v1544, 110
        %v1601 = vpop.permute.xlu0 %1600
        %1602 = vrot.lane.b32.xlu0 %v1545, 110
        %v1603 = vpop.permute.xlu0 %1602
        %1604 = vrot.lane.b32.xlu0 %v1546, 110
        %v1605 = vpop.permute.xlu0 %1604
        %1606 = vrot.lane.b32.xlu0 %v1547, 110
        %v1607 = vpop.permute.xlu0 %1606
        %1608 = vrot.lane.b32.xlu0 %v1548, 110
        %v1609 = vpop.permute.xlu0 %1608
        %1610 = vrot.lane.b32.xlu0 %v1549, 110
        %v1611 = vpop.permute.xlu0 %1610
        %1612 = vrot.lane.b32.xlu0 %v1550, 110
        %v1613 = vpop.permute.xlu0 %1612
        %1614 = vrot.lane.b32.xlu0 %v1551, 110
        %v1615 = vpop.permute.xlu0 %1614
        %1616 = vrot.lane.b32.xlu0 %v1552, 110
        %v1617 = vpop.permute.xlu0 %1616
        %1618 = vrot.lane.b32.xlu0 %v1553, 110
        %v1619 = vpop.permute.xlu0 %1618
        %1620 = vrot.lane.b32.xlu0 %v1554, 110
        %v1621 = vpop.permute.xlu0 %1620
        %1622 = vrot.lane.b32.xlu0 %v1555, 110
        %v1623 = vpop.permute.xlu0 %1622
        %1624 = vrot.lane.b32.xlu0 %v1556, 110
        %v1625 = vpop.permute.xlu0 %1624
        %1626 = vrot.lane.b32.xlu0 %v1557, 110
        %v1627 = vpop.permute.xlu0 %1626
        %1628 = vrot.lane.b32.xlu0 %v1558, 110
        %v1629 = vpop.permute.xlu0 %1628
        %1630 = vrot.lane.b32.xlu0 %v1559, 110
        %v1631 = vpop.permute.xlu0 %1630
        %vm1632 = vcmask 900096
        %v1633 = vsel %vm1632, %v1585, %v1587
        %v1634 = vsel %vm1632, %v1587, %v1589
        %v1635 = vsel %vm1632, %v1591, %v1593
        %v1636 = vsel %vm1632, %v1593, %v1595
        %v1637 = vsel %vm1632, %v1597, %v1599
        %v1638 = vsel %vm1632, %v1599, %v1601
        %v1639 = vsel %vm1632, %v1603, %v1605
        %v1640 = vsel %vm1632, %v1605, %v1607
        %v1641 = vsel %vm1632, %v1609, %v1611
        %v1642 = vsel %vm1632, %v1611, %v1613
        %v1643 = vsel %vm1632, %v1615, %v1617
        %v1644 = vsel %vm1632, %v1617, %v1619
        %v1645 = vsel %vm1632, %v1621, %v1623
        %v1646 = vsel %vm1632, %v1623, %v1625
        %v1647 = vsel %vm1632, %v1627, %v1629
        %v1648 = vsel %vm1632, %v1629, %v1631
        %v1673 = vadd.f32 %v1465, %v1585
        %v1674 = vadd.f32 %v1466, %v1633
        %v1675 = vadd.f32 %v1467, %v1634
        %v1676 = vadd.f32 %v1468, %v1591
        %v1677 = vadd.f32 %v1469, %v1635
        %v1678 = vadd.f32 %v1470, %v1636
        %v1679 = vadd.f32 %v1471, %v1597
        %v1680 = vadd.f32 %v1472, %v1637
        %v1681 = vadd.f32 %v1473, %v1638
        %v1682 = vadd.f32 %v1474, %v1603
        %v1683 = vadd.f32 %v1475, %v1639
        %v1684 = vadd.f32 %v1476, %v1640
        %v1685 = vadd.f32 %v1477, %v1609
        %v1686 = vadd.f32 %v1478, %v1641
        %v1687 = vadd.f32 %v1479, %v1642
        %v1688 = vadd.f32 %v1480, %v1615
        %v1689 = vadd.f32 %v1481, %v1643
        %v1690 = vadd.f32 %v1482, %v1644
        %v1691 = vadd.f32 %v1483, %v1621
        %v1692 = vadd.f32 %v1484, %v1645
        %v1693 = vadd.f32 %v1485, %v1646
        %v1694 = vadd.f32 %v1486, %v1627
        %v1695 = vadd.f32 %v1487, %v1647
        %v1696 = vadd.f32 %v1488, %v1648
        %1697 = vrot.lane.b32.xlu0 %v562, 15
        %v1698 = vpop.permute.xlu0 %1697
        %v1699 = vrot.slane %v1698, 7
        %vm1700 = vcmask 121856
        %v1701 = vsel %vm1700, %v1699, %v1698
        %v1703 = vmul.f32 %v1489, %v1701
        %1704 = vset.pattern.permute.xlu0 6
        %1705 = vperm.xlu0 %1704, %v614
        %v1706 = vpop.permute.xlu0 %1705
        %1708 = vset.pattern.permute.xlu0 6
        %1709 = vperm.xlu0 %1708, %v615
        %v1710 = vpop.permute.xlu0 %1709
        %1712 = vset.pattern.permute.xlu0 6
        %1713 = vperm.xlu0 %1712, %v616
        %v1714 = vpop.permute.xlu0 %1713
        %1716 = vset.pattern.permute.xlu0 6
        %1717 = vperm.xlu0 %1716, %v617
        %v1718 = vpop.permute.xlu0 %1717
        %1720 = vset.pattern.permute.xlu0 6
        %1721 = vperm.xlu0 %1720, %v618
        %v1722 = vpop.permute.xlu0 %1721
        %1724 = vset.pattern.permute.xlu0 6
        %1725 = vperm.xlu0 %1724, %v619
        %v1726 = vpop.permute.xlu0 %1725
        %1728 = vset.pattern.permute.xlu0 6
        %1729 = vperm.xlu0 %1728, %v620
        %v1730 = vpop.permute.xlu0 %1729
        %1732 = vset.pattern.permute.xlu0 6
        %1733 = vperm.xlu0 %1732, %v621
        %v1734 = vpop.permute.xlu0 %1733
        %v1737 = vperm.slane %v1703, 0
        %v1738 = vperm.slane %v1703, 1
        %v1739 = vperm.slane %v1703, 2
        %v1743 = vmul.f32 %v1706, %v1737
        %v1744 = vmul.f32 %v1706, %v1738
        %v1745 = vmul.f32 %v1706, %v1739
        %v1746 = vmul.f32 %v1710, %v1737
        %v1747 = vmul.f32 %v1710, %v1738
        %v1748 = vmul.f32 %v1710, %v1739
        %v1749 = vmul.f32 %v1714, %v1737
        %v1750 = vmul.f32 %v1714, %v1738
        %v1751 = vmul.f32 %v1714, %v1739
        %v1752 = vmul.f32 %v1718, %v1737
        %v1753 = vmul.f32 %v1718, %v1738
        %v1754 = vmul.f32 %v1718, %v1739
        %v1755 = vmul.f32 %v1722, %v1737
        %v1756 = vmul.f32 %v1722, %v1738
        %v1757 = vmul.f32 %v1722, %v1739
        %v1758 = vmul.f32 %v1726, %v1737
        %v1759 = vmul.f32 %v1726, %v1738
        %v1760 = vmul.f32 %v1726, %v1739
        %v1761 = vmul.f32 %v1730, %v1737
        %v1762 = vmul.f32 %v1730, %v1738
        %v1763 = vmul.f32 %v1730, %v1739
        %v1764 = vmul.f32 %v1734, %v1737
        %v1765 = vmul.f32 %v1734, %v1738
        %v1766 = vmul.f32 %v1734, %v1739
        %1791 = vrot.lane.b32.xlu0 %v1743, 96
        %v1792 = vpop.permute.xlu0 %1791
        %1793 = vrot.lane.b32.xlu0 %v1744, 96
        %v1794 = vpop.permute.xlu0 %1793
        %1795 = vrot.lane.b32.xlu0 %v1745, 96
        %v1796 = vpop.permute.xlu0 %1795
        %1797 = vrot.lane.b32.xlu0 %v1746, 96
        %v1798 = vpop.permute.xlu0 %1797
        %1799 = vrot.lane.b32.xlu0 %v1747, 96
        %v1800 = vpop.permute.xlu0 %1799
        %1801 = vrot.lane.b32.xlu0 %v1748, 96
        %v1802 = vpop.permute.xlu0 %1801
        %1803 = vrot.lane.b32.xlu0 %v1749, 96
        %v1804 = vpop.permute.xlu0 %1803
        %1805 = vrot.lane.b32.xlu0 %v1750, 96
        %v1806 = vpop.permute.xlu0 %1805
        %1807 = vrot.lane.b32.xlu0 %v1751, 96
        %v1808 = vpop.permute.xlu0 %1807
        %1809 = vrot.lane.b32.xlu0 %v1752, 96
        %v1810 = vpop.permute.xlu0 %1809
        %1811 = vrot.lane.b32.xlu0 %v1753, 96
        %v1812 = vpop.permute.xlu0 %1811
        %1813 = vrot.lane.b32.xlu0 %v1754, 96
        %v1814 = vpop.permute.xlu0 %1813
        %1815 = vrot.lane.b32.xlu0 %v1755, 96
        %v1816 = vpop.permute.xlu0 %1815
        %1817 = vrot.lane.b32.xlu0 %v1756, 96
        %v1818 = vpop.permute.xlu0 %1817
        %1819 = vrot.lane.b32.xlu0 %v1757, 96
        %v1820 = vpop.permute.xlu0 %1819
        %1821 = vrot.lane.b32.xlu0 %v1758, 96
        %v1822 = vpop.permute.xlu0 %1821
        %1823 = vrot.lane.b32.xlu0 %v1759, 96
        %v1824 = vpop.permute.xlu0 %1823
        %1825 = vrot.lane.b32.xlu0 %v1760, 96
        %v1826 = vpop.permute.xlu0 %1825
        %1827 = vrot.lane.b32.xlu0 %v1761, 96
        %v1828 = vpop.permute.xlu0 %1827
        %1829 = vrot.lane.b32.xlu0 %v1762, 96
        %v1830 = vpop.permute.xlu0 %1829
        %1831 = vrot.lane.b32.xlu0 %v1763, 96
        %v1832 = vpop.permute.xlu0 %1831
        %1833 = vrot.lane.b32.xlu0 %v1764, 96
        %v1834 = vpop.permute.xlu0 %1833
        %1835 = vrot.lane.b32.xlu0 %v1765, 96
        %v1836 = vpop.permute.xlu0 %1835
        %1837 = vrot.lane.b32.xlu0 %v1766, 96
        %v1838 = vpop.permute.xlu0 %1837
        %vm1839 = vcmask 785408
        %v1840 = vsel %vm1839, %v1792, %v1794
        %v1841 = vsel %vm1839, %v1794, %v1796
        %v1842 = vsel %vm1839, %v1798, %v1800
        %v1843 = vsel %vm1839, %v1800, %v1802
        %v1844 = vsel %vm1839, %v1804, %v1806
        %v1845 = vsel %vm1839, %v1806, %v1808
        %v1846 = vsel %vm1839, %v1810, %v1812
        %v1847 = vsel %vm1839, %v1812, %v1814
        %v1848 = vsel %vm1839, %v1816, %v1818
        %v1849 = vsel %vm1839, %v1818, %v1820
        %v1850 = vsel %vm1839, %v1822, %v1824
        %v1851 = vsel %vm1839, %v1824, %v1826
        %v1852 = vsel %vm1839, %v1828, %v1830
        %v1853 = vsel %vm1839, %v1830, %v1832
        %v1854 = vsel %vm1839, %v1834, %v1836
        %v1855 = vsel %vm1839, %v1836, %v1838
        %v1880 = vadd.f32 %v1673, %v1792
        %v1881 = vadd.f32 %v1674, %v1840
        %v1882 = vadd.f32 %v1675, %v1841
        %v1883 = vadd.f32 %v1676, %v1798
        %v1884 = vadd.f32 %v1677, %v1842
        %v1885 = vadd.f32 %v1678, %v1843
        %v1886 = vadd.f32 %v1679, %v1804
        %v1887 = vadd.f32 %v1680, %v1844
        %v1888 = vadd.f32 %v1681, %v1845
        %v1889 = vadd.f32 %v1682, %v1810
        %v1890 = vadd.f32 %v1683, %v1846
        %v1891 = vadd.f32 %v1684, %v1847
        %v1892 = vadd.f32 %v1685, %v1816
        %v1893 = vadd.f32 %v1686, %v1848
        %v1894 = vadd.f32 %v1687, %v1849
        %v1895 = vadd.f32 %v1688, %v1822
        %v1896 = vadd.f32 %v1689, %v1850
        %v1897 = vadd.f32 %v1690, %v1851
        %v1898 = vadd.f32 %v1691, %v1828
        %v1899 = vadd.f32 %v1692, %v1852
        %v1900 = vadd.f32 %v1693, %v1853
        %v1901 = vadd.f32 %v1694, %v1834
        %v1902 = vadd.f32 %v1695, %v1854
        %v1903 = vadd.f32 %v1696, %v1855
        %1904 = vset.pattern.permute.xlu0 7
        %1905 = vperm.xlu0 %1904, %v614
        %v1906 = vpop.permute.xlu0 %1905
        %1908 = vset.pattern.permute.xlu0 7
        %1909 = vperm.xlu0 %1908, %v615
        %v1910 = vpop.permute.xlu0 %1909
        %1912 = vset.pattern.permute.xlu0 7
        %1913 = vperm.xlu0 %1912, %v616
        %v1914 = vpop.permute.xlu0 %1913
        %1916 = vset.pattern.permute.xlu0 7
        %1917 = vperm.xlu0 %1916, %v617
        %v1918 = vpop.permute.xlu0 %1917
        %1920 = vset.pattern.permute.xlu0 7
        %1921 = vperm.xlu0 %1920, %v618
        %v1922 = vpop.permute.xlu0 %1921
        %1924 = vset.pattern.permute.xlu0 7
        %1925 = vperm.xlu0 %1924, %v619
        %v1926 = vpop.permute.xlu0 %1925
        %1928 = vset.pattern.permute.xlu0 7
        %1929 = vperm.xlu0 %1928, %v620
        %v1930 = vpop.permute.xlu0 %1929
        %1932 = vset.pattern.permute.xlu0 7
        %1933 = vperm.xlu0 %1932, %v621
        %v1934 = vpop.permute.xlu0 %1933
        %v1937 = vperm.slane %v1489, 0
        %v1938 = vperm.slane %v1489, 1
        %v1939 = vperm.slane %v1489, 2
        %v1943 = vmul.f32 %v1906, %v1937
        %v1944 = vmul.f32 %v1906, %v1938
        %v1945 = vmul.f32 %v1906, %v1939
        %v1946 = vmul.f32 %v1910, %v1937
        %v1947 = vmul.f32 %v1910, %v1938
        %v1948 = vmul.f32 %v1910, %v1939
        %v1949 = vmul.f32 %v1914, %v1937
        %v1950 = vmul.f32 %v1914, %v1938
        %v1951 = vmul.f32 %v1914, %v1939
        %v1952 = vmul.f32 %v1918, %v1937
        %v1953 = vmul.f32 %v1918, %v1938
        %v1954 = vmul.f32 %v1918, %v1939
        %v1955 = vmul.f32 %v1922, %v1937
        %v1956 = vmul.f32 %v1922, %v1938
        %v1957 = vmul.f32 %v1922, %v1939
        %v1958 = vmul.f32 %v1926, %v1937
        %v1959 = vmul.f32 %v1926, %v1938
        %v1960 = vmul.f32 %v1926, %v1939
        %v1961 = vmul.f32 %v1930, %v1937
        %v1962 = vmul.f32 %v1930, %v1938
        %v1963 = vmul.f32 %v1930, %v1939
        %v1964 = vmul.f32 %v1934, %v1937
        %v1965 = vmul.f32 %v1934, %v1938
        %v1966 = vmul.f32 %v1934, %v1939
        %1991 = vrot.lane.b32.xlu0 %v1943, 95
        %v1992 = vpop.permute.xlu0 %1991
        %1993 = vrot.lane.b32.xlu0 %v1944, 95
        %v1994 = vpop.permute.xlu0 %1993
        %1995 = vrot.lane.b32.xlu0 %v1945, 95
        %v1996 = vpop.permute.xlu0 %1995
        %1997 = vrot.lane.b32.xlu0 %v1946, 95
        %v1998 = vpop.permute.xlu0 %1997
        %1999 = vrot.lane.b32.xlu0 %v1947, 95
        %v2000 = vpop.permute.xlu0 %1999
        %2001 = vrot.lane.b32.xlu0 %v1948, 95
        %v2002 = vpop.permute.xlu0 %2001
        %2003 = vrot.lane.b32.xlu0 %v1949, 95
        %v2004 = vpop.permute.xlu0 %2003
        %2005 = vrot.lane.b32.xlu0 %v1950, 95
        %v2006 = vpop.permute.xlu0 %2005
        %2007 = vrot.lane.b32.xlu0 %v1951, 95
        %v2008 = vpop.permute.xlu0 %2007
        %2009 = vrot.lane.b32.xlu0 %v1952, 95
        %v2010 = vpop.permute.xlu0 %2009
        %2011 = vrot.lane.b32.xlu0 %v1953, 95
        %v2012 = vpop.permute.xlu0 %2011
        %2013 = vrot.lane.b32.xlu0 %v1954, 95
        %v2014 = vpop.permute.xlu0 %2013
        %2015 = vrot.lane.b32.xlu0 %v1955, 95
        %v2016 = vpop.permute.xlu0 %2015
        %2017 = vrot.lane.b32.xlu0 %v1956, 95
        %v2018 = vpop.permute.xlu0 %2017
        %2019 = vrot.lane.b32.xlu0 %v1957, 95
        %v2020 = vpop.permute.xlu0 %2019
        %2021 = vrot.lane.b32.xlu0 %v1958, 95
        %v2022 = vpop.permute.xlu0 %2021
        %2023 = vrot.lane.b32.xlu0 %v1959, 95
        %v2024 = vpop.permute.xlu0 %2023
        %2025 = vrot.lane.b32.xlu0 %v1960, 95
        %v2026 = vpop.permute.xlu0 %2025
        %2027 = vrot.lane.b32.xlu0 %v1961, 95
        %v2028 = vpop.permute.xlu0 %2027
        %2029 = vrot.lane.b32.xlu0 %v1962, 95
        %v2030 = vpop.permute.xlu0 %2029
        %2031 = vrot.lane.b32.xlu0 %v1963, 95
        %v2032 = vpop.permute.xlu0 %2031
        %2033 = vrot.lane.b32.xlu0 %v1964, 95
        %v2034 = vpop.permute.xlu0 %2033
        %2035 = vrot.lane.b32.xlu0 %v1965, 95
        %v2036 = vpop.permute.xlu0 %2035
        %2037 = vrot.lane.b32.xlu0 %v1966, 95
        %v2038 = vpop.permute.xlu0 %2037
        %vm2039 = vcmask 777216
        %v2040 = vsel %vm2039, %v1992, %v1994
        %v2041 = vsel %vm2039, %v1994, %v1996
        %v2042 = vsel %vm2039, %v1998, %v2000
        %v2043 = vsel %vm2039, %v2000, %v2002
        %v2044 = vsel %vm2039, %v2004, %v2006
        %v2045 = vsel %vm2039, %v2006, %v2008
        %v2046 = vsel %vm2039, %v2010, %v2012
        %v2047 = vsel %vm2039, %v2012, %v2014
        %v2048 = vsel %vm2039, %v2016, %v2018
        %v2049 = vsel %vm2039, %v2018, %v2020
        %v2050 = vsel %vm2039, %v2022, %v2024
        %v2051 = vsel %vm2039, %v2024, %v2026
        %v2052 = vsel %vm2039, %v2028, %v2030
        %v2053 = vsel %vm2039, %v2030, %v2032
        %v2054 = vsel %vm2039, %v2034, %v2036
        %v2055 = vsel %vm2039, %v2036, %v2038
        %v2080 = vadd.f32 %v1880, %v1992
        %v2081 = vadd.f32 %v1881, %v2040
        %v2082 = vadd.f32 %v1882, %v2041
        %v2083 = vadd.f32 %v1883, %v1998
        %v2084 = vadd.f32 %v1884, %v2042
        %v2085 = vadd.f32 %v1885, %v2043
        %v2086 = vadd.f32 %v1886, %v2004
        %v2087 = vadd.f32 %v1887, %v2044
        %v2088 = vadd.f32 %v1888, %v2045
        %v2089 = vadd.f32 %v1889, %v2010
        %v2090 = vadd.f32 %v1890, %v2046
        %v2091 = vadd.f32 %v1891, %v2047
        %v2092 = vadd.f32 %v1892, %v2016
        %v2093 = vadd.f32 %v1893, %v2048
        %v2094 = vadd.f32 %v1894, %v2049
        %v2095 = vadd.f32 %v1895, %v2022
        %v2096 = vadd.f32 %v1896, %v2050
        %v2097 = vadd.f32 %v1897, %v2051
        %v2098 = vadd.f32 %v1898, %v2028
        %v2099 = vadd.f32 %v1899, %v2052
        %v2100 = vadd.f32 %v1900, %v2053
        %v2101 = vadd.f32 %v1901, %v2034
        %v2102 = vadd.f32 %v1902, %v2054
        %v2103 = vadd.f32 %v1903, %v2055
        %2104 = vrot.lane.b32.xlu0 %v564, 17
        %v2105 = vpop.permute.xlu0 %2104
        %v2106 = vrot.slane %v2105, 7
        %vm2107 = vcmask 138240
        %v2108 = vsel %vm2107, %v2106, %v2105
        %v2110 = vmul.f32 %v1489, %v2108
        %2111 = vset.pattern.permute.xlu0 8
        %2112 = vperm.xlu0 %2111, %v614
        %v2113 = vpop.permute.xlu0 %2112
        %2115 = vset.pattern.permute.xlu0 8
        %2116 = vperm.xlu0 %2115, %v615
        %v2117 = vpop.permute.xlu0 %2116
        %2119 = vset.pattern.permute.xlu0 8
        %2120 = vperm.xlu0 %2119, %v616
        %v2121 = vpop.permute.xlu0 %2120
        %2123 = vset.pattern.permute.xlu0 8
        %2124 = vperm.xlu0 %2123, %v617
        %v2125 = vpop.permute.xlu0 %2124
        %2127 = vset.pattern.permute.xlu0 8
        %2128 = vperm.xlu0 %2127, %v618
        %v2129 = vpop.permute.xlu0 %2128
        %2131 = vset.pattern.permute.xlu0 8
        %2132 = vperm.xlu0 %2131, %v619
        %v2133 = vpop.permute.xlu0 %2132
        %2135 = vset.pattern.permute.xlu0 8
        %2136 = vperm.xlu0 %2135, %v620
        %v2137 = vpop.permute.xlu0 %2136
        %2139 = vset.pattern.permute.xlu0 8
        %2140 = vperm.xlu0 %2139, %v621
        %v2141 = vpop.permute.xlu0 %2140
        %v2144 = vperm.slane %v2110, 0
        %v2145 = vperm.slane %v2110, 1
        %v2146 = vperm.slane %v2110, 2
        %v2150 = vmul.f32 %v2113, %v2144
        %v2151 = vmul.f32 %v2113, %v2145
        %v2152 = vmul.f32 %v2113, %v2146
        %v2153 = vmul.f32 %v2117, %v2144
        %v2154 = vmul.f32 %v2117, %v2145
        %v2155 = vmul.f32 %v2117, %v2146
        %v2156 = vmul.f32 %v2121, %v2144
        %v2157 = vmul.f32 %v2121, %v2145
        %v2158 = vmul.f32 %v2121, %v2146
        %v2159 = vmul.f32 %v2125, %v2144
        %v2160 = vmul.f32 %v2125, %v2145
        %v2161 = vmul.f32 %v2125, %v2146
        %v2162 = vmul.f32 %v2129, %v2144
        %v2163 = vmul.f32 %v2129, %v2145
        %v2164 = vmul.f32 %v2129, %v2146
        %v2165 = vmul.f32 %v2133, %v2144
        %v2166 = vmul.f32 %v2133, %v2145
        %v2167 = vmul.f32 %v2133, %v2146
        %v2168 = vmul.f32 %v2137, %v2144
        %v2169 = vmul.f32 %v2137, %v2145
        %v2170 = vmul.f32 %v2137, %v2146
        %v2171 = vmul.f32 %v2141, %v2144
        %v2172 = vmul.f32 %v2141, %v2145
        %v2173 = vmul.f32 %v2141, %v2146
        %2198 = vrot.lane.b32.xlu0 %v2150, 94
        %v2199 = vpop.permute.xlu0 %2198
        %2200 = vrot.lane.b32.xlu0 %v2151, 94
        %v2201 = vpop.permute.xlu0 %2200
        %2202 = vrot.lane.b32.xlu0 %v2152, 94
        %v2203 = vpop.permute.xlu0 %2202
        %2204 = vrot.lane.b32.xlu0 %v2153, 94
        %v2205 = vpop.permute.xlu0 %2204
        %2206 = vrot.lane.b32.xlu0 %v2154, 94
        %v2207 = vpop.permute.xlu0 %2206
        %2208 = vrot.lane.b32.xlu0 %v2155, 94
        %v2209 = vpop.permute.xlu0 %2208
        %2210 = vrot.lane.b32.xlu0 %v2156, 94
        %v2211 = vpop.permute.xlu0 %2210
        %2212 = vrot.lane.b32.xlu0 %v2157, 94
        %v2213 = vpop.permute.xlu0 %2212
        %2214 = vrot.lane.b32.xlu0 %v2158, 94
        %v2215 = vpop.permute.xlu0 %2214
        %2216 = vrot.lane.b32.xlu0 %v2159, 94
        %v2217 = vpop.permute.xlu0 %2216
        %2218 = vrot.lane.b32.xlu0 %v2160, 94
        %v2219 = vpop.permute.xlu0 %2218
        %2220 = vrot.lane.b32.xlu0 %v2161, 94
        %v2221 = vpop.permute.xlu0 %2220
        %2222 = vrot.lane.b32.xlu0 %v2162, 94
        %v2223 = vpop.permute.xlu0 %2222
        %2224 = vrot.lane.b32.xlu0 %v2163, 94
        %v2225 = vpop.permute.xlu0 %2224
        %2226 = vrot.lane.b32.xlu0 %v2164, 94
        %v2227 = vpop.permute.xlu0 %2226
        %2228 = vrot.lane.b32.xlu0 %v2165, 94
        %v2229 = vpop.permute.xlu0 %2228
        %2230 = vrot.lane.b32.xlu0 %v2166, 94
        %v2231 = vpop.permute.xlu0 %2230
        %2232 = vrot.lane.b32.xlu0 %v2167, 94
        %v2233 = vpop.permute.xlu0 %2232
        %2234 = vrot.lane.b32.xlu0 %v2168, 94
        %v2235 = vpop.permute.xlu0 %2234
        %2236 = vrot.lane.b32.xlu0 %v2169, 94
        %v2237 = vpop.permute.xlu0 %2236
        %2238 = vrot.lane.b32.xlu0 %v2170, 94
        %v2239 = vpop.permute.xlu0 %2238
        %2240 = vrot.lane.b32.xlu0 %v2171, 94
        %v2241 = vpop.permute.xlu0 %2240
        %2242 = vrot.lane.b32.xlu0 %v2172, 94
        %v2243 = vpop.permute.xlu0 %2242
        %2244 = vrot.lane.b32.xlu0 %v2173, 94
        %v2245 = vpop.permute.xlu0 %2244
        %vm2246 = vcmask 769024
        %v2247 = vsel %vm2246, %v2199, %v2201
        %v2248 = vsel %vm2246, %v2201, %v2203
        %v2249 = vsel %vm2246, %v2205, %v2207
        %v2250 = vsel %vm2246, %v2207, %v2209
        %v2251 = vsel %vm2246, %v2211, %v2213
        %v2252 = vsel %vm2246, %v2213, %v2215
        %v2253 = vsel %vm2246, %v2217, %v2219
        %v2254 = vsel %vm2246, %v2219, %v2221
        %v2255 = vsel %vm2246, %v2223, %v2225
        %v2256 = vsel %vm2246, %v2225, %v2227
        %v2257 = vsel %vm2246, %v2229, %v2231
        %v2258 = vsel %vm2246, %v2231, %v2233
        %v2259 = vsel %vm2246, %v2235, %v2237
        %v2260 = vsel %vm2246, %v2237, %v2239
        %v2261 = vsel %vm2246, %v2241, %v2243
        %v2262 = vsel %vm2246, %v2243, %v2245
        %v2287 = vadd.f32 %v2080, %v2199
        %v2288 = vadd.f32 %v2081, %v2247
        %v2289 = vadd.f32 %v2082, %v2248
        %v2290 = vadd.f32 %v2083, %v2205
        %v2291 = vadd.f32 %v2084, %v2249
        %v2292 = vadd.f32 %v2085, %v2250
        %v2293 = vadd.f32 %v2086, %v2211
        %v2294 = vadd.f32 %v2087, %v2251
        %v2295 = vadd.f32 %v2088, %v2252
        %v2296 = vadd.f32 %v2089, %v2217
        %v2297 = vadd.f32 %v2090, %v2253
        %v2298 = vadd.f32 %v2091, %v2254
        %v2299 = vadd.f32 %v2092, %v2223
        %v2300 = vadd.f32 %v2093, %v2255
        %v2301 = vadd.f32 %v2094, %v2256
        %v2302 = vadd.f32 %v2095, %v2229
        %v2303 = vadd.f32 %v2096, %v2257
        %v2304 = vadd.f32 %v2097, %v2258
        %v2305 = vadd.f32 %v2098, %v2235
        %v2306 = vadd.f32 %v2099, %v2259
        %v2307 = vadd.f32 %v2100, %v2260
        %v2308 = vadd.f32 %v2101, %v2241
        %v2309 = vadd.f32 %v2102, %v2261
        %v2310 = vadd.f32 %v2103, %v2262
        %v2311 = vld [vmem:[%s4] sm:$0xff]
        %v2312 = vld [vmem:[%s4 + $0x8] sm:$0xff]
        %v2313 = vld [vmem:[%s4 + $0x10] sm:$0xff]
        %v2314 = vld [vmem:[%s4 + $0x18] sm:$0xff]
        %v2315 = vld [vmem:[%s4 + $0x20] sm:$0xff]
        %v2316 = vld [vmem:[%s4 + $0x28] sm:$0xff]
        %v2317 = vld [vmem:[%s4 + $0x30] sm:$0xff]
        %v2318 = vld [vmem:[%s4 + $0x38] sm:$0xff]
        %2320 = vset.pattern.permute.xlu0 0
        %2321 = vperm.xlu0 %2320, %v2311
        %v2322 = vpop.permute.xlu0 %2321
        %2325 = vset.pattern.permute.xlu0 0
        %2326 = vperm.xlu0 %2325, %v2312
        %v2327 = vpop.permute.xlu0 %2326
        %2330 = vset.pattern.permute.xlu0 0
        %2331 = vperm.xlu0 %2330, %v2313
        %v2332 = vpop.permute.xlu0 %2331
        %2335 = vset.pattern.permute.xlu0 0
        %2336 = vperm.xlu0 %2335, %v2314
        %v2337 = vpop.permute.xlu0 %2336
        %2340 = vset.pattern.permute.xlu0 0
        %2341 = vperm.xlu0 %2340, %v2315
        %v2342 = vpop.permute.xlu0 %2341
        %2345 = vset.pattern.permute.xlu0 0
        %2346 = vperm.xlu0 %2345, %v2316
        %v2347 = vpop.permute.xlu0 %2346
        %2350 = vset.pattern.permute.xlu0 0
        %2351 = vperm.xlu0 %2350, %v2317
        %v2352 = vpop.permute.xlu0 %2351
        %2355 = vset.pattern.permute.xlu0 0
        %2356 = vperm.xlu0 %2355, %v2318
        %v2357 = vpop.permute.xlu0 %2356
        %v2359 = vadd.f32 %v2287, %v2322
        %v2360 = vadd.f32 %v2288, %v2322
        %v2361 = vadd.f32 %v2289, %v2322
        %v2362 = vadd.f32 %v2290, %v2327
        %v2363 = vadd.f32 %v2291, %v2327
        %v2364 = vadd.f32 %v2292, %v2327
        %v2365 = vadd.f32 %v2293, %v2332
        %v2366 = vadd.f32 %v2294, %v2332
        %v2367 = vadd.f32 %v2295, %v2332
        %v2368 = vadd.f32 %v2296, %v2337
        %v2369 = vadd.f32 %v2297, %v2337
        %v2370 = vadd.f32 %v2298, %v2337
        %v2371 = vadd.f32 %v2299, %v2342
        %v2372 = vadd.f32 %v2300, %v2342
        %v2373 = vadd.f32 %v2301, %v2342
        %v2374 = vadd.f32 %v2302, %v2347
        %v2375 = vadd.f32 %v2303, %v2347
        %v2376 = vadd.f32 %v2304, %v2347
        %v2377 = vadd.f32 %v2305, %v2352
        %v2378 = vadd.f32 %v2306, %v2352
        %v2379 = vadd.f32 %v2307, %v2352
        %v2380 = vadd.f32 %v2308, %v2357
        %v2381 = vadd.f32 %v2309, %v2357
        %v2382 = vadd.f32 %v2310, %v2357
        %v2383 = vmax.f32 %v2359, 0.0
        %v2384 = vmax.f32 %v2360, 0.0
        %v2385 = vmax.f32 %v2361, 0.0
        %v2386 = vmax.f32 %v2362, 0.0
        %v2387 = vmax.f32 %v2363, 0.0
        %v2388 = vmax.f32 %v2364, 0.0
        %v2389 = vmax.f32 %v2365, 0.0
        %v2390 = vmax.f32 %v2366, 0.0
        %v2391 = vmax.f32 %v2367, 0.0
        %v2392 = vmax.f32 %v2368, 0.0
        %v2393 = vmax.f32 %v2369, 0.0
        %v2394 = vmax.f32 %v2370, 0.0
        %v2395 = vmax.f32 %v2371, 0.0
        %v2396 = vmax.f32 %v2372, 0.0
        %v2397 = vmax.f32 %v2373, 0.0
        %v2398 = vmax.f32 %v2374, 0.0
        %v2399 = vmax.f32 %v2375, 0.0
        %v2400 = vmax.f32 %v2376, 0.0
        %v2401 = vmax.f32 %v2377, 0.0
        %v2402 = vmax.f32 %v2378, 0.0
        %v2403 = vmax.f32 %v2379, 0.0
        %v2404 = vmax.f32 %v2380, 0.0
        %v2405 = vmax.f32 %v2381, 0.0
        %v2406 = vmax.f32 %v2382, 0.0
        %2431 = vrot.lane.b32.xlu0 %v2383, 17
        %v2432 = vpop.permute.xlu0 %2431
        %2433 = vrot.lane.b32.xlu0 %v2384, 17
        %v2434 = vpop.permute.xlu0 %2433
        %2435 = vrot.lane.b32.xlu0 %v2385, 17
        %v2436 = vpop.permute.xlu0 %2435
        %2437 = vrot.lane.b32.xlu0 %v2386, 17
        %v2438 = vpop.permute.xlu0 %2437
        %2439 = vrot.lane.b32.xlu0 %v2387, 17
        %v2440 = vpop.permute.xlu0 %2439
        %2441 = vrot.lane.b32.xlu0 %v2388, 17
        %v2442 = vpop.permute.xlu0 %2441
        %2443 = vrot.lane.b32.xlu0 %v2389, 17
        %v2444 = vpop.permute.xlu0 %2443
        %2445 = vrot.lane.b32.xlu0 %v2390, 17
        %v2446 = vpop.permute.xlu0 %2445
        %2447 = vrot.lane.b32.xlu0 %v2391, 17
        %v2448 = vpop.permute.xlu0 %2447
        %2449 = vrot.lane.b32.xlu0 %v2392, 17
        %v2450 = vpop.permute.xlu0 %2449
        %2451 = vrot.lane.b32.xlu0 %v2393, 17
        %v2452 = vpop.permute.xlu0 %2451
        %2453 = vrot.lane.b32.xlu0 %v2394, 17
        %v2454 = vpop.permute.xlu0 %2453
        %2455 = vrot.lane.b32.xlu0 %v2395, 17
        %v2456 = vpop.permute.xlu0 %2455
        %2457 = vrot.lane.b32.xlu0 %v2396, 17
        %v2458 = vpop.permute.xlu0 %2457
        %2459 = vrot.lane.b32.xlu0 %v2397, 17
        %v2460 = vpop.permute.xlu0 %2459
        %2461 = vrot.lane.b32.xlu0 %v2398, 17
        %v2462 = vpop.permute.xlu0 %2461
        %2463 = vrot.lane.b32.xlu0 %v2399, 17
        %v2464 = vpop.permute.xlu0 %2463
        %2465 = vrot.lane.b32.xlu0 %v2400, 17
        %v2466 = vpop.permute.xlu0 %2465
        %2467 = vrot.lane.b32.xlu0 %v2401, 17
        %v2468 = vpop.permute.xlu0 %2467
        %2469 = vrot.lane.b32.xlu0 %v2402, 17
        %v2470 = vpop.permute.xlu0 %2469
        %2471 = vrot.lane.b32.xlu0 %v2403, 17
        %v2472 = vpop.permute.xlu0 %2471
        %2473 = vrot.lane.b32.xlu0 %v2404, 17
        %v2474 = vpop.permute.xlu0 %2473
        %2475 = vrot.lane.b32.xlu0 %v2405, 17
        %v2476 = vpop.permute.xlu0 %2475
        %2477 = vrot.lane.b32.xlu0 %v2406, 17
        %v2478 = vpop.permute.xlu0 %2477
        %v2479 = vsel %vm2107, %v2432, %v2434
        %v2480 = vsel %vm2107, %v2434, %v2436
        %v2481 = vsel %vm2107, %v2438, %v2440
        %v2482 = vsel %vm2107, %v2440, %v2442
        %v2483 = vsel %vm2107, %v2444, %v2446
        %v2484 = vsel %vm2107, %v2446, %v2448
        %v2485 = vsel %vm2107, %v2450, %v2452
        %v2486 = vsel %vm2107, %v2452, %v2454
        %v2487 = vsel %vm2107, %v2456, %v2458
        %v2488 = vsel %vm2107, %v2458, %v2460
        %v2489 = vsel %vm2107, %v2462, %v2464
        %v2490 = vsel %vm2107, %v2464, %v2466
        %v2491 = vsel %vm2107, %v2468, %v2470
        %v2492 = vsel %vm2107, %v2470, %v2472
        %v2493 = vsel %vm2107, %v2474, %v2476
        %v2494 = vsel %vm2107, %v2476, %v2478
        %2511 = vst [vmem:[#allocation2 + $0x8] sm:$0xff] %v2479
        %2512 = vst [vmem:[#allocation2 + $0x10] sm:$0xff] %v2480
        %2513 = vst [vmem:[#allocation2 + $0x28] sm:$0xff] %v2481
        %2514 = vst [vmem:[#allocation2 + $0x30] sm:$0xff] %v2482
        %2515 = vst [vmem:[#allocation2 + $0x48] sm:$0xff] %v2483
        %2516 = vst [vmem:[#allocation2 + $0x50] sm:$0xff] %v2484
        %2517 = vst [vmem:[#allocation2 + $0x68] sm:$0xff] %v2485
        %2518 = vst [vmem:[#allocation2 + $0x70] sm:$0xff] %v2486
        %2519 = vst [vmem:[#allocation2 + $0x88] sm:$0xff] %v2487
        %2520 = vst [vmem:[#allocation2 + $0x90] sm:$0xff] %v2488
        %2521 = vst [vmem:[#allocation2 + $0xa8] sm:$0xff] %v2489
        %2522 = vst [vmem:[#allocation2 + $0xb0] sm:$0xff] %v2490
        %2523 = vst [vmem:[#allocation2 + $0xc8] sm:$0xff] %v2491
        %2524 = vst [vmem:[#allocation2 + $0xd0] sm:$0xff] %v2492
        %2525 = vst [vmem:[#allocation2 + $0xe8] sm:$0xff] %v2493
        %2526 = vst [vmem:[#allocation2 + $0xf0] sm:$0xff] %v2494
        %v2527 = vld [vmem:[#allocation2] sm:$0xff]
        %v2528 = vld [vmem:[#allocation2 + $0x8] sm:$0xff]
        %v2529 = vld [vmem:[#allocation2 + $0x10] sm:$0xff]
        %v2530 = vld [vmem:[#allocation2 + $0x20] sm:$0xff]
        %v2531 = vld [vmem:[#allocation2 + $0x28] sm:$0xff]
        %v2532 = vld [vmem:[#allocation2 + $0x30] sm:$0xff]
        %v2533 = vld [vmem:[#allocation2 + $0x40] sm:$0xff]
        %v2534 = vld [vmem:[#allocation2 + $0x48] sm:$0xff]
        %v2535 = vld [vmem:[#allocation2 + $0x50] sm:$0xff]
        %v2536 = vld [vmem:[#allocation2 + $0x60] sm:$0xff]
        %v2537 = vld [vmem:[#allocation2 + $0x68] sm:$0xff]
        %v2538 = vld [vmem:[#allocation2 + $0x70] sm:$0xff]
        %v2539 = vld [vmem:[#allocation2 + $0x80] sm:$0xff]
        %v2540 = vld [vmem:[#allocation2 + $0x88] sm:$0xff]
        %v2541 = vld [vmem:[#allocation2 + $0x90] sm:$0xff]
        %v2542 = vld [vmem:[#allocation2 + $0xa0] sm:$0xff]
        %v2543 = vld [vmem:[#allocation2 + $0xa8] sm:$0xff]
        %v2544 = vld [vmem:[#allocation2 + $0xb0] sm:$0xff]
        %v2545 = vld [vmem:[#allocation2 + $0xc0] sm:$0xff]
        %v2546 = vld [vmem:[#allocation2 + $0xc8] sm:$0xff]
        %v2547 = vld [vmem:[#allocation2 + $0xd0] sm:$0xff]
        %v2548 = vld [vmem:[#allocation2 + $0xe0] sm:$0xff]
        %v2549 = vld [vmem:[#allocation2 + $0xe8] sm:$0xff]
        %v2550 = vld [vmem:[#allocation2 + $0xf0] sm:$0xff]
        %v2551 = vperm.slane %v562, 0
        %v2552 = vperm.slane %v562, 1
        %2553 = vrot.lane.b32.xlu0 %v2551, 111
        %v2554 = vpop.permute.xlu0 %2553
        %2555 = vrot.lane.b32.xlu0 %v2552, 111
        %v2556 = vpop.permute.xlu0 %2555
        %v2557 = vsel %vm610, %v2554, %v2556
        %v2561 = vmul.f32 %v2527, %v2554
        %v2562 = vmul.f32 %v2528, %v2557
        %v2563 = vmul.f32 %v2529, %v2556
        %v2564 = vmul.f32 %v2530, %v2554
        %v2565 = vmul.f32 %v2531, %v2557
        %v2566 = vmul.f32 %v2532, %v2556
        %v2567 = vmul.f32 %v2533, %v2554
        %v2568 = vmul.f32 %v2534, %v2557
        %v2569 = vmul.f32 %v2535, %v2556
        %v2570 = vmul.f32 %v2536, %v2554
        %v2571 = vmul.f32 %v2537, %v2557
        %v2572 = vmul.f32 %v2538, %v2556
        %v2573 = vmul.f32 %v2539, %v2554
        %v2574 = vmul.f32 %v2540, %v2557
        %v2575 = vmul.f32 %v2541, %v2556
        %v2576 = vmul.f32 %v2542, %v2554
        %v2577 = vmul.f32 %v2543, %v2557
        %v2578 = vmul.f32 %v2544, %v2556
        %v2579 = vmul.f32 %v2545, %v2554
        %v2580 = vmul.f32 %v2546, %v2557
        %v2581 = vmul.f32 %v2547, %v2556
        %v2582 = vmul.f32 %v2548, %v2554
        %v2583 = vmul.f32 %v2549, %v2557
        %v2584 = vmul.f32 %v2550, %v2556
        %v2585 = vpack.c.bf16 %v2562, %v2561
        %v2586 = vpack.c.bf16 %v2563, %v2563
        %v2587 = vpack.c.bf16 %v2565, %v2564
        %v2588 = vpack.c.bf16 %v2566, %v2566
        %v2589 = vpack.c.bf16 %v2568, %v2567
        %v2590 = vpack.c.bf16 %v2569, %v2569
        %v2591 = vpack.c.bf16 %v2571, %v2570
        %v2592 = vpack.c.bf16 %v2572, %v2572
        %v2593 = vpack.c.bf16 %v2574, %v2573
        %v2594 = vpack.c.bf16 %v2575, %v2575
        %v2595 = vpack.c.bf16 %v2577, %v2576
        %v2596 = vpack.c.bf16 %v2578, %v2578
        %v2597 = vpack.c.bf16 %v2580, %v2579
        %v2598 = vpack.c.bf16 %v2581, %v2581
        %v2599 = vpack.c.bf16 %v2583, %v2582
        %v2600 = vpack.c.bf16 %v2584, %v2584
        %2617 = vrot.lane.b32.xlu0 %v2585, 17
        %v2618 = vpop.permute.xlu0 %2617
        %2619 = vrot.lane.b32.xlu0 %v2586, 17
        %v2620 = vpop.permute.xlu0 %2619
        %2621 = vrot.lane.b32.xlu0 %v2587, 17
        %v2622 = vpop.permute.xlu0 %2621
        %2623 = vrot.lane.b32.xlu0 %v2588, 17
        %v2624 = vpop.permute.xlu0 %2623
        %2625 = vrot.lane.b32.xlu0 %v2589, 17
        %v2626 = vpop.permute.xlu0 %2625
        %2627 = vrot.lane.b32.xlu0 %v2590, 17
        %v2628 = vpop.permute.xlu0 %2627
        %2629 = vrot.lane.b32.xlu0 %v2591, 17
        %v2630 = vpop.permute.xlu0 %2629
        %2631 = vrot.lane.b32.xlu0 %v2592, 17
        %v2632 = vpop.permute.xlu0 %2631
        %2633 = vrot.lane.b32.xlu0 %v2593, 17
        %v2634 = vpop.permute.xlu0 %2633
        %2635 = vrot.lane.b32.xlu0 %v2594, 17
        %v2636 = vpop.permute.xlu0 %2635
        %2637 = vrot.lane.b32.xlu0 %v2595, 17
        %v2638 = vpop.permute.xlu0 %2637
        %2639 = vrot.lane.b32.xlu0 %v2596, 17
        %v2640 = vpop.permute.xlu0 %2639
        %2641 = vrot.lane.b32.xlu0 %v2597, 17
        %v2642 = vpop.permute.xlu0 %2641
        %2643 = vrot.lane.b32.xlu0 %v2598, 17
        %v2644 = vpop.permute.xlu0 %2643
        %2645 = vrot.lane.b32.xlu0 %v2599, 17
        %v2646 = vpop.permute.xlu0 %2645
        %2647 = vrot.lane.b32.xlu0 %v2600, 17
        %v2648 = vpop.permute.xlu0 %2647
        %v2649 = vrot.slane %v2618, 4
        %v2650 = vrot.slane %v2620, 4
        %v2651 = vrot.slane %v2622, 4
        %v2652 = vrot.slane %v2624, 4
        %v2653 = vrot.slane %v2626, 4
        %v2654 = vrot.slane %v2628, 4
        %v2655 = vrot.slane %v2630, 4
        %v2656 = vrot.slane %v2632, 4
        %v2657 = vrot.slane %v2634, 4
        %v2658 = vrot.slane %v2636, 4
        %v2659 = vrot.slane %v2638, 4
        %v2660 = vrot.slane %v2640, 4
        %v2661 = vrot.slane %v2642, 4
        %v2662 = vrot.slane %v2644, 4
        %v2663 = vrot.slane %v2646, 4
        %v2664 = vrot.slane %v2648, 4
        %vm2665 = vcmask 1043456
        %v2666 = vsel %vm2665, %v2649, %v2650
        %vm2667 = vcmask 138240
        %v2668 = vsel %vm2667, %v2618, %v2666
        %v2669 = vsel %vm2665, %v2651, %v2652
        %v2670 = vsel %vm2667, %v2622, %v2669
        %v2671 = vsel %vm2665, %v2653, %v2654
        %v2672 = vsel %vm2667, %v2626, %v2671
        %v2673 = vsel %vm2665, %v2655, %v2656
        %v2674 = vsel %vm2667, %v2630, %v2673
        %v2675 = vsel %vm2665, %v2657, %v2658
        %v2676 = vsel %vm2667, %v2634, %v2675
        %v2677 = vsel %vm2665, %v2659, %v2660
        %v2678 = vsel %vm2667, %v2638, %v2677
        %v2679 = vsel %vm2665, %v2661, %v2662
        %v2680 = vsel %vm2667, %v2642, %v2679
        %v2681 = vsel %vm2665, %v2663, %v2664
        %v2682 = vsel %vm2667, %v2646, %v2681
        %2691 = vst [vmem:[#allocation3] sm:$0xff] %v2668
        %2692 = vst [vmem:[#allocation3 + $0x8] sm:$0xff] %v2670
        %2693 = vst [vmem:[#allocation3 + $0x10] sm:$0xff] %v2672
        %2694 = vst [vmem:[#allocation3 + $0x18] sm:$0xff] %v2674
        %2695 = vst [vmem:[#allocation3 + $0x20] sm:$0xff] %v2676
        %2696 = vst [vmem:[#allocation3 + $0x28] sm:$0xff] %v2678
        %2697 = vst [vmem:[#allocation3 + $0x30] sm:$0xff] %v2680
        %2698 = vst [vmem:[#allocation3 + $0x38] sm:$0xff] %v2682
        %v2699 = vld [vmem:[#allocation2] sm:$0xff]
        %v2700 = vld [vmem:[#allocation2 + $0x8] sm:$0xff]
        %v2701 = vld [vmem:[#allocation2 + $0x10] sm:$0xff]
        %v2702 = vld [vmem:[#allocation2 + $0x20] sm:$0xff]
        %v2703 = vld [vmem:[#allocation2 + $0x28] sm:$0xff]
        %v2704 = vld [vmem:[#allocation2 + $0x30] sm:$0xff]
        %v2705 = vld [vmem:[#allocation2 + $0x40] sm:$0xff]
        %v2706 = vld [vmem:[#allocation2 + $0x48] sm:$0xff]
        %v2707 = vld [vmem:[#allocation2 + $0x50] sm:$0xff]
        %v2708 = vld [vmem:[#allocation2 + $0x60] sm:$0xff]
        %v2709 = vld [vmem:[#allocation2 + $0x68] sm:$0xff]
        %v2710 = vld [vmem:[#allocation2 + $0x70] sm:$0xff]
        %v2711 = vld [vmem:[#allocation2 + $0x80] sm:$0xff]
        %v2712 = vld [vmem:[#allocation2 + $0x88] sm:$0xff]
        %v2713 = vld [vmem:[#allocation2 + $0x90] sm:$0xff]
        %v2714 = vld [vmem:[#allocation2 + $0xa0] sm:$0xff]
        %v2715 = vld [vmem:[#allocation2 + $0xa8] sm:$0xff]
        %v2716 = vld [vmem:[#allocation2 + $0xb0] sm:$0xff]
        %v2717 = vld [vmem:[#allocation2 + $0xc0] sm:$0xff]
        %v2718 = vld [vmem:[#allocation2 + $0xc8] sm:$0xff]
        %v2719 = vld [vmem:[#allocation2 + $0xd0] sm:$0xff]
        %v2720 = vld [vmem:[#allocation2 + $0xe0] sm:$0xff]
        %v2721 = vld [vmem:[#allocation2 + $0xe8] sm:$0xff]
        %v2722 = vld [vmem:[#allocation2 + $0xf0] sm:$0xff]
        %v2723 = vpack.c.bf16 %v2700, %v2699
        %v2724 = vpack.c.bf16 %v2701, %v2701
        %v2725 = vpack.c.bf16 %v2703, %v2702
        %v2726 = vpack.c.bf16 %v2704, %v2704
        %v2727 = vpack.c.bf16 %v2706, %v2705
        %v2728 = vpack.c.bf16 %v2707, %v2707
        %v2729 = vpack.c.bf16 %v2709, %v2708
        %v2730 = vpack.c.bf16 %v2710, %v2710
        %v2731 = vpack.c.bf16 %v2712, %v2711
        %v2732 = vpack.c.bf16 %v2713, %v2713
        %v2733 = vpack.c.bf16 %v2715, %v2714
        %v2734 = vpack.c.bf16 %v2716, %v2716
        %v2735 = vpack.c.bf16 %v2718, %v2717
        %v2736 = vpack.c.bf16 %v2719, %v2719
        %v2737 = vpack.c.bf16 %v2721, %v2720
        %v2738 = vpack.c.bf16 %v2722, %v2722
        %2755 = vrot.lane.b32.xlu0 %v2723, 16
        %v2756 = vpop.permute.xlu0 %2755
        %2757 = vrot.lane.b32.xlu0 %v2724, 16
        %v2758 = vpop.permute.xlu0 %2757
        %2759 = vrot.lane.b32.xlu0 %v2725, 16
        %v2760 = vpop.permute.xlu0 %2759
        %2761 = vrot.lane.b32.xlu0 %v2726, 16
        %v2762 = vpop.permute.xlu0 %2761
        %2763 = vrot.lane.b32.xlu0 %v2727, 16
        %v2764 = vpop.permute.xlu0 %2763
        %2765 = vrot.lane.b32.xlu0 %v2728, 16
        %v2766 = vpop.permute.xlu0 %2765
        %2767 = vrot.lane.b32.xlu0 %v2729, 16
        %v2768 = vpop.permute.xlu0 %2767
        %2769 = vrot.lane.b32.xlu0 %v2730, 16
        %v2770 = vpop.permute.xlu0 %2769
        %2771 = vrot.lane.b32.xlu0 %v2731, 16
        %v2772 = vpop.permute.xlu0 %2771
        %2773 = vrot.lane.b32.xlu0 %v2732, 16
        %v2774 = vpop.permute.xlu0 %2773
        %2775 = vrot.lane.b32.xlu0 %v2733, 16
        %v2776 = vpop.permute.xlu0 %2775
        %2777 = vrot.lane.b32.xlu0 %v2734, 16
        %v2778 = vpop.permute.xlu0 %2777
        %2779 = vrot.lane.b32.xlu0 %v2735, 16
        %v2780 = vpop.permute.xlu0 %2779
        %2781 = vrot.lane.b32.xlu0 %v2736, 16
        %v2782 = vpop.permute.xlu0 %2781
        %2783 = vrot.lane.b32.xlu0 %v2737, 16
        %v2784 = vpop.permute.xlu0 %2783
        %2785 = vrot.lane.b32.xlu0 %v2738, 16
        %v2786 = vpop.permute.xlu0 %2785
        %v2787 = vrot.slane %v2756, 4
        %v2788 = vrot.slane %v2758, 4
        %v2789 = vrot.slane %v2760, 4
        %v2790 = vrot.slane %v2762, 4
        %v2791 = vrot.slane %v2764, 4
        %v2792 = vrot.slane %v2766, 4
        %v2793 = vrot.slane %v2768, 4
        %v2794 = vrot.slane %v2770, 4
        %v2795 = vrot.slane %v2772, 4
        %v2796 = vrot.slane %v2774, 4
        %v2797 = vrot.slane %v2776, 4
        %v2798 = vrot.slane %v2778, 4
        %v2799 = vrot.slane %v2780, 4
        %v2800 = vrot.slane %v2782, 4
        %v2801 = vrot.slane %v2784, 4
        %v2802 = vrot.slane %v2786, 4
        %v2803 = vsel %vm2665, %v2787, %v2788
        %vm2804 = vcmask 130048
        %v2805 = vsel %vm2804, %v2756, %v2803
        %v2806 = vsel %vm2665, %v2789, %v2790
        %v2807 = vsel %vm2804, %v2760, %v2806
        %v2808 = vsel %vm2665, %v2791, %v2792
        %v2809 = vsel %vm2804, %v2764, %v2808
        %v2810 = vsel %vm2665, %v2793, %v2794
        %v2811 = vsel %vm2804, %v2768, %v2810
        %v2812 = vsel %vm2665, %v2795, %v2796
        %v2813 = vsel %vm2804, %v2772, %v2812
        %v2814 = vsel %vm2665, %v2797, %v2798
        %v2815 = vsel %vm2804, %v2776, %v2814
        %v2816 = vsel %vm2665, %v2799, %v2800
        %v2817 = vsel %vm2804, %v2780, %v2816
        %v2818 = vsel %vm2665, %v2801, %v2802
        %v2819 = vsel %vm2804, %v2784, %v2818
        %2828 = vst [vmem:[#allocation3 + $0x40] sm:$0xff] %v2805
        %2829 = vst [vmem:[#allocation3 + $0x48] sm:$0xff] %v2807
        %2830 = vst [vmem:[#allocation3 + $0x50] sm:$0xff] %v2809
        %2831 = vst [vmem:[#allocation3 + $0x58] sm:$0xff] %v2811
        %2832 = vst [vmem:[#allocation3 + $0x60] sm:$0xff] %v2813
        %2833 = vst [vmem:[#allocation3 + $0x68] sm:$0xff] %v2815
        %2834 = vst [vmem:[#allocation3 + $0x70] sm:$0xff] %v2817
        %2835 = vst [vmem:[#allocation3 + $0x78] sm:$0xff] %v2819
        %v2836 = vld [vmem:[#allocation2] sm:$0xff]
        %v2837 = vld [vmem:[#allocation2 + $0x8] sm:$0xff]
        %v2838 = vld [vmem:[#allocation2 + $0x10] sm:$0xff]
        %v2839 = vld [vmem:[#allocation2 + $0x20] sm:$0xff]
        %v2840 = vld [vmem:[#allocation2 + $0x28] sm:$0xff]
        %v2841 = vld [vmem:[#allocation2 + $0x30] sm:$0xff]
        %v2842 = vld [vmem:[#allocation2 + $0x40] sm:$0xff]
        %v2843 = vld [vmem:[#allocation2 + $0x48] sm:$0xff]
        %v2844 = vld [vmem:[#allocation2 + $0x50] sm:$0xff]
        %v2845 = vld [vmem:[#allocation2 + $0x60] sm:$0xff]
        %v2846 = vld [vmem:[#allocation2 + $0x68] sm:$0xff]
        %v2847 = vld [vmem:[#allocation2 + $0x70] sm:$0xff]
        %v2848 = vld [vmem:[#allocation2 + $0x80] sm:$0xff]
        %v2849 = vld [vmem:[#allocation2 + $0x88] sm:$0xff]
        %v2850 = vld [vmem:[#allocation2 + $0x90] sm:$0xff]
        %v2851 = vld [vmem:[#allocation2 + $0xa0] sm:$0xff]
        %v2852 = vld [vmem:[#allocation2 + $0xa8] sm:$0xff]
        %v2853 = vld [vmem:[#allocation2 + $0xb0] sm:$0xff]
        %v2854 = vld [vmem:[#allocation2 + $0xc0] sm:$0xff]
        %v2855 = vld [vmem:[#allocation2 + $0xc8] sm:$0xff]
        %v2856 = vld [vmem:[#allocation2 + $0xd0] sm:$0xff]
        %v2857 = vld [vmem:[#allocation2 + $0xe0] sm:$0xff]
        %v2858 = vld [vmem:[#allocation2 + $0xe8] sm:$0xff]
        %v2859 = vld [vmem:[#allocation2 + $0xf0] sm:$0xff]
        %v2860 = vperm.slane %v564, 0
        %v2861 = vperm.slane %v564, 1
        %2862 = vrot.lane.b32.xlu0 %v2860, 113
        %v2863 = vpop.permute.xlu0 %2862
        %2864 = vrot.lane.b32.xlu0 %v2861, 113
        %v2865 = vpop.permute.xlu0 %2864
        %v2866 = vsel %vm921, %v2863, %v2865
        %v2870 = vmul.f32 %v2836, %v2863
        %v2871 = vmul.f32 %v2837, %v2866
        %v2872 = vmul.f32 %v2838, %v2865
        %v2873 = vmul.f32 %v2839, %v2863
        %v2874 = vmul.f32 %v2840, %v2866
        %v2875 = vmul.f32 %v2841, %v2865
        %v2876 = vmul.f32 %v2842, %v2863
        %v2877 = vmul.f32 %v2843, %v2866
        %v2878 = vmul.f32 %v2844, %v2865
        %v2879 = vmul.f32 %v2845, %v2863
        %v2880 = vmul.f32 %v2846, %v2866
        %v2881 = vmul.f32 %v2847, %v2865
        %v2882 = vmul.f32 %v2848, %v2863
        %v2883 = vmul.f32 %v2849, %v2866
        %v2884 = vmul.f32 %v2850, %v2865
        %v2885 = vmul.f32 %v2851, %v2863
        %v2886 = vmul.f32 %v2852, %v2866
        %v2887 = vmul.f32 %v2853, %v2865
        %v2888 = vmul.f32 %v2854, %v2863
        %v2889 = vmul.f32 %v2855, %v2866
        %v2890 = vmul.f32 %v2856, %v2865
        %v2891 = vmul.f32 %v2857, %v2863
        %v2892 = vmul.f32 %v2858, %v2866
        %v2893 = vmul.f32 %v2859, %v2865
        %v2894 = vpack.c.bf16 %v2871, %v2870
        %v2895 = vpack.c.bf16 %v2872, %v2872
        %v2896 = vpack.c.bf16 %v2874, %v2873
        %v2897 = vpack.c.bf16 %v2875, %v2875
        %v2898 = vpack.c.bf16 %v2877, %v2876
        %v2899 = vpack.c.bf16 %v2878, %v2878
        %v2900 = vpack.c.bf16 %v2880, %v2879
        %v2901 = vpack.c.bf16 %v2881, %v2881
        %v2902 = vpack.c.bf16 %v2883, %v2882
        %v2903 = vpack.c.bf16 %v2884, %v2884
        %v2904 = vpack.c.bf16 %v2886, %v2885
        %v2905 = vpack.c.bf16 %v2887, %v2887
        %v2906 = vpack.c.bf16 %v2889, %v2888
        %v2907 = vpack.c.bf16 %v2890, %v2890
        %v2908 = vpack.c.bf16 %v2892, %v2891
        %v2909 = vpack.c.bf16 %v2893, %v2893
        %2926 = vrot.lane.b32.xlu0 %v2894, 15
        %v2927 = vpop.permute.xlu0 %2926
        %2928 = vrot.lane.b32.xlu0 %v2895, 15
        %v2929 = vpop.permute.xlu0 %2928
        %2930 = vrot.lane.b32.xlu0 %v2896, 15
        %v2931 = vpop.permute.xlu0 %2930
        %2932 = vrot.lane.b32.xlu0 %v2897, 15
        %v2933 = vpop.permute.xlu0 %2932
        %2934 = vrot.lane.b32.xlu0 %v2898, 15
        %v2935 = vpop.permute.xlu0 %2934
        %2936 = vrot.lane.b32.xlu0 %v2899, 15
        %v2937 = vpop.permute.xlu0 %2936
        %2938 = vrot.lane.b32.xlu0 %v2900, 15
        %v2939 = vpop.permute.xlu0 %2938
        %2940 = vrot.lane.b32.xlu0 %v2901, 15
        %v2941 = vpop.permute.xlu0 %2940
        %2942 = vrot.lane.b32.xlu0 %v2902, 15
        %v2943 = vpop.permute.xlu0 %2942
        %2944 = vrot.lane.b32.xlu0 %v2903, 15
        %v2945 = vpop.permute.xlu0 %2944
        %2946 = vrot.lane.b32.xlu0 %v2904, 15
        %v2947 = vpop.permute.xlu0 %2946
        %2948 = vrot.lane.b32.xlu0 %v2905, 15
        %v2949 = vpop.permute.xlu0 %2948
        %2950 = vrot.lane.b32.xlu0 %v2906, 15
        %v2951 = vpop.permute.xlu0 %2950
        %2952 = vrot.lane.b32.xlu0 %v2907, 15
        %v2953 = vpop.permute.xlu0 %2952
        %2954 = vrot.lane.b32.xlu0 %v2908, 15
        %v2955 = vpop.permute.xlu0 %2954
        %2956 = vrot.lane.b32.xlu0 %v2909, 15
        %v2957 = vpop.permute.xlu0 %2956
        %v2958 = vrot.slane %v2927, 4
        %v2959 = vrot.slane %v2929, 4
        %v2960 = vrot.slane %v2931, 4
        %v2961 = vrot.slane %v2933, 4
        %v2962 = vrot.slane %v2935, 4
        %v2963 = vrot.slane %v2937, 4
        %v2964 = vrot.slane %v2939, 4
        %v2965 = vrot.slane %v2941, 4
        %v2966 = vrot.slane %v2943, 4
        %v2967 = vrot.slane %v2945, 4
        %v2968 = vrot.slane %v2947, 4
        %v2969 = vrot.slane %v2949, 4
        %v2970 = vrot.slane %v2951, 4
        %v2971 = vrot.slane %v2953, 4
        %v2972 = vrot.slane %v2955, 4
        %v2973 = vrot.slane %v2957, 4
        %v2974 = vsel %vm2665, %v2958, %v2959
        %vm2975 = vcmask 121856
        %v2976 = vsel %vm2975, %v2927, %v2974
        %v2977 = vsel %vm2665, %v2960, %v2961
        %v2978 = vsel %vm2975, %v2931, %v2977
        %v2979 = vsel %vm2665, %v2962, %v2963
        %v2980 = vsel %vm2975, %v2935, %v2979
        %v2981 = vsel %vm2665, %v2964, %v2965
        %v2982 = vsel %vm2975, %v2939, %v2981
        %v2983 = vsel %vm2665, %v2966, %v2967
        %v2984 = vsel %vm2975, %v2943, %v2983
        %v2985 = vsel %vm2665, %v2968, %v2969
        %v2986 = vsel %vm2975, %v2947, %v2985
        %v2987 = vsel %vm2665, %v2970, %v2971
        %v2988 = vsel %vm2975, %v2951, %v2987
        %v2989 = vsel %vm2665, %v2972, %v2973
        %v2990 = vsel %vm2975, %v2955, %v2989
        %2999 = vst [vmem:[#allocation3 + $0x80] sm:$0xff] %v2976
        %3000 = vst [vmem:[#allocation3 + $0x88] sm:$0xff] %v2978
        %3001 = vst [vmem:[#allocation3 + $0x90] sm:$0xff] %v2980
        %3002 = vst [vmem:[#allocation3 + $0x98] sm:$0xff] %v2982
        %3003 = vst [vmem:[#allocation3 + $0xa0] sm:$0xff] %v2984
        %3004 = vst [vmem:[#allocation3 + $0xa8] sm:$0xff] %v2986
        %3005 = vst [vmem:[#allocation3 + $0xb0] sm:$0xff] %v2988
        %3006 = vst [vmem:[#allocation3 + $0xb8] sm:$0xff] %v2990
        %v3007 = vld [vmem:[#allocation2] sm:$0xff]
        %v3008 = vld [vmem:[#allocation2 + $0x8] sm:$0xff]
        %v3009 = vld [vmem:[#allocation2 + $0x10] sm:$0xff]
        %v3010 = vld [vmem:[#allocation2 + $0x20] sm:$0xff]
        %v3011 = vld [vmem:[#allocation2 + $0x28] sm:$0xff]
        %v3012 = vld [vmem:[#allocation2 + $0x30] sm:$0xff]
        %v3013 = vld [vmem:[#allocation2 + $0x40] sm:$0xff]
        %v3014 = vld [vmem:[#allocation2 + $0x48] sm:$0xff]
        %v3015 = vld [vmem:[#allocation2 + $0x50] sm:$0xff]
        %v3016 = vld [vmem:[#allocation2 + $0x60] sm:$0xff]
        %v3017 = vld [vmem:[#allocation2 + $0x68] sm:$0xff]
        %v3018 = vld [vmem:[#allocation2 + $0x70] sm:$0xff]
        %v3019 = vld [vmem:[#allocation2 + $0x80] sm:$0xff]
        %v3020 = vld [vmem:[#allocation2 + $0x88] sm:$0xff]
        %v3021 = vld [vmem:[#allocation2 + $0x90] sm:$0xff]
        %v3022 = vld [vmem:[#allocation2 + $0xa0] sm:$0xff]
        %v3023 = vld [vmem:[#allocation2 + $0xa8] sm:$0xff]
        %v3024 = vld [vmem:[#allocation2 + $0xb0] sm:$0xff]
        %v3025 = vld [vmem:[#allocation2 + $0xc0] sm:$0xff]
        %v3026 = vld [vmem:[#allocation2 + $0xc8] sm:$0xff]
        %v3027 = vld [vmem:[#allocation2 + $0xd0] sm:$0xff]
        %v3028 = vld [vmem:[#allocation2 + $0xe0] sm:$0xff]
        %v3029 = vld [vmem:[#allocation2 + $0xe8] sm:$0xff]
        %v3030 = vld [vmem:[#allocation2 + $0xf0] sm:$0xff]
        %3031 = vrot.lane.b32.xlu0 %v2551, 127
        %v3032 = vpop.permute.xlu0 %3031
        %3033 = vrot.lane.b32.xlu0 %v2552, 127
        %v3034 = vpop.permute.xlu0 %3033
        %v3035 = vsel %vm852, %v3032, %v3034
        %v3039 = vmul.f32 %v3007, %v3032
        %v3040 = vmul.f32 %v3008, %v3035
        %v3041 = vmul.f32 %v3009, %v3034
        %v3042 = vmul.f32 %v3010, %v3032
        %v3043 = vmul.f32 %v3011, %v3035
        %v3044 = vmul.f32 %v3012, %v3034
        %v3045 = vmul.f32 %v3013, %v3032
        %v3046 = vmul.f32 %v3014, %v3035
        %v3047 = vmul.f32 %v3015, %v3034
        %v3048 = vmul.f32 %v3016, %v3032
        %v3049 = vmul.f32 %v3017, %v3035
        %v3050 = vmul.f32 %v3018, %v3034
        %v3051 = vmul.f32 %v3019, %v3032
        %v3052 = vmul.f32 %v3020, %v3035
        %v3053 = vmul.f32 %v3021, %v3034
        %v3054 = vmul.f32 %v3022, %v3032
        %v3055 = vmul.f32 %v3023, %v3035
        %v3056 = vmul.f32 %v3024, %v3034
        %v3057 = vmul.f32 %v3025, %v3032
        %v3058 = vmul.f32 %v3026, %v3035
        %v3059 = vmul.f32 %v3027, %v3034
        %v3060 = vmul.f32 %v3028, %v3032
        %v3061 = vmul.f32 %v3029, %v3035
        %v3062 = vmul.f32 %v3030, %v3034
        %v3063 = vpack.c.bf16 %v3040, %v3039
        %v3064 = vpack.c.bf16 %v3041, %v3041
        %v3065 = vpack.c.bf16 %v3043, %v3042
        %v3066 = vpack.c.bf16 %v3044, %v3044
        %v3067 = vpack.c.bf16 %v3046, %v3045
        %v3068 = vpack.c.bf16 %v3047, %v3047
        %v3069 = vpack.c.bf16 %v3049, %v3048
        %v3070 = vpack.c.bf16 %v3050, %v3050
        %v3071 = vpack.c.bf16 %v3052, %v3051
        %v3072 = vpack.c.bf16 %v3053, %v3053
        %v3073 = vpack.c.bf16 %v3055, %v3054
        %v3074 = vpack.c.bf16 %v3056, %v3056
        %v3075 = vpack.c.bf16 %v3058, %v3057
        %v3076 = vpack.c.bf16 %v3059, %v3059
        %v3077 = vpack.c.bf16 %v3061, %v3060
        %v3078 = vpack.c.bf16 %v3062, %v3062
        %3095 = vrot.lane.b32.xlu0 %v3063, 1
        %v3096 = vpop.permute.xlu0 %3095
        %3097 = vrot.lane.b32.xlu0 %v3064, 1
        %v3098 = vpop.permute.xlu0 %3097
        %3099 = vrot.lane.b32.xlu0 %v3065, 1
        %v3100 = vpop.permute.xlu0 %3099
        %3101 = vrot.lane.b32.xlu0 %v3066, 1
        %v3102 = vpop.permute.xlu0 %3101
        %3103 = vrot.lane.b32.xlu0 %v3067, 1
        %v3104 = vpop.permute.xlu0 %3103
        %3105 = vrot.lane.b32.xlu0 %v3068, 1
        %v3106 = vpop.permute.xlu0 %3105
        %3107 = vrot.lane.b32.xlu0 %v3069, 1
        %v3108 = vpop.permute.xlu0 %3107
        %3109 = vrot.lane.b32.xlu0 %v3070, 1
        %v3110 = vpop.permute.xlu0 %3109
        %3111 = vrot.lane.b32.xlu0 %v3071, 1
        %v3112 = vpop.permute.xlu0 %3111
        %3113 = vrot.lane.b32.xlu0 %v3072, 1
        %v3114 = vpop.permute.xlu0 %3113
        %3115 = vrot.lane.b32.xlu0 %v3073, 1
        %v3116 = vpop.permute.xlu0 %3115
        %3117 = vrot.lane.b32.xlu0 %v3074, 1
        %v3118 = vpop.permute.xlu0 %3117
        %3119 = vrot.lane.b32.xlu0 %v3075, 1
        %v3120 = vpop.permute.xlu0 %3119
        %3121 = vrot.lane.b32.xlu0 %v3076, 1
        %v3122 = vpop.permute.xlu0 %3121
        %3123 = vrot.lane.b32.xlu0 %v3077, 1
        %v3124 = vpop.permute.xlu0 %3123
        %3125 = vrot.lane.b32.xlu0 %v3078, 1
        %v3126 = vpop.permute.xlu0 %3125
        %v3127 = vrot.slane %v3096, 4
        %v3128 = vrot.slane %v3098, 4
        %v3129 = vrot.slane %v3100, 4
        %v3130 = vrot.slane %v3102, 4
        %v3131 = vrot.slane %v3104, 4
        %v3132 = vrot.slane %v3106, 4
        %v3133 = vrot.slane %v3108, 4
        %v3134 = vrot.slane %v3110, 4
        %v3135 = vrot.slane %v3112, 4
        %v3136 = vrot.slane %v3114, 4
        %v3137 = vrot.slane %v3116, 4
        %v3138 = vrot.slane %v3118, 4
        %v3139 = vrot.slane %v3120, 4
        %v3140 = vrot.slane %v3122, 4
        %v3141 = vrot.slane %v3124, 4
        %v3142 = vrot.slane %v3126, 4
        %v3143 = vsel %vm2665, %v3127, %v3128
        %vm3144 = vcmask 7168
        %v3145 = vsel %vm3144, %v3096, %v3143
        %v3146 = vsel %vm2665, %v3129, %v3130
        %v3147 = vsel %vm3144, %v3100, %v3146
        %v3148 = vsel %vm2665, %v3131, %v3132
        %v3149 = vsel %vm3144, %v3104, %v3148
        %v3150 = vsel %vm2665, %v3133, %v3134
        %v3151 = vsel %vm3144, %v3108, %v3150
        %v3152 = vsel %vm2665, %v3135, %v3136
        %v3153 = vsel %vm3144, %v3112, %v3152
        %v3154 = vsel %vm2665, %v3137, %v3138
        %v3155 = vsel %vm3144, %v3116, %v3154
        %v3156 = vsel %vm2665, %v3139, %v3140
        %v3157 = vsel %vm3144, %v3120, %v3156
        %v3158 = vsel %vm2665, %v3141, %v3142
        %v3159 = vsel %vm3144, %v3124, %v3158
        %3168 = vst [vmem:[#allocation3 + $0xc0] sm:$0xff] %v3145
        %3169 = vst [vmem:[#allocation3 + $0xc8] sm:$0xff] %v3147
        %3170 = vst [vmem:[#allocation3 + $0xd0] sm:$0xff] %v3149
        %3171 = vst [vmem:[#allocation3 + $0xd8] sm:$0xff] %v3151
        %3172 = vst [vmem:[#allocation3 + $0xe0] sm:$0xff] %v3153
        %3173 = vst [vmem:[#allocation3 + $0xe8] sm:$0xff] %v3155
        %3174 = vst [vmem:[#allocation3 + $0xf0] sm:$0xff] %v3157
        %3175 = vst [vmem:[#allocation3 + $0xf8] sm:$0xff] %v3159
        %v3176 = vld [vmem:[#allocation2 + $0x8] sm:$0xff]
        %v3177 = vld [vmem:[#allocation2 + $0x10] sm:$0xff]
        %v3178 = vld [vmem:[#allocation2 + $0x28] sm:$0xff]
        %v3179 = vld [vmem:[#allocation2 + $0x30] sm:$0xff]
        %v3180 = vld [vmem:[#allocation2 + $0x48] sm:$0xff]
        %v3181 = vld [vmem:[#allocation2 + $0x50] sm:$0xff]
        %v3182 = vld [vmem:[#allocation2 + $0x68] sm:$0xff]
        %v3183 = vld [vmem:[#allocation2 + $0x70] sm:$0xff]
        %v3184 = vld [vmem:[#allocation2 + $0x88] sm:$0xff]
        %v3185 = vld [vmem:[#allocation2 + $0x90] sm:$0xff]
        %v3186 = vld [vmem:[#allocation2 + $0xa8] sm:$0xff]
        %v3187 = vld [vmem:[#allocation2 + $0xb0] sm:$0xff]
        %v3188 = vld [vmem:[#allocation2 + $0xc8] sm:$0xff]
        %v3189 = vld [vmem:[#allocation2 + $0xd0] sm:$0xff]
        %v3190 = vld [vmem:[#allocation2 + $0xe8] sm:$0xff]
        %v3191 = vld [vmem:[#allocation2 + $0xf0] sm:$0xff]
        %v3192 = vpack.c.bf16 %v3177, %v3176
        %v3193 = vpack.c.bf16 %v3179, %v3178
        %v3194 = vpack.c.bf16 %v3181, %v3180
        %v3195 = vpack.c.bf16 %v3183, %v3182
        %v3196 = vpack.c.bf16 %v3185, %v3184
        %v3197 = vpack.c.bf16 %v3187, %v3186
        %v3198 = vpack.c.bf16 %v3189, %v3188
        %v3199 = vpack.c.bf16 %v3191, %v3190
        %3200 = vst [vmem:[#allocation3 + $0x100] sm:$0xff] %v3192
        %3201 = vst [vmem:[#allocation3 + $0x108] sm:$0xff] %v3193
        %3202 = vst [vmem:[#allocation3 + $0x110] sm:$0xff] %v3194
        %3203 = vst [vmem:[#allocation3 + $0x118] sm:$0xff] %v3195
        %3204 = vst [vmem:[#allocation3 + $0x120] sm:$0xff] %v3196
        %3205 = vst [vmem:[#allocation3 + $0x128] sm:$0xff] %v3197
        %3206 = vst [vmem:[#allocation3 + $0x130] sm:$0xff] %v3198
        %3207 = vst [vmem:[#allocation3 + $0x138] sm:$0xff] %v3199
        %v3208 = vld [vmem:[#allocation2 + $0x8] sm:$0xff]
        %v3209 = vld [vmem:[#allocation2 + $0x10] sm:$0xff]
        %v3210 = vld [vmem:[#allocation2 + $0x18] sm:$0xff]
        %v3211 = vld [vmem:[#allocation2 + $0x28] sm:$0xff]
        %v3212 = vld [vmem:[#allocation2 + $0x30] sm:$0xff]
        %v3213 = vld [vmem:[#allocation2 + $0x38] sm:$0xff]
        %v3214 = vld [vmem:[#allocation2 + $0x48] sm:$0xff]
        %v3215 = vld [vmem:[#allocation2 + $0x50] sm:$0xff]
        %v3216 = vld [vmem:[#allocation2 + $0x58] sm:$0xff]
        %v3217 = vld [vmem:[#allocation2 + $0x68] sm:$0xff]
        %v3218 = vld [vmem:[#allocation2 + $0x70] sm:$0xff]
        %v3219 = vld [vmem:[#allocation2 + $0x78] sm:$0xff]
        %v3220 = vld [vmem:[#allocation2 + $0x88] sm:$0xff]
        %v3221 = vld [vmem:[#allocation2 + $0x90] sm:$0xff]
        %v3222 = vld [vmem:[#allocation2 + $0x98] sm:$0xff]
        %v3223 = vld [vmem:[#allocation2 + $0xa8] sm:$0xff]
        %v3224 = vld [vmem:[#allocation2 + $0xb0] sm:$0xff]
        %v3225 = vld [vmem:[#allocation2 + $0xb8] sm:$0xff]
        %v3226 = vld [vmem:[#allocation2 + $0xc8] sm:$0xff]
        %v3227 = vld [vmem:[#allocation2 + $0xd0] sm:$0xff]
        %v3228 = vld [vmem:[#allocation2 + $0xd8] sm:$0xff]
        %v3229 = vld [vmem:[#allocation2 + $0xe8] sm:$0xff]
        %v3230 = vld [vmem:[#allocation2 + $0xf0] sm:$0xff]
        %v3231 = vld [vmem:[#allocation2 + $0xf8] sm:$0xff]
        %3232 = vrot.lane.b32.xlu0 %v2860, 1
        %v3233 = vpop.permute.xlu0 %3232
        %3234 = vrot.lane.b32.xlu0 %v2861, 1
        %v3235 = vpop.permute.xlu0 %3234
        %v3236 = vsel %vm1493, %v3233, %v3235
        %v3240 = vmul.f32 %v3208, %v3233
        %v3241 = vmul.f32 %v3209, %v3236
        %v3242 = vmul.f32 %v3210, %v3235
        %v3243 = vmul.f32 %v3211, %v3233
        %v3244 = vmul.f32 %v3212, %v3236
        %v3245 = vmul.f32 %v3213, %v3235
        %v3246 = vmul.f32 %v3214, %v3233
        %v3247 = vmul.f32 %v3215, %v3236
        %v3248 = vmul.f32 %v3216, %v3235
        %v3249 = vmul.f32 %v3217, %v3233
        %v3250 = vmul.f32 %v3218, %v3236
        %v3251 = vmul.f32 %v3219, %v3235
        %v3252 = vmul.f32 %v3220, %v3233
        %v3253 = vmul.f32 %v3221, %v3236
        %v3254 = vmul.f32 %v3222, %v3235
        %v3255 = vmul.f32 %v3223, %v3233
        %v3256 = vmul.f32 %v3224, %v3236
        %v3257 = vmul.f32 %v3225, %v3235
        %v3258 = vmul.f32 %v3226, %v3233
        %v3259 = vmul.f32 %v3227, %v3236
        %v3260 = vmul.f32 %v3228, %v3235
        %v3261 = vmul.f32 %v3229, %v3233
        %v3262 = vmul.f32 %v3230, %v3236
        %v3263 = vmul.f32 %v3231, %v3235
        %v3264 = vpack.c.bf16 %v3241, %v3240
        %v3265 = vpack.c.bf16 %v3242, %v3242
        %v3266 = vpack.c.bf16 %v3244, %v3243
        %v3267 = vpack.c.bf16 %v3245, %v3245
        %v3268 = vpack.c.bf16 %v3247, %v3246
        %v3269 = vpack.c.bf16 %v3248, %v3248
        %v3270 = vpack.c.bf16 %v3250, %v3249
        %v3271 = vpack.c.bf16 %v3251, %v3251
        %v3272 = vpack.c.bf16 %v3253, %v3252
        %v3273 = vpack.c.bf16 %v3254, %v3254
        %v3274 = vpack.c.bf16 %v3256, %v3255
        %v3275 = vpack.c.bf16 %v3257, %v3257
        %v3276 = vpack.c.bf16 %v3259, %v3258
        %v3277 = vpack.c.bf16 %v3260, %v3260
        %v3278 = vpack.c.bf16 %v3262, %v3261
        %v3279 = vpack.c.bf16 %v3263, %v3263
        %3296 = vrot.lane.b32.xlu0 %v3264, 127
        %v3297 = vpop.permute.xlu0 %3296
        %3298 = vrot.lane.b32.xlu0 %v3265, 127
        %v3299 = vpop.permute.xlu0 %3298
        %3300 = vrot.lane.b32.xlu0 %v3266, 127
        %v3301 = vpop.permute.xlu0 %3300
        %3302 = vrot.lane.b32.xlu0 %v3267, 127
        %v3303 = vpop.permute.xlu0 %3302
        %3304 = vrot.lane.b32.xlu0 %v3268, 127
        %v3305 = vpop.permute.xlu0 %3304
        %3306 = vrot.lane.b32.xlu0 %v3269, 127
        %v3307 = vpop.permute.xlu0 %3306
        %3308 = vrot.lane.b32.xlu0 %v3270, 127
        %v3309 = vpop.permute.xlu0 %3308
        %3310 = vrot.lane.b32.xlu0 %v3271, 127
        %v3311 = vpop.permute.xlu0 %3310
        %3312 = vrot.lane.b32.xlu0 %v3272, 127
        %v3313 = vpop.permute.xlu0 %3312
        %3314 = vrot.lane.b32.xlu0 %v3273, 127
        %v3315 = vpop.permute.xlu0 %3314
        %3316 = vrot.lane.b32.xlu0 %v3274, 127
        %v3317 = vpop.permute.xlu0 %3316
        %3318 = vrot.lane.b32.xlu0 %v3275, 127
        %v3319 = vpop.permute.xlu0 %3318
        %3320 = vrot.lane.b32.xlu0 %v3276, 127
        %v3321 = vpop.permute.xlu0 %3320
        %3322 = vrot.lane.b32.xlu0 %v3277, 127
        %v3323 = vpop.permute.xlu0 %3322
        %3324 = vrot.lane.b32.xlu0 %v3278, 127
        %v3325 = vpop.permute.xlu0 %3324
        %3326 = vrot.lane.b32.xlu0 %v3279, 127
        %v3327 = vpop.permute.xlu0 %3326
        %v3328 = vrot.slane %v3297, 4
        %v3329 = vrot.slane %v3299, 4
        %v3330 = vrot.slane %v3301, 4
        %v3331 = vrot.slane %v3303, 4
        %v3332 = vrot.slane %v3305, 4
        %v3333 = vrot.slane %v3307, 4
        %v3334 = vrot.slane %v3309, 4
        %v3335 = vrot.slane %v3311, 4
        %v3336 = vrot.slane %v3313, 4
        %v3337 = vrot.slane %v3315, 4
        %v3338 = vrot.slane %v3317, 4
        %v3339 = vrot.slane %v3319, 4
        %v3340 = vrot.slane %v3321, 4
        %v3341 = vrot.slane %v3323, 4
        %v3342 = vrot.slane %v3325, 4
        %v3343 = vrot.slane %v3327, 4
        %v3344 = vsel %vm2665, %v3328, %v3329
        %vm3345 = vcmask 1039360
        %v3346 = vsel %vm3345, %v3297, %v3344
        %v3347 = vsel %vm2665, %v3330, %v3331
        %v3348 = vsel %vm3345, %v3301, %v3347
        %v3349 = vsel %vm2665, %v3332, %v3333
        %v3350 = vsel %vm3345, %v3305, %v3349
        %v3351 = vsel %vm2665, %v3334, %v3335
        %v3352 = vsel %vm3345, %v3309, %v3351
        %v3353 = vsel %vm2665, %v3336, %v3337
        %v3354 = vsel %vm3345, %v3313, %v3353
        %v3355 = vsel %vm2665, %v3338, %v3339
        %v3356 = vsel %vm3345, %v3317, %v3355
        %v3357 = vsel %vm2665, %v3340, %v3341
        %v3358 = vsel %vm3345, %v3321, %v3357
        %v3359 = vsel %vm2665, %v3342, %v3343
        %v3360 = vsel %vm3345, %v3325, %v3359
        %3369 = vst [vmem:[#allocation3 + $0x140] sm:$0xff] %v3346
        %3370 = vst [vmem:[#allocation3 + $0x148] sm:$0xff] %v3348
        %3371 = vst [vmem:[#allocation3 + $0x150] sm:$0xff] %v3350
        %3372 = vst [vmem:[#allocation3 + $0x158] sm:$0xff] %v3352
        %3373 = vst [vmem:[#allocation3 + $0x160] sm:$0xff] %v3354
        %3374 = vst [vmem:[#allocation3 + $0x168] sm:$0xff] %v3356
        %3375 = vst [vmem:[#allocation3 + $0x170] sm:$0xff] %v3358
        %3376 = vst [vmem:[#allocation3 + $0x178] sm:$0xff] %v3360
        %v3377 = vld [vmem:[#allocation2 + $0x8] sm:$0xff]
        %v3378 = vld [vmem:[#allocation2 + $0x10] sm:$0xff]
        %v3379 = vld [vmem:[#allocation2 + $0x18] sm:$0xff]
        %v3380 = vld [vmem:[#allocation2 + $0x28] sm:$0xff]
        %v3381 = vld [vmem:[#allocation2 + $0x30] sm:$0xff]
        %v3382 = vld [vmem:[#allocation2 + $0x38] sm:$0xff]
        %v3383 = vld [vmem:[#allocation2 + $0x48] sm:$0xff]
        %v3384 = vld [vmem:[#allocation2 + $0x50] sm:$0xff]
        %v3385 = vld [vmem:[#allocation2 + $0x58] sm:$0xff]
        %v3386 = vld [vmem:[#allocation2 + $0x68] sm:$0xff]
        %v3387 = vld [vmem:[#allocation2 + $0x70] sm:$0xff]
        %v3388 = vld [vmem:[#allocation2 + $0x78] sm:$0xff]
        %v3389 = vld [vmem:[#allocation2 + $0x88] sm:$0xff]
        %v3390 = vld [vmem:[#allocation2 + $0x90] sm:$0xff]
        %v3391 = vld [vmem:[#allocation2 + $0x98] sm:$0xff]
        %v3392 = vld [vmem:[#allocation2 + $0xa8] sm:$0xff]
        %v3393 = vld [vmem:[#allocation2 + $0xb0] sm:$0xff]
        %v3394 = vld [vmem:[#allocation2 + $0xb8] sm:$0xff]
        %v3395 = vld [vmem:[#allocation2 + $0xc8] sm:$0xff]
        %v3396 = vld [vmem:[#allocation2 + $0xd0] sm:$0xff]
        %v3397 = vld [vmem:[#allocation2 + $0xd8] sm:$0xff]
        %v3398 = vld [vmem:[#allocation2 + $0xe8] sm:$0xff]
        %v3399 = vld [vmem:[#allocation2 + $0xf0] sm:$0xff]
        %v3400 = vld [vmem:[#allocation2 + $0xf8] sm:$0xff]
        %3401 = vrot.lane.b32.xlu0 %v2551, 15
        %v3402 = vpop.permute.xlu0 %3401
        %3403 = vrot.lane.b32.xlu0 %v2552, 15
        %v3404 = vpop.permute.xlu0 %3403
        %v3405 = vsel %vm1700, %v3402, %v3404
        %v3409 = vmul.f32 %v3377, %v3402
        %v3410 = vmul.f32 %v3378, %v3405
        %v3411 = vmul.f32 %v3379, %v3404
        %v3412 = vmul.f32 %v3380, %v3402
        %v3413 = vmul.f32 %v3381, %v3405
        %v3414 = vmul.f32 %v3382, %v3404
        %v3415 = vmul.f32 %v3383, %v3402
        %v3416 = vmul.f32 %v3384, %v3405
        %v3417 = vmul.f32 %v3385, %v3404
        %v3418 = vmul.f32 %v3386, %v3402
        %v3419 = vmul.f32 %v3387, %v3405
        %v3420 = vmul.f32 %v3388, %v3404
        %v3421 = vmul.f32 %v3389, %v3402
        %v3422 = vmul.f32 %v3390, %v3405
        %v3423 = vmul.f32 %v3391, %v3404
        %v3424 = vmul.f32 %v3392, %v3402
        %v3425 = vmul.f32 %v3393, %v3405
        %v3426 = vmul.f32 %v3394, %v3404
        %v3427 = vmul.f32 %v3395, %v3402
        %v3428 = vmul.f32 %v3396, %v3405
        %v3429 = vmul.f32 %v3397, %v3404
        %v3430 = vmul.f32 %v3398, %v3402
        %v3431 = vmul.f32 %v3399, %v3405
        %v3432 = vmul.f32 %v3400, %v3404
        %v3433 = vpack.c.bf16 %v3410, %v3409
        %v3434 = vpack.c.bf16 %v3411, %v3411
        %v3435 = vpack.c.bf16 %v3413, %v3412
        %v3436 = vpack.c.bf16 %v3414, %v3414
        %v3437 = vpack.c.bf16 %v3416, %v3415
        %v3438 = vpack.c.bf16 %v3417, %v3417
        %v3439 = vpack.c.bf16 %v3419, %v3418
        %v3440 = vpack.c.bf16 %v3420, %v3420
        %v3441 = vpack.c.bf16 %v3422, %v3421
        %v3442 = vpack.c.bf16 %v3423, %v3423
        %v3443 = vpack.c.bf16 %v3425, %v3424
        %v3444 = vpack.c.bf16 %v3426, %v3426
        %v3445 = vpack.c.bf16 %v3428, %v3427
        %v3446 = vpack.c.bf16 %v3429, %v3429
        %v3447 = vpack.c.bf16 %v3431, %v3430
        %v3448 = vpack.c.bf16 %v3432, %v3432
        %3465 = vrot.lane.b32.xlu0 %v3433, 113
        %v3466 = vpop.permute.xlu0 %3465
        %3467 = vrot.lane.b32.xlu0 %v3434, 113
        %v3468 = vpop.permute.xlu0 %3467
        %3469 = vrot.lane.b32.xlu0 %v3435, 113
        %v3470 = vpop.permute.xlu0 %3469
        %3471 = vrot.lane.b32.xlu0 %v3436, 113
        %v3472 = vpop.permute.xlu0 %3471
        %3473 = vrot.lane.b32.xlu0 %v3437, 113
        %v3474 = vpop.permute.xlu0 %3473
        %3475 = vrot.lane.b32.xlu0 %v3438, 113
        %v3476 = vpop.permute.xlu0 %3475
        %3477 = vrot.lane.b32.xlu0 %v3439, 113
        %v3478 = vpop.permute.xlu0 %3477
        %3479 = vrot.lane.b32.xlu0 %v3440, 113
        %v3480 = vpop.permute.xlu0 %3479
        %3481 = vrot.lane.b32.xlu0 %v3441, 113
        %v3482 = vpop.permute.xlu0 %3481
        %3483 = vrot.lane.b32.xlu0 %v3442, 113
        %v3484 = vpop.permute.xlu0 %3483
        %3485 = vrot.lane.b32.xlu0 %v3443, 113
        %v3486 = vpop.permute.xlu0 %3485
        %3487 = vrot.lane.b32.xlu0 %v3444, 113
        %v3488 = vpop.permute.xlu0 %3487
        %3489 = vrot.lane.b32.xlu0 %v3445, 113
        %v3490 = vpop.permute.xlu0 %3489
        %3491 = vrot.lane.b32.xlu0 %v3446, 113
        %v3492 = vpop.permute.xlu0 %3491
        %3493 = vrot.lane.b32.xlu0 %v3447, 113
        %v3494 = vpop.permute.xlu0 %3493
        %3495 = vrot.lane.b32.xlu0 %v3448, 113
        %v3496 = vpop.permute.xlu0 %3495
        %v3497 = vrot.slane %v3466, 4
        %v3498 = vrot.slane %v3468, 4
        %v3499 = vrot.slane %v3470, 4
        %v3500 = vrot.slane %v3472, 4
        %v3501 = vrot.slane %v3474, 4
        %v3502 = vrot.slane %v3476, 4
        %v3503 = vrot.slane %v3478, 4
        %v3504 = vrot.slane %v3480, 4
        %v3505 = vrot.slane %v3482, 4
        %v3506 = vrot.slane %v3484, 4
        %v3507 = vrot.slane %v3486, 4
        %v3508 = vrot.slane %v3488, 4
        %v3509 = vrot.slane %v3490, 4
        %v3510 = vrot.slane %v3492, 4
        %v3511 = vrot.slane %v3494, 4
        %v3512 = vrot.slane %v3496, 4
        %v3513 = vsel %vm2665, %v3497, %v3498
        %vm3514 = vcmask 924672
        %v3515 = vsel %vm3514, %v3466, %v3513
        %v3516 = vsel %vm2665, %v3499, %v3500
        %v3517 = vsel %vm3514, %v3470, %v3516
        %v3518 = vsel %vm2665, %v3501, %v3502
        %v3519 = vsel %vm3514, %v3474, %v3518
        %v3520 = vsel %vm2665, %v3503, %v3504
        %v3521 = vsel %vm3514, %v3478, %v3520
        %v3522 = vsel %vm2665, %v3505, %v3506
        %v3523 = vsel %vm3514, %v3482, %v3522
        %v3524 = vsel %vm2665, %v3507, %v3508
        %v3525 = vsel %vm3514, %v3486, %v3524
        %v3526 = vsel %vm2665, %v3509, %v3510
        %v3527 = vsel %vm3514, %v3490, %v3526
        %v3528 = vsel %vm2665, %v3511, %v3512
        %v3529 = vsel %vm3514, %v3494, %v3528
        %3538 = vst [vmem:[#allocation3 + $0x180] sm:$0xff] %v3515
        %3539 = vst [vmem:[#allocation3 + $0x188] sm:$0xff] %v3517
        %3540 = vst [vmem:[#allocation3 + $0x190] sm:$0xff] %v3519
        %3541 = vst [vmem:[#allocation3 + $0x198] sm:$0xff] %v3521
        %3542 = vst [vmem:[#allocation3 + $0x1a0] sm:$0xff] %v3523
        %3543 = vst [vmem:[#allocation3 + $0x1a8] sm:$0xff] %v3525
        %3544 = vst [vmem:[#allocation3 + $0x1b0] sm:$0xff] %v3527
        %3545 = vst [vmem:[#allocation3 + $0x1b8] sm:$0xff] %v3529
        %v3546 = vld [vmem:[#allocation2 + $0x8] sm:$0xff]
        %v3547 = vld [vmem:[#allocation2 + $0x10] sm:$0xff]
        %v3548 = vld [vmem:[#allocation2 + $0x18] sm:$0xff]
        %v3549 = vld [vmem:[#allocation2 + $0x28] sm:$0xff]
        %v3550 = vld [vmem:[#allocation2 + $0x30] sm:$0xff]
        %v3551 = vld [vmem:[#allocation2 + $0x38] sm:$0xff]
        %v3552 = vld [vmem:[#allocation2 + $0x48] sm:$0xff]
        %v3553 = vld [vmem:[#allocation2 + $0x50] sm:$0xff]
        %v3554 = vld [vmem:[#allocation2 + $0x58] sm:$0xff]
        %v3555 = vld [vmem:[#allocation2 + $0x68] sm:$0xff]
        %v3556 = vld [vmem:[#allocation2 + $0x70] sm:$0xff]
        %v3557 = vld [vmem:[#allocation2 + $0x78] sm:$0xff]
        %v3558 = vld [vmem:[#allocation2 + $0x88] sm:$0xff]
        %v3559 = vld [vmem:[#allocation2 + $0x90] sm:$0xff]
        %v3560 = vld [vmem:[#allocation2 + $0x98] sm:$0xff]
        %v3561 = vld [vmem:[#allocation2 + $0xa8] sm:$0xff]
        %v3562 = vld [vmem:[#allocation2 + $0xb0] sm:$0xff]
        %v3563 = vld [vmem:[#allocation2 + $0xb8] sm:$0xff]
        %v3564 = vld [vmem:[#allocation2 + $0xc8] sm:$0xff]
        %v3565 = vld [vmem:[#allocation2 + $0xd0] sm:$0xff]
        %v3566 = vld [vmem:[#allocation2 + $0xd8] sm:$0xff]
        %v3567 = vld [vmem:[#allocation2 + $0xe8] sm:$0xff]
        %v3568 = vld [vmem:[#allocation2 + $0xf0] sm:$0xff]
        %v3569 = vld [vmem:[#allocation2 + $0xf8] sm:$0xff]
        %v3570 = vpack.c.bf16 %v3547, %v3546
        %v3571 = vpack.c.bf16 %v3548, %v3548
        %v3572 = vpack.c.bf16 %v3550, %v3549
        %v3573 = vpack.c.bf16 %v3551, %v3551
        %v3574 = vpack.c.bf16 %v3553, %v3552
        %v3575 = vpack.c.bf16 %v3554, %v3554
        %v3576 = vpack.c.bf16 %v3556, %v3555
        %v3577 = vpack.c.bf16 %v3557, %v3557
        %v3578 = vpack.c.bf16 %v3559, %v3558
        %v3579 = vpack.c.bf16 %v3560, %v3560
        %v3580 = vpack.c.bf16 %v3562, %v3561
        %v3581 = vpack.c.bf16 %v3563, %v3563
        %v3582 = vpack.c.bf16 %v3565, %v3564
        %v3583 = vpack.c.bf16 %v3566, %v3566
        %v3584 = vpack.c.bf16 %v3568, %v3567
        %v3585 = vpack.c.bf16 %v3569, %v3569
        %3602 = vrot.lane.b32.xlu0 %v3570, 112
        %v3603 = vpop.permute.xlu0 %3602
        %3604 = vrot.lane.b32.xlu0 %v3571, 112
        %v3605 = vpop.permute.xlu0 %3604
        %3606 = vrot.lane.b32.xlu0 %v3572, 112
        %v3607 = vpop.permute.xlu0 %3606
        %3608 = vrot.lane.b32.xlu0 %v3573, 112
        %v3609 = vpop.permute.xlu0 %3608
        %3610 = vrot.lane.b32.xlu0 %v3574, 112
        %v3611 = vpop.permute.xlu0 %3610
        %3612 = vrot.lane.b32.xlu0 %v3575, 112
        %v3613 = vpop.permute.xlu0 %3612
        %3614 = vrot.lane.b32.xlu0 %v3576, 112
        %v3615 = vpop.permute.xlu0 %3614
        %3616 = vrot.lane.b32.xlu0 %v3577, 112
        %v3617 = vpop.permute.xlu0 %3616
        %3618 = vrot.lane.b32.xlu0 %v3578, 112
        %v3619 = vpop.permute.xlu0 %3618
        %3620 = vrot.lane.b32.xlu0 %v3579, 112
        %v3621 = vpop.permute.xlu0 %3620
        %3622 = vrot.lane.b32.xlu0 %v3580, 112
        %v3623 = vpop.permute.xlu0 %3622
        %3624 = vrot.lane.b32.xlu0 %v3581, 112
        %v3625 = vpop.permute.xlu0 %3624
        %3626 = vrot.lane.b32.xlu0 %v3582, 112
        %v3627 = vpop.permute.xlu0 %3626
        %3628 = vrot.lane.b32.xlu0 %v3583, 112
        %v3629 = vpop.permute.xlu0 %3628
        %3630 = vrot.lane.b32.xlu0 %v3584, 112
        %v3631 = vpop.permute.xlu0 %3630
        %3632 = vrot.lane.b32.xlu0 %v3585, 112
        %v3633 = vpop.permute.xlu0 %3632
        %v3634 = vrot.slane %v3603, 4
        %v3635 = vrot.slane %v3605, 4
        %v3636 = vrot.slane %v3607, 4
        %v3637 = vrot.slane %v3609, 4
        %v3638 = vrot.slane %v3611, 4
        %v3639 = vrot.slane %v3613, 4
        %v3640 = vrot.slane %v3615, 4
        %v3641 = vrot.slane %v3617, 4
        %v3642 = vrot.slane %v3619, 4
        %v3643 = vrot.slane %v3621, 4
        %v3644 = vrot.slane %v3623, 4
        %v3645 = vrot.slane %v3625, 4
        %v3646 = vrot.slane %v3627, 4
        %v3647 = vrot.slane %v3629, 4
        %v3648 = vrot.slane %v3631, 4
        %v3649 = vrot.slane %v3633, 4
        %v3650 = vsel %vm2665, %v3634, %v3635
        %vm3651 = vcmask 916480
        %v3652 = vsel %vm3651, %v3603, %v3650
        %v3653 = vsel %vm2665, %v3636, %v3637
        %v3654 = vsel %vm3651, %v3607, %v3653
        %v3655 = vsel %vm2665, %v3638, %v3639
        %v3656 = vsel %vm3651, %v3611, %v3655
        %v3657 = vsel %vm2665, %v3640, %v3641
        %v3658 = vsel %vm3651, %v3615, %v3657
        %v3659 = vsel %vm2665, %v3642, %v3643
        %v3660 = vsel %vm3651, %v3619, %v3659
        %v3661 = vsel %vm2665, %v3644, %v3645
        %v3662 = vsel %vm3651, %v3623, %v3661
        %v3663 = vsel %vm2665, %v3646, %v3647
        %v3664 = vsel %vm3651, %v3627, %v3663
        %v3665 = vsel %vm2665, %v3648, %v3649
        %v3666 = vsel %vm3651, %v3631, %v3665
        %3675 = vst [vmem:[#allocation3 + $0x1c0] sm:$0xff] %v3652
        %3676 = vst [vmem:[#allocation3 + $0x1c8] sm:$0xff] %v3654
        %3677 = vst [vmem:[#allocation3 + $0x1d0] sm:$0xff] %v3656
        %3678 = vst [vmem:[#allocation3 + $0x1d8] sm:$0xff] %v3658
        %3679 = vst [vmem:[#allocation3 + $0x1e0] sm:$0xff] %v3660
        %3680 = vst [vmem:[#allocation3 + $0x1e8] sm:$0xff] %v3662
        %3681 = vst [vmem:[#allocation3 + $0x1f0] sm:$0xff] %v3664
        %3682 = vst [vmem:[#allocation3 + $0x1f8] sm:$0xff] %v3666
        %v3683 = vld [vmem:[#allocation2 + $0x8] sm:$0xff]
        %v3684 = vld [vmem:[#allocation2 + $0x10] sm:$0xff]
        %v3685 = vld [vmem:[#allocation2 + $0x18] sm:$0xff]
        %v3686 = vld [vmem:[#allocation2 + $0x28] sm:$0xff]
        %v3687 = vld [vmem:[#allocation2 + $0x30] sm:$0xff]
        %v3688 = vld [vmem:[#allocation2 + $0x38] sm:$0xff]
        %v3689 = vld [vmem:[#allocation2 + $0x48] sm:$0xff]
        %v3690 = vld [vmem:[#allocation2 + $0x50] sm:$0xff]
        %v3691 = vld [vmem:[#allocation2 + $0x58] sm:$0xff]
        %v3692 = vld [vmem:[#allocation2 + $0x68] sm:$0xff]
        %v3693 = vld [vmem:[#allocation2 + $0x70] sm:$0xff]
        %v3694 = vld [vmem:[#allocation2 + $0x78] sm:$0xff]
        %v3695 = vld [vmem:[#allocation2 + $0x88] sm:$0xff]
        %v3696 = vld [vmem:[#allocation2 + $0x90] sm:$0xff]
        %v3697 = vld [vmem:[#allocation2 + $0x98] sm:$0xff]
        %v3698 = vld [vmem:[#allocation2 + $0xa8] sm:$0xff]
        %v3699 = vld [vmem:[#allocation2 + $0xb0] sm:$0xff]
        %v3700 = vld [vmem:[#allocation2 + $0xb8] sm:$0xff]
        %v3701 = vld [vmem:[#allocation2 + $0xc8] sm:$0xff]
        %v3702 = vld [vmem:[#allocation2 + $0xd0] sm:$0xff]
        %v3703 = vld [vmem:[#allocation2 + $0xd8] sm:$0xff]
        %v3704 = vld [vmem:[#allocation2 + $0xe8] sm:$0xff]
        %v3705 = vld [vmem:[#allocation2 + $0xf0] sm:$0xff]
        %v3706 = vld [vmem:[#allocation2 + $0xf8] sm:$0xff]
        %3707 = vrot.lane.b32.xlu0 %v2860, 17
        %v3708 = vpop.permute.xlu0 %3707
        %3709 = vrot.lane.b32.xlu0 %v2861, 17
        %v3710 = vpop.permute.xlu0 %3709
        %v3711 = vsel %vm2107, %v3708, %v3710
        %v3715 = vmul.f32 %v3683, %v3708
        %v3716 = vmul.f32 %v3684, %v3711
        %v3717 = vmul.f32 %v3685, %v3710
        %v3718 = vmul.f32 %v3686, %v3708
        %v3719 = vmul.f32 %v3687, %v3711
        %v3720 = vmul.f32 %v3688, %v3710
        %v3721 = vmul.f32 %v3689, %v3708
        %v3722 = vmul.f32 %v3690, %v3711
        %v3723 = vmul.f32 %v3691, %v3710
        %v3724 = vmul.f32 %v3692, %v3708
        %v3725 = vmul.f32 %v3693, %v3711
        %v3726 = vmul.f32 %v3694, %v3710
        %v3727 = vmul.f32 %v3695, %v3708
        %v3728 = vmul.f32 %v3696, %v3711
        %v3729 = vmul.f32 %v3697, %v3710
        %v3730 = vmul.f32 %v3698, %v3708
        %v3731 = vmul.f32 %v3699, %v3711
        %v3732 = vmul.f32 %v3700, %v3710
        %v3733 = vmul.f32 %v3701, %v3708
        %v3734 = vmul.f32 %v3702, %v3711
        %v3735 = vmul.f32 %v3703, %v3710
        %v3736 = vmul.f32 %v3704, %v3708
        %v3737 = vmul.f32 %v3705, %v3711
        %v3738 = vmul.f32 %v3706, %v3710
        %v3739 = vpack.c.bf16 %v3716, %v3715
        %v3740 = vpack.c.bf16 %v3717, %v3717
        %v3741 = vpack.c.bf16 %v3719, %v3718
        %v3742 = vpack.c.bf16 %v3720, %v3720
        %v3743 = vpack.c.bf16 %v3722, %v3721
        %v3744 = vpack.c.bf16 %v3723, %v3723
        %v3745 = vpack.c.bf16 %v3725, %v3724
        %v3746 = vpack.c.bf16 %v3726, %v3726
        %v3747 = vpack.c.bf16 %v3728, %v3727
        %v3748 = vpack.c.bf16 %v3729, %v3729
        %v3749 = vpack.c.bf16 %v3731, %v3730
        %v3750 = vpack.c.bf16 %v3732, %v3732
        %v3751 = vpack.c.bf16 %v3734, %v3733
        %v3752 = vpack.c.bf16 %v3735, %v3735
        %v3753 = vpack.c.bf16 %v3737, %v3736
        %v3754 = vpack.c.bf16 %v3738, %v3738
        %3771 = vrot.lane.b32.xlu0 %v3739, 111
        %v3772 = vpop.permute.xlu0 %3771
        %3773 = vrot.lane.b32.xlu0 %v3740, 111
        %v3774 = vpop.permute.xlu0 %3773
        %3775 = vrot.lane.b32.xlu0 %v3741, 111
        %v3776 = vpop.permute.xlu0 %3775
        %3777 = vrot.lane.b32.xlu0 %v3742, 111
        %v3778 = vpop.permute.xlu0 %3777
        %3779 = vrot.lane.b32.xlu0 %v3743, 111
        %v3780 = vpop.permute.xlu0 %3779
        %3781 = vrot.lane.b32.xlu0 %v3744, 111
        %v3782 = vpop.permute.xlu0 %3781
        %3783 = vrot.lane.b32.xlu0 %v3745, 111
        %v3784 = vpop.permute.xlu0 %3783
        %3785 = vrot.lane.b32.xlu0 %v3746, 111
        %v3786 = vpop.permute.xlu0 %3785
        %3787 = vrot.lane.b32.xlu0 %v3747, 111
        %v3788 = vpop.permute.xlu0 %3787
        %3789 = vrot.lane.b32.xlu0 %v3748, 111
        %v3790 = vpop.permute.xlu0 %3789
        %3791 = vrot.lane.b32.xlu0 %v3749, 111
        %v3792 = vpop.permute.xlu0 %3791
        %3793 = vrot.lane.b32.xlu0 %v3750, 111
        %v3794 = vpop.permute.xlu0 %3793
        %3795 = vrot.lane.b32.xlu0 %v3751, 111
        %v3796 = vpop.permute.xlu0 %3795
        %3797 = vrot.lane.b32.xlu0 %v3752, 111
        %v3798 = vpop.permute.xlu0 %3797
        %3799 = vrot.lane.b32.xlu0 %v3753, 111
        %v3800 = vpop.permute.xlu0 %3799
        %3801 = vrot.lane.b32.xlu0 %v3754, 111
        %v3802 = vpop.permute.xlu0 %3801
        %v3803 = vrot.slane %v3772, 4
        %v3804 = vrot.slane %v3774, 4
        %v3805 = vrot.slane %v3776, 4
        %v3806 = vrot.slane %v3778, 4
        %v3807 = vrot.slane %v3780, 4
        %v3808 = vrot.slane %v3782, 4
        %v3809 = vrot.slane %v3784, 4
        %v3810 = vrot.slane %v3786, 4
        %v3811 = vrot.slane %v3788, 4
        %v3812 = vrot.slane %v3790, 4
        %v3813 = vrot.slane %v3792, 4
        %v3814 = vrot.slane %v3794, 4
        %v3815 = vrot.slane %v3796, 4
        %v3816 = vrot.slane %v3798, 4
        %v3817 = vrot.slane %v3800, 4
        %v3818 = vrot.slane %v3802, 4
        %v3819 = vsel %vm2665, %v3803, %v3804
        %vm3820 = vcmask 908288
        %v3821 = vsel %vm3820, %v3772, %v3819
        %v3822 = vsel %vm2665, %v3805, %v3806
        %v3823 = vsel %vm3820, %v3776, %v3822
        %v3824 = vsel %vm2665, %v3807, %v3808
        %v3825 = vsel %vm3820, %v3780, %v3824
        %v3826 = vsel %vm2665, %v3809, %v3810
        %v3827 = vsel %vm3820, %v3784, %v3826
        %v3828 = vsel %vm2665, %v3811, %v3812
        %v3829 = vsel %vm3820, %v3788, %v3828
        %v3830 = vsel %vm2665, %v3813, %v3814
        %v3831 = vsel %vm3820, %v3792, %v3830
        %v3832 = vsel %vm2665, %v3815, %v3816
        %v3833 = vsel %vm3820, %v3796, %v3832
        %v3834 = vsel %vm2665, %v3817, %v3818
        %v3835 = vsel %vm3820, %v3800, %v3834
        %3844 = vst [vmem:[#allocation3 + $0x200] sm:$0xff] %v3821
        %3845 = vst [vmem:[#allocation3 + $0x208] sm:$0xff] %v3823
        %3846 = vst [vmem:[#allocation3 + $0x210] sm:$0xff] %v3825
        %3847 = vst [vmem:[#allocation3 + $0x218] sm:$0xff] %v3827
        %3848 = vst [vmem:[#allocation3 + $0x220] sm:$0xff] %v3829
        %3849 = vst [vmem:[#allocation3 + $0x228] sm:$0xff] %v3831
        %3850 = vst [vmem:[#allocation3 + $0x230] sm:$0xff] %v3833
        %3851 = vst [vmem:[#allocation3 + $0x238] sm:$0xff] %v3835
        %v3852 = vld [vmem:[%s5] sm:$0xff]
        %v3853 = vld [vmem:[%s5 + $0x8] sm:$0xff]
        %v3854 = vld [vmem:[%s5 + $0x10] sm:$0xf]
        %v3855 = vld [vmem:[%s5 + $0x14] sm:$0xff]
        %v3856 = vld [vmem:[%s5 + $0x1c] sm:$0xff]
        %v3857 = vld [vmem:[%s5 + $0x24] sm:$0xf]
        %v3858 = vld [vmem:[#allocation3] sm:$0xff]
        %v3859 = vld [vmem:[#allocation3 + $0x8] sm:$0xff]
        %v3860 = vld [vmem:[#allocation3 + $0x10] sm:$0xff]
        %v3861 = vld [vmem:[#allocation3 + $0x18] sm:$0xff]
        %v3862 = vld [vmem:[#allocation3 + $0x20] sm:$0xff]
        %v3863 = vld [vmem:[#allocation3 + $0x28] sm:$0xff]
        %v3864 = vld [vmem:[#allocation3 + $0x30] sm:$0xff]
        %v3865 = vld [vmem:[#allocation3 + $0x38] sm:$0xff]
        %v3866 = vld [vmem:[#allocation3 + $0x40] sm:$0xff]
        %v3867 = vld [vmem:[#allocation3 + $0x48] sm:$0xff]
        %v3868 = vld [vmem:[#allocation3 + $0x50] sm:$0xff]
        %v3869 = vld [vmem:[#allocation3 + $0x58] sm:$0xff]
        %v3870 = vld [vmem:[#allocation3 + $0x60] sm:$0xff]
        %v3871 = vld [vmem:[#allocation3 + $0x68] sm:$0xff]
        %v3872 = vld [vmem:[#allocation3 + $0x70] sm:$0xff]
        %v3873 = vld [vmem:[#allocation3 + $0x78] sm:$0xff]
        %v3874 = vld [vmem:[#allocation3 + $0x80] sm:$0xff]
        %v3875 = vld [vmem:[#allocation3 + $0x88] sm:$0xff]
        %v3876 = vld [vmem:[#allocation3 + $0x90] sm:$0xff]
        %v3877 = vld [vmem:[#allocation3 + $0x98] sm:$0xff]
        %v3878 = vld [vmem:[#allocation3 + $0xa0] sm:$0xff]
        %v3879 = vld [vmem:[#allocation3 + $0xa8] sm:$0xff]
        %v3880 = vld [vmem:[#allocation3 + $0xb0] sm:$0xff]
        %v3881 = vld [vmem:[#allocation3 + $0xb8] sm:$0xff]
        %v3882 = vld [vmem:[#allocation3 + $0xc0] sm:$0xff]
        %v3883 = vld [vmem:[#allocation3 + $0xc8] sm:$0xff]
        %v3884 = vld [vmem:[#allocation3 + $0xd0] sm:$0xff]
        %v3885 = vld [vmem:[#allocation3 + $0xd8] sm:$0xff]
        %v3886 = vld [vmem:[#allocation3 + $0xe0] sm:$0xff]
        %v3887 = vld [vmem:[#allocation3 + $0xe8] sm:$0xff]
        %v3888 = vld [vmem:[#allocation3 + $0xf0] sm:$0xff]
        %v3889 = vld [vmem:[#allocation3 + $0xf8] sm:$0xff]
        %v3890 = vld [vmem:[#allocation3 + $0x100] sm:$0xff]
        %v3891 = vld [vmem:[#allocation3 + $0x108] sm:$0xff]
        %v3892 = vld [vmem:[#allocation3 + $0x110] sm:$0xff]
        %v3893 = vld [vmem:[#allocation3 + $0x118] sm:$0xff]
        %v3894 = vld [vmem:[#allocation3 + $0x120] sm:$0xff]
        %v3895 = vld [vmem:[#allocation3 + $0x128] sm:$0xff]
        %v3896 = vld [vmem:[#allocation3 + $0x130] sm:$0xff]
        %v3897 = vld [vmem:[#allocation3 + $0x138] sm:$0xff]
        %v3898 = vld [vmem:[#allocation3 + $0x140] sm:$0xff]
        %v3899 = vld [vmem:[#allocation3 + $0x148] sm:$0xff]
        %v3900 = vld [vmem:[#allocation3 + $0x150] sm:$0xff]
        %v3901 = vld [vmem:[#allocation3 + $0x158] sm:$0xff]
        %v3902 = vld [vmem:[#allocation3 + $0x160] sm:$0xff]
        %v3903 = vld [vmem:[#allocation3 + $0x168] sm:$0xff]
        %v3904 = vld [vmem:[#allocation3 + $0x170] sm:$0xff]
        %v3905 = vld [vmem:[#allocation3 + $0x178] sm:$0xff]
        %v3906 = vld [vmem:[#allocation3 + $0x180] sm:$0xff]
        %v3907 = vld [vmem:[#allocation3 + $0x188] sm:$0xff]
        %v3908 = vld [vmem:[#allocation3 + $0x190] sm:$0xff]
        %v3909 = vld [vmem:[#allocation3 + $0x198] sm:$0xff]
        %v3910 = vld [vmem:[#allocation3 + $0x1a0] sm:$0xff]
        %v3911 = vld [vmem:[#allocation3 + $0x1a8] sm:$0xff]
        %v3912 = vld [vmem:[#allocation3 + $0x1b0] sm:$0xff]
        %v3913 = vld [vmem:[#allocation3 + $0x1b8] sm:$0xff]
        %v3914 = vld [vmem:[#allocation3 + $0x1c0] sm:$0xff]
        %v3915 = vld [vmem:[#allocation3 + $0x1c8] sm:$0xff]
        %v3916 = vld [vmem:[#allocation3 + $0x1d0] sm:$0xff]
        %v3917 = vld [vmem:[#allocation3 + $0x1d8] sm:$0xff]
        %v3918 = vld [vmem:[#allocation3 + $0x1e0] sm:$0xff]
        %v3919 = vld [vmem:[#allocation3 + $0x1e8] sm:$0xff]
        %v3920 = vld [vmem:[#allocation3 + $0x1f0] sm:$0xff]
        %v3921 = vld [vmem:[#allocation3 + $0x1f8] sm:$0xff]
        %v3922 = vld [vmem:[#allocation3 + $0x200] sm:$0xff]
        %v3923 = vld [vmem:[#allocation3 + $0x208] sm:$0xff]
        %v3924 = vld [vmem:[#allocation3 + $0x210] sm:$0xff]
        %v3925 = vld [vmem:[#allocation3 + $0x218] sm:$0xff]
        %v3926 = vld [vmem:[#allocation3 + $0x220] sm:$0xff]
        %v3927 = vld [vmem:[#allocation3 + $0x228] sm:$0xff]
        %v3928 = vld [vmem:[#allocation3 + $0x230] sm:$0xff]
        %v3929 = vld [vmem:[#allocation3 + $0x238] sm:$0xff]
        %v3930 = vld [vmem:[%s6] sm:$0xff]
        %v3931 = vld [vmem:[%s6 + $0x8] sm:$0xff]
        %3933 = vset.pattern.permute.xlu0 0
        %3934 = vperm.xlu0 %3933, %v3930
        %v3935 = vpop.permute.xlu0 %3934
        %3938 = vset.pattern.permute.xlu0 0
        %3939 = vperm.xlu0 %3938, %v3931
        %v3940 = vpop.permute.xlu0 %3939
        %v3948 = vunpack.c.l.b16 %v3852
        %v3949 = vunpack.c.h.b16 %v3852
        %v3950 = vunpack.c.l.b16 %v3853
        %v3951 = vunpack.c.h.b16 %v3853
        %v3952 = vunpack.c.l.b16 %v3854
        %v3953 = vunpack.c.l.b16 %v3855
        %v3954 = vunpack.c.h.b16 %v3855
        %v3955 = vunpack.c.l.b16 %v3856
        %v3956 = vunpack.c.h.b16 %v3856
        %v3957 = vunpack.c.l.b16 %v3857
        %v3958 = vpack.c.b16 %v3953, %v3948
        %v3959 = vpack.c.b16 %v3954, %v3949
        %v3960 = vpack.c.b16 %v3955, %v3950
        %v3961 = vpack.c.b16 %v3956, %v3951
        %v3962 = vpack.c.b16 %v3957, %v3952
        %v4039 = vunpack.c.l.b16 %v3858
        %v4040 = vunpack.c.h.b16 %v3858
        %v4041 = vunpack.c.l.b16 %v3859
        %v4042 = vunpack.c.h.b16 %v3859
        %v4043 = vunpack.c.l.b16 %v3860
        %v4044 = vunpack.c.h.b16 %v3860
        %v4045 = vunpack.c.l.b16 %v3861
        %v4046 = vunpack.c.h.b16 %v3861
        %v4047 = vunpack.c.l.b16 %v3862
        %v4048 = vunpack.c.h.b16 %v3862
        %v4049 = vunpack.c.l.b16 %v3863
        %v4050 = vunpack.c.h.b16 %v3863
        %v4051 = vunpack.c.l.b16 %v3864
        %v4052 = vunpack.c.h.b16 %v3864
        %v4053 = vunpack.c.l.b16 %v3865
        %v4054 = vunpack.c.h.b16 %v3865
        %v4055 = vunpack.c.l.b16 %v3866
        %v4056 = vunpack.c.h.b16 %v3866
        %v4057 = vunpack.c.l.b16 %v3867
        %v4058 = vunpack.c.h.b16 %v3867
        %v4059 = vunpack.c.l.b16 %v3868
        %v4060 = vunpack.c.h.b16 %v3868
        %v4061 = vunpack.c.l.b16 %v3869
        %v4062 = vunpack.c.h.b16 %v3869
        %v4063 = vunpack.c.l.b16 %v3870
        %v4064 = vunpack.c.h.b16 %v3870
        %v4065 = vunpack.c.l.b16 %v3871
        %v4066 = vunpack.c.h.b16 %v3871
        %v4067 = vunpack.c.l.b16 %v3872
        %v4068 = vunpack.c.h.b16 %v3872
        %v4069 = vunpack.c.l.b16 %v3873
        %v4070 = vunpack.c.h.b16 %v3873
        %v4071 = vunpack.c.l.b16 %v3874
        %v4072 = vunpack.c.h.b16 %v3874
        %v4073 = vunpack.c.l.b16 %v3875
        %v4074 = vunpack.c.h.b16 %v3875
        %v4075 = vunpack.c.l.b16 %v3876
        %v4076 = vunpack.c.h.b16 %v3876
        %v4077 = vunpack.c.l.b16 %v3877
        %v4078 = vunpack.c.h.b16 %v3877
        %v4079 = vunpack.c.l.b16 %v3878
        %v4080 = vunpack.c.h.b16 %v3878
        %v4081 = vunpack.c.l.b16 %v3879
        %v4082 = vunpack.c.h.b16 %v3879
        %v4083 = vunpack.c.l.b16 %v3880
        %v4084 = vunpack.c.h.b16 %v3880
        %v4085 = vunpack.c.l.b16 %v3881
        %v4086 = vunpack.c.h.b16 %v3881
        %v4087 = vunpack.c.l.b16 %v3882
        %v4088 = vunpack.c.h.b16 %v3882
        %v4089 = vunpack.c.l.b16 %v3883
        %v4090 = vunpack.c.h.b16 %v3883
        %v4091 = vunpack.c.l.b16 %v3884
        %v4092 = vunpack.c.h.b16 %v3884
        %v4093 = vunpack.c.l.b16 %v3885
        %v4094 = vunpack.c.h.b16 %v3885
        %v4095 = vunpack.c.l.b16 %v3886
        %v4096 = vunpack.c.h.b16 %v3886
        %v4097 = vunpack.c.l.b16 %v3887
        %v4098 = vunpack.c.h.b16 %v3887
        %v4099 = vunpack.c.l.b16 %v3888
        %v4100 = vunpack.c.h.b16 %v3888
        %v4101 = vunpack.c.l.b16 %v3889
        %v4102 = vunpack.c.h.b16 %v3889
        %v4103 = vunpack.c.l.b16 %v3890
        %v4104 = vunpack.c.h.b16 %v3890
        %v4105 = vunpack.c.l.b16 %v3891
        %v4106 = vunpack.c.h.b16 %v3891
        %v4107 = vunpack.c.l.b16 %v3892
        %v4108 = vunpack.c.h.b16 %v3892
        %v4109 = vunpack.c.l.b16 %v3893
        %v4110 = vunpack.c.h.b16 %v3893
        %v4111 = vunpack.c.l.b16 %v3894
        %v4112 = vunpack.c.h.b16 %v3894
        %v4113 = vunpack.c.l.b16 %v3895
        %v4114 = vunpack.c.h.b16 %v3895
        %v4115 = vunpack.c.l.b16 %v3896
        %v4116 = vunpack.c.h.b16 %v3896
        %v4117 = vunpack.c.l.b16 %v3897
        %v4118 = vunpack.c.h.b16 %v3897
        %v4119 = vunpack.c.l.b16 %v3898
        %v4120 = vunpack.c.h.b16 %v3898
        %v4121 = vunpack.c.l.b16 %v3899
        %v4122 = vunpack.c.h.b16 %v3899
        %v4123 = vunpack.c.l.b16 %v3900
        %v4124 = vunpack.c.h.b16 %v3900
        %v4125 = vunpack.c.l.b16 %v3901
        %v4126 = vunpack.c.h.b16 %v3901
        %v4127 = vunpack.c.l.b16 %v3902
        %v4128 = vunpack.c.h.b16 %v3902
        %v4129 = vunpack.c.l.b16 %v3903
        %v4130 = vunpack.c.h.b16 %v3903
        %v4131 = vunpack.c.l.b16 %v3904
        %v4132 = vunpack.c.h.b16 %v3904
        %v4133 = vunpack.c.l.b16 %v3905
        %v4134 = vunpack.c.h.b16 %v3905
        %v4135 = vunpack.c.l.b16 %v3906
        %v4136 = vunpack.c.h.b16 %v3906
        %v4137 = vunpack.c.l.b16 %v3907
        %v4138 = vunpack.c.h.b16 %v3907
        %v4139 = vunpack.c.l.b16 %v3908
        %v4140 = vunpack.c.h.b16 %v3908
        %v4141 = vunpack.c.l.b16 %v3909
        %v4142 = vunpack.c.h.b16 %v3909
        %v4143 = vunpack.c.l.b16 %v3910
        %v4144 = vunpack.c.h.b16 %v3910
        %v4145 = vunpack.c.l.b16 %v3911
        %v4146 = vunpack.c.h.b16 %v3911
        %v4147 = vunpack.c.l.b16 %v3912
        %v4148 = vunpack.c.h.b16 %v3912
        %v4149 = vunpack.c.l.b16 %v3913
        %v4150 = vunpack.c.h.b16 %v3913
        %v4151 = vunpack.c.l.b16 %v3914
        %v4152 = vunpack.c.h.b16 %v3914
        %v4153 = vunpack.c.l.b16 %v3915
        %v4154 = vunpack.c.h.b16 %v3915
        %v4155 = vunpack.c.l.b16 %v3916
        %v4156 = vunpack.c.h.b16 %v3916
        %v4157 = vunpack.c.l.b16 %v3917
        %v4158 = vunpack.c.h.b16 %v3917
        %v4159 = vunpack.c.l.b16 %v3918
        %v4160 = vunpack.c.h.b16 %v3918
        %v4161 = vunpack.c.l.b16 %v3919
        %v4162 = vunpack.c.h.b16 %v3919
        %v4163 = vunpack.c.l.b16 %v3920
        %v4164 = vunpack.c.h.b16 %v3920
        %v4165 = vunpack.c.l.b16 %v3921
        %v4166 = vunpack.c.h.b16 %v3921
        %v4167 = vunpack.c.l.b16 %v3922
        %v4168 = vunpack.c.h.b16 %v3922
        %v4169 = vunpack.c.l.b16 %v3923
        %v4170 = vunpack.c.h.b16 %v3923
        %v4171 = vunpack.c.l.b16 %v3924
        %v4172 = vunpack.c.h.b16 %v3924
        %v4173 = vunpack.c.l.b16 %v3925
        %v4174 = vunpack.c.h.b16 %v3925
        %v4175 = vunpack.c.l.b16 %v3926
        %v4176 = vunpack.c.h.b16 %v3926
        %v4177 = vunpack.c.l.b16 %v3927
        %v4178 = vunpack.c.h.b16 %v3927
        %v4179 = vunpack.c.l.b16 %v3928
        %v4180 = vunpack.c.h.b16 %v3928
        %v4181 = vunpack.c.l.b16 %v3929
        %v4182 = vunpack.c.h.b16 %v3929
        %v4183 = vpack.c.b16 %v4041, %v4039
        %v4184 = vpack.c.b16 %v4042, %v4040
        %v4185 = vpack.c.b16 %v4045, %v4043
        %v4186 = vpack.c.b16 %v4046, %v4044
        %v4187 = vpack.c.b16 %v4049, %v4047
        %v4188 = vpack.c.b16 %v4050, %v4048
        %v4189 = vpack.c.b16 %v4053, %v4051
        %v4190 = vpack.c.b16 %v4054, %v4052
        %v4191 = vpack.c.b16 %v4057, %v4055
        %v4192 = vpack.c.b16 %v4058, %v4056
        %v4193 = vpack.c.b16 %v4061, %v4059
        %v4194 = vpack.c.b16 %v4062, %v4060
        %v4195 = vpack.c.b16 %v4065, %v4063
        %v4196 = vpack.c.b16 %v4066, %v4064
        %v4197 = vpack.c.b16 %v4069, %v4067
        %v4198 = vpack.c.b16 %v4070, %v4068
        %v4199 = vpack.c.b16 %v4073, %v4071
        %v4200 = vpack.c.b16 %v4074, %v4072
        %v4201 = vpack.c.b16 %v4077, %v4075
        %v4202 = vpack.c.b16 %v4078, %v4076
        %v4203 = vpack.c.b16 %v4081, %v4079
        %v4204 = vpack.c.b16 %v4082, %v4080
        %v4205 = vpack.c.b16 %v4085, %v4083
        %v4206 = vpack.c.b16 %v4086, %v4084
        %v4207 = vpack.c.b16 %v4089, %v4087
        %v4208 = vpack.c.b16 %v4090, %v4088
        %v4209 = vpack.c.b16 %v4093, %v4091
        %v4210 = vpack.c.b16 %v4094, %v4092
        %v4211 = vpack.c.b16 %v4097, %v4095
        %v4212 = vpack.c.b16 %v4098, %v4096
        %v4213 = vpack.c.b16 %v4101, %v4099
        %v4214 = vpack.c.b16 %v4102, %v4100
        %v4215 = vpack.c.b16 %v4105, %v4103
        %v4216 = vpack.c.b16 %v4106, %v4104
        %v4217 = vpack.c.b16 %v4109, %v4107
        %v4218 = vpack.c.b16 %v4110, %v4108
        %v4219 = vpack.c.b16 %v4113, %v4111
        %v4220 = vpack.c.b16 %v4114, %v4112
        %v4221 = vpack.c.b16 %v4117, %v4115
        %v4222 = vpack.c.b16 %v4118, %v4116
        %v4223 = vpack.c.b16 %v4121, %v4119
        %v4224 = vpack.c.b16 %v4122, %v4120
        %v4225 = vpack.c.b16 %v4125, %v4123
        %v4226 = vpack.c.b16 %v4126, %v4124
        %v4227 = vpack.c.b16 %v4129, %v4127
        %v4228 = vpack.c.b16 %v4130, %v4128
        %v4229 = vpack.c.b16 %v4133, %v4131
        %v4230 = vpack.c.b16 %v4134, %v4132
        %v4231 = vpack.c.b16 %v4137, %v4135
        %v4232 = vpack.c.b16 %v4138, %v4136
        %v4233 = vpack.c.b16 %v4141, %v4139
        %v4234 = vpack.c.b16 %v4142, %v4140
        %v4235 = vpack.c.b16 %v4145, %v4143
        %v4236 = vpack.c.b16 %v4146, %v4144
        %v4237 = vpack.c.b16 %v4149, %v4147
        %v4238 = vpack.c.b16 %v4150, %v4148
        %v4239 = vpack.c.b16 %v4153, %v4151
        %v4240 = vpack.c.b16 %v4154, %v4152
        %v4241 = vpack.c.b16 %v4157, %v4155
        %v4242 = vpack.c.b16 %v4158, %v4156
        %v4243 = vpack.c.b16 %v4161, %v4159
        %v4244 = vpack.c.b16 %v4162, %v4160
        %v4245 = vpack.c.b16 %v4165, %v4163
        %v4246 = vpack.c.b16 %v4166, %v4164
        %v4247 = vpack.c.b16 %v4169, %v4167
        %v4248 = vpack.c.b16 %v4170, %v4168
        %v4249 = vpack.c.b16 %v4173, %v4171
        %v4250 = vpack.c.b16 %v4174, %v4172
        %v4251 = vpack.c.b16 %v4177, %v4175
        %v4252 = vpack.c.b16 %v4178, %v4176
        %v4253 = vpack.c.b16 %v4181, %v4179
        %v4254 = vpack.c.b16 %v4182, %v4180
        %vm4327 = vcmask 523264
        %v4329 = vsel %vm4327, %v3962, 0
        %4331 = vmatpush.bf16.msra.mxu0 %v4197
        %4332 = vmatpush.bf16.msra.mxu0 %v4195
        %4333 = vmatpush.bf16.msra.mxu0 %v4193
        %4334 = vmatpush.bf16.msra.mxu0 %v4191
        %4335 = vmatpush.bf16.msra.mxu0 %v4189
        %4336 = vmatpush.bf16.msra.mxu0 %v4187
        %4337 = vmatpush.bf16.msra.mxu0 %v4185
        %4338 = vmatpush.bf16.msra.mxu0 %v4183
        %4339 = vmatmul.bf16.gmra.mxu0 %v3958
        %v4340 = vpop.f32.mrf.mxu0
        %v4341 = vadd.f32 %v3935, %v4340
        %v4342 = vpop.f32.mrf.mxu0
        %v4343 = vadd.f32 %v3940, %v4342
        %4344 = vdwg.mxu0
        %4345 = vmatpush.bf16.msra.mxu0 %v4213
        %4346 = vmatpush.bf16.msra.mxu0 %v4211
        %4347 = vmatpush.bf16.msra.mxu0 %v4209
        %4348 = vmatpush.bf16.msra.mxu0 %v4207
        %4349 = vmatpush.bf16.msra.mxu0 %v4205
        %4350 = vmatpush.bf16.msra.mxu0 %v4203
        %4351 = vmatpush.bf16.msra.mxu0 %v4201
        %4352 = vmatpush.bf16.msra.mxu0 %v4199
        %4353 = vmatmul.bf16.gmra.mxu0 %v3959
        %v4354 = vpop.f32.mrf.mxu0
        %v4355 = vadd.f32 %v4341, %v4354
        %v4356 = vpop.f32.mrf.mxu0
        %v4357 = vadd.f32 %v4343, %v4356
        %4358 = vdwg.mxu0
        %4359 = vmatpush.bf16.msra.mxu0 %v4229
        %4360 = vmatpush.bf16.msra.mxu0 %v4227
        %4361 = vmatpush.bf16.msra.mxu0 %v4225
        %4362 = vmatpush.bf16.msra.mxu0 %v4223
        %4363 = vmatpush.bf16.msra.mxu0 %v4221
        %4364 = vmatpush.bf16.msra.mxu0 %v4219
        %4365 = vmatpush.bf16.msra.mxu0 %v4217
        %4366 = vmatpush.bf16.msra.mxu0 %v4215
        %4367 = vmatmul.bf16.gmra.mxu0 %v3960
        %v4368 = vpop.f32.mrf.mxu0
        %v4369 = vadd.f32 %v4355, %v4368
        %v4370 = vpop.f32.mrf.mxu0
        %v4371 = vadd.f32 %v4357, %v4370
        %4372 = vdwg.mxu0
        %4373 = vmatpush.bf16.msra.mxu0 %v4245
        %4374 = vmatpush.bf16.msra.mxu0 %v4243
        %4375 = vmatpush.bf16.msra.mxu0 %v4241
        %4376 = vmatpush.bf16.msra.mxu0 %v4239
        %4377 = vmatpush.bf16.msra.mxu0 %v4237
        %4378 = vmatpush.bf16.msra.mxu0 %v4235
        %4379 = vmatpush.bf16.msra.mxu0 %v4233
        %4380 = vmatpush.bf16.msra.mxu0 %v4231
        %4381 = vmatmul.bf16.gmra.mxu0 %v3961
        %v4382 = vpop.f32.mrf.mxu0
        %v4383 = vadd.f32 %v4369, %v4382
        %v4384 = vpop.f32.mrf.mxu0
        %v4385 = vadd.f32 %v4371, %v4384
        %4386 = vdwg.mxu0
        %4387 = vmatpush.bf16.msra.mxu0 0
        %4388 = vmatpush.bf16.msra.mxu0 0
        %4389 = vmatpush.bf16.msra.mxu0 0
        %4390 = vmatpush.bf16.msra.mxu0 0
        %4391 = vmatpush.bf16.msra.mxu0 %v4253
        %4392 = vmatpush.bf16.msra.mxu0 %v4251
        %4393 = vmatpush.bf16.msra.mxu0 %v4249
        %4394 = vmatpush.bf16.msra.mxu0 %v4247
        %4395 = vmatmul.bf16.gmra.mxu0 %v4329
        %v4396 = vpop.f32.mrf.mxu0
        %v4397 = vadd.f32 %v4383, %v4396
        %v4398 = vpop.f32.mrf.mxu0
        %v4399 = vadd.f32 %v4385, %v4398
        %4400 = vdwg.mxu0
        %4401 = vmatpush.bf16.msra.mxu0 %v4198
        %4402 = vmatpush.bf16.msra.mxu0 %v4196
        %4403 = vmatpush.bf16.msra.mxu0 %v4194
        %4404 = vmatpush.bf16.msra.mxu0 %v4192
        %4405 = vmatpush.bf16.msra.mxu0 %v4190
        %4406 = vmatpush.bf16.msra.mxu0 %v4188
        %4407 = vmatpush.bf16.msra.mxu0 %v4186
        %4408 = vmatpush.bf16.msra.mxu0 %v4184
        %4409 = vmatmul.bf16.gmra.mxu0 %v3958
        %v4410 = vpop.f32.mrf.mxu0
        %v4411 = vadd.f32 %v3935, %v4410
        %v4412 = vpop.f32.mrf.mxu0
        %v4413 = vadd.f32 %v3940, %v4412
        %4414 = vdwg.mxu0
        %4415 = vmatpush.bf16.msra.mxu0 %v4214
        %4416 = vmatpush.bf16.msra.mxu0 %v4212
        %4417 = vmatpush.bf16.msra.mxu0 %v4210
        %4418 = vmatpush.bf16.msra.mxu0 %v4208
        %4419 = vmatpush.bf16.msra.mxu0 %v4206
        %4420 = vmatpush.bf16.msra.mxu0 %v4204
        %4421 = vmatpush.bf16.msra.mxu0 %v4202
        %4422 = vmatpush.bf16.msra.mxu0 %v4200
        %4423 = vmatmul.bf16.gmra.mxu0 %v3959
        %v4424 = vpop.f32.mrf.mxu0
        %v4425 = vadd.f32 %v4411, %v4424
        %v4426 = vpop.f32.mrf.mxu0
        %v4427 = vadd.f32 %v4413, %v4426
        %4428 = vdwg.mxu0
        %4429 = vmatpush.bf16.msra.mxu0 %v4230
        %4430 = vmatpush.bf16.msra.mxu0 %v4228
        %4431 = vmatpush.bf16.msra.mxu0 %v4226
        %4432 = vmatpush.bf16.msra.mxu0 %v4224
        %4433 = vmatpush.bf16.msra.mxu0 %v4222
        %4434 = vmatpush.bf16.msra.mxu0 %v4220
        %4435 = vmatpush.bf16.msra.mxu0 %v4218
        %4436 = vmatpush.bf16.msra.mxu0 %v4216
        %4437 = vmatmul.bf16.gmra.mxu0 %v3960
        %v4438 = vpop.f32.mrf.mxu0
        %v4439 = vadd.f32 %v4425, %v4438
        %v4440 = vpop.f32.mrf.mxu0
        %v4441 = vadd.f32 %v4427, %v4440
        %4442 = vdwg.mxu0
        %4443 = vmatpush.bf16.msra.mxu0 %v4246
        %4444 = vmatpush.bf16.msra.mxu0 %v4244
        %4445 = vmatpush.bf16.msra.mxu0 %v4242
        %4446 = vmatpush.bf16.msra.mxu0 %v4240
        %4447 = vmatpush.bf16.msra.mxu0 %v4238
        %4448 = vmatpush.bf16.msra.mxu0 %v4236
        %4449 = vmatpush.bf16.msra.mxu0 %v4234
        %4450 = vmatpush.bf16.msra.mxu0 %v4232
        %4451 = vmatmul.bf16.gmra.mxu0 %v3961
        %v4452 = vpop.f32.mrf.mxu0
        %v4453 = vadd.f32 %v4439, %v4452
        %v4454 = vpop.f32.mrf.mxu0
        %v4455 = vadd.f32 %v4441, %v4454
        %4456 = vdwg.mxu0
        %4457 = vmatpush.bf16.msra.mxu0 0
        %4458 = vmatpush.bf16.msra.mxu0 0
        %4459 = vmatpush.bf16.msra.mxu0 0
        %4460 = vmatpush.bf16.msra.mxu0 0
        %4461 = vmatpush.bf16.msra.mxu0 %v4254
        %4462 = vmatpush.bf16.msra.mxu0 %v4252
        %4463 = vmatpush.bf16.msra.mxu0 %v4250
        %4464 = vmatpush.bf16.msra.mxu0 %v4248
        %4465 = vmatmul.bf16.gmra.mxu0 %v4329
        %v4466 = vpop.f32.mrf.mxu0
        %v4467 = vadd.f32 %v4453, %v4466
        %v4468 = vpop.f32.mrf.mxu0
        %v4469 = vadd.f32 %v4455, %v4468
        %4470 = vdwg.mxu0
        %v4471 = vmax.f32 %v4397, 0.0
        %v4472 = vmax.f32 %v4467, 0.0
        %v4473 = vmax.f32 %v4399, 0.0
        %v4474 = vmax.f32 %v4469, 0.0
        %4475 = vst [vmem:[#allocation2 + $0x8] sm:$0xff] %v4471
        %4476 = vst [vmem:[#allocation2 + $0x10] sm:$0xff] %v4472
        %4477 = vst [vmem:[#allocation2 + $0x28] sm:$0xff] %v4473
        %4478 = vst [vmem:[#allocation2 + $0x30] sm:$0xff] %v4474
        %v4479 = vld [vmem:[#allocation2] sm:$0xff]
        %v4480 = vld [vmem:[#allocation2 + $0x8] sm:$0xff]
        %v4481 = vld [vmem:[#allocation2 + $0x10] sm:$0xff]
        %v4482 = vld [vmem:[#allocation2 + $0x20] sm:$0xff]
        %v4483 = vld [vmem:[#allocation2 + $0x28] sm:$0xff]
        %v4484 = vld [vmem:[#allocation2 + $0x30] sm:$0xff]
        %v4485 = vmul.f32 %v4479, %v2554
        %v4486 = vmul.f32 %v4480, %v2557
        %v4487 = vmul.f32 %v4481, %v2556
        %v4488 = vmul.f32 %v4482, %v2554
        %v4489 = vmul.f32 %v4483, %v2557
        %v4490 = vmul.f32 %v4484, %v2556
        %v4491 = vpack.c.bf16 %v4486, %v4485
        %v4492 = vpack.c.bf16 %v4487, %v4487
        %v4493 = vpack.c.bf16 %v4489, %v4488
        %v4494 = vpack.c.bf16 %v4490, %v4490
        %4499 = vrot.lane.b32.xlu0 %v4491, 17
        %v4500 = vpop.permute.xlu0 %4499
        %4501 = vrot.lane.b32.xlu0 %v4492, 17
        %v4502 = vpop.permute.xlu0 %4501
        %4503 = vrot.lane.b32.xlu0 %v4493, 17
        %v4504 = vpop.permute.xlu0 %4503
        %4505 = vrot.lane.b32.xlu0 %v4494, 17
        %v4506 = vpop.permute.xlu0 %4505
        %v4507 = vrot.slane %v4500, 4
        %v4508 = vrot.slane %v4502, 4
        %v4509 = vrot.slane %v4504, 4
        %v4510 = vrot.slane %v4506, 4
        %v4511 = vsel %vm2665, %v4507, %v4508
        %v4512 = vsel %vm2667, %v4500, %v4511
        %v4513 = vsel %vm2665, %v4509, %v4510
        %v4514 = vsel %vm2667, %v4504, %v4513
        %4517 = vst [vmem:[#allocation3] sm:$0xff] %v4512
        %4518 = vst [vmem:[#allocation3 + $0x8] sm:$0xff] %v4514
        %v4519 = vld [vmem:[#allocation2] sm:$0xff]
        %v4520 = vld [vmem:[#allocation2 + $0x8] sm:$0xff]
        %v4521 = vld [vmem:[#allocation2 + $0x10] sm:$0xff]
        %v4522 = vld [vmem:[#allocation2 + $0x20] sm:$0xff]
        %v4523 = vld [vmem:[#allocation2 + $0x28] sm:$0xff]
        %v4524 = vld [vmem:[#allocation2 + $0x30] sm:$0xff]
        %v4525 = vpack.c.bf16 %v4520, %v4519
        %v4526 = vpack.c.bf16 %v4521, %v4521
        %v4527 = vpack.c.bf16 %v4523, %v4522
        %v4528 = vpack.c.bf16 %v4524, %v4524
        %4533 = vrot.lane.b32.xlu0 %v4525, 16
        %v4534 = vpop.permute.xlu0 %4533
        %4535 = vrot.lane.b32.xlu0 %v4526, 16
        %v4536 = vpop.permute.xlu0 %4535
        %4537 = vrot.lane.b32.xlu0 %v4527, 16
        %v4538 = vpop.permute.xlu0 %4537
        %4539 = vrot.lane.b32.xlu0 %v4528, 16
        %v4540 = vpop.permute.xlu0 %4539
        %v4541 = vrot.slane %v4534, 4
        %v4542 = vrot.slane %v4536, 4
        %v4543 = vrot.slane %v4538, 4
        %v4544 = vrot.slane %v4540, 4
        %v4545 = vsel %vm2665, %v4541, %v4542
        %v4546 = vsel %vm2804, %v4534, %v4545
        %v4547 = vsel %vm2665, %v4543, %v4544
        %v4548 = vsel %vm2804, %v4538, %v4547
        %4551 = vst [vmem:[#allocation3 + $0x10] sm:$0xff] %v4546
        %4552 = vst [vmem:[#allocation3 + $0x18] sm:$0xff] %v4548
        %v4553 = vld [vmem:[#allocation2] sm:$0xff]
        %v4554 = vld [vmem:[#allocation2 + $0x8] sm:$0xff]
        %v4555 = vld [vmem:[#allocation2 + $0x10] sm:$0xff]
        %v4556 = vld [vmem:[#allocation2 + $0x20] sm:$0xff]
        %v4557 = vld [vmem:[#allocation2 + $0x28] sm:$0xff]
        %v4558 = vld [vmem:[#allocation2 + $0x30] sm:$0xff]
        %v4559 = vmul.f32 %v4553, %v2863
        %v4560 = vmul.f32 %v4554, %v2866
        %v4561 = vmul.f32 %v4555, %v2865
        %v4562 = vmul.f32 %v4556, %v2863
        %v4563 = vmul.f32 %v4557, %v2866
        %v4564 = vmul.f32 %v4558, %v2865
        %v4565 = vpack.c.bf16 %v4560, %v4559
        %v4566 = vpack.c.bf16 %v4561, %v4561
        %v4567 = vpack.c.bf16 %v4563, %v4562
        %v4568 = vpack.c.bf16 %v4564, %v4564
        %4573 = vrot.lane.b32.xlu0 %v4565, 15
        %v4574 = vpop.permute.xlu0 %4573
        %4575 = vrot.lane.b32.xlu0 %v4566, 15
        %v4576 = vpop.permute.xlu0 %4575
        %4577 = vrot.lane.b32.xlu0 %v4567, 15
        %v4578 = vpop.permute.xlu0 %4577
        %4579 = vrot.lane.b32.xlu0 %v4568, 15
        %v4580 = vpop.permute.xlu0 %4579
        %v4581 = vrot.slane %v4574, 4
        %v4582 = vrot.slane %v4576, 4
        %v4583 = vrot.slane %v4578, 4
        %v4584 = vrot.slane %v4580, 4
        %v4585 = vsel %vm2665, %v4581, %v4582
        %v4586 = vsel %vm2975, %v4574, %v4585
        %v4587 = vsel %vm2665, %v4583, %v4584
        %v4588 = vsel %vm2975, %v4578, %v4587
        %4591 = vst [vmem:[#allocation3 + $0x20] sm:$0xff] %v4586
        %4592 = vst [vmem:[#allocation3 + $0x28] sm:$0xff] %v4588
        %v4593 = vld [vmem:[#allocation2] sm:$0xff]
        %v4594 = vld [vmem:[#allocation2 + $0x8] sm:$0xff]
        %v4595 = vld [vmem:[#allocation2 + $0x10] sm:$0xff]
        %v4596 = vld [vmem:[#allocation2 + $0x20] sm:$0xff]
        %v4597 = vld [vmem:[#allocation2 + $0x28] sm:$0xff]
        %v4598 = vld [vmem:[#allocation2 + $0x30] sm:$0xff]
        %v4599 = vmul.f32 %v4593, %v3032
        %v4600 = vmul.f32 %v4594, %v3035
        %v4601 = vmul.f32 %v4595, %v3034
        %v4602 = vmul.f32 %v4596, %v3032
        %v4603 = vmul.f32 %v4597, %v3035
        %v4604 = vmul.f32 %v4598, %v3034
        %v4605 = vpack.c.bf16 %v4600, %v4599
        %v4606 = vpack.c.bf16 %v4601, %v4601
        %v4607 = vpack.c.bf16 %v4603, %v4602
        %v4608 = vpack.c.bf16 %v4604, %v4604
        %4613 = vrot.lane.b32.xlu0 %v4605, 1
        %v4614 = vpop.permute.xlu0 %4613
        %4615 = vrot.lane.b32.xlu0 %v4606, 1
        %v4616 = vpop.permute.xlu0 %4615
        %4617 = vrot.lane.b32.xlu0 %v4607, 1
        %v4618 = vpop.permute.xlu0 %4617
        %4619 = vrot.lane.b32.xlu0 %v4608, 1
        %v4620 = vpop.permute.xlu0 %4619
        %v4621 = vrot.slane %v4614, 4
        %v4622 = vrot.slane %v4616, 4
        %v4623 = vrot.slane %v4618, 4
        %v4624 = vrot.slane %v4620, 4
        %v4625 = vsel %vm2665, %v4621, %v4622
        %v4626 = vsel %vm3144, %v4614, %v4625
        %v4627 = vsel %vm2665, %v4623, %v4624
        %v4628 = vsel %vm3144, %v4618, %v4627
        %4631 = vst [vmem:[#allocation3 + $0x30] sm:$0xff] %v4626
        %4632 = vst [vmem:[#allocation3 + $0x38] sm:$0xff] %v4628
        %v4633 = vld [vmem:[#allocation2 + $0x8] sm:$0xff]
        %v4634 = vld [vmem:[#allocation2 + $0x10] sm:$0xff]
        %v4635 = vld [vmem:[#allocation2 + $0x28] sm:$0xff]
        %v4636 = vld [vmem:[#allocation2 + $0x30] sm:$0xff]
        %v4637 = vpack.c.bf16 %v4634, %v4633
        %v4638 = vpack.c.bf16 %v4636, %v4635
        %4639 = vst [vmem:[#allocation3 + $0x40] sm:$0xff] %v4637
        %4640 = vst [vmem:[#allocation3 + $0x48] sm:$0xff] %v4638
        %v4641 = vld [vmem:[#allocation2 + $0x8] sm:$0xff]
        %v4642 = vld [vmem:[#allocation2 + $0x10] sm:$0xff]
        %v4643 = vld [vmem:[#allocation2 + $0x18] sm:$0xff]
        %v4644 = vld [vmem:[#allocation2 + $0x28] sm:$0xff]
        %v4645 = vld [vmem:[#allocation2 + $0x30] sm:$0xff]
        %v4646 = vld [vmem:[#allocation2 + $0x38] sm:$0xff]
        %v4647 = vmul.f32 %v4641, %v3233
        %v4648 = vmul.f32 %v4642, %v3236
        %v4649 = vmul.f32 %v4643, %v3235
        %v4650 = vmul.f32 %v4644, %v3233
        %v4651 = vmul.f32 %v4645, %v3236
        %v4652 = vmul.f32 %v4646, %v3235
        %v4653 = vpack.c.bf16 %v4648, %v4647
        %v4654 = vpack.c.bf16 %v4649, %v4649
        %v4655 = vpack.c.bf16 %v4651, %v4650
        %v4656 = vpack.c.bf16 %v4652, %v4652
        %4661 = vrot.lane.b32.xlu0 %v4653, 127
        %v4662 = vpop.permute.xlu0 %4661
        %4663 = vrot.lane.b32.xlu0 %v4654, 127
        %v4664 = vpop.permute.xlu0 %4663
        %4665 = vrot.lane.b32.xlu0 %v4655, 127
        %v4666 = vpop.permute.xlu0 %4665
        %4667 = vrot.lane.b32.xlu0 %v4656, 127
        %v4668 = vpop.permute.xlu0 %4667
        %v4669 = vrot.slane %v4662, 4
        %v4670 = vrot.slane %v4664, 4
        %v4671 = vrot.slane %v4666, 4
        %v4672 = vrot.slane %v4668, 4
        %v4673 = vsel %vm2665, %v4669, %v4670
        %v4674 = vsel %vm3345, %v4662, %v4673
        %v4675 = vsel %vm2665, %v4671, %v4672
        %v4676 = vsel %vm3345, %v4666, %v4675
        %4679 = vst [vmem:[#allocation3 + $0x50] sm:$0xff] %v4674
        %4680 = vst [vmem:[#allocation3 + $0x58] sm:$0xff] %v4676
        %v4681 = vld [vmem:[#allocation2 + $0x8] sm:$0xff]
        %v4682 = vld [vmem:[#allocation2 + $0x10] sm:$0xff]
        %v4683 = vld [vmem:[#allocation2 + $0x18] sm:$0xff]
        %v4684 = vld [vmem:[#allocation2 + $0x28] sm:$0xff]
        %v4685 = vld [vmem:[#allocation2 + $0x30] sm:$0xff]
        %v4686 = vld [vmem:[#allocation2 + $0x38] sm:$0xff]
        %v4687 = vmul.f32 %v4681, %v3402
        %v4688 = vmul.f32 %v4682, %v3405
        %v4689 = vmul.f32 %v4683, %v3404
        %v4690 = vmul.f32 %v4684, %v3402
        %v4691 = vmul.f32 %v4685, %v3405
        %v4692 = vmul.f32 %v4686, %v3404
        %v4693 = vpack.c.bf16 %v4688, %v4687
        %v4694 = vpack.c.bf16 %v4689, %v4689
        %v4695 = vpack.c.bf16 %v4691, %v4690
        %v4696 = vpack.c.bf16 %v4692, %v4692
        %4701 = vrot.lane.b32.xlu0 %v4693, 113
        %v4702 = vpop.permute.xlu0 %4701
        %4703 = vrot.lane.b32.xlu0 %v4694, 113
        %v4704 = vpop.permute.xlu0 %4703
        %4705 = vrot.lane.b32.xlu0 %v4695, 113
        %v4706 = vpop.permute.xlu0 %4705
        %4707 = vrot.lane.b32.xlu0 %v4696, 113
        %v4708 = vpop.permute.xlu0 %4707
        %v4709 = vrot.slane %v4702, 4
        %v4710 = vrot.slane %v4704, 4
        %v4711 = vrot.slane %v4706, 4
        %v4712 = vrot.slane %v4708, 4
        %v4713 = vsel %vm2665, %v4709, %v4710
        %v4714 = vsel %vm3514, %v4702, %v4713
        %v4715 = vsel %vm2665, %v4711, %v4712
        %v4716 = vsel %vm3514, %v4706, %v4715
        %4719 = vst [vmem:[#allocation3 + $0x60] sm:$0xff] %v4714
        %4720 = vst [vmem:[#allocation3 + $0x68] sm:$0xff] %v4716
        %v4721 = vld [vmem:[#allocation2 + $0x8] sm:$0xff]
        %v4722 = vld [vmem:[#allocation2 + $0x10] sm:$0xff]
        %v4723 = vld [vmem:[#allocation2 + $0x18] sm:$0xff]
        %v4724 = vld [vmem:[#allocation2 + $0x28] sm:$0xff]
        %v4725 = vld [vmem:[#allocation2 + $0x30] sm:$0xff]
        %v4726 = vld [vmem:[#allocation2 + $0x38] sm:$0xff]
        %v4727 = vpack.c.bf16 %v4722, %v4721
        %v4728 = vpack.c.bf16 %v4723, %v4723
        %v4729 = vpack.c.bf16 %v4725, %v4724
        %v4730 = vpack.c.bf16 %v4726, %v4726
        %4735 = vrot.lane.b32.xlu0 %v4727, 112
        %v4736 = vpop.permute.xlu0 %4735
        %4737 = vrot.lane.b32.xlu0 %v4728, 112
        %v4738 = vpop.permute.xlu0 %4737
        %4739 = vrot.lane.b32.xlu0 %v4729, 112
        %v4740 = vpop.permute.xlu0 %4739
        %4741 = vrot.lane.b32.xlu0 %v4730, 112
        %v4742 = vpop.permute.xlu0 %4741
        %v4743 = vrot.slane %v4736, 4
        %v4744 = vrot.slane %v4738, 4
        %v4745 = vrot.slane %v4740, 4
        %v4746 = vrot.slane %v4742, 4
        %v4747 = vsel %vm2665, %v4743, %v4744
        %v4748 = vsel %vm3651, %v4736, %v4747
        %v4749 = vsel %vm2665, %v4745, %v4746
        %v4750 = vsel %vm3651, %v4740, %v4749
        %4753 = vst [vmem:[#allocation3 + $0x70] sm:$0xff] %v4748
        %4754 = vst [vmem:[#allocation3 + $0x78] sm:$0xff] %v4750
        %v4755 = vld [vmem:[#allocation2 + $0x8] sm:$0xff]
        %v4756 = vld [vmem:[#allocation2 + $0x10] sm:$0xff]
        %v4757 = vld [vmem:[#allocation2 + $0x18] sm:$0xff]
        %v4758 = vld [vmem:[#allocation2 + $0x28] sm:$0xff]
        %v4759 = vld [vmem:[#allocation2 + $0x30] sm:$0xff]
        %v4760 = vld [vmem:[#allocation2 + $0x38] sm:$0xff]
        %v4761 = vmul.f32 %v4755, %v3708
        %v4762 = vmul.f32 %v4756, %v3711
        %v4763 = vmul.f32 %v4757, %v3710
        %v4764 = vmul.f32 %v4758, %v3708
        %v4765 = vmul.f32 %v4759, %v3711
        %v4766 = vmul.f32 %v4760, %v3710
        %v4767 = vpack.c.bf16 %v4762, %v4761
        %v4768 = vpack.c.bf16 %v4763, %v4763
        %v4769 = vpack.c.bf16 %v4765, %v4764
        %v4770 = vpack.c.bf16 %v4766, %v4766
        %4775 = vrot.lane.b32.xlu0 %v4767, 111
        %v4776 = vpop.permute.xlu0 %4775
        %4777 = vrot.lane.b32.xlu0 %v4768, 111
        %v4778 = vpop.permute.xlu0 %4777
        %4779 = vrot.lane.b32.xlu0 %v4769, 111
        %v4780 = vpop.permute.xlu0 %4779
        %4781 = vrot.lane.b32.xlu0 %v4770, 111
        %v4782 = vpop.permute.xlu0 %4781
        %v4783 = vrot.slane %v4776, 4
        %v4784 = vrot.slane %v4778, 4
        %v4785 = vrot.slane %v4780, 4
        %v4786 = vrot.slane %v4782, 4
        %v4787 = vsel %vm2665, %v4783, %v4784
        %v4788 = vsel %vm3820, %v4776, %v4787
        %v4789 = vsel %vm2665, %v4785, %v4786
        %v4790 = vsel %vm3820, %v4780, %v4789
        %4793 = vst [vmem:[#allocation3 + $0x80] sm:$0xff] %v4788
        %4794 = vst [vmem:[#allocation3 + $0x88] sm:$0xff] %v4790
        %v4795 = vld [vmem:[%s7] sm:$0xff]
        %v4796 = vld [vmem:[%s7 + $0x8] sm:$0xff]
        %v4797 = vld [vmem:[#allocation3] sm:$0xff]
        %v4798 = vld [vmem:[#allocation3 + $0x8] sm:$0xff]
        %v4799 = vld [vmem:[#allocation3 + $0x10] sm:$0xff]
        %v4800 = vld [vmem:[#allocation3 + $0x18] sm:$0xff]
        %v4801 = vld [vmem:[#allocation3 + $0x20] sm:$0xff]
        %v4802 = vld [vmem:[#allocation3 + $0x28] sm:$0xff]
        %v4803 = vld [vmem:[#allocation3 + $0x30] sm:$0xff]
        %v4804 = vld [vmem:[#allocation3 + $0x38] sm:$0xff]
        %v4805 = vld [vmem:[#allocation3 + $0x40] sm:$0xff]
        %v4806 = vld [vmem:[#allocation3 + $0x48] sm:$0xff]
        %v4807 = vld [vmem:[#allocation3 + $0x50] sm:$0xff]
        %v4808 = vld [vmem:[#allocation3 + $0x58] sm:$0xff]
        %v4809 = vld [vmem:[#allocation3 + $0x60] sm:$0xff]
        %v4810 = vld [vmem:[#allocation3 + $0x68] sm:$0xff]
        %v4811 = vld [vmem:[#allocation3 + $0x70] sm:$0xff]
        %v4812 = vld [vmem:[#allocation3 + $0x78] sm:$0xff]
        %v4813 = vld [vmem:[#allocation3 + $0x80] sm:$0xff]
        %v4814 = vld [vmem:[#allocation3 + $0x88] sm:$0xff]
        %v4815 = vld [vmem:[%s8] sm:$0xff]
        %v4816 = vld [vmem:[%s8 + $0x8] sm:$0xff]
        %4818 = vset.pattern.permute.xlu0 0
        %4819 = vperm.xlu0 %4818, %v4815
        %v4820 = vpop.permute.xlu0 %4819
        %4823 = vset.pattern.permute.xlu0 0
        %4824 = vperm.xlu0 %4823, %v4816
        %v4825 = vpop.permute.xlu0 %4824
        %v4829 = vunpack.c.l.b16 %v4795
        %v4830 = vunpack.c.h.b16 %v4795
        %v4831 = vunpack.c.l.b16 %v4796
        %v4832 = vunpack.c.h.b16 %v4796
        %v4833 = vpack.c.b16 %v4831, %v4829
        %v4834 = vpack.c.b16 %v4832, %v4830
        %v4854 = vunpack.c.l.b16 %v4797
        %v4855 = vunpack.c.h.b16 %v4797
        %v4856 = vunpack.c.l.b16 %v4798
        %v4857 = vunpack.c.h.b16 %v4798
        %v4858 = vunpack.c.l.b16 %v4799
        %v4859 = vunpack.c.h.b16 %v4799
        %v4860 = vunpack.c.l.b16 %v4800
        %v4861 = vunpack.c.h.b16 %v4800
        %v4862 = vunpack.c.l.b16 %v4801
        %v4863 = vunpack.c.h.b16 %v4801
        %v4864 = vunpack.c.l.b16 %v4802
        %v4865 = vunpack.c.h.b16 %v4802
        %v4866 = vunpack.c.l.b16 %v4803
        %v4867 = vunpack.c.h.b16 %v4803
        %v4868 = vunpack.c.l.b16 %v4804
        %v4869 = vunpack.c.h.b16 %v4804
        %v4870 = vunpack.c.l.b16 %v4805
        %v4871 = vunpack.c.h.b16 %v4805
        %v4872 = vunpack.c.l.b16 %v4806
        %v4873 = vunpack.c.h.b16 %v4806
        %v4874 = vunpack.c.l.b16 %v4807
        %v4875 = vunpack.c.h.b16 %v4807
        %v4876 = vunpack.c.l.b16 %v4808
        %v4877 = vunpack.c.h.b16 %v4808
        %v4878 = vunpack.c.l.b16 %v4809
        %v4879 = vunpack.c.h.b16 %v4809
        %v4880 = vunpack.c.l.b16 %v4810
        %v4881 = vunpack.c.h.b16 %v4810
        %v4882 = vunpack.c.l.b16 %v4811
        %v4883 = vunpack.c.h.b16 %v4811
        %v4884 = vunpack.c.l.b16 %v4812
        %v4885 = vunpack.c.h.b16 %v4812
        %v4886 = vunpack.c.l.b16 %v4813
        %v4887 = vunpack.c.h.b16 %v4813
        %v4888 = vunpack.c.l.b16 %v4814
        %v4889 = vunpack.c.h.b16 %v4814
        %v4890 = vpack.c.b16 %v4856, %v4854
        %v4891 = vpack.c.b16 %v4857, %v4855
        %v4892 = vpack.c.b16 %v4860, %v4858
        %v4893 = vpack.c.b16 %v4861, %v4859
        %v4894 = vpack.c.b16 %v4864, %v4862
        %v4895 = vpack.c.b16 %v4865, %v4863
        %v4896 = vpack.c.b16 %v4868, %v4866
        %v4897 = vpack.c.b16 %v4869, %v4867
        %v4898 = vpack.c.b16 %v4872, %v4870
        %v4899 = vpack.c.b16 %v4873, %v4871
        %v4900 = vpack.c.b16 %v4876, %v4874
        %v4901 = vpack.c.b16 %v4877, %v4875
        %v4902 = vpack.c.b16 %v4880, %v4878
        %v4903 = vpack.c.b16 %v4881, %v4879
        %v4904 = vpack.c.b16 %v4884, %v4882
        %v4905 = vpack.c.b16 %v4885, %v4883
        %v4906 = vpack.c.b16 %v4888, %v4886
        %v4907 = vpack.c.b16 %v4889, %v4887
        %vm4926 = vcmask 130048
        %v4928 = vsel %vm4926, %v4834, 0
        %4930 = vmatpush.bf16.msra.mxu0 %v4904
        %4931 = vmatpush.bf16.msra.mxu0 %v4902
        %4932 = vmatpush.bf16.msra.mxu0 %v4900
        %4933 = vmatpush.bf16.msra.mxu0 %v4898
        %4934 = vmatpush.bf16.msra.mxu0 %v4896
        %4935 = vmatpush.bf16.msra.mxu0 %v4894
        %4936 = vmatpush.bf16.msra.mxu0 %v4892
        %4937 = vmatpush.bf16.msra.mxu0 %v4890
        %4938 = vmatmul.bf16.gmra.mxu0 %v4833
        %v4939 = vpop.f32.mrf.mxu0
        %v4940 = vadd.f32 %v4820, %v4939
        %v4941 = vpop.f32.mrf.mxu0
        %v4942 = vadd.f32 %v4825, %v4941
        %4943 = vdwg.mxu0
        %4944 = vmatpush.bf16.msra.mxu0 0
        %4945 = vmatpush.bf16.msra.mxu0 0
        %4946 = vmatpush.bf16.msra.mxu0 0
        %4947 = vmatpush.bf16.msra.mxu0 0
        %4948 = vmatpush.bf16.msra.mxu0 0
        %4949 = vmatpush.bf16.msra.mxu0 0
        %4950 = vmatpush.bf16.msra.mxu0 0
        %4951 = vmatpush.bf16.msra.mxu0 %v4906
        %4952 = vmatmul.bf16.gmra.mxu0 %v4928
        %v4953 = vpop.f32.mrf.mxu0
        %v4954 = vadd.f32 %v4940, %v4953
        %v4955 = vpop.f32.mrf.mxu0
        %v4956 = vadd.f32 %v4942, %v4955
        %4957 = vdwg.mxu0
        %4958 = vmatpush.bf16.msra.mxu0 %v4905
        %4959 = vmatpush.bf16.msra.mxu0 %v4903
        %4960 = vmatpush.bf16.msra.mxu0 %v4901
        %4961 = vmatpush.bf16.msra.mxu0 %v4899
        %4962 = vmatpush.bf16.msra.mxu0 %v4897
        %4963 = vmatpush.bf16.msra.mxu0 %v4895
        %4964 = vmatpush.bf16.msra.mxu0 %v4893
        %4965 = vmatpush.bf16.msra.mxu0 %v4891
        %4966 = vmatmul.bf16.gmra.mxu0 %v4833
        %v4967 = vpop.f32.mrf.mxu0
        %v4968 = vadd.f32 %v4820, %v4967
        %v4969 = vpop.f32.mrf.mxu0
        %v4970 = vadd.f32 %v4825, %v4969
        %4971 = vdwg.mxu0
        %4972 = vmatpush.bf16.msra.mxu0 0
        %4973 = vmatpush.bf16.msra.mxu0 0
        %4974 = vmatpush.bf16.msra.mxu0 0
        %4975 = vmatpush.bf16.msra.mxu0 0
        %4976 = vmatpush.bf16.msra.mxu0 0
        %4977 = vmatpush.bf16.msra.mxu0 0
        %4978 = vmatpush.bf16.msra.mxu0 0
        %4979 = vmatpush.bf16.msra.mxu0 %v4907
        %4980 = vmatmul.bf16.gmra.mxu0 %v4928
        %v4981 = vpop.f32.mrf.mxu0
        %v4982 = vadd.f32 %v4968, %v4981
        %v4983 = vpop.f32.mrf.mxu0
        %v4984 = vadd.f32 %v4970, %v4983
        %4985 = vdwg.mxu0
        %v4986 = vld [vmem:[%s9] sm:$0xf]
        %v4987 = vld [vmem:[%s9 + $0x4] sm:$0xf]
        %v4988 = vpack.c.bf16 %v4473, %v4471
        %v4989 = vpack.c.bf16 %v4474, %v4472
        %v4990 = vld [vmem:[%s10] sm:$0xff]
        %v4991 = vld [vmem:[%s10 + $0x8] sm:$0xff]
        %4993 = vset.pattern.permute.xlu0 0
        %4994 = vperm.xlu0 %4993, %v4990
        %v4995 = vpop.permute.xlu0 %4994
        %4998 = vset.pattern.permute.xlu0 0
        %4999 = vperm.xlu0 %4998, %v4991
        %v5000 = vpop.permute.xlu0 %4999
        %v5004 = vunpack.c.l.b16 %v4986
        %v5005 = vunpack.c.l.b16 %v4987
        %v5006 = vpack.c.b16 %v5005, %v5004
        %v5008 = vsel %vm4926, %v5006, 0
        %5010 = vmatpush.bf16.msra.mxu0 0
        %5011 = vmatpush.bf16.msra.mxu0 0
        %5012 = vmatpush.bf16.msra.mxu0 0
        %5013 = vmatpush.bf16.msra.mxu0 0
        %5014 = vmatpush.bf16.msra.mxu0 0
        %5015 = vmatpush.bf16.msra.mxu0 0
        %5016 = vmatpush.bf16.msra.mxu0 0
        %5017 = vmatpush.bf16.msra.mxu0 %v4988
        %5018 = vmatmul.bf16.gmra.mxu0 %v5008
        %v5019 = vpop.f32.mrf.mxu0
        %v5020 = vadd.f32 %v4995, %v5019
        %v5021 = vpop.f32.mrf.mxu0
        %v5022 = vadd.f32 %v5000, %v5021
        %5023 = vdwg.mxu0
        %5024 = vmatpush.bf16.msra.mxu0 0
        %5025 = vmatpush.bf16.msra.mxu0 0
        %5026 = vmatpush.bf16.msra.mxu0 0
        %5027 = vmatpush.bf16.msra.mxu0 0
        %5028 = vmatpush.bf16.msra.mxu0 0
        %5029 = vmatpush.bf16.msra.mxu0 0
        %5030 = vmatpush.bf16.msra.mxu0 0
        %5031 = vmatpush.bf16.msra.mxu0 %v4989
        %5032 = vmatmul.bf16.gmra.mxu0 %v5008
        %v5033 = vpop.f32.mrf.mxu0
        %v5034 = vadd.f32 %v4995, %v5033
        %v5035 = vpop.f32.mrf.mxu0
        %v5036 = vadd.f32 %v5000, %v5035
        %5037 = vdwg.mxu0
        %v5038 = vmax.f32 %v4471, 0.0
        %v5039 = vmax.f32 %v4472, 0.0
        %v5040 = vmax.f32 %v4473, 0.0
        %v5041 = vmax.f32 %v4474, 0.0
        %v5042 = vpack.c.bf16 %v5039, %v5038
        %v5043 = vpack.c.bf16 %v5041, %v5040
        %5044 = vst [vmem:[#allocation3] sm:$0xff] %v5042
        %5045 = vst [vmem:[#allocation3 + $0x8] sm:$0xff] %v5043
        %v5046 = vmax.f32 %v4954, 0.0
        %v5047 = vmax.f32 %v4982, 0.0
        %v5048 = vmax.f32 %v4956, 0.0
        %v5049 = vmax.f32 %v4984, 0.0
        %v5050 = vpack.c.bf16 %v5047, %v5046
        %v5051 = vpack.c.bf16 %v5049, %v5048
        %5052 = vst [vmem:[#allocation3 + $0x10] sm:$0xff] %v5050
        %5053 = vst [vmem:[#allocation3 + $0x18] sm:$0xff] %v5051
        %v5054 = vmax.f32 %v5020, 0.0
        %v5055 = vmax.f32 %v5034, 0.0
        %v5056 = vmax.f32 %v5022, 0.0
        %v5057 = vmax.f32 %v5036, 0.0
        %v5058 = vpack.c.bf16 %v5055, %v5054
        %v5059 = vpack.c.bf16 %v5057, %v5056
        %5060 = vst [vmem:[#allocation3 + $0x20] sm:$0xff] %v5058
        %5061 = vst [vmem:[#allocation3 + $0x28] sm:$0xff] %v5059
        %v5062 = vld [vmem:[%s11] sm:$0xf]
        %v5063 = vld [vmem:[%s11 + $0x4] sm:$0xf]
        %v5064 = vld [vmem:[%s11 + $0x8] sm:$0xf]
        %v5065 = vld [vmem:[%s11 + $0xc] sm:$0xf]
        %v5066 = vld [vmem:[%s11 + $0x10] sm:$0xf]
        %v5067 = vld [vmem:[%s11 + $0x14] sm:$0xf]
        %v5068 = vld [vmem:[%s11 + $0x18] sm:$0xf]
        %v5069 = vld [vmem:[%s11 + $0x1c] sm:$0xf]
        %v5070 = vld [vmem:[%s11 + $0x20] sm:$0xf]
        %v5071 = vld [vmem:[%s11 + $0x24] sm:$0xf]
        %v5072 = vld [vmem:[%s11 + $0x28] sm:$0xf]
        %v5073 = vld [vmem:[%s11 + $0x2c] sm:$0xf]
        %v5074 = vld [vmem:[%s11 + $0x30] sm:$0xf]
        %v5075 = vld [vmem:[%s11 + $0x34] sm:$0xf]
        %v5076 = vld [vmem:[%s11 + $0x38] sm:$0xf]
        %v5077 = vld [vmem:[%s11 + $0x3c] sm:$0xf]
        %v5078 = vld [vmem:[#allocation3] sm:$0xff]
        %v5079 = vld [vmem:[#allocation3 + $0x8] sm:$0xff]
        %v5080 = vld [vmem:[#allocation3 + $0x10] sm:$0xff]
        %v5081 = vld [vmem:[#allocation3 + $0x18] sm:$0xff]
        %v5082 = vld [vmem:[#allocation3 + $0x20] sm:$0xff]
        %v5083 = vld [vmem:[#allocation3 + $0x28] sm:$0xff]
        %v5084 = vld [vmem:[%s12] sm:$0xff]
        %v5085 = vld [vmem:[%s12 + $0x8] sm:$0xff]
        %v5086 = vld [vmem:[%s12 + $0x10] sm:$0xff]
        %v5087 = vld [vmem:[%s12 + $0x18] sm:$0xff]
        %v5088 = vld [vmem:[%s12 + $0x20] sm:$0xff]
        %v5089 = vld [vmem:[%s12 + $0x28] sm:$0xff]
        %v5090 = vld [vmem:[%s12 + $0x30] sm:$0xff]
        %v5091 = vld [vmem:[%s12 + $0x38] sm:$0xff]
        %v5092 = vld [vmem:[%s12 + $0x40] sm:$0xff]
        %v5093 = vld [vmem:[%s12 + $0x48] sm:$0xff]
        %v5094 = vld [vmem:[%s12 + $0x50] sm:$0xff]
        %v5095 = vld [vmem:[%s12 + $0x58] sm:$0xff]
        %v5096 = vld [vmem:[%s12 + $0x60] sm:$0xff]
        %v5097 = vld [vmem:[%s12 + $0x68] sm:$0xff]
        %v5098 = vld [vmem:[%s12 + $0x70] sm:$0xff]
        %v5099 = vld [vmem:[%s12 + $0x78] sm:$0xff]
        %5101 = vset.pattern.permute.xlu0 0
        %5102 = vperm.xlu0 %5101, %v5084
        %v5103 = vpop.permute.xlu0 %5102
        %5106 = vset.pattern.permute.xlu0 0
        %5107 = vperm.xlu0 %5106, %v5085
        %v5108 = vpop.permute.xlu0 %5107
        %5111 = vset.pattern.permute.xlu0 0
        %5112 = vperm.xlu0 %5111, %v5086
        %v5113 = vpop.permute.xlu0 %5112
        %5116 = vset.pattern.permute.xlu0 0
        %5117 = vperm.xlu0 %5116, %v5087
        %v5118 = vpop.permute.xlu0 %5117
        %5121 = vset.pattern.permute.xlu0 0
        %5122 = vperm.xlu0 %5121, %v5088
        %v5123 = vpop.permute.xlu0 %5122
        %5126 = vset.pattern.permute.xlu0 0
        %5127 = vperm.xlu0 %5126, %v5089
        %v5128 = vpop.permute.xlu0 %5127
        %5131 = vset.pattern.permute.xlu0 0
        %5132 = vperm.xlu0 %5131, %v5090
        %v5133 = vpop.permute.xlu0 %5132
        %5136 = vset.pattern.permute.xlu0 0
        %5137 = vperm.xlu0 %5136, %v5091
        %v5138 = vpop.permute.xlu0 %5137
        %5141 = vset.pattern.permute.xlu0 0
        %5142 = vperm.xlu0 %5141, %v5092
        %v5143 = vpop.permute.xlu0 %5142
        %5146 = vset.pattern.permute.xlu0 0
        %5147 = vperm.xlu0 %5146, %v5093
        %v5148 = vpop.permute.xlu0 %5147
        %5151 = vset.pattern.permute.xlu0 0
        %5152 = vperm.xlu0 %5151, %v5094
        %v5153 = vpop.permute.xlu0 %5152
        %5156 = vset.pattern.permute.xlu0 0
        %5157 = vperm.xlu0 %5156, %v5095
        %v5158 = vpop.permute.xlu0 %5157
        %5161 = vset.pattern.permute.xlu0 0
        %5162 = vperm.xlu0 %5161, %v5096
        %v5163 = vpop.permute.xlu0 %5162
        %5166 = vset.pattern.permute.xlu0 0
        %5167 = vperm.xlu0 %5166, %v5097
        %v5168 = vpop.permute.xlu0 %5167
        %5171 = vset.pattern.permute.xlu0 0
        %5172 = vperm.xlu0 %5171, %v5098
        %v5173 = vpop.permute.xlu0 %5172
        %5176 = vset.pattern.permute.xlu0 0
        %5177 = vperm.xlu0 %5176, %v5099
        %v5178 = vpop.permute.xlu0 %5177
        %v5196 = vunpack.c.l.b16 %v5062
        %v5197 = vunpack.c.l.b16 %v5063
        %v5198 = vunpack.c.l.b16 %v5064
        %v5199 = vunpack.c.l.b16 %v5065
        %v5200 = vunpack.c.l.b16 %v5066
        %v5201 = vunpack.c.l.b16 %v5067
        %v5202 = vunpack.c.l.b16 %v5068
        %v5203 = vunpack.c.l.b16 %v5069
        %v5204 = vunpack.c.l.b16 %v5070
        %v5205 = vunpack.c.l.b16 %v5071
        %v5206 = vunpack.c.l.b16 %v5072
        %v5207 = vunpack.c.l.b16 %v5073
        %v5208 = vunpack.c.l.b16 %v5074
        %v5209 = vunpack.c.l.b16 %v5075
        %v5210 = vunpack.c.l.b16 %v5076
        %v5211 = vunpack.c.l.b16 %v5077
        %v5212 = vpack.c.b16 %v5197, %v5196
        %v5213 = vpack.c.b16 %v5199, %v5198
        %v5214 = vpack.c.b16 %v5201, %v5200
        %v5215 = vpack.c.b16 %v5203, %v5202
        %v5216 = vpack.c.b16 %v5205, %v5204
        %v5217 = vpack.c.b16 %v5207, %v5206
        %v5218 = vpack.c.b16 %v5209, %v5208
        %v5219 = vpack.c.b16 %v5211, %v5210
        %v5226 = vunpack.c.l.b16 %v5078
        %v5227 = vunpack.c.h.b16 %v5078
        %v5228 = vunpack.c.l.b16 %v5079
        %v5229 = vunpack.c.h.b16 %v5079
        %v5230 = vunpack.c.l.b16 %v5080
        %v5231 = vunpack.c.h.b16 %v5080
        %v5232 = vunpack.c.l.b16 %v5081
        %v5233 = vunpack.c.h.b16 %v5081
        %v5234 = vunpack.c.l.b16 %v5082
        %v5235 = vunpack.c.h.b16 %v5082
        %v5236 = vunpack.c.l.b16 %v5083
        %v5237 = vunpack.c.h.b16 %v5083
        %v5238 = vpack.c.b16 %v5228, %v5226
        %v5239 = vpack.c.b16 %v5229, %v5227
        %v5240 = vpack.c.b16 %v5232, %v5230
        %v5241 = vpack.c.b16 %v5233, %v5231
        %v5242 = vpack.c.b16 %v5236, %v5234
        %v5243 = vpack.c.b16 %v5237, %v5235
        %vm5250 = vcmask 392192
        %v5252 = vsel %vm5250, %v5212, 0
        %v5255 = vsel %vm5250, %v5213, 0
        %v5258 = vsel %vm5250, %v5214, 0
        %v5261 = vsel %vm5250, %v5215, 0
        %v5264 = vsel %vm5250, %v5216, 0
        %v5267 = vsel %vm5250, %v5217, 0
        %v5270 = vsel %vm5250, %v5218, 0
        %v5273 = vsel %vm5250, %v5219, 0
        %5275 = vmatpush.bf16.msra.mxu0 0
        %5276 = vmatpush.bf16.msra.mxu0 0
        %5277 = vmatpush.bf16.msra.mxu0 0
        %5278 = vmatpush.bf16.msra.mxu0 0
        %5279 = vmatpush.bf16.msra.mxu0 0
        %5280 = vmatpush.bf16.msra.mxu0 %v5242
        %5281 = vmatpush.bf16.msra.mxu0 %v5240
        %5282 = vmatpush.bf16.msra.mxu0 %v5238
        %5283 = vmatmul.bf16.gmra.mxu0 %v5252
        %v5284 = vpop.f32.mrf.mxu0
        %v5285 = vadd.f32 %v5103, %v5284
        %v5286 = vpop.f32.mrf.mxu0
        %v5287 = vadd.f32 %v5108, %v5286
        %5288 = vmatmul.bf16.gmra.mxu0 %v5255
        %v5289 = vpop.f32.mrf.mxu0
        %v5290 = vadd.f32 %v5113, %v5289
        %v5291 = vpop.f32.mrf.mxu0
        %v5292 = vadd.f32 %v5118, %v5291
        %5293 = vmatmul.bf16.gmra.mxu0 %v5258
        %v5294 = vpop.f32.mrf.mxu0
        %v5295 = vadd.f32 %v5123, %v5294
        %v5296 = vpop.f32.mrf.mxu0
        %v5297 = vadd.f32 %v5128, %v5296
        %5298 = vmatmul.bf16.gmra.mxu0 %v5261
        %v5299 = vpop.f32.mrf.mxu0
        %v5300 = vadd.f32 %v5133, %v5299
        %v5301 = vpop.f32.mrf.mxu0
        %v5302 = vadd.f32 %v5138, %v5301
        %5303 = vmatmul.bf16.gmra.mxu0 %v5264
        %v5304 = vpop.f32.mrf.mxu0
        %v5305 = vadd.f32 %v5143, %v5304
        %v5306 = vpop.f32.mrf.mxu0
        %v5307 = vadd.f32 %v5148, %v5306
        %5308 = vmatmul.bf16.gmra.mxu0 %v5267
        %v5309 = vpop.f32.mrf.mxu0
        %v5310 = vadd.f32 %v5153, %v5309
        %v5311 = vpop.f32.mrf.mxu0
        %v5312 = vadd.f32 %v5158, %v5311
        %5313 = vmatmul.bf16.gmra.mxu0 %v5270
        %v5314 = vpop.f32.mrf.mxu0
        %v5315 = vadd.f32 %v5163, %v5314
        %v5316 = vpop.f32.mrf.mxu0
        %v5317 = vadd.f32 %v5168, %v5316
        %5318 = vmatmul.bf16.gmra.mxu0 %v5273
        %v5319 = vpop.f32.mrf.mxu0
        %v5320 = vadd.f32 %v5173, %v5319
        %v5321 = vpop.f32.mrf.mxu0
        %v5322 = vadd.f32 %v5178, %v5321
        %5323 = vdwg.mxu0
        %5324 = vmatpush.bf16.msra.mxu0 0
        %5325 = vmatpush.bf16.msra.mxu0 0
        %5326 = vmatpush.bf16.msra.mxu0 0
        %5327 = vmatpush.bf16.msra.mxu0 0
        %5328 = vmatpush.bf16.msra.mxu0 0
        %5329 = vmatpush.bf16.msra.mxu0 %v5243
        %5330 = vmatpush.bf16.msra.mxu0 %v5241
        %5331 = vmatpush.bf16.msra.mxu0 %v5239
        %5332 = vmatmul.bf16.gmra.mxu0 %v5252
        %v5333 = vpop.f32.mrf.mxu0
        %v5334 = vadd.f32 %v5103, %v5333
        %v5335 = vpop.f32.mrf.mxu0
        %v5336 = vadd.f32 %v5108, %v5335
        %5337 = vmatmul.bf16.gmra.mxu0 %v5255
        %v5338 = vpop.f32.mrf.mxu0
        %v5339 = vadd.f32 %v5113, %v5338
        %v5340 = vpop.f32.mrf.mxu0
        %v5341 = vadd.f32 %v5118, %v5340
        %5342 = vmatmul.bf16.gmra.mxu0 %v5258
        %v5343 = vpop.f32.mrf.mxu0
        %v5344 = vadd.f32 %v5123, %v5343
        %v5345 = vpop.f32.mrf.mxu0
        %v5346 = vadd.f32 %v5128, %v5345
        %5347 = vmatmul.bf16.gmra.mxu0 %v5261
        %v5348 = vpop.f32.mrf.mxu0
        %v5349 = vadd.f32 %v5133, %v5348
        %v5350 = vpop.f32.mrf.mxu0
        %v5351 = vadd.f32 %v5138, %v5350
        %5352 = vmatmul.bf16.gmra.mxu0 %v5264
        %v5353 = vpop.f32.mrf.mxu0
        %v5354 = vadd.f32 %v5143, %v5353
        %v5355 = vpop.f32.mrf.mxu0
        %v5356 = vadd.f32 %v5148, %v5355
        %5357 = vmatmul.bf16.gmra.mxu0 %v5267
        %v5358 = vpop.f32.mrf.mxu0
        %v5359 = vadd.f32 %v5153, %v5358
        %v5360 = vpop.f32.mrf.mxu0
        %v5361 = vadd.f32 %v5158, %v5360
        %5362 = vmatmul.bf16.gmra.mxu0 %v5270
        %v5363 = vpop.f32.mrf.mxu0
        %v5364 = vadd.f32 %v5163, %v5363
        %v5365 = vpop.f32.mrf.mxu0
        %v5366 = vadd.f32 %v5168, %v5365
        %5367 = vmatmul.bf16.gmra.mxu0 %v5273
        %v5368 = vpop.f32.mrf.mxu0
        %v5369 = vadd.f32 %v5173, %v5368
        %v5370 = vpop.f32.mrf.mxu0
        %v5371 = vadd.f32 %v5178, %v5370
        %5372 = vdwg.mxu0
        %v5373 = vmax.f32 %v5285, 0.0
        %v5374 = vmax.f32 %v5334, 0.0
        %v5375 = vmax.f32 %v5287, 0.0
        %v5376 = vmax.f32 %v5336, 0.0
        %v5377 = vmax.f32 %v5290, 0.0
        %v5378 = vmax.f32 %v5339, 0.0
        %v5379 = vmax.f32 %v5292, 0.0
        %v5380 = vmax.f32 %v5341, 0.0
        %v5381 = vmax.f32 %v5295, 0.0
        %v5382 = vmax.f32 %v5344, 0.0
        %v5383 = vmax.f32 %v5297, 0.0
        %v5384 = vmax.f32 %v5346, 0.0
        %v5385 = vmax.f32 %v5300, 0.0
        %v5386 = vmax.f32 %v5349, 0.0
        %v5387 = vmax.f32 %v5302, 0.0
        %v5388 = vmax.f32 %v5351, 0.0
        %v5389 = vmax.f32 %v5305, 0.0
        %v5390 = vmax.f32 %v5354, 0.0
        %v5391 = vmax.f32 %v5307, 0.0
        %v5392 = vmax.f32 %v5356, 0.0
        %v5393 = vmax.f32 %v5310, 0.0
        %v5394 = vmax.f32 %v5359, 0.0
        %v5395 = vmax.f32 %v5312, 0.0
        %v5396 = vmax.f32 %v5361, 0.0
        %v5397 = vmax.f32 %v5315, 0.0
        %v5398 = vmax.f32 %v5364, 0.0
        %v5399 = vmax.f32 %v5317, 0.0
        %v5400 = vmax.f32 %v5366, 0.0
        %v5401 = vmax.f32 %v5320, 0.0
        %v5402 = vmax.f32 %v5369, 0.0
        %v5403 = vmax.f32 %v5322, 0.0
        %v5404 = vmax.f32 %v5371, 0.0
        %v5405 = vld [vmem:[%s13] sm:$0xf]
        %v5406 = vld [vmem:[%s13 + $0x4] sm:$0xf]
        %v5407 = vpack.c.bf16 %v5375, %v5373
        %v5408 = vpack.c.bf16 %v5376, %v5374
        %v5409 = vpack.c.bf16 %v5379, %v5377
        %v5410 = vpack.c.bf16 %v5380, %v5378
        %v5411 = vpack.c.bf16 %v5383, %v5381
        %v5412 = vpack.c.bf16 %v5384, %v5382
        %v5413 = vpack.c.bf16 %v5387, %v5385
        %v5414 = vpack.c.bf16 %v5388, %v5386
        %v5415 = vpack.c.bf16 %v5391, %v5389
        %v5416 = vpack.c.bf16 %v5392, %v5390
        %v5417 = vpack.c.bf16 %v5395, %v5393
        %v5418 = vpack.c.bf16 %v5396, %v5394
        %v5419 = vpack.c.bf16 %v5399, %v5397
        %v5420 = vpack.c.bf16 %v5400, %v5398
        %v5421 = vpack.c.bf16 %v5403, %v5401
        %v5422 = vpack.c.bf16 %v5404, %v5402
        %v5423 = vld [vmem:[%s14] sm:$0xff]
        %v5424 = vld [vmem:[%s14 + $0x8] sm:$0xff]
        %5426 = vset.pattern.permute.xlu0 0
        %5427 = vperm.xlu0 %5426, %v5423
        %v5428 = vpop.permute.xlu0 %5427
        %5431 = vset.pattern.permute.xlu0 0
        %5432 = vperm.xlu0 %5431, %v5424
        %v5433 = vpop.permute.xlu0 %5432
        %v5437 = vunpack.c.l.b16 %v5405
        %v5438 = vunpack.c.l.b16 %v5406
        %v5439 = vpack.c.b16 %v5438, %v5437
        %5441 = vmatpush.bf16.msra.mxu0 %v5421
        %5442 = vmatpush.bf16.msra.mxu0 %v5419
        %5443 = vmatpush.bf16.msra.mxu0 %v5417
        %5444 = vmatpush.bf16.msra.mxu0 %v5415
        %5445 = vmatpush.bf16.msra.mxu0 %v5413
        %5446 = vmatpush.bf16.msra.mxu0 %v5411
        %5447 = vmatpush.bf16.msra.mxu0 %v5409
        %5448 = vmatpush.bf16.msra.mxu0 %v5407
        %5449 = vmatmul.bf16.gmra.mxu0 %v5439
        %v5450 = vpop.f32.mrf.mxu0
        %v5451 = vadd.f32 %v5428, %v5450
        %v5452 = vpop.f32.mrf.mxu0
        %v5453 = vadd.f32 %v5433, %v5452
        %5454 = vdwg.mxu0
        %5455 = vmatpush.bf16.msra.mxu0 %v5422
        %5456 = vmatpush.bf16.msra.mxu0 %v5420
        %5457 = vmatpush.bf16.msra.mxu0 %v5418
        %5458 = vmatpush.bf16.msra.mxu0 %v5416
        %5459 = vmatpush.bf16.msra.mxu0 %v5414
        %5460 = vmatpush.bf16.msra.mxu0 %v5412
        %5461 = vmatpush.bf16.msra.mxu0 %v5410
        %5462 = vmatpush.bf16.msra.mxu0 %v5408
        %5463 = vmatmul.bf16.gmra.mxu0 %v5439
        %v5464 = vpop.f32.mrf.mxu0
        %v5465 = vadd.f32 %v5428, %v5464
        %v5466 = vpop.f32.mrf.mxu0
        %v5467 = vadd.f32 %v5433, %v5466
        %5468 = vdwg.mxu0
        %v5469 = vld [vmem:[%s560] sm:$0x3]
        %v5471 = vperm.slane %v5469, 0
        %v5472 = vperm.slane %v5469, 1
        %v5475 = vmul.f32 %v5471, %v5451
        %v5476 = vmul.f32 %v5472, %v5465
        %v5477 = vmul.f32 %v5471, %v5453
        %v5478 = vmul.f32 %v5472, %v5467
        %v5479 = vadd.f32 %v4471, %v5475
        %v5480 = vadd.f32 %v4472, %v5476
        %v5481 = vadd.f32 %v4473, %v5477
        %v5482 = vadd.f32 %v4474, %v5478
        %5483 = vst [vmem:[#allocation2 + $0x8] sm:$0xff] %v5479
        %5484 = vst [vmem:[#allocation2 + $0x10] sm:$0xff] %v5480
        %5485 = vst [vmem:[#allocation2 + $0x28] sm:$0xff] %v5481
        %5486 = vst [vmem:[#allocation2 + $0x30] sm:$0xff] %v5482
        %v5487 = vld [vmem:[#allocation2] sm:$0xff]
        %v5488 = vld [vmem:[#allocation2 + $0x8] sm:$0xff]
        %v5489 = vld [vmem:[#allocation2 + $0x10] sm:$0xff]
        %v5490 = vld [vmem:[#allocation2 + $0x20] sm:$0xff]
        %v5491 = vld [vmem:[#allocation2 + $0x28] sm:$0xff]
        %v5492 = vld [vmem:[#allocation2 + $0x30] sm:$0xff]
        %v5493 = vmul.f32 %v5487, %v2554
        %v5494 = vmul.f32 %v5488, %v2557
        %v5495 = vmul.f32 %v5489, %v2556
        %v5496 = vmul.f32 %v5490, %v2554
        %v5497 = vmul.f32 %v5491, %v2557
        %v5498 = vmul.f32 %v5492, %v2556
        %v5499 = vpack.c.bf16 %v5494, %v5493
        %v5500 = vpack.c.bf16 %v5495, %v5495
        %v5501 = vpack.c.bf16 %v5497, %v5496
        %v5502 = vpack.c.bf16 %v5498, %v5498
        %5507 = vrot.lane.b32.xlu0 %v5499, 17
        %v5508 = vpop.permute.xlu0 %5507
        %5509 = vrot.lane.b32.xlu0 %v5500, 17
        %v5510 = vpop.permute.xlu0 %5509
        %5511 = vrot.lane.b32.xlu0 %v5501, 17
        %v5512 = vpop.permute.xlu0 %5511
        %5513 = vrot.lane.b32.xlu0 %v5502, 17
        %v5514 = vpop.permute.xlu0 %5513
        %v5515 = vrot.slane %v5508, 4
        %v5516 = vrot.slane %v5510, 4
        %v5517 = vrot.slane %v5512, 4
        %v5518 = vrot.slane %v5514, 4
        %v5519 = vsel %vm2665, %v5515, %v5516
        %v5520 = vsel %vm2667, %v5508, %v5519
        %v5521 = vsel %vm2665, %v5517, %v5518
        %v5522 = vsel %vm2667, %v5512, %v5521
        %5525 = vst [vmem:[#allocation3] sm:$0xff] %v5520
        %5526 = vst [vmem:[#allocation3 + $0x8] sm:$0xff] %v5522
        %v5527 = vld [vmem:[#allocation2] sm:$0xff]
        %v5528 = vld [vmem:[#allocation2 + $0x8] sm:$0xff]
        %v5529 = vld [vmem:[#allocation2 + $0x10] sm:$0xff]
        %v5530 = vld [vmem:[#allocation2 + $0x20] sm:$0xff]
        %v5531 = vld [vmem:[#allocation2 + $0x28] sm:$0xff]
        %v5532 = vld [vmem:[#allocation2 + $0x30] sm:$0xff]
        %v5533 = vpack.c.bf16 %v5528, %v5527
        %v5534 = vpack.c.bf16 %v5529, %v5529
        %v5535 = vpack.c.bf16 %v5531, %v5530
        %v5536 = vpack.c.bf16 %v5532, %v5532
        %5541 = vrot.lane.b32.xlu0 %v5533, 16
        %v5542 = vpop.permute.xlu0 %5541
        %5543 = vrot.lane.b32.xlu0 %v5534, 16
        %v5544 = vpop.permute.xlu0 %5543
        %5545 = vrot.lane.b32.xlu0 %v5535, 16
        %v5546 = vpop.permute.xlu0 %5545
        %5547 = vrot.lane.b32.xlu0 %v5536, 16
        %v5548 = vpop.permute.xlu0 %5547
        %v5549 = vrot.slane %v5542, 4
        %v5550 = vrot.slane %v5544, 4
        %v5551 = vrot.slane %v5546, 4
        %v5552 = vrot.slane %v5548, 4
        %v5553 = vsel %vm2665, %v5549, %v5550
        %v5554 = vsel %vm2804, %v5542, %v5553
        %v5555 = vsel %vm2665, %v5551, %v5552
        %v5556 = vsel %vm2804, %v5546, %v5555
        %5559 = vst [vmem:[#allocation3 + $0x10] sm:$0xff] %v5554
        %5560 = vst [vmem:[#allocation3 + $0x18] sm:$0xff] %v5556
        %v5561 = vld [vmem:[#allocation2] sm:$0xff]
        %v5562 = vld [vmem:[#allocation2 + $0x8] sm:$0xff]
        %v5563 = vld [vmem:[#allocation2 + $0x10] sm:$0xff]
        %v5564 = vld [vmem:[#allocation2 + $0x20] sm:$0xff]
        %v5565 = vld [vmem:[#allocation2 + $0x28] sm:$0xff]
        %v5566 = vld [vmem:[#allocation2 + $0x30] sm:$0xff]
        %v5567 = vmul.f32 %v5561, %v2863
        %v5568 = vmul.f32 %v5562, %v2866
        %v5569 = vmul.f32 %v5563, %v2865
        %v5570 = vmul.f32 %v5564, %v2863
        %v5571 = vmul.f32 %v5565, %v2866
        %v5572 = vmul.f32 %v5566, %v2865
        %v5573 = vpack.c.bf16 %v5568, %v5567
        %v5574 = vpack.c.bf16 %v5569, %v5569
        %v5575 = vpack.c.bf16 %v5571, %v5570
        %v5576 = vpack.c.bf16 %v5572, %v5572
        %5581 = vrot.lane.b32.xlu0 %v5573, 15
        %v5582 = vpop.permute.xlu0 %5581
        %5583 = vrot.lane.b32.xlu0 %v5574, 15
        %v5584 = vpop.permute.xlu0 %5583
        %5585 = vrot.lane.b32.xlu0 %v5575, 15
        %v5586 = vpop.permute.xlu0 %5585
        %5587 = vrot.lane.b32.xlu0 %v5576, 15
        %v5588 = vpop.permute.xlu0 %5587
        %v5589 = vrot.slane %v5582, 4
        %v5590 = vrot.slane %v5584, 4
        %v5591 = vrot.slane %v5586, 4
        %v5592 = vrot.slane %v5588, 4
        %v5593 = vsel %vm2665, %v5589, %v5590
        %v5594 = vsel %vm2975, %v5582, %v5593
        %v5595 = vsel %vm2665, %v5591, %v5592
        %v5596 = vsel %vm2975, %v5586, %v5595
        %5599 = vst [vmem:[#allocation3 + $0x20] sm:$0xff] %v5594
        %5600 = vst [vmem:[#allocation3 + $0x28] sm:$0xff] %v5596
        %v5601 = vld [vmem:[#allocation2] sm:$0xff]
        %v5602 = vld [vmem:[#allocation2 + $0x8] sm:$0xff]
        %v5603 = vld [vmem:[#allocation2 + $0x10] sm:$0xff]
        %v5604 = vld [vmem:[#allocation2 + $0x20] sm:$0xff]
        %v5605 = vld [vmem:[#allocation2 + $0x28] sm:$0xff]
        %v5606 = vld [vmem:[#allocation2 + $0x30] sm:$0xff]
        %v5607 = vmul.f32 %v5601, %v3032
        %v5608 = vmul.f32 %v5602, %v3035
        %v5609 = vmul.f32 %v5603, %v3034
        %v5610 = vmul.f32 %v5604, %v3032
        %v5611 = vmul.f32 %v5605, %v3035
        %v5612 = vmul.f32 %v5606, %v3034
        %v5613 = vpack.c.bf16 %v5608, %v5607
        %v5614 = vpack.c.bf16 %v5609, %v5609
        %v5615 = vpack.c.bf16 %v5611, %v5610
        %v5616 = vpack.c.bf16 %v5612, %v5612
        %5621 = vrot.lane.b32.xlu0 %v5613, 1
        %v5622 = vpop.permute.xlu0 %5621
        %5623 = vrot.lane.b32.xlu0 %v5614, 1
        %v5624 = vpop.permute.xlu0 %5623
        %5625 = vrot.lane.b32.xlu0 %v5615, 1
        %v5626 = vpop.permute.xlu0 %5625
        %5627 = vrot.lane.b32.xlu0 %v5616, 1
        %v5628 = vpop.permute.xlu0 %5627
        %v5629 = vrot.slane %v5622, 4
        %v5630 = vrot.slane %v5624, 4
        %v5631 = vrot.slane %v5626, 4
        %v5632 = vrot.slane %v5628, 4
        %v5633 = vsel %vm2665, %v5629, %v5630
        %v5634 = vsel %vm3144, %v5622, %v5633
        %v5635 = vsel %vm2665, %v5631, %v5632
        %v5636 = vsel %vm3144, %v5626, %v5635
        %5639 = vst [vmem:[#allocation3 + $0x30] sm:$0xff] %v5634
        %5640 = vst [vmem:[#allocation3 + $0x38] sm:$0xff] %v5636
        %v5641 = vld [vmem:[#allocation2 + $0x8] sm:$0xff]
        %v5642 = vld [vmem:[#allocation2 + $0x10] sm:$0xff]
        %v5643 = vld [vmem:[#allocation2 + $0x28] sm:$0xff]
        %v5644 = vld [vmem:[#allocation2 + $0x30] sm:$0xff]
        %v5645 = vpack.c.bf16 %v5642, %v5641
        %v5646 = vpack.c.bf16 %v5644, %v5643
        %5647 = vst [vmem:[#allocation3 + $0x40] sm:$0xff] %v5645
        %5648 = vst [vmem:[#allocation3 + $0x48] sm:$0xff] %v5646
        %v5649 = vld [vmem:[#allocation2 + $0x8] sm:$0xff]
        %v5650 = vld [vmem:[#allocation2 + $0x10] sm:$0xff]
        %v5651 = vld [vmem:[#allocation2 + $0x18] sm:$0xff]
        %v5652 = vld [vmem:[#allocation2 + $0x28] sm:$0xff]
        %v5653 = vld [vmem:[#allocation2 + $0x30] sm:$0xff]
        %v5654 = vld [vmem:[#allocation2 + $0x38] sm:$0xff]
        %v5655 = vmul.f32 %v5649, %v3233
        %v5656 = vmul.f32 %v5650, %v3236
        %v5657 = vmul.f32 %v5651, %v3235
        %v5658 = vmul.f32 %v5652, %v3233
        %v5659 = vmul.f32 %v5653, %v3236
        %v5660 = vmul.f32 %v5654, %v3235
        %v5661 = vpack.c.bf16 %v5656, %v5655
        %v5662 = vpack.c.bf16 %v5657, %v5657
        %v5663 = vpack.c.bf16 %v5659, %v5658
        %v5664 = vpack.c.bf16 %v5660, %v5660
        %5669 = vrot.lane.b32.xlu0 %v5661, 127
        %v5670 = vpop.permute.xlu0 %5669
        %5671 = vrot.lane.b32.xlu0 %v5662, 127
        %v5672 = vpop.permute.xlu0 %5671
        %5673 = vrot.lane.b32.xlu0 %v5663, 127
        %v5674 = vpop.permute.xlu0 %5673
        %5675 = vrot.lane.b32.xlu0 %v5664, 127
        %v5676 = vpop.permute.xlu0 %5675
        %v5677 = vrot.slane %v5670, 4
        %v5678 = vrot.slane %v5672, 4
        %v5679 = vrot.slane %v5674, 4
        %v5680 = vrot.slane %v5676, 4
        %v5681 = vsel %vm2665, %v5677, %v5678
        %v5682 = vsel %vm3345, %v5670, %v5681
        %v5683 = vsel %vm2665, %v5679, %v5680
        %v5684 = vsel %vm3345, %v5674, %v5683
        %5687 = vst [vmem:[#allocation3 + $0x50] sm:$0xff] %v5682
        %5688 = vst [vmem:[#allocation3 + $0x58] sm:$0xff] %v5684
        %v5689 = vld [vmem:[#allocation2 + $0x8] sm:$0xff]
        %v5690 = vld [vmem:[#allocation2 + $0x10] sm:$0xff]
        %v5691 = vld [vmem:[#allocation2 + $0x18] sm:$0xff]
        %v5692 = vld [vmem:[#allocation2 + $0x28] sm:$0xff]
        %v5693 = vld [vmem:[#allocation2 + $0x30] sm:$0xff]
        %v5694 = vld [vmem:[#allocation2 + $0x38] sm:$0xff]
        %v5695 = vmul.f32 %v5689, %v3402
        %v5696 = vmul.f32 %v5690, %v3405
        %v5697 = vmul.f32 %v5691, %v3404
        %v5698 = vmul.f32 %v5692, %v3402
        %v5699 = vmul.f32 %v5693, %v3405
        %v5700 = vmul.f32 %v5694, %v3404
        %v5701 = vpack.c.bf16 %v5696, %v5695
        %v5702 = vpack.c.bf16 %v5697, %v5697
        %v5703 = vpack.c.bf16 %v5699, %v5698
        %v5704 = vpack.c.bf16 %v5700, %v5700
        %5709 = vrot.lane.b32.xlu0 %v5701, 113
        %v5710 = vpop.permute.xlu0 %5709
        %5711 = vrot.lane.b32.xlu0 %v5702, 113
        %v5712 = vpop.permute.xlu0 %5711
        %5713 = vrot.lane.b32.xlu0 %v5703, 113
        %v5714 = vpop.permute.xlu0 %5713
        %5715 = vrot.lane.b32.xlu0 %v5704, 113
        %v5716 = vpop.permute.xlu0 %5715
        %v5717 = vrot.slane %v5710, 4
        %v5718 = vrot.slane %v5712, 4
        %v5719 = vrot.slane %v5714, 4
        %v5720 = vrot.slane %v5716, 4
        %v5721 = vsel %vm2665, %v5717, %v5718
        %v5722 = vsel %vm3514, %v5710, %v5721
        %v5723 = vsel %vm2665, %v5719, %v5720
        %v5724 = vsel %vm3514, %v5714, %v5723
        %5727 = vst [vmem:[#allocation3 + $0x60] sm:$0xff] %v5722
        %5728 = vst [vmem:[#allocation3 + $0x68] sm:$0xff] %v5724
        %v5729 = vld [vmem:[#allocation2 + $0x8] sm:$0xff]
        %v5730 = vld [vmem:[#allocation2 + $0x10] sm:$0xff]
        %v5731 = vld [vmem:[#allocation2 + $0x18] sm:$0xff]
        %v5732 = vld [vmem:[#allocation2 + $0x28] sm:$0xff]
        %v5733 = vld [vmem:[#allocation2 + $0x30] sm:$0xff]
        %v5734 = vld [vmem:[#allocation2 + $0x38] sm:$0xff]
        %v5735 = vpack.c.bf16 %v5730, %v5729
        %v5736 = vpack.c.bf16 %v5731, %v5731
        %v5737 = vpack.c.bf16 %v5733, %v5732
        %v5738 = vpack.c.bf16 %v5734, %v5734
        %5743 = vrot.lane.b32.xlu0 %v5735, 112
        %v5744 = vpop.permute.xlu0 %5743
        %5745 = vrot.lane.b32.xlu0 %v5736, 112
        %v5746 = vpop.permute.xlu0 %5745
        %5747 = vrot.lane.b32.xlu0 %v5737, 112
        %v5748 = vpop.permute.xlu0 %5747
        %5749 = vrot.lane.b32.xlu0 %v5738, 112
        %v5750 = vpop.permute.xlu0 %5749
        %v5751 = vrot.slane %v5744, 4
        %v5752 = vrot.slane %v5746, 4
        %v5753 = vrot.slane %v5748, 4
        %v5754 = vrot.slane %v5750, 4
        %v5755 = vsel %vm2665, %v5751, %v5752
        %v5756 = vsel %vm3651, %v5744, %v5755
        %v5757 = vsel %vm2665, %v5753, %v5754
        %v5758 = vsel %vm3651, %v5748, %v5757
        %5761 = vst [vmem:[#allocation3 + $0x70] sm:$0xff] %v5756
        %5762 = vst [vmem:[#allocation3 + $0x78] sm:$0xff] %v5758
        %v5763 = vld [vmem:[#allocation2 + $0x8] sm:$0xff]
        %v5764 = vld [vmem:[#allocation2 + $0x10] sm:$0xff]
        %v5765 = vld [vmem:[#allocation2 + $0x18] sm:$0xff]
        %v5766 = vld [vmem:[#allocation2 + $0x28] sm:$0xff]
        %v5767 = vld [vmem:[#allocation2 + $0x30] sm:$0xff]
        %v5768 = vld [vmem:[#allocation2 + $0x38] sm:$0xff]
        %v5769 = vmul.f32 %v5763, %v3708
        %v5770 = vmul.f32 %v5764, %v3711
        %v5771 = vmul.f32 %v5765, %v3710
        %v5772 = vmul.f32 %v5766, %v3708
        %v5773 = vmul.f32 %v5767, %v3711
        %v5774 = vmul.f32 %v5768, %v3710
        %v5775 = vpack.c.bf16 %v5770, %v5769
        %v5776 = vpack.c.bf16 %v5771, %v5771
        %v5777 = vpack.c.bf16 %v5773, %v5772
        %v5778 = vpack.c.bf16 %v5774, %v5774
        %5783 = vrot.lane.b32.xlu0 %v5775, 111
        %v5784 = vpop.permute.xlu0 %5783
        %5785 = vrot.lane.b32.xlu0 %v5776, 111
        %v5786 = vpop.permute.xlu0 %5785
        %5787 = vrot.lane.b32.xlu0 %v5777, 111
        %v5788 = vpop.permute.xlu0 %5787
        %5789 = vrot.lane.b32.xlu0 %v5778, 111
        %v5790 = vpop.permute.xlu0 %5789
        %v5791 = vrot.slane %v5784, 4
        %v5792 = vrot.slane %v5786, 4
        %v5793 = vrot.slane %v5788, 4
        %v5794 = vrot.slane %v5790, 4
        %v5795 = vsel %vm2665, %v5791, %v5792
        %v5796 = vsel %vm3820, %v5784, %v5795
        %v5797 = vsel %vm2665, %v5793, %v5794
        %v5798 = vsel %vm3820, %v5788, %v5797
        %5801 = vst [vmem:[#allocation3 + $0x80] sm:$0xff] %v5796
        %5802 = vst [vmem:[#allocation3 + $0x88] sm:$0xff] %v5798
        %v5803 = vld [vmem:[%s7] sm:$0xff]
        %v5804 = vld [vmem:[%s7 + $0x8] sm:$0xff]
        %v5805 = vld [vmem:[#allocation3] sm:$0xff]
        %v5806 = vld [vmem:[#allocation3 + $0x8] sm:$0xff]
        %v5807 = vld [vmem:[#allocation3 + $0x10] sm:$0xff]
        %v5808 = vld [vmem:[#allocation3 + $0x18] sm:$0xff]
        %v5809 = vld [vmem:[#allocation3 + $0x20] sm:$0xff]
        %v5810 = vld [vmem:[#allocation3 + $0x28] sm:$0xff]
        %v5811 = vld [vmem:[#allocation3 + $0x30] sm:$0xff]
        %v5812 = vld [vmem:[#allocation3 + $0x38] sm:$0xff]
        %v5813 = vld [vmem:[#allocation3 + $0x40] sm:$0xff]
        %v5814 = vld [vmem:[#allocation3 + $0x48] sm:$0xff]
        %v5815 = vld [vmem:[#allocation3 + $0x50] sm:$0xff]
        %v5816 = vld [vmem:[#allocation3 + $0x58] sm:$0xff]
        %v5817 = vld [vmem:[#allocation3 + $0x60] sm:$0xff]
        %v5818 = vld [vmem:[#allocation3 + $0x68] sm:$0xff]
        %v5819 = vld [vmem:[#allocation3 + $0x70] sm:$0xff]
        %v5820 = vld [vmem:[#allocation3 + $0x78] sm:$0xff]
        %v5821 = vld [vmem:[#allocation3 + $0x80] sm:$0xff]
        %v5822 = vld [vmem:[#allocation3 + $0x88] sm:$0xff]
        %v5823 = vld [vmem:[%s8] sm:$0xff]
        %v5824 = vld [vmem:[%s8 + $0x8] sm:$0xff]
        %5826 = vset.pattern.permute.xlu0 0
        %5827 = vperm.xlu0 %5826, %v5823
        %v5828 = vpop.permute.xlu0 %5827
        %5831 = vset.pattern.permute.xlu0 0
        %5832 = vperm.xlu0 %5831, %v5824
        %v5833 = vpop.permute.xlu0 %5832
        %v5837 = vunpack.c.l.b16 %v5803
        %v5838 = vunpack.c.h.b16 %v5803
        %v5839 = vunpack.c.l.b16 %v5804
        %v5840 = vunpack.c.h.b16 %v5804
        %v5841 = vpack.c.b16 %v5839, %v5837
        %v5842 = vpack.c.b16 %v5840, %v5838
        %v5862 = vunpack.c.l.b16 %v5805
        %v5863 = vunpack.c.h.b16 %v5805
        %v5864 = vunpack.c.l.b16 %v5806
        %v5865 = vunpack.c.h.b16 %v5806
        %v5866 = vunpack.c.l.b16 %v5807
        %v5867 = vunpack.c.h.b16 %v5807
        %v5868 = vunpack.c.l.b16 %v5808
        %v5869 = vunpack.c.h.b16 %v5808
        %v5870 = vunpack.c.l.b16 %v5809
        %v5871 = vunpack.c.h.b16 %v5809
        %v5872 = vunpack.c.l.b16 %v5810
        %v5873 = vunpack.c.h.b16 %v5810
        %v5874 = vunpack.c.l.b16 %v5811
        %v5875 = vunpack.c.h.b16 %v5811
        %v5876 = vunpack.c.l.b16 %v5812
        %v5877 = vunpack.c.h.b16 %v5812
        %v5878 = vunpack.c.l.b16 %v5813
        %v5879 = vunpack.c.h.b16 %v5813
        %v5880 = vunpack.c.l.b16 %v5814
        %v5881 = vunpack.c.h.b16 %v5814
        %v5882 = vunpack.c.l.b16 %v5815
        %v5883 = vunpack.c.h.b16 %v5815
        %v5884 = vunpack.c.l.b16 %v5816
        %v5885 = vunpack.c.h.b16 %v5816
        %v5886 = vunpack.c.l.b16 %v5817
        %v5887 = vunpack.c.h.b16 %v5817
        %v5888 = vunpack.c.l.b16 %v5818
        %v5889 = vunpack.c.h.b16 %v5818
        %v5890 = vunpack.c.l.b16 %v5819
        %v5891 = vunpack.c.h.b16 %v5819
        %v5892 = vunpack.c.l.b16 %v5820
        %v5893 = vunpack.c.h.b16 %v5820
        %v5894 = vunpack.c.l.b16 %v5821
        %v5895 = vunpack.c.h.b16 %v5821
        %v5896 = vunpack.c.l.b16 %v5822
        %v5897 = vunpack.c.h.b16 %v5822
        %v5898 = vpack.c.b16 %v5864, %v5862
        %v5899 = vpack.c.b16 %v5865, %v5863
        %v5900 = vpack.c.b16 %v5868, %v5866
        %v5901 = vpack.c.b16 %v5869, %v5867
        %v5902 = vpack.c.b16 %v5872, %v5870
        %v5903 = vpack.c.b16 %v5873, %v5871
        %v5904 = vpack.c.b16 %v5876, %v5874
        %v5905 = vpack.c.b16 %v5877, %v5875
        %v5906 = vpack.c.b16 %v5880, %v5878
        %v5907 = vpack.c.b16 %v5881, %v5879
        %v5908 = vpack.c.b16 %v5884, %v5882
        %v5909 = vpack.c.b16 %v5885, %v5883
        %v5910 = vpack.c.b16 %v5888, %v5886
        %v5911 = vpack.c.b16 %v5889, %v5887
        %v5912 = vpack.c.b16 %v5892, %v5890
        %v5913 = vpack.c.b16 %v5893, %v5891
        %v5914 = vpack.c.b16 %v5896, %v5894
        %v5915 = vpack.c.b16 %v5897, %v5895
        %v5935 = vsel %vm4926, %v5842, 0
        %5937 = vmatpush.bf16.msra.mxu0 %v5912
        %5938 = vmatpush.bf16.msra.mxu0 %v5910
        %5939 = vmatpush.bf16.msra.mxu0 %v5908
        %5940 = vmatpush.bf16.msra.mxu0 %v5906
        %5941 = vmatpush.bf16.msra.mxu0 %v5904
        %5942 = vmatpush.bf16.msra.mxu0 %v5902
        %5943 = vmatpush.bf16.msra.mxu0 %v5900
        %5944 = vmatpush.bf16.msra.mxu0 %v5898
        %5945 = vmatmul.bf16.gmra.mxu0 %v5841
        %v5946 = vpop.f32.mrf.mxu0
        %v5947 = vadd.f32 %v5828, %v5946
        %v5948 = vpop.f32.mrf.mxu0
        %v5949 = vadd.f32 %v5833, %v5948
        %5950 = vdwg.mxu0
        %5951 = vmatpush.bf16.msra.mxu0 0
        %5952 = vmatpush.bf16.msra.mxu0 0
        %5953 = vmatpush.bf16.msra.mxu0 0
        %5954 = vmatpush.bf16.msra.mxu0 0
        %5955 = vmatpush.bf16.msra.mxu0 0
        %5956 = vmatpush.bf16.msra.mxu0 0
        %5957 = vmatpush.bf16.msra.mxu0 0
        %5958 = vmatpush.bf16.msra.mxu0 %v5914
        %5959 = vmatmul.bf16.gmra.mxu0 %v5935
        %v5960 = vpop.f32.mrf.mxu0
        %v5961 = vadd.f32 %v5947, %v5960
        %v5962 = vpop.f32.mrf.mxu0
        %v5963 = vadd.f32 %v5949, %v5962
        %5964 = vdwg.mxu0
        %5965 = vmatpush.bf16.msra.mxu0 %v5913
        %5966 = vmatpush.bf16.msra.mxu0 %v5911
        %5967 = vmatpush.bf16.msra.mxu0 %v5909
        %5968 = vmatpush.bf16.msra.mxu0 %v5907
        %5969 = vmatpush.bf16.msra.mxu0 %v5905
        %5970 = vmatpush.bf16.msra.mxu0 %v5903
        %5971 = vmatpush.bf16.msra.mxu0 %v5901
        %5972 = vmatpush.bf16.msra.mxu0 %v5899
        %5973 = vmatmul.bf16.gmra.mxu0 %v5841
        %v5974 = vpop.f32.mrf.mxu0
        %v5975 = vadd.f32 %v5828, %v5974
        %v5976 = vpop.f32.mrf.mxu0
        %v5977 = vadd.f32 %v5833, %v5976
        %5978 = vdwg.mxu0
        %5979 = vmatpush.bf16.msra.mxu0 0
        %5980 = vmatpush.bf16.msra.mxu0 0
        %5981 = vmatpush.bf16.msra.mxu0 0
        %5982 = vmatpush.bf16.msra.mxu0 0
        %5983 = vmatpush.bf16.msra.mxu0 0
        %5984 = vmatpush.bf16.msra.mxu0 0
        %5985 = vmatpush.bf16.msra.mxu0 0
        %5986 = vmatpush.bf16.msra.mxu0 %v5915
        %5987 = vmatmul.bf16.gmra.mxu0 %v5935
        %v5988 = vpop.f32.mrf.mxu0
        %v5989 = vadd.f32 %v5975, %v5988
        %v5990 = vpop.f32.mrf.mxu0
        %v5991 = vadd.f32 %v5977, %v5990
        %5992 = vdwg.mxu0
        %v5993 = vld [vmem:[%s9] sm:$0xf]
        %v5994 = vld [vmem:[%s9 + $0x4] sm:$0xf]
        %v5995 = vpack.c.bf16 %v5481, %v5479
        %v5996 = vpack.c.bf16 %v5482, %v5480
        %v5997 = vld [vmem:[%s10] sm:$0xff]
        %v5998 = vld [vmem:[%s10 + $0x8] sm:$0xff]
        %6000 = vset.pattern.permute.xlu0 0
        %6001 = vperm.xlu0 %6000, %v5997
        %v6002 = vpop.permute.xlu0 %6001
        %6005 = vset.pattern.permute.xlu0 0
        %6006 = vperm.xlu0 %6005, %v5998
        %v6007 = vpop.permute.xlu0 %6006
        %v6011 = vunpack.c.l.b16 %v5993
        %v6012 = vunpack.c.l.b16 %v5994
        %v6013 = vpack.c.b16 %v6012, %v6011
        %v6015 = vsel %vm4926, %v6013, 0
        %6017 = vmatpush.bf16.msra.mxu0 0
        %6018 = vmatpush.bf16.msra.mxu0 0
        %6019 = vmatpush.bf16.msra.mxu0 0
        %6020 = vmatpush.bf16.msra.mxu0 0
        %6021 = vmatpush.bf16.msra.mxu0 0
        %6022 = vmatpush.bf16.msra.mxu0 0
        %6023 = vmatpush.bf16.msra.mxu0 0
        %6024 = vmatpush.bf16.msra.mxu0 %v5995
        %6025 = vmatmul.bf16.gmra.mxu0 %v6015
        %v6026 = vpop.f32.mrf.mxu0
        %v6027 = vadd.f32 %v6002, %v6026
        %v6028 = vpop.f32.mrf.mxu0
        %v6029 = vadd.f32 %v6007, %v6028
        %6030 = vdwg.mxu0
        %6031 = vmatpush.bf16.msra.mxu0 0
        %6032 = vmatpush.bf16.msra.mxu0 0
        %6033 = vmatpush.bf16.msra.mxu0 0
        %6034 = vmatpush.bf16.msra.mxu0 0
        %6035 = vmatpush.bf16.msra.mxu0 0
        %6036 = vmatpush.bf16.msra.mxu0 0
        %6037 = vmatpush.bf16.msra.mxu0 0
        %6038 = vmatpush.bf16.msra.mxu0 %v5996
        %6039 = vmatmul.bf16.gmra.mxu0 %v6015
        %v6040 = vpop.f32.mrf.mxu0
        %v6041 = vadd.f32 %v6002, %v6040
        %v6042 = vpop.f32.mrf.mxu0
        %v6043 = vadd.f32 %v6007, %v6042
        %6044 = vdwg.mxu0
        %v6045 = vmax.f32 %v5479, 0.0
        %v6046 = vmax.f32 %v5480, 0.0
        %v6047 = vmax.f32 %v5481, 0.0
        %v6048 = vmax.f32 %v5482, 0.0
        %v6049 = vpack.c.bf16 %v6046, %v6045
        %v6050 = vpack.c.bf16 %v6048, %v6047
        %6051 = vst [vmem:[#allocation3] sm:$0xff] %v6049
        %6052 = vst [vmem:[#allocation3 + $0x8] sm:$0xff] %v6050
        %v6053 = vmax.f32 %v5961, 0.0
        %v6054 = vmax.f32 %v5989, 0.0
        %v6055 = vmax.f32 %v5963, 0.0
        %v6056 = vmax.f32 %v5991, 0.0
        %v6057 = vpack.c.bf16 %v6054, %v6053
        %v6058 = vpack.c.bf16 %v6056, %v6055
        %6059 = vst [vmem:[#allocation3 + $0x10] sm:$0xff] %v6057
        %6060 = vst [vmem:[#allocation3 + $0x18] sm:$0xff] %v6058
        %v6061 = vmax.f32 %v6027, 0.0
        %v6062 = vmax.f32 %v6041, 0.0
        %v6063 = vmax.f32 %v6029, 0.0
        %v6064 = vmax.f32 %v6043, 0.0
        %v6065 = vpack.c.bf16 %v6062, %v6061
        %v6066 = vpack.c.bf16 %v6064, %v6063
        %6067 = vst [vmem:[#allocation3 + $0x20] sm:$0xff] %v6065
        %6068 = vst [vmem:[#allocation3 + $0x28] sm:$0xff] %v6066
        %v6069 = vld [vmem:[%s11] sm:$0xf]
        %v6070 = vld [vmem:[%s11 + $0x4] sm:$0xf]
        %v6071 = vld [vmem:[%s11 + $0x8] sm:$0xf]
        %v6072 = vld [vmem:[%s11 + $0xc] sm:$0xf]
        %v6073 = vld [vmem:[%s11 + $0x10] sm:$0xf]
        %v6074 = vld [vmem:[%s11 + $0x14] sm:$0xf]
        %v6075 = vld [vmem:[%s11 + $0x18] sm:$0xf]
        %v6076 = vld [vmem:[%s11 + $0x1c] sm:$0xf]
        %v6077 = vld [vmem:[%s11 + $0x20] sm:$0xf]
        %v6078 = vld [vmem:[%s11 + $0x24] sm:$0xf]
        %v6079 = vld [vmem:[%s11 + $0x28] sm:$0xf]
        %v6080 = vld [vmem:[%s11 + $0x2c] sm:$0xf]
        %v6081 = vld [vmem:[%s11 + $0x30] sm:$0xf]
        %v6082 = vld [vmem:[%s11 + $0x34] sm:$0xf]
        %v6083 = vld [vmem:[%s11 + $0x38] sm:$0xf]
        %v6084 = vld [vmem:[%s11 + $0x3c] sm:$0xf]
        %v6085 = vld [vmem:[#allocation3] sm:$0xff]
        %v6086 = vld [vmem:[#allocation3 + $0x8] sm:$0xff]
        %v6087 = vld [vmem:[#allocation3 + $0x10] sm:$0xff]
        %v6088 = vld [vmem:[#allocation3 + $0x18] sm:$0xff]
        %v6089 = vld [vmem:[#allocation3 + $0x20] sm:$0xff]
        %v6090 = vld [vmem:[#allocation3 + $0x28] sm:$0xff]
        %v6091 = vld [vmem:[%s12] sm:$0xff]
        %v6092 = vld [vmem:[%s12 + $0x8] sm:$0xff]
        %v6093 = vld [vmem:[%s12 + $0x10] sm:$0xff]
        %v6094 = vld [vmem:[%s12 + $0x18] sm:$0xff]
        %v6095 = vld [vmem:[%s12 + $0x20] sm:$0xff]
        %v6096 = vld [vmem:[%s12 + $0x28] sm:$0xff]
        %v6097 = vld [vmem:[%s12 + $0x30] sm:$0xff]
        %v6098 = vld [vmem:[%s12 + $0x38] sm:$0xff]
        %v6099 = vld [vmem:[%s12 + $0x40] sm:$0xff]
        %v6100 = vld [vmem:[%s12 + $0x48] sm:$0xff]
        %v6101 = vld [vmem:[%s12 + $0x50] sm:$0xff]
        %v6102 = vld [vmem:[%s12 + $0x58] sm:$0xff]
        %v6103 = vld [vmem:[%s12 + $0x60] sm:$0xff]
        %v6104 = vld [vmem:[%s12 + $0x68] sm:$0xff]
        %v6105 = vld [vmem:[%s12 + $0x70] sm:$0xff]
        %v6106 = vld [vmem:[%s12 + $0x78] sm:$0xff]
        %6108 = vset.pattern.permute.xlu0 0
        %6109 = vperm.xlu0 %6108, %v6091
        %v6110 = vpop.permute.xlu0 %6109
        %6113 = vset.pattern.permute.xlu0 0
        %6114 = vperm.xlu0 %6113, %v6092
        %v6115 = vpop.permute.xlu0 %6114
        %6118 = vset.pattern.permute.xlu0 0
        %6119 = vperm.xlu0 %6118, %v6093
        %v6120 = vpop.permute.xlu0 %6119
        %6123 = vset.pattern.permute.xlu0 0
        %6124 = vperm.xlu0 %6123, %v6094
        %v6125 = vpop.permute.xlu0 %6124
        %6128 = vset.pattern.permute.xlu0 0
        %6129 = vperm.xlu0 %6128, %v6095
        %v6130 = vpop.permute.xlu0 %6129
        %6133 = vset.pattern.permute.xlu0 0
        %6134 = vperm.xlu0 %6133, %v6096
        %v6135 = vpop.permute.xlu0 %6134
        %6138 = vset.pattern.permute.xlu0 0
        %6139 = vperm.xlu0 %6138, %v6097
        %v6140 = vpop.permute.xlu0 %6139
        %6143 = vset.pattern.permute.xlu0 0
        %6144 = vperm.xlu0 %6143, %v6098
        %v6145 = vpop.permute.xlu0 %6144
        %6148 = vset.pattern.permute.xlu0 0
        %6149 = vperm.xlu0 %6148, %v6099
        %v6150 = vpop.permute.xlu0 %6149
        %6153 = vset.pattern.permute.xlu0 0
        %6154 = vperm.xlu0 %6153, %v6100
        %v6155 = vpop.permute.xlu0 %6154
        %6158 = vset.pattern.permute.xlu0 0
        %6159 = vperm.xlu0 %6158, %v6101
        %v6160 = vpop.permute.xlu0 %6159
        %6163 = vset.pattern.permute.xlu0 0
        %6164 = vperm.xlu0 %6163, %v6102
        %v6165 = vpop.permute.xlu0 %6164
        %6168 = vset.pattern.permute.xlu0 0
        %6169 = vperm.xlu0 %6168, %v6103
        %v6170 = vpop.permute.xlu0 %6169
        %6173 = vset.pattern.permute.xlu0 0
        %6174 = vperm.xlu0 %6173, %v6104
        %v6175 = vpop.permute.xlu0 %6174
        %6178 = vset.pattern.permute.xlu0 0
        %6179 = vperm.xlu0 %6178, %v6105
        %v6180 = vpop.permute.xlu0 %6179
        %6183 = vset.pattern.permute.xlu0 0
        %6184 = vperm.xlu0 %6183, %v6106
        %v6185 = vpop.permute.xlu0 %6184
        %v6203 = vunpack.c.l.b16 %v6069
        %v6204 = vunpack.c.l.b16 %v6070
        %v6205 = vunpack.c.l.b16 %v6071
        %v6206 = vunpack.c.l.b16 %v6072
        %v6207 = vunpack.c.l.b16 %v6073
        %v6208 = vunpack.c.l.b16 %v6074
        %v6209 = vunpack.c.l.b16 %v6075
        %v6210 = vunpack.c.l.b16 %v6076
        %v6211 = vunpack.c.l.b16 %v6077
        %v6212 = vunpack.c.l.b16 %v6078
        %v6213 = vunpack.c.l.b16 %v6079
        %v6214 = vunpack.c.l.b16 %v6080
        %v6215 = vunpack.c.l.b16 %v6081
        %v6216 = vunpack.c.l.b16 %v6082
        %v6217 = vunpack.c.l.b16 %v6083
        %v6218 = vunpack.c.l.b16 %v6084
        %v6219 = vpack.c.b16 %v6204, %v6203
        %v6220 = vpack.c.b16 %v6206, %v6205
        %v6221 = vpack.c.b16 %v6208, %v6207
        %v6222 = vpack.c.b16 %v6210, %v6209
        %v6223 = vpack.c.b16 %v6212, %v6211
        %v6224 = vpack.c.b16 %v6214, %v6213
        %v6225 = vpack.c.b16 %v6216, %v6215
        %v6226 = vpack.c.b16 %v6218, %v6217
        %v6233 = vunpack.c.l.b16 %v6085
        %v6234 = vunpack.c.h.b16 %v6085
        %v6235 = vunpack.c.l.b16 %v6086
        %v6236 = vunpack.c.h.b16 %v6086
        %v6237 = vunpack.c.l.b16 %v6087
        %v6238 = vunpack.c.h.b16 %v6087
        %v6239 = vunpack.c.l.b16 %v6088
        %v6240 = vunpack.c.h.b16 %v6088
        %v6241 = vunpack.c.l.b16 %v6089
        %v6242 = vunpack.c.h.b16 %v6089
        %v6243 = vunpack.c.l.b16 %v6090
        %v6244 = vunpack.c.h.b16 %v6090
        %v6245 = vpack.c.b16 %v6235, %v6233
        %v6246 = vpack.c.b16 %v6236, %v6234
        %v6247 = vpack.c.b16 %v6239, %v6237
        %v6248 = vpack.c.b16 %v6240, %v6238
        %v6249 = vpack.c.b16 %v6243, %v6241
        %v6250 = vpack.c.b16 %v6244, %v6242
        %v6258 = vsel %vm5250, %v6219, 0
        %v6261 = vsel %vm5250, %v6220, 0
        %v6264 = vsel %vm5250, %v6221, 0
        %v6267 = vsel %vm5250, %v6222, 0
        %v6270 = vsel %vm5250, %v6223, 0
        %v6273 = vsel %vm5250, %v6224, 0
        %v6276 = vsel %vm5250, %v6225, 0
        %v6279 = vsel %vm5250, %v6226, 0
        %6281 = vmatpush.bf16.msra.mxu0 0
        %6282 = vmatpush.bf16.msra.mxu0 0
        %6283 = vmatpush.bf16.msra.mxu0 0
        %6284 = vmatpush.bf16.msra.mxu0 0
        %6285 = vmatpush.bf16.msra.mxu0 0
        %6286 = vmatpush.bf16.msra.mxu0 %v6249
        %6287 = vmatpush.bf16.msra.mxu0 %v6247
        %6288 = vmatpush.bf16.msra.mxu0 %v6245
        %6289 = vmatmul.bf16.gmra.mxu0 %v6258
        %v6290 = vpop.f32.mrf.mxu0
        %v6291 = vadd.f32 %v6110, %v6290
        %v6292 = vpop.f32.mrf.mxu0
        %v6293 = vadd.f32 %v6115, %v6292
        %6294 = vmatmul.bf16.gmra.mxu0 %v6261
        %v6295 = vpop.f32.mrf.mxu0
        %v6296 = vadd.f32 %v6120, %v6295
        %v6297 = vpop.f32.mrf.mxu0
        %v6298 = vadd.f32 %v6125, %v6297
        %6299 = vmatmul.bf16.gmra.mxu0 %v6264
        %v6300 = vpop.f32.mrf.mxu0
        %v6301 = vadd.f32 %v6130, %v6300
        %v6302 = vpop.f32.mrf.mxu0
        %v6303 = vadd.f32 %v6135, %v6302
        %6304 = vmatmul.bf16.gmra.mxu0 %v6267
        %v6305 = vpop.f32.mrf.mxu0
        %v6306 = vadd.f32 %v6140, %v6305
        %v6307 = vpop.f32.mrf.mxu0
        %v6308 = vadd.f32 %v6145, %v6307
        %6309 = vmatmul.bf16.gmra.mxu0 %v6270
        %v6310 = vpop.f32.mrf.mxu0
        %v6311 = vadd.f32 %v6150, %v6310
        %v6312 = vpop.f32.mrf.mxu0
        %v6313 = vadd.f32 %v6155, %v6312
        %6314 = vmatmul.bf16.gmra.mxu0 %v6273
        %v6315 = vpop.f32.mrf.mxu0
        %v6316 = vadd.f32 %v6160, %v6315
        %v6317 = vpop.f32.mrf.mxu0
        %v6318 = vadd.f32 %v6165, %v6317
        %6319 = vmatmul.bf16.gmra.mxu0 %v6276
        %v6320 = vpop.f32.mrf.mxu0
        %v6321 = vadd.f32 %v6170, %v6320
        %v6322 = vpop.f32.mrf.mxu0
        %v6323 = vadd.f32 %v6175, %v6322
        %6324 = vmatmul.bf16.gmra.mxu0 %v6279
        %v6325 = vpop.f32.mrf.mxu0
        %v6326 = vadd.f32 %v6180, %v6325
        %v6327 = vpop.f32.mrf.mxu0
        %v6328 = vadd.f32 %v6185, %v6327
        %6329 = vdwg.mxu0
        %6330 = vmatpush.bf16.msra.mxu0 0
        %6331 = vmatpush.bf16.msra.mxu0 0
        %6332 = vmatpush.bf16.msra.mxu0 0
        %6333 = vmatpush.bf16.msra.mxu0 0
        %6334 = vmatpush.bf16.msra.mxu0 0
        %6335 = vmatpush.bf16.msra.mxu0 %v6250
        %6336 = vmatpush.bf16.msra.mxu0 %v6248
        %6337 = vmatpush.bf16.msra.mxu0 %v6246
        %6338 = vmatmul.bf16.gmra.mxu0 %v6258
        %v6339 = vpop.f32.mrf.mxu0
        %v6340 = vadd.f32 %v6110, %v6339
        %v6341 = vpop.f32.mrf.mxu0
        %v6342 = vadd.f32 %v6115, %v6341
        %6343 = vmatmul.bf16.gmra.mxu0 %v6261
        %v6344 = vpop.f32.mrf.mxu0
        %v6345 = vadd.f32 %v6120, %v6344
        %v6346 = vpop.f32.mrf.mxu0
        %v6347 = vadd.f32 %v6125, %v6346
        %6348 = vmatmul.bf16.gmra.mxu0 %v6264
        %v6349 = vpop.f32.mrf.mxu0
        %v6350 = vadd.f32 %v6130, %v6349
        %v6351 = vpop.f32.mrf.mxu0
        %v6352 = vadd.f32 %v6135, %v6351
        %6353 = vmatmul.bf16.gmra.mxu0 %v6267
        %v6354 = vpop.f32.mrf.mxu0
        %v6355 = vadd.f32 %v6140, %v6354
        %v6356 = vpop.f32.mrf.mxu0
        %v6357 = vadd.f32 %v6145, %v6356
        %6358 = vmatmul.bf16.gmra.mxu0 %v6270
        %v6359 = vpop.f32.mrf.mxu0
        %v6360 = vadd.f32 %v6150, %v6359
        %v6361 = vpop.f32.mrf.mxu0
        %v6362 = vadd.f32 %v6155, %v6361
        %6363 = vmatmul.bf16.gmra.mxu0 %v6273
        %v6364 = vpop.f32.mrf.mxu0
        %v6365 = vadd.f32 %v6160, %v6364
        %v6366 = vpop.f32.mrf.mxu0
        %v6367 = vadd.f32 %v6165, %v6366
        %6368 = vmatmul.bf16.gmra.mxu0 %v6276
        %v6369 = vpop.f32.mrf.mxu0
        %v6370 = vadd.f32 %v6170, %v6369
        %v6371 = vpop.f32.mrf.mxu0
        %v6372 = vadd.f32 %v6175, %v6371
        %6373 = vmatmul.bf16.gmra.mxu0 %v6279
        %v6374 = vpop.f32.mrf.mxu0
        %v6375 = vadd.f32 %v6180, %v6374
        %v6376 = vpop.f32.mrf.mxu0
        %v6377 = vadd.f32 %v6185, %v6376
        %6378 = vdwg.mxu0
        %v6379 = vmax.f32 %v6291, 0.0
        %v6380 = vmax.f32 %v6340, 0.0
        %v6381 = vmax.f32 %v6293, 0.0
        %v6382 = vmax.f32 %v6342, 0.0
        %v6383 = vmax.f32 %v6296, 0.0
        %v6384 = vmax.f32 %v6345, 0.0
        %v6385 = vmax.f32 %v6298, 0.0
        %v6386 = vmax.f32 %v6347, 0.0
        %v6387 = vmax.f32 %v6301, 0.0
        %v6388 = vmax.f32 %v6350, 0.0
        %v6389 = vmax.f32 %v6303, 0.0
        %v6390 = vmax.f32 %v6352, 0.0
        %v6391 = vmax.f32 %v6306, 0.0
        %v6392 = vmax.f32 %v6355, 0.0
        %v6393 = vmax.f32 %v6308, 0.0
        %v6394 = vmax.f32 %v6357, 0.0
        %v6395 = vmax.f32 %v6311, 0.0
        %v6396 = vmax.f32 %v6360, 0.0
        %v6397 = vmax.f32 %v6313, 0.0
        %v6398 = vmax.f32 %v6362, 0.0
        %v6399 = vmax.f32 %v6316, 0.0
        %v6400 = vmax.f32 %v6365, 0.0
        %v6401 = vmax.f32 %v6318, 0.0
        %v6402 = vmax.f32 %v6367, 0.0
        %v6403 = vmax.f32 %v6321, 0.0
        %v6404 = vmax.f32 %v6370, 0.0
        %v6405 = vmax.f32 %v6323, 0.0
        %v6406 = vmax.f32 %v6372, 0.0
        %v6407 = vmax.f32 %v6326, 0.0
        %v6408 = vmax.f32 %v6375, 0.0
        %v6409 = vmax.f32 %v6328, 0.0
        %v6410 = vmax.f32 %v6377, 0.0
        %v6411 = vld [vmem:[%s13] sm:$0xf]
        %v6412 = vld [vmem:[%s13 + $0x4] sm:$0xf]
        %v6413 = vpack.c.bf16 %v6381, %v6379
        %v6414 = vpack.c.bf16 %v6382, %v6380
        %v6415 = vpack.c.bf16 %v6385, %v6383
        %v6416 = vpack.c.bf16 %v6386, %v6384
        %v6417 = vpack.c.bf16 %v6389, %v6387
        %v6418 = vpack.c.bf16 %v6390, %v6388
        %v6419 = vpack.c.bf16 %v6393, %v6391
        %v6420 = vpack.c.bf16 %v6394, %v6392
        %v6421 = vpack.c.bf16 %v6397, %v6395
        %v6422 = vpack.c.bf16 %v6398, %v6396
        %v6423 = vpack.c.bf16 %v6401, %v6399
        %v6424 = vpack.c.bf16 %v6402, %v6400
        %v6425 = vpack.c.bf16 %v6405, %v6403
        %v6426 = vpack.c.bf16 %v6406, %v6404
        %v6427 = vpack.c.bf16 %v6409, %v6407
        %v6428 = vpack.c.bf16 %v6410, %v6408
        %v6429 = vld [vmem:[%s14] sm:$0xff]
        %v6430 = vld [vmem:[%s14 + $0x8] sm:$0xff]
        %6432 = vset.pattern.permute.xlu0 0
        %6433 = vperm.xlu0 %6432, %v6429
        %v6434 = vpop.permute.xlu0 %6433
        %6437 = vset.pattern.permute.xlu0 0
        %6438 = vperm.xlu0 %6437, %v6430
        %v6439 = vpop.permute.xlu0 %6438
        %v6443 = vunpack.c.l.b16 %v6411
        %v6444 = vunpack.c.l.b16 %v6412
        %v6445 = vpack.c.b16 %v6444, %v6443
        %6447 = vmatpush.bf16.msra.mxu0 %v6427
        %6448 = vmatpush.bf16.msra.mxu0 %v6425
        %6449 = vmatpush.bf16.msra.mxu0 %v6423
        %6450 = vmatpush.bf16.msra.mxu0 %v6421
        %6451 = vmatpush.bf16.msra.mxu0 %v6419
        %6452 = vmatpush.bf16.msra.mxu0 %v6417
        %6453 = vmatpush.bf16.msra.mxu0 %v6415
        %6454 = vmatpush.bf16.msra.mxu0 %v6413
        %6455 = vmatmul.bf16.gmra.mxu0 %v6445
        %v6456 = vpop.f32.mrf.mxu0
        %v6457 = vadd.f32 %v6434, %v6456
        %v6458 = vpop.f32.mrf.mxu0
        %v6459 = vadd.f32 %v6439, %v6458
        %6460 = vdwg.mxu0
        %6461 = vmatpush.bf16.msra.mxu0 %v6428
        %6462 = vmatpush.bf16.msra.mxu0 %v6426
        %6463 = vmatpush.bf16.msra.mxu0 %v6424
        %6464 = vmatpush.bf16.msra.mxu0 %v6422
        %6465 = vmatpush.bf16.msra.mxu0 %v6420
        %6466 = vmatpush.bf16.msra.mxu0 %v6418
        %6467 = vmatpush.bf16.msra.mxu0 %v6416
        %6468 = vmatpush.bf16.msra.mxu0 %v6414
        %6469 = vmatmul.bf16.gmra.mxu0 %v6445
        %v6470 = vpop.f32.mrf.mxu0
        %v6471 = vadd.f32 %v6434, %v6470
        %v6472 = vpop.f32.mrf.mxu0
        %v6473 = vadd.f32 %v6439, %v6472
        %6474 = vdwg.mxu0
        %s6475 = scalar_lea.vmem %s560, 2
        %v6476 = vld [vmem:[%s6475] sm:$0x3]
        %v6478 = vperm.slane %v6476, 0
        %v6479 = vperm.slane %v6476, 1
        %v6482 = vmul.f32 %v6478, %v6457
        %v6483 = vmul.f32 %v6479, %v6471
        %v6484 = vmul.f32 %v6478, %v6459
        %v6485 = vmul.f32 %v6479, %v6473
        %v6486 = vadd.f32 %v5479, %v6482
        %v6487 = vadd.f32 %v5480, %v6483
        %v6488 = vadd.f32 %v5481, %v6484
        %v6489 = vadd.f32 %v5482, %v6485
        %v6490 = vld [vmem:[%s15] sm:$0xf]
        %v6491 = vld [vmem:[%s15 + $0x4] sm:$0xf]
        %v6492 = vpack.c.bf16 %v6488, %v6486
        %v6493 = vpack.c.bf16 %v6489, %v6487
        %v6494 = vld [vmem:[%s16] sm:$0xff]
        %v6495 = vld [vmem:[%s16 + $0x8] sm:$0xff]
        %6497 = vset.pattern.permute.xlu0 0
        %6498 = vperm.xlu0 %6497, %v6494
        %v6499 = vpop.permute.xlu0 %6498
        %6502 = vset.pattern.permute.xlu0 0
        %6503 = vperm.xlu0 %6502, %v6495
        %v6504 = vpop.permute.xlu0 %6503
        %v6508 = vunpack.c.l.b16 %v6490
        %v6509 = vunpack.c.l.b16 %v6491
        %v6510 = vpack.c.b16 %v6509, %v6508
        %v6512 = vsel %vm4926, %v6510, 0
        %6514 = vmatpush.bf16.msra.mxu0 0
        %6515 = vmatpush.bf16.msra.mxu0 0
        %6516 = vmatpush.bf16.msra.mxu0 0
        %6517 = vmatpush.bf16.msra.mxu0 0
        %6518 = vmatpush.bf16.msra.mxu0 0
        %6519 = vmatpush.bf16.msra.mxu0 0
        %6520 = vmatpush.bf16.msra.mxu0 0
        %6521 = vmatpush.bf16.msra.mxu0 %v6492
        %6522 = vmatmul.bf16.gmra.mxu0 %v6512
        %v6523 = vpop.f32.mrf.mxu0
        %v6524 = vadd.f32 %v6499, %v6523
        %v6525 = vpop.f32.mrf.mxu0
        %v6526 = vadd.f32 %v6504, %v6525
        %6527 = vdwg.mxu0
        %6528 = vmatpush.bf16.msra.mxu0 0
        %6529 = vmatpush.bf16.msra.mxu0 0
        %6530 = vmatpush.bf16.msra.mxu0 0
        %6531 = vmatpush.bf16.msra.mxu0 0
        %6532 = vmatpush.bf16.msra.mxu0 0
        %6533 = vmatpush.bf16.msra.mxu0 0
        %6534 = vmatpush.bf16.msra.mxu0 0
        %6535 = vmatpush.bf16.msra.mxu0 %v6493
        %6536 = vmatmul.bf16.gmra.mxu0 %v6512
        %v6537 = vpop.f32.mrf.mxu0
        %v6538 = vadd.f32 %v6499, %v6537
        %v6539 = vpop.f32.mrf.mxu0
        %v6540 = vadd.f32 %v6504, %v6539
        %6541 = vdwg.mxu0
        %v6542 = vxor.u32 %v6524, 2147483648
        %v6543 = vxor.u32 %v6538, 2147483648
        %v6544 = vxor.u32 %v6526, 2147483648
        %v6545 = vxor.u32 %v6540, 2147483648
        %v6546 = vmul.f32 %v6542, 1.442695
        %v6547 = vpow.pop %v6546
        %v6548 = vmul.f32 %v6543, 1.442695
        %v6549 = vpow.pop %v6548
        %v6550 = vmul.f32 %v6544, 1.442695
        %v6551 = vpow.pop %v6550
        %v6552 = vmul.f32 %v6545, 1.442695
        %v6553 = vpow.pop %v6552
        %v6554 = vadd.f32 %v6547, 1.0
        %v6555 = vadd.f32 %v6549, 1.0
        %v6556 = vadd.f32 %v6551, 1.0
        %v6557 = vadd.f32 %v6553, 1.0
        %v6558 = vrcp.pop %v6554
        %v6559 = vmul.f32 %v6554, %v6558
        %v6560 = vsub.f32 1.0, %v6559
        %v6561 = vmul.f32 %v6558, %v6560
        %v6562 = vadd.f32 %v6558, %v6561
        %vm6563 = vweird.f32 %v6554
        %vm6564 = vweird.f32 %v6558
        %vm6565 = vmor %vm6563, %vm6564
        %v6566 = vsel %vm6565, %v6558, %v6562
        %v6567 = vand.u32 2147483647, %v6554
        %vm6568 = vcmp.eq.f32.partialorder %v6567, 8.507059e+37
        %v6569 = vand.u32 %v6554, 2147483648
        %v6570 = vor.u32 1.1754944e-38, %v6569
        %v6571 = vsel %vm6568, %v6570, %v6566
        %v6572 = vmul.f32 1.0, %v6571
        %v6573 = vrcp.pop %v6555
        %v6574 = vmul.f32 %v6555, %v6573
        %v6575 = vsub.f32 1.0, %v6574
        %v6576 = vmul.f32 %v6573, %v6575
        %v6577 = vadd.f32 %v6573, %v6576
        %vm6578 = vweird.f32 %v6555
        %vm6579 = vweird.f32 %v6573
        %vm6580 = vmor %vm6578, %vm6579
        %v6581 = vsel %vm6580, %v6573, %v6577
        %v6582 = vand.u32 2147483647, %v6555
        %vm6583 = vcmp.eq.f32.partialorder %v6582, 8.507059e+37
        %v6584 = vand.u32 %v6555, 2147483648
        %v6585 = vor.u32 1.1754944e-38, %v6584
        %v6586 = vsel %vm6583, %v6585, %v6581
        %v6587 = vmul.f32 1.0, %v6586
        %v6588 = vrcp.pop %v6556
        %v6589 = vmul.f32 %v6556, %v6588
        %v6590 = vsub.f32 1.0, %v6589
        %v6591 = vmul.f32 %v6588, %v6590
        %v6592 = vadd.f32 %v6588, %v6591
        %vm6593 = vweird.f32 %v6556
        %vm6594 = vweird.f32 %v6588
        %vm6595 = vmor %vm6593, %vm6594
        %v6596 = vsel %vm6595, %v6588, %v6592
        %v6597 = vand.u32 2147483647, %v6556
        %vm6598 = vcmp.eq.f32.partialorder %v6597, 8.507059e+37
        %v6599 = vand.u32 %v6556, 2147483648
        %v6600 = vor.u32 1.1754944e-38, %v6599
        %v6601 = vsel %vm6598, %v6600, %v6596
        %v6602 = vmul.f32 1.0, %v6601
        %v6603 = vrcp.pop %v6557
        %v6604 = vmul.f32 %v6557, %v6603
        %v6605 = vsub.f32 1.0, %v6604
        %v6606 = vmul.f32 %v6603, %v6605
        %v6607 = vadd.f32 %v6603, %v6606
        %vm6608 = vweird.f32 %v6557
        %vm6609 = vweird.f32 %v6603
        %vm6610 = vmor %vm6608, %vm6609
        %v6611 = vsel %vm6610, %v6603, %v6607
        %v6612 = vand.u32 2147483647, %v6557
        %vm6613 = vcmp.eq.f32.partialorder %v6612, 8.507059e+37
        %v6614 = vand.u32 %v6557, 2147483648
        %v6615 = vor.u32 1.1754944e-38, %v6614
        %v6616 = vsel %vm6613, %v6615, %v6611
        %v6617 = vmul.f32 1.0, %v6616
        %6618 = vst [vmem:[%s552] sm:$0xff] %v6572
        %6619 = vst [vmem:[%s552 + $0x8] sm:$0xff] %v6587
        %6620 = vst [vmem:[%s552 + $0x10] sm:$0xff] %v6602
        %6621 = vst [vmem:[%s552 + $0x18] sm:$0xff] %v6617
        %s6622 = sand.u32 %s406, 1
        %s6623 = scalar_lea.sflag [#allocation5], %s6622
        %s6624 = sand.u32 %s406, 1
        %s6625 = smul.addr %s6624, 32
        %s6626 = scalar_lea.vmem [#allocation4], %s6625
        // Predicated region
        $region89: #{tpu_custom_call.1} parent=87 // pred_check
          %p6627 = pneg %p416
        $region90: #{tpu_custom_call.1} parent=87 // pred_check_branch
          %6629 = sbr.rel (%p6627) target = $region92
        $region91: #{tpu_custom_call.1} parent=87 // pred_region
          %6631 = vsyncadd %s6623, 0
          %s6632 = smul.addr %s31, 4
          %s6633 = smul.addr %s6632, 8
          %s6634 = scalar_lea.hbm %s17, %s6633
          %s6635 = sshll.u32 %s6626, 4
          %s6636 = int_to_ptr.vmem [resolvable:$true] %s6635
          %s6637 = sshll.u32 %s6634, 4
          %s6638 = int_to_ptr.hbm [resolvable:$true] %s6637
          %6643 = dma.vmem_to_hbm [thread:$0]  %s6636, 512, %s6638, %s6623, 256, 256, 16
        $region92: #{tpu_custom_call.1} parent=87 // pred_fallthru
          _
      $region88: #{tpu_custom_call.1} parent=5 // pred_fallthru
        _
      %p6644 = scmp.le.s32.totalorder 2, %s26
      // Predicated region
      $region93: #{tpu_custom_call.1} parent=5 // pred_check
        %p6645 = pneg %p6644
      $region94: #{tpu_custom_call.1} parent=5 // pred_check_branch
        %6647 = sbr.rel (%p6645) target = $region96
      $region95: #{tpu_custom_call.1} parent=5 // pred_region
        %s6648 = ssub.s32 %s26, 2
        // Predicated region
        $region97: #{tpu_custom_call.1} parent=95 // pred_check
          %p6649 = pneg %p422
        $region98: #{tpu_custom_call.1} parent=95 // pred_check_branch
          %6651 = sbr.rel (%p6649) target = $region100
        $region99: #{tpu_custom_call.1} parent=95 // pred_region
          %s6652 = sand.u32 %s407, 1
          %s6653 = scalar_lea.sflag [#allocation5], %s6652
          %s6654 = sand.u32 %s407, 1
          %s6655 = smul.addr %s6654, 32
          %s6656 = scalar_lea.vmem [#allocation4], %s6655
          %6658 = dma.done %s6653, 512
        $region100: #{tpu_custom_call.1} parent=95 // pred_fallthru
          _
      $region96: #{tpu_custom_call.1} parent=5 // pred_fallthru
        _
    $region6: #{tpu_custom_call.1} parent=1 // loop_footer
      %s30 = sadd.s32 1, %s26
    $region7: #{tpu_custom_call.1} parent=1 // loop_footer_branch
      %25 = sbr.rel target = $region3
    $region8: #{tpu_custom_call.1} parent=1 // loop_exit
      _
    %6659 = vsyncpa [#allocation5], 1
    %s6660 = scalar_lea.sflag [#allocation5], 1
    %6661 = vsyncpa %s6660, 1

</llo_original>
